<compile_context>
chip_gen: v7x
topology: tpu7x:2x2x1
jax: 0.10.0
libtpu: 0.0.40
codegen_flags: <defaults>
</compile_context>

<pallas_src>
import functools

import jax
import jax.numpy as jnp
from jax.experimental import pallas as pl
from jax.experimental.pallas import tpu as pltpu

EPS = 1e-5
LANE = 128
PAD_W = 8   # sublane column offset of the conv2 halo-scratch interior


# --------------------------------------------------------------------------- helpers
def _round_up(n, m):
    return (n + m - 1) // m * m


def _vmem_capacity_bytes():
    try:
        return int(pltpu.get_tpu_info().vmem_capacity_bytes)
    except Exception:
        return 64 * 1024 * 1024      # conservative default (v7x per-TensorCore VMEM)


def _prefer_direct_taps():
    """v5e's 4x128x128 MXU is already filled at K=C per tap, so im2col only burns its
    single vector-store slot; accumulate 9 matmuls straight from the halo scratch there.
    v6e/v7x keep im2col (K=9*C fills their 256-deep MXU)."""
    try:
        kind = jax.devices()[0].device_kind.lower()
        return ("v5 lite" in kind) or ("v5e" in kind) or ("v5litepod" in kind)
    except Exception:
        return False


def _row_block(rows, bytes_per_row, vmem_budget):
    """Largest multiple-of-8 divisor of `rows` in the ~256..4096 sweet spot that keeps
    the double-buffered working set well under `vmem_budget`, preferring >= 2 blocks
    (v7x megacore)."""
    if rows % 8 != 0:
        # TODO(synk): masked tail tile for row counts that are not a multiple of 8.
        return rows
    tgt = min(4096, max(256, vmem_budget // max(4 * bytes_per_row, 1)))
    tgt = min(tgt, max(256, rows // 2))               # keep >= 2 blocks when possible
    tgt -= tgt % 8
    if tgt >= rows:
        return rows
    t = tgt
    while t >= 8 and rows % t != 0:
        t -= 8
    return t if t >= 8 else rows


def _pick_group(n_imgs, hw_out, per_img_bytes, vmem_budget):
    """Images per stage-2 grid step: smallest divisor of n_imgs giving >= 256 matmul
    rows, preferring >= 2 grid steps (v7x megacore) and <= ~1/3 of the VMEM budget."""
    divisors = [g for g in range(1, n_imgs + 1) if n_imgs % g == 0]
    feasible = [g for g in divisors if g * per_img_bytes <= vmem_budget // 3] or [1]
    good = [g for g in feasible if g * hw_out >= 256]
    good2 = [g for g in good if n_imgs // g >= 2]
    if good2:
        return good2[0]
    if good:
        return good[0]
    two_steps = [g for g in feasible if n_imgs // g >= 2]
    return two_steps[-1] if two_steps else feasible[-1]


def _scale_shift(gamma, beta, mean, var, c_pad):
    """Fold BN (batch stats) into per-channel scale/shift, zero-padded to c_pad lanes."""
    scale = gamma * jax.lax.rsqrt(var + EPS)
    shift = beta - mean * scale
    pad = c_pad - gamma.shape[0]
    return (jnp.pad(scale, (0, pad)).reshape(1, c_pad).astype(jnp.float32),
            jnp.pad(shift, (0, pad)).reshape(1, c_pad).astype(jnp.float32))


def _pad_last(a, c_pad):
    return jnp.pad(a, [(0, 0)] * (a.ndim - 1) + [(0, c_pad - a.shape[-1])])


# --------------------------------------------------------------------------- kernels
def _stage1_kernel(x_ref, s1_ref, t1_ref, w1_ref, h1_ref, sum_ref, sq_ref):
    """h0 = relu(x*scale1+shift1); h1 = h0 @ W1 (stored bf16); per-tile sum/sumsq of the
    bf16-rounded h1 (exactly what stage 2 reads) for bn_2."""
    h0 = jnp.maximum(x_ref[...].astype(jnp.float32) * s1_ref[...] + t1_ref[...], 0.0)
    h1 = jnp.dot(h0.astype(jnp.bfloat16), w1_ref[...],
                 preferred_element_type=jnp.float32)
    h1b = h1.astype(jnp.bfloat16)
    h1_ref[...] = h1b
    h1f = h1b.astype(jnp.float32)
    sum_ref[0] = jnp.sum(h1f, axis=0, keepdims=True)
    sq_ref[0] = jnp.sum(h1f * h1f, axis=0, keepdims=True)


def _stage2_kernel(h1_ref, s2_ref, t2_ref, w2_ref, y2_ref, sum_ref, sq_ref, *scratch,
                   H, W, Hout, Wout, stride, C, G, use_im2col):
    """relu(bn_2(h1)) -> 3x3/stride conv for G images; per-step sum/sumsq for bn_3."""
    if use_im2col:
        pad_ref, col_ref = scratch
    else:
        (pad_ref,) = scratch
    M = Hout * Wout

    # Zero the four constant 1-wide halo strips.  NOTE: re-zeroed every grid step on
    # purpose — with a "parallel" grid axis each v7x TensorCore owns a private scratch
    # and the second core never runs program_id 0, so a once-only init would leave
    # garbage halos on that core.
    zrow = jnp.zeros((1, W + 2, C), jnp.bfloat16)
    pad_ref[0:1, PAD_W - 1:PAD_W + W + 1, :] = zrow
    pad_ref[H + 1:H + 2, PAD_W - 1:PAD_W + W + 1, :] = zrow
    zcol = jnp.zeros((H, 1, C), jnp.bfloat16)
    pad_ref[1:H + 1, PAD_W - 1:PAD_W, :] = zcol
    pad_ref[1:H + 1, PAD_W + W:PAD_W + W + 1, :] = zcol

    part_sum, part_sq = [], []
    for g in range(G):
        # relu(bn_2(h1)) for image g, stored bf16 into the halo-scratch interior.
        h1n = jnp.maximum(h1_ref[g].astype(jnp.float32) * s2_ref[...] + t2_ref[...], 0.0)
        pad_ref[1:H + 1, PAD_W:PAD_W + W, :] = h1n.astype(jnp.bfloat16)

        taps = []
        for t in range(9):
            kh, kw = divmod(t, 3)
            if stride == 1:
                tap = pad_ref[kh:kh + Hout, PAD_W - 1 + kw:PAD_W - 1 + kw + Wout, :]
            else:
                # TODO(synk): stride>1 strided tap reads are implemented but not
                # exercised by the self-test below.
                tap = pad_ref[pl.ds(kh, Hout, stride=stride),
                              pl.ds(PAD_W - 1 + kw, Wout, stride=stride), :]
            tap = tap.reshape(M, C)
            if use_im2col:
                col_ref[g * M:(g + 1) * M, t * C:(t + 1) * C] = tap
            else:
                taps.append(tap)

        if not use_im2col:       # v5e: 9 accumulated matmuls straight from the scratch
            acc = jnp.zeros((M, C), jnp.float32)
            for t in range(9):
                acc = acc + jnp.dot(taps[t], w2_ref[t * C:(t + 1) * C, :],
                                    preferred_element_type=jnp.float32)
            accb = acc.astype(jnp.bfloat16)
            y2_ref[g] = accb.reshape(Hout, Wout, C)
            accf = accb.astype(jnp.float32)
            part_sum.append(jnp.sum(accf, axis=0, keepdims=True))
            part_sq.append(jnp.sum(accf * accf, axis=0, keepdims=True))

    if use_im2col:               # v6e / v7x: ONE K = 9*C matmul over all G images
        y2 = jnp.dot(col_ref[...], w2_ref[...], preferred_element_type=jnp.float32)
        y2b = y2.astype(jnp.bfloat16)
        y2_ref[...] = y2b.reshape(G, Hout, Wout, C)
        y2f = y2b.astype(jnp.float32)
        sum_ref[0] = jnp.sum(y2f, axis=0, keepdims=True)
        sq_ref[0] = jnp.sum(y2f * y2f, axis=0, keepdims=True)
    else:
        sum_ref[0] = functools.reduce(lambda a, b: a + b, part_sum)
        sq_ref[0] = functools.reduce(lambda a, b: a + b, part_sq)


def _stage3_kernel(*refs, proj):
    """relu(bn_3(y2)) -> conv_3 (1x1) fused with the shortcut.
    proj=True : out = [h2 | relu(sc*s1+t1)] @ [W3 ; Wsc]   (single fused MXU matmul)
    proj=False: out = h2 @ W3 + x                          (identity shortcut)"""
    if proj:
        y2_ref, sc_ref, s3_ref, t3_ref, ss_ref, st_ref, w_ref, out_ref = refs
        h2 = jnp.maximum(y2_ref[...].astype(jnp.float32) * s3_ref[...] + t3_ref[...], 0.0)
        sc = jnp.maximum(sc_ref[...].astype(jnp.float32) * ss_ref[...] + st_ref[...], 0.0)
        lhs = jnp.concatenate([h2.astype(jnp.bfloat16), sc.astype(jnp.bfloat16)], axis=1)
        out = jnp.dot(lhs, w_ref[...], preferred_element_type=jnp.float32)
    else:
        y2_ref, sc_ref, s3_ref, t3_ref, w_ref, out_ref = refs
        h2 = jnp.maximum(y2_ref[...].astype(jnp.float32) * s3_ref[...] + t3_ref[...], 0.0)
        out = (jnp.dot(h2.astype(jnp.bfloat16), w_ref[...],
                       preferred_element_type=jnp.float32)
               + sc_ref[...].astype(jnp.float32))
    out_ref[...] = out.astype(out_ref.dtype)


# --------------------------------------------------------------------------- wrapper
def preact_bottleneck_pallas(x_nchw, params, stride):
    """params = (g1, b1, w1_oihw, g2, b2, w2_oihw, g3, b3, w3_oihw, wsc_oihw)."""
    g1, b1, w1, g2, b2, w2, g3, b3, w3, wsc = params
    N, Cin, H, W = x_nchw.shape
    Cmid = w1.shape[0]
    Cout = w3.shape[0]
    has_shortcut = (stride != 1) or (Cin != Cout)
    Hout = (H - 1) // stride + 1
    Wout = (W - 1) // stride + 1
    R, Rout = N * H * W, N * Hout * Wout

    cin_p = _round_up(Cin, LANE)
    cmid_p = _round_up(Cmid, LANE)
    cout_p = _round_up(Cout, LANE)

    vmem_limit = min(_vmem_capacity_bytes() * 3 // 4, 100 * 1024 * 1024)

    def cparams():
        return pltpu.CompilerParams(dimension_semantics=("parallel",),
                                    vmem_limit_bytes=int(vmem_limit))

    # TODO(synk): a full network should keep activations NHWC/bf16 end-to-end; these
    # NCHW<->NHWC transposes only adapt to the PyTorch module's interface.
    x_nhwc = _pad_last(jnp.transpose(x_nchw, (0, 2, 3, 1)), cin_p).astype(jnp.bfloat16)
    x2d = x_nhwc.reshape(R, cin_p)

    # Conv weights as lane-padded bf16 matmul matrices.
    w1_m = jnp.pad(w1[:, :, 0, 0].T,
                   ((0, cin_p - Cin), (0, cmid_p - Cmid))).astype(jnp.bfloat16)
    w2_m = jnp.pad(jnp.transpose(w2, (2, 3, 1, 0)),
                   ((0, 0), (0, 0), (0, cmid_p - Cmid), (0, cmid_p - Cmid))
                   ).reshape(9 * cmid_p, cmid_p).astype(jnp.bfloat16)
    w3_m = jnp.pad(w3[:, :, 0, 0].T,
                   ((0, cmid_p - Cmid), (0, cout_p - Cout))).astype(jnp.bfloat16)

    # ---- bn_1 batch stats: one fused sum / sum-of-squares pass over x ----
    xf = x_nchw.astype(jnp.float32)
    x_sum = jnp.sum(xf, axis=(0, 2, 3))
    x_sq = jnp.sum(xf * xf, axis=(0, 2, 3))
    m1 = x_sum / R
    v1 = jnp.maximum(x_sq / R - m1 * m1, 0.0)
    s1, t1 = _scale_shift(g1, b1, m1, v1, cin_p)

    # ---- stage 1: bn_1 + relu + conv_1 (1x1), tiled over rows of (N*H*W, C) ----
    tr1 = _row_block(R, (cin_p + cmid_p) * 2, vmem_limit)
    nb1 = R // tr1
    h1_2d, h1sum, h1sq = pl.pallas_call(
        _stage1_kernel,
        out_shape=(jax.ShapeDtypeStruct((R, cmid_p), jnp.bfloat16),
                   jax.ShapeDtypeStruct((nb1, 1, cmid_p), jnp.float32),
                   jax.ShapeDtypeStruct((nb1, 1, cmid_p), jnp.float32)),
        grid=(nb1,),
        in_specs=[pl.BlockSpec((tr1, cin_p), lambda i: (i, 0)),
                  pl.BlockSpec((1, cin_p), lambda i: (0, 0)),
                  pl.BlockSpec((1, cin_p), lambda i: (0, 0)),
                  pl.BlockSpec((cin_p, cmid_p), lambda i: (0, 0))],
        out_specs=(pl.BlockSpec((tr1, cmid_p), lambda i: (i, 0)),
                   pl.BlockSpec((1, 1, cmid_p), lambda i: (i, 0, 0)),
                   pl.BlockSpec((1, 1, cmid_p), lambda i: (i, 0, 0))),
        compiler_params=cparams(),
    )(x2d, s1, t1, w1_m)

    # finalize bn_2 (global over all rows, biased variance).
    # TODO(synk): E[x^2]-mean^2 can cancel for large offset activations; clamped >= 0.
    mean2 = jnp.sum(h1sum, axis=(0, 1)) / R
    var2 = jnp.maximum(jnp.sum(h1sq, axis=(0, 1)) / R - mean2 * mean2, 0.0)
    s2, t2 = _scale_shift(g2, b2, mean2[:Cmid], var2[:Cmid], cmid_p)

    # ---- stage 2: bn_2 + relu + conv_2 (3x3, stride), G images per grid step ----
    h1_4d = h1_2d.reshape(N, H, W, cmid_p)
    use_im2col = not _prefer_direct_taps()
    per_img = (2 * (H * W * cmid_p * 2) + 2 * (Hout * Wout * cmid_p * 2)
               + (Hout * Wout * 9 * cmid_p * 2 if use_im2col else 0))
    G = _pick_group(N, Hout * Wout, per_img, vmem_limit)
    nb2 = N // G

    scratch2 = [pltpu.VMEM((H + 2, W + 2 * PAD_W, cmid_p), jnp.bfloat16)]
    if use_im2col:
        scratch2.append(pltpu.VMEM((G * Hout * Wout, 9 * cmid_p), jnp.bfloat16))

    stage2 = functools.partial(_stage2_kernel, H=H, W=W, Hout=Hout, Wout=Wout,
                               stride=stride, C=cmid_p, G=G, use_im2col=use_im2col)
    y2, y2sum, y2sq = pl.pallas_call(
        stage2,
        out_shape=(jax.ShapeDtypeStruct((N, Hout, Wout, cmid_p), jnp.bfloat16),
                   jax.ShapeDtypeStruct((nb2, 1, cmid_p), jnp.float32),
                   jax.ShapeDtypeStruct((nb2, 1, cmid_p), jnp.float32)),
        grid=(nb2,),
        in_specs=[pl.BlockSpec((G, H, W, cmid_p), lambda n: (n, 0, 0, 0)),
                  pl.BlockSpec((1, cmid_p), lambda n: (0, 0)),
                  pl.BlockSpec((1, cmid_p), lambda n: (0, 0)),
                  pl.BlockSpec((9 * cmid_p, cmid_p), lambda n: (0, 0))],
        out_specs=(pl.BlockSpec((G, Hout, Wout, cmid_p), lambda n: (n, 0, 0, 0)),
                   pl.BlockSpec((1, 1, cmid_p), lambda n: (n, 0, 0)),
                   pl.BlockSpec((1, 1, cmid_p), lambda n: (n, 0, 0))),
        scratch_shapes=scratch2,
        compiler_params=cparams(),
    )(h1_4d, s2, t2, w2_m)

    # finalize bn_3
    mean3 = jnp.sum(y2sum, axis=(0, 1)) / Rout
    var3 = jnp.maximum(jnp.sum(y2sq, axis=(0, 1)) / Rout - mean3 * mean3, 0.0)
    s3, t3 = _scale_shift(g3, b3, mean3[:Cmid], var3[:Cmid], cmid_p)

    # ---- stage 3: bn_3 + relu + conv_3 fused with shortcut, tiled over output rows ----
    y2_2d = y2.reshape(Rout, cmid_p)
    if has_shortcut:
        wsc_m = jnp.pad(wsc[:, :, 0, 0].T,
                        ((0, cin_p - Cin), (0, cout_p - Cout))).astype(jnp.bfloat16)
        w_last = jnp.concatenate([w3_m, wsc_m], axis=0)        # (cmid_p + cin_p, cout_p)
        # Shortcut = conv_sc(relu(bn_1(x)))[::stride]: bn_1 and the 1x1 conv are
        # pointwise, so stride x in the wrapper and recompute relu(bn_1) in-kernel.
        sc_nhwc = x_nhwc if stride == 1 else x_nhwc[:, ::stride, ::stride, :]
        sc2d = sc_nhwc.reshape(Rout, cin_p)
        s3_in = [y2_2d, sc2d, s3, t3, s1, t1, w_last]
        extra_specs = [pl.BlockSpec((1, cin_p), lambda i: (0, 0)),
                       pl.BlockSpec((1, cin_p), lambda i: (0, 0))]
    else:
        w_last = w3_m
        sc2d = x2d                       # identity shortcut (Cin == Cout, stride 1)
        s3_in = [y2_2d, sc2d, s3, t3, w_last]
        extra_specs = []

    tr3 = _row_block(Rout, (cmid_p + cin_p) * 2 + cout_p * 4, vmem_limit)
    nb3 = Rout // tr3
    s3_in_specs = ([pl.BlockSpec((tr3, cmid_p), lambda i: (i, 0)),
                    pl.BlockSpec((tr3, cin_p), lambda i: (i, 0)),
                    pl.BlockSpec((1, cmid_p), lambda i: (0, 0)),
                    pl.BlockSpec((1, cmid_p), lambda i: (0, 0))]
                   + extra_specs
                   + [pl.BlockSpec(w_last.shape, lambda i: (0, 0))])
    out2d = pl.pallas_call(
        functools.partial(_stage3_kernel, proj=has_shortcut),
        out_shape=jax.ShapeDtypeStruct((Rout, cout_p), jnp.float32),
        grid=(nb3,),
        in_specs=s3_in_specs,
        out_specs=pl.BlockSpec((tr3, cout_p), lambda i: (i, 0)),
        compiler_params=cparams(),
    )(*s3_in)

    out = out2d.reshape(N, Hout, Wout, cout_p)[:, :, :, :Cout]
    return jnp.transpose(out, (0, 3, 1, 2)).astype(x_nchw.dtype)


# --------------------------------------------------------------------------- reference
def preact_bottleneck_reference(x, params, stride):
    """Pure-JAX f32 NCHW reference matching the PyTorch module's forward."""
    g1, b1, w1, g2, b2, w2, g3, b3, w3, wsc = params
    has_shortcut = (stride != 1) or (x.shape[1] != w3.shape[0])

    def bn(x, g, b):
        m = jnp.mean(x, axis=(0, 2, 3), keepdims=True)
        v = jnp.mean((x - m) ** 2, axis=(0, 2, 3), keepdims=True)
        return (x - m) / jnp.sqrt(v + EPS) * g.reshape(1, -1, 1, 1) + b.reshape(1, -1, 1, 1)

    def conv(x, w, s=1, p=0):
        return jax.lax.conv_general_dilated(
            x, w, (s, s), [(p, p), (p, p)],
            dimension_numbers=("NCHW", "OIHW", "NCHW"))

    out = jax.nn.relu(bn(x, g1, b1))
    sc = conv(out, wsc, s=stride) if has_shortcut else x
    out = conv(out, w1)
    out = jax.nn.relu(bn(out, g2, b2))
    out = conv(out, w2, s=stride, p=1)
    out = jax.nn.relu(bn(out, g3, b3))
    out = conv(out, w3)
    return out + sc


if __name__ == "__main__":
    # Module config (small, consistent with PreActivationBottleneckBlock).
    in_slices, slices, stride = 4, 4, 1
    expansion = 4
    cout = expansion * slices
    N, H, W = 2, 16, 16

    key = jax.random.PRNGKey(0)
    ks = jax.random.split(key, 12)

    w1 = 0.1 * jax.random.normal(ks[0], (slices, in_slices, 1, 1), jnp.float32)
    w2 = 0.1 * jax.random.normal(ks[1], (slices, slices, 3, 3), jnp.float32)
    w3 = 0.1 * jax.random.normal(ks[2], (cout, slices, 1, 1), jnp.float32)
    wsc = 0.1 * jax.random.normal(ks[3], (cout, in_slices, 1, 1), jnp.float32)
    g1 = 1.0 + 0.1 * jax.random.normal(ks[4], (in_slices,), jnp.float32)
    b1 = 0.1 * jax.random.normal(ks[5], (in_slices,), jnp.float32)
    g2 = 1.0 + 0.1 * jax.random.normal(ks[6], (slices,), jnp.float32)
    b2 = 0.1 * jax.random.normal(ks[7], (slices,), jnp.float32)
    g3 = 1.0 + 0.1 * jax.random.normal(ks[8], (slices,), jnp.float32)
    b3 = 0.1 * jax.random.normal(ks[9], (slices,), jnp.float32)
    params = (g1, b1, w1, g2, b2, w2, g3, b3, w3, wsc)

    x = jax.random.normal(ks[10], (N, in_slices, H, W), jnp.float32)   # NCHW input

    fwd = jax.jit(preact_bottleneck_pallas, static_argnums=(2,))
    out = jax.block_until_ready(fwd(x, params, stride))
    ref = jax.block_until_ready(preact_bottleneck_reference(x, params, stride))

    assert out.shape == (N, cout, H, W), out.shape
    # Kernel uses bf16 MXU operands and bf16 inter-stage intermediates (f32 accumulation
    # and f32 BN math); reference is pure f32, so not bit-exact.
    err = float(jnp.max(jnp.abs(out - ref)))
    assert err < 5e-2, err

    print("KERNEL_OK")
</pallas_src>

<mosaic_0001>
module attributes {stable_mosaic.version = 11 : i64} {
  func.func @_stage1_kernel(%arg0: i32, %arg1: memref<256x128xbf16, #tpu.memory_space<vmem>>, %arg2: memref<1x128xf32, #tpu.memory_space<vmem>>, %arg3: memref<1x128xf32, #tpu.memory_space<vmem>>, %arg4: memref<128x128xbf16, #tpu.memory_space<vmem>>, %arg5: memref<256x128xbf16, #tpu.memory_space<vmem>>, %arg6: memref<1x1x128xf32, #tpu.memory_space<vmem>>, %arg7: memref<1x1x128xf32, #tpu.memory_space<vmem>>) attributes {dimension_semantics = [#tpu.dimension_semantics<parallel>], iteration_bounds = array<i64: 2>, scalar_prefetch = 0 : i64, scratch_operands = 0 : i64, tpu.core_type = #tpu.core_type<tc>, window_params = [{transform_indices = @transform_0, window_bounds = array<i64: 256, 128>}, {pipeline_mode = #tpu.pipeline_mode<synchronous>, transform_indices = @transform_1, window_bounds = array<i64: 1, 128>}, {pipeline_mode = #tpu.pipeline_mode<synchronous>, transform_indices = @transform_2, window_bounds = array<i64: 1, 128>}, {pipeline_mode = #tpu.pipeline_mode<synchronous>, transform_indices = @transform_3, window_bounds = array<i64: 128, 128>}, {transform_indices = @transform_4, window_bounds = array<i64: 256, 128>}, {transform_indices = @transform_5, window_bounds = array<i64: 1, 1, 128>}, {transform_indices = @transform_6, window_bounds = array<i64: 1, 1, 128>}]} {
    %c0 = arith.constant 0 : index
    %c0_0 = arith.constant 0 : index
    %0 = vector.load %arg1[%c0, %c0_0] : memref<256x128xbf16, #tpu.memory_space<vmem>>, vector<256x128xbf16>
    %1 = arith.extf %0 : vector<256x128xbf16> to vector<256x128xf32>
    %c0_1 = arith.constant 0 : index
    %c0_2 = arith.constant 0 : index
    %2 = vector.load %arg2[%c0_1, %c0_2] : memref<1x128xf32, #tpu.memory_space<vmem>>, vector<1x128xf32>
    %3 = vector.broadcast %2 : vector<1x128xf32> to vector<256x128xf32>
    %4 = arith.mulf %1, %3 : vector<256x128xf32>
    %c0_3 = arith.constant 0 : index
    %c0_4 = arith.constant 0 : index
    %5 = vector.load %arg3[%c0_3, %c0_4] : memref<1x128xf32, #tpu.memory_space<vmem>>, vector<1x128xf32>
    %6 = vector.broadcast %5 : vector<1x128xf32> to vector<256x128xf32>
    %7 = arith.addf %4, %6 : vector<256x128xf32>
    %cst = arith.constant 0.000000e+00 : f32
    %8 = vector.broadcast %cst : f32 to vector<256x128xf32>
    %9 = arith.maximumf %7, %8 : vector<256x128xf32>
    %10 = arith.truncf %9 : vector<256x128xf32> to vector<256x128xbf16>
    %c0_5 = arith.constant 0 : index
    %c0_6 = arith.constant 0 : index
    %11 = vector.load %arg4[%c0_5, %c0_6] : memref<128x128xbf16, #tpu.memory_space<vmem>>, vector<128x128xbf16>
    %cst_7 = arith.constant dense<0.000000e+00> : vector<256x128xf32>
    %12 = tpu.matmul %10, %11, %cst_7 {dimension_numbers = #tpu.dot_dimension_numbers<[1], [0], [0], [1], [0, 0, 1, 1], [], []>} : vector<256x128xbf16>, vector<128x128xbf16>, vector<256x128xf32> -> vector<256x128xf32>
    %13 = arith.truncf %12 : vector<256x128xf32> to vector<256x128xbf16>
    %c0_8 = arith.constant 0 : index
    %c0_9 = arith.constant 0 : index
    %14 = vector.load %arg5[%c0_8, %c0_9] : memref<256x128xbf16, #tpu.memory_space<vmem>>, vector<256x128xbf16>
    tpu.vector_store %arg5[%c0_8, %c0_9], %13 {strides = array<i32>} : memref<256x128xbf16, #tpu.memory_space<vmem>>, vector<256x128xbf16>,
    %15 = arith.extf %13 : vector<256x128xbf16> to vector<256x128xf32>
    %cst_10 = arith.constant dense<0.000000e+00> : vector<128xf32>
    %16 = vector.multi_reduction <add>, %15, %cst_10 [0] : vector<256x128xf32> to vector<128xf32>
    %17 = vector.shape_cast %16 : vector<128xf32> to vector<1x128xf32>
    %c0_11 = arith.constant 0 : index
    %c0_12 = arith.constant 0 : index
    %c0_13 = arith.constant 0 : index
    %18 = vector.load %arg6[%c0_11, %c0_12, %c0_13] : memref<1x1x128xf32, #tpu.memory_space<vmem>>, vector<1x1x128xf32>
    %19 = vector.shape_cast %18 : vector<1x1x128xf32> to vector<1x128xf32>
    %20 = vector.shape_cast %17 : vector<1x128xf32> to vector<1x1x128xf32>
    tpu.vector_store %arg6[%c0_11, %c0_12, %c0_13], %20 {strides = array<i32>} : memref<1x1x128xf32, #tpu.memory_space<vmem>>, vector<1x1x128xf32>,
    %21 = arith.mulf %15, %15 : vector<256x128xf32>
    %cst_14 = arith.constant dense<0.000000e+00> : vector<128xf32>
    %22 = vector.multi_reduction <add>, %21, %cst_14 [0] : vector<256x128xf32> to vector<128xf32>
    %23 = vector.shape_cast %22 : vector<128xf32> to vector<1x128xf32>
    %c0_15 = arith.constant 0 : index
    %c0_16 = arith.constant 0 : index
    %c0_17 = arith.constant 0 : index
    %24 = vector.load %arg7[%c0_15, %c0_16, %c0_17] : memref<1x1x128xf32, #tpu.memory_space<vmem>>, vector<1x1x128xf32>
    %25 = vector.shape_cast %24 : vector<1x1x128xf32> to vector<1x128xf32>
    %26 = vector.shape_cast %23 : vector<1x128xf32> to vector<1x1x128xf32>
    tpu.vector_store %arg7[%c0_15, %c0_16, %c0_17], %26 {strides = array<i32>} : memref<1x1x128xf32, #tpu.memory_space<vmem>>, vector<1x1x128xf32>,
    return
  }
  func.func @transform_0(%arg0: i32) -> (i32, i32) {
    %c0_i32 = arith.constant 0 : i32
    %c0_i32_0 = arith.constant 0 : i32
    return %arg0, %c0_i32 : i32, i32
  }
  func.func @transform_1(%arg0: i32) -> (i32, i32) {
    %c0_i32 = arith.constant 0 : i32
    %c0_i32_0 = arith.constant 0 : i32
    %c0_i32_1 = arith.constant 0 : i32
    return %c0_i32, %c0_i32_0 : i32, i32
  }
  func.func @transform_2(%arg0: i32) -> (i32, i32) {
    %c0_i32 = arith.constant 0 : i32
    %c0_i32_0 = arith.constant 0 : i32
    %c0_i32_1 = arith.constant 0 : i32
    return %c0_i32, %c0_i32_0 : i32, i32
  }
  func.func @transform_3(%arg0: i32) -> (i32, i32) {
    %c0_i32 = arith.constant 0 : i32
    %c0_i32_0 = arith.constant 0 : i32
    %c0_i32_1 = arith.constant 0 : i32
    return %c0_i32, %c0_i32_0 : i32, i32
  }
  func.func @transform_4(%arg0: i32) -> (i32, i32) {
    %c0_i32 = arith.constant 0 : i32
    %c0_i32_0 = arith.constant 0 : i32
    return %arg0, %c0_i32 : i32, i32
  }
  func.func @transform_5(%arg0: i32) -> (i32, i32, i32) {
    %c0_i32 = arith.constant 0 : i32
    %c0_i32_0 = arith.constant 0 : i32
    %c0_i32_1 = arith.constant 0 : i32
    return %arg0, %c0_i32, %c0_i32_0 : i32, i32, i32
  }
  func.func @transform_6(%arg0: i32) -> (i32, i32, i32) {
    %c0_i32 = arith.constant 0 : i32
    %c0_i32_0 = arith.constant 0 : i32
    %c0_i32_1 = arith.constant 0 : i32
    return %arg0, %c0_i32, %c0_i32_0 : i32, i32, i32
  }
}

module attributes {stable_mosaic.version = 11 : i64} {
  func.func @_stage2_kernel(%arg0: i32, %arg1: memref<1x16x16x128xbf16, #tpu.memory_space<vmem>>, %arg2: memref<1x128xf32, #tpu.memory_space<vmem>>, %arg3: memref<1x128xf32, #tpu.memory_space<vmem>>, %arg4: memref<1152x128xbf16, #tpu.memory_space<vmem>>, %arg5: memref<1x16x16x128xbf16, #tpu.memory_space<vmem>>, %arg6: memref<1x1x128xf32, #tpu.memory_space<vmem>>, %arg7: memref<1x1x128xf32, #tpu.memory_space<vmem>>, %arg8: memref<18x32x128xbf16, #tpu.memory_space<vmem>>, %arg9: memref<256x1152xbf16, #tpu.memory_space<vmem>>) attributes {dimension_semantics = [#tpu.dimension_semantics<parallel>], iteration_bounds = array<i64: 2>, scalar_prefetch = 0 : i64, scratch_operands = 2 : i64, tpu.core_type = #tpu.core_type<tc>, window_params = [{transform_indices = @transform_0, window_bounds = array<i64: 1, 16, 16, 128>}, {pipeline_mode = #tpu.pipeline_mode<synchronous>, transform_indices = @transform_1, window_bounds = array<i64: 1, 128>}, {pipeline_mode = #tpu.pipeline_mode<synchronous>, transform_indices = @transform_2, window_bounds = array<i64: 1, 128>}, {pipeline_mode = #tpu.pipeline_mode<synchronous>, transform_indices = @transform_3, window_bounds = array<i64: 1152, 128>}, {transform_indices = @transform_4, window_bounds = array<i64: 1, 16, 16, 128>}, {transform_indices = @transform_5, window_bounds = array<i64: 1, 1, 128>}, {transform_indices = @transform_6, window_bounds = array<i64: 1, 1, 128>}]} {
    %cst = arith.constant 0.000000e+00 : bf16
    %0 = vector.broadcast %cst : bf16 to vector<1x18x128xbf16>
    %c0 = arith.constant 0 : index
    %c7 = arith.constant 7 : index
    %c0_0 = arith.constant 0 : index
    %1 = vector.load %arg8[%c0, %c7, %c0_0] : memref<18x32x128xbf16, #tpu.memory_space<vmem>>, vector<1x18x128xbf16>
    tpu.vector_store %arg8[%c0, %c7, %c0_0], %0 {strides = array<i32>} : memref<18x32x128xbf16, #tpu.memory_space<vmem>>, vector<1x18x128xbf16>,
    %c17 = arith.constant 17 : index
    %c7_1 = arith.constant 7 : index
    %c0_2 = arith.constant 0 : index
    %2 = vector.load %arg8[%c17, %c7_1, %c0_2] : memref<18x32x128xbf16, #tpu.memory_space<vmem>>, vector<1x18x128xbf16>
    tpu.vector_store %arg8[%c17, %c7_1, %c0_2], %0 {strides = array<i32>} : memref<18x32x128xbf16, #tpu.memory_space<vmem>>, vector<1x18x128xbf16>,
    %cst_3 = arith.constant 0.000000e+00 : bf16
    %3 = vector.broadcast %cst_3 : bf16 to vector<16x1x128xbf16>
    %c1 = arith.constant 1 : index
    %c7_4 = arith.constant 7 : index
    %c0_5 = arith.constant 0 : index
    %4 = vector.load %arg8[%c1, %c7_4, %c0_5] : memref<18x32x128xbf16, #tpu.memory_space<vmem>>, vector<16x1x128xbf16>
    tpu.vector_store %arg8[%c1, %c7_4, %c0_5], %3 {strides = array<i32>} : memref<18x32x128xbf16, #tpu.memory_space<vmem>>, vector<16x1x128xbf16>,
    %c1_6 = arith.constant 1 : index
    %c24 = arith.constant 24 : index
    %c0_7 = arith.constant 0 : index
    %5 = vector.load %arg8[%c1_6, %c24, %c0_7] : memref<18x32x128xbf16, #tpu.memory_space<vmem>>, vector<16x1x128xbf16>
    tpu.vector_store %arg8[%c1_6, %c24, %c0_7], %3 {strides = array<i32>} : memref<18x32x128xbf16, #tpu.memory_space<vmem>>, vector<16x1x128xbf16>,
    %c0_8 = arith.constant 0 : index
    %c0_9 = arith.constant 0 : index
    %c0_10 = arith.constant 0 : index
    %c0_11 = arith.constant 0 : index
    %6 = vector.load %arg1[%c0_8, %c0_9, %c0_10, %c0_11] : memref<1x16x16x128xbf16, #tpu.memory_space<vmem>>, vector<1x16x16x128xbf16>
    %7 = vector.shape_cast %6 : vector<1x16x16x128xbf16> to vector<16x16x128xbf16>
    %8 = arith.extf %7 : vector<16x16x128xbf16> to vector<16x16x128xf32>
    %c0_12 = arith.constant 0 : index
    %c0_13 = arith.constant 0 : index
    %9 = vector.load %arg2[%c0_12, %c0_13] : memref<1x128xf32, #tpu.memory_space<vmem>>, vector<1x128xf32>
    %10 = vector.shape_cast %9 : vector<1x128xf32> to vector<1x1x128xf32>
    %11 = vector.broadcast %10 : vector<1x1x128xf32> to vector<16x16x128xf32>
    %12 = arith.mulf %8, %11 : vector<16x16x128xf32>
    %c0_14 = arith.constant 0 : index
    %c0_15 = arith.constant 0 : index
    %13 = vector.load %arg3[%c0_14, %c0_15] : memref<1x128xf32, #tpu.memory_space<vmem>>, vector<1x128xf32>
    %14 = vector.shape_cast %13 : vector<1x128xf32> to vector<1x1x128xf32>
    %15 = vector.broadcast %14 : vector<1x1x128xf32> to vector<16x16x128xf32>
    %16 = arith.addf %12, %15 : vector<16x16x128xf32>
    %cst_16 = arith.constant 0.000000e+00 : f32
    %17 = vector.broadcast %cst_16 : f32 to vector<16x16x128xf32>
    %18 = arith.maximumf %16, %17 : vector<16x16x128xf32>
    %19 = arith.truncf %18 : vector<16x16x128xf32> to vector<16x16x128xbf16>
    %c1_17 = arith.constant 1 : index
    %c8 = arith.constant 8 : index
    %c0_18 = arith.constant 0 : index
    %20 = vector.load %arg8[%c1_17, %c8, %c0_18] : memref<18x32x128xbf16, #tpu.memory_space<vmem>>, vector<16x16x128xbf16>
    tpu.vector_store %arg8[%c1_17, %c8, %c0_18], %19 {strides = array<i32>} : memref<18x32x128xbf16, #tpu.memory_space<vmem>>, vector<16x16x128xbf16>,
    %c0_19 = arith.constant 0 : index
    %c7_20 = arith.constant 7 : index
    %c0_21 = arith.constant 0 : index
    %21 = vector.load %arg8[%c0_19, %c7_20, %c0_21] : memref<18x32x128xbf16, #tpu.memory_space<vmem>>, vector<16x16x128xbf16>
    %22 = vector.shape_cast %21 : vector<16x16x128xbf16> to vector<256x128xbf16>
    %c0_22 = arith.constant 0 : index
    %c0_23 = arith.constant 0 : index
    %23 = vector.load %arg9[%c0_22, %c0_23] : memref<256x1152xbf16, #tpu.memory_space<vmem>>, vector<256x128xbf16>
    tpu.vector_store %arg9[%c0_22, %c0_23], %22 {strides = array<i32>} : memref<256x1152xbf16, #tpu.memory_space<vmem>>, vector<256x128xbf16>,
    %c0_24 = arith.constant 0 : index
    %c8_25 = arith.constant 8 : index
    %c0_26 = arith.constant 0 : index
    %24 = vector.load %arg8[%c0_24, %c8_25, %c0_26] : memref<18x32x128xbf16, #tpu.memory_space<vmem>>, vector<16x16x128xbf16>
    %25 = vector.shape_cast %24 : vector<16x16x128xbf16> to vector<256x128xbf16>
    %c0_27 = arith.constant 0 : index
    %c128 = arith.constant 128 : index
    %26 = vector.load %arg9[%c0_27, %c128] : memref<256x1152xbf16, #tpu.memory_space<vmem>>, vector<256x128xbf16>
    tpu.vector_store %arg9[%c0_27, %c128], %25 {strides = array<i32>} : memref<256x1152xbf16, #tpu.memory_space<vmem>>, vector<256x128xbf16>,
    %c0_28 = arith.constant 0 : index
    %c9 = arith.constant 9 : index
    %c0_29 = arith.constant 0 : index
    %27 = vector.load %arg8[%c0_28, %c9, %c0_29] : memref<18x32x128xbf16, #tpu.memory_space<vmem>>, vector<16x16x128xbf16>
    %28 = vector.shape_cast %27 : vector<16x16x128xbf16> to vector<256x128xbf16>
    %c0_30 = arith.constant 0 : index
    %c256 = arith.constant 256 : index
    %29 = vector.load %arg9[%c0_30, %c256] : memref<256x1152xbf16, #tpu.memory_space<vmem>>, vector<256x128xbf16>
    tpu.vector_store %arg9[%c0_30, %c256], %28 {strides = array<i32>} : memref<256x1152xbf16, #tpu.memory_space<vmem>>, vector<256x128xbf16>,
    %c1_31 = arith.constant 1 : index
    %c7_32 = arith.constant 7 : index
    %c0_33 = arith.constant 0 : index
    %30 = vector.load %arg8[%c1_31, %c7_32, %c0_33] : memref<18x32x128xbf16, #tpu.memory_space<vmem>>, vector<16x16x128xbf16>
    %31 = vector.shape_cast %30 : vector<16x16x128xbf16> to vector<256x128xbf16>
    %c0_34 = arith.constant 0 : index
    %c384 = arith.constant 384 : index
    %32 = vector.load %arg9[%c0_34, %c384] : memref<256x1152xbf16, #tpu.memory_space<vmem>>, vector<256x128xbf16>
    tpu.vector_store %arg9[%c0_34, %c384], %31 {strides = array<i32>} : memref<256x1152xbf16, #tpu.memory_space<vmem>>, vector<256x128xbf16>,
    %c1_35 = arith.constant 1 : index
    %c8_36 = arith.constant 8 : index
    %c0_37 = arith.constant 0 : index
    %33 = vector.load %arg8[%c1_35, %c8_36, %c0_37] : memref<18x32x128xbf16, #tpu.memory_space<vmem>>, vector<16x16x128xbf16>
    %34 = vector.shape_cast %33 : vector<16x16x128xbf16> to vector<256x128xbf16>
    %c0_38 = arith.constant 0 : index
    %c512 = arith.constant 512 : index
    %35 = vector.load %arg9[%c0_38, %c512] : memref<256x1152xbf16, #tpu.memory_space<vmem>>, vector<256x128xbf16>
    tpu.vector_store %arg9[%c0_38, %c512], %34 {strides = array<i32>} : memref<256x1152xbf16, #tpu.memory_space<vmem>>, vector<256x128xbf16>,
    %c1_39 = arith.constant 1 : index
    %c9_40 = arith.constant 9 : index
    %c0_41 = arith.constant 0 : index
    %36 = vector.load %arg8[%c1_39, %c9_40, %c0_41] : memref<18x32x128xbf16, #tpu.memory_space<vmem>>, vector<16x16x128xbf16>
    %37 = vector.shape_cast %36 : vector<16x16x128xbf16> to vector<256x128xbf16>
    %c0_42 = arith.constant 0 : index
    %c640 = arith.constant 640 : index
    %38 = vector.load %arg9[%c0_42, %c640] : memref<256x1152xbf16, #tpu.memory_space<vmem>>, vector<256x128xbf16>
    tpu.vector_store %arg9[%c0_42, %c640], %37 {strides = array<i32>} : memref<256x1152xbf16, #tpu.memory_space<vmem>>, vector<256x128xbf16>,
    %c2 = arith.constant 2 : index
    %c7_43 = arith.constant 7 : index
    %c0_44 = arith.constant 0 : index
    %39 = vector.load %arg8[%c2, %c7_43, %c0_44] : memref<18x32x128xbf16, #tpu.memory_space<vmem>>, vector<16x16x128xbf16>
    %40 = vector.shape_cast %39 : vector<16x16x128xbf16> to vector<256x128xbf16>
    %c0_45 = arith.constant 0 : index
    %c768 = arith.constant 768 : index
    %41 = vector.load %arg9[%c0_45, %c768] : memref<256x1152xbf16, #tpu.memory_space<vmem>>, vector<256x128xbf16>
    tpu.vector_store %arg9[%c0_45, %c768], %40 {strides = array<i32>} : memref<256x1152xbf16, #tpu.memory_space<vmem>>, vector<256x128xbf16>,
    %c2_46 = arith.constant 2 : index
    %c8_47 = arith.constant 8 : index
    %c0_48 = arith.constant 0 : index
    %42 = vector.load %arg8[%c2_46, %c8_47, %c0_48] : memref<18x32x128xbf16, #tpu.memory_space<vmem>>, vector<16x16x128xbf16>
    %43 = vector.shape_cast %42 : vector<16x16x128xbf16> to vector<256x128xbf16>
    %c0_49 = arith.constant 0 : index
    %c896 = arith.constant 896 : index
    %44 = vector.load %arg9[%c0_49, %c896] : memref<256x1152xbf16, #tpu.memory_space<vmem>>, vector<256x128xbf16>
    tpu.vector_store %arg9[%c0_49, %c896], %43 {strides = array<i32>} : memref<256x1152xbf16, #tpu.memory_space<vmem>>, vector<256x128xbf16>,
    %c2_50 = arith.constant 2 : index
    %c9_51 = arith.constant 9 : index
    %c0_52 = arith.constant 0 : index
    %45 = vector.load %arg8[%c2_50, %c9_51, %c0_52] : memref<18x32x128xbf16, #tpu.memory_space<vmem>>, vector<16x16x128xbf16>
    %46 = vector.shape_cast %45 : vector<16x16x128xbf16> to vector<256x128xbf16>
    %c0_53 = arith.constant 0 : index
    %c1024 = arith.constant 1024 : index
    %47 = vector.load %arg9[%c0_53, %c1024] : memref<256x1152xbf16, #tpu.memory_space<vmem>>, vector<256x128xbf16>
    tpu.vector_store %arg9[%c0_53, %c1024], %46 {strides = array<i32>} : memref<256x1152xbf16, #tpu.memory_space<vmem>>, vector<256x128xbf16>,
    %c0_54 = arith.constant 0 : index
    %c0_55 = arith.constant 0 : index
    %48 = vector.load %arg9[%c0_54, %c0_55] : memref<256x1152xbf16, #tpu.memory_space<vmem>>, vector<256x1152xbf16>
    %c0_56 = arith.constant 0 : index
    %c0_57 = arith.constant 0 : index
    %49 = vector.load %arg4[%c0_56, %c0_57] : memref<1152x128xbf16, #tpu.memory_space<vmem>>, vector<1152x128xbf16>
    %cst_58 = arith.constant dense<0.000000e+00> : vector<256x128xf32>
    %50 = tpu.matmul %48, %49, %cst_58 {dimension_numbers = #tpu.dot_dimension_numbers<[1], [0], [0], [1], [0, 0, 1, 1], [], []>} : vector<256x1152xbf16>, vector<1152x128xbf16>, vector<256x128xf32> -> vector<256x128xf32>
    %51 = arith.truncf %50 : vector<256x128xf32> to vector<256x128xbf16>
    %52 = vector.shape_cast %51 : vector<256x128xbf16> to vector<1x16x16x128xbf16>
    %c0_59 = arith.constant 0 : index
    %c0_60 = arith.constant 0 : index
    %c0_61 = arith.constant 0 : index
    %c0_62 = arith.constant 0 : index
    %53 = vector.load %arg5[%c0_59, %c0_60, %c0_61, %c0_62] : memref<1x16x16x128xbf16, #tpu.memory_space<vmem>>, vector<1x16x16x128xbf16>
    tpu.vector_store %arg5[%c0_59, %c0_60, %c0_61, %c0_62], %52 {strides = array<i32>} : memref<1x16x16x128xbf16, #tpu.memory_space<vmem>>, vector<1x16x16x128xbf16>,
    %54 = arith.extf %51 : vector<256x128xbf16> to vector<256x128xf32>
    %cst_63 = arith.constant dense<0.000000e+00> : vector<128xf32>
    %55 = vector.multi_reduction <add>, %54, %cst_63 [0] : vector<256x128xf32> to vector<128xf32>
    %56 = vector.shape_cast %55 : vector<128xf32> to vector<1x128xf32>
    %c0_64 = arith.constant 0 : index
    %c0_65 = arith.constant 0 : index
    %c0_66 = arith.constant 0 : index
    %57 = vector.load %arg6[%c0_64, %c0_65, %c0_66] : memref<1x1x128xf32, #tpu.memory_space<vmem>>, vector<1x1x128xf32>
    %58 = vector.shape_cast %57 : vector<1x1x128xf32> to vector<1x128xf32>
    %59 = vector.shape_cast %56 : vector<1x128xf32> to vector<1x1x128xf32>
    tpu.vector_store %arg6[%c0_64, %c0_65, %c0_66], %59 {strides = array<i32>} : memref<1x1x128xf32, #tpu.memory_space<vmem>>, vector<1x1x128xf32>,
    %60 = arith.mulf %54, %54 : vector<256x128xf32>
    %cst_67 = arith.constant dense<0.000000e+00> : vector<128xf32>
    %61 = vector.multi_reduction <add>, %60, %cst_67 [0] : vector<256x128xf32> to vector<128xf32>
    %62 = vector.shape_cast %61 : vector<128xf32> to vector<1x128xf32>
    %c0_68 = arith.constant 0 : index
    %c0_69 = arith.constant 0 : index
    %c0_70 = arith.constant 0 : index
    %63 = vector.load %arg7[%c0_68, %c0_69, %c0_70] : memref<1x1x128xf32, #tpu.memory_space<vmem>>, vector<1x1x128xf32>
    %64 = vector.shape_cast %63 : vector<1x1x128xf32> to vector<1x128xf32>
    %65 = vector.shape_cast %62 : vector<1x128xf32> to vector<1x1x128xf32>
    tpu.vector_store %arg7[%c0_68, %c0_69, %c0_70], %65 {strides = array<i32>} : memref<1x1x128xf32, #tpu.memory_space<vmem>>, vector<1x1x128xf32>,
    return
  }
  func.func @transform_0(%arg0: i32) -> (i32, i32, i32, i32) {
    %c0_i32 = arith.constant 0 : i32
    %c0_i32_0 = arith.constant 0 : i32
    %c0_i32_1 = arith.constant 0 : i32
    %c0_i32_2 = arith.constant 0 : i32
    return %arg0, %c0_i32, %c0_i32_0, %c0_i32_1 : i32, i32, i32, i32
  }
  func.func @transform_1(%arg0: i32) -> (i32, i32) {
    %c0_i32 = arith.constant 0 : i32
    %c0_i32_0 = arith.constant 0 : i32
    %c0_i32_1 = arith.constant 0 : i32
    return %c0_i32, %c0_i32_0 : i32, i32
  }
  func.func @transform_2(%arg0: i32) -> (i32, i32) {
    %c0_i32 = arith.constant 0 : i32
    %c0_i32_0 = arith.constant 0 : i32
    %c0_i32_1 = arith.constant 0 : i32
    return %c0_i32, %c0_i32_0 : i32, i32
  }
  func.func @transform_3(%arg0: i32) -> (i32, i32) {
    %c0_i32 = arith.constant 0 : i32
    %c0_i32_0 = arith.constant 0 : i32
    %c0_i32_1 = arith.constant 0 : i32
    return %c0_i32, %c0_i32_0 : i32, i32
  }
  func.func @transform_4(%arg0: i32) -> (i32, i32, i32, i32) {
    %c0_i32 = arith.constant 0 : i32
    %c0_i32_0 = arith.constant 0 : i32
    %c0_i32_1 = arith.constant 0 : i32
    %c0_i32_2 = arith.constant 0 : i32
    return %arg0, %c0_i32, %c0_i32_0, %c0_i32_1 : i32, i32, i32, i32
  }
  func.func @transform_5(%arg0: i32) -> (i32, i32, i32) {
    %c0_i32 = arith.constant 0 : i32
    %c0_i32_0 = arith.constant 0 : i32
    %c0_i32_1 = arith.constant 0 : i32
    return %arg0, %c0_i32, %c0_i32_0 : i32, i32, i32
  }
  func.func @transform_6(%arg0: i32) -> (i32, i32, i32) {
    %c0_i32 = arith.constant 0 : i32
    %c0_i32_0 = arith.constant 0 : i32
    %c0_i32_1 = arith.constant 0 : i32
    return %arg0, %c0_i32, %c0_i32_0 : i32, i32, i32
  }
}

module attributes {stable_mosaic.version = 11 : i64} {
  func.func @_stage3_kernel(%arg0: i32, %arg1: memref<256x128xbf16, #tpu.memory_space<vmem>>, %arg2: memref<256x128xbf16, #tpu.memory_space<vmem>>, %arg3: memref<1x128xf32, #tpu.memory_space<vmem>>, %arg4: memref<1x128xf32, #tpu.memory_space<vmem>>, %arg5: memref<1x128xf32, #tpu.memory_space<vmem>>, %arg6: memref<1x128xf32, #tpu.memory_space<vmem>>, %arg7: memref<256x128xbf16, #tpu.memory_space<vmem>>, %arg8: memref<256x128xf32, #tpu.memory_space<vmem>>) attributes {dimension_semantics = [#tpu.dimension_semantics<parallel>], iteration_bounds = array<i64: 2>, scalar_prefetch = 0 : i64, scratch_operands = 0 : i64, tpu.core_type = #tpu.core_type<tc>, window_params = [{transform_indices = @transform_0, window_bounds = array<i64: 256, 128>}, {transform_indices = @transform_1, window_bounds = array<i64: 256, 128>}, {pipeline_mode = #tpu.pipeline_mode<synchronous>, transform_indices = @transform_2, window_bounds = array<i64: 1, 128>}, {pipeline_mode = #tpu.pipeline_mode<synchronous>, transform_indices = @transform_3, window_bounds = array<i64: 1, 128>}, {pipeline_mode = #tpu.pipeline_mode<synchronous>, transform_indices = @transform_4, window_bounds = array<i64: 1, 128>}, {pipeline_mode = #tpu.pipeline_mode<synchronous>, transform_indices = @transform_5, window_bounds = array<i64: 1, 128>}, {pipeline_mode = #tpu.pipeline_mode<synchronous>, transform_indices = @transform_6, window_bounds = array<i64: 256, 128>}, {transform_indices = @transform_7, window_bounds = array<i64: 256, 128>}]} {
    %c0 = arith.constant 0 : index
    %c0_0 = arith.constant 0 : index
    %0 = vector.load %arg1[%c0, %c0_0] : memref<256x128xbf16, #tpu.memory_space<vmem>>, vector<256x128xbf16>
    %1 = arith.extf %0 : vector<256x128xbf16> to vector<256x128xf32>
    %c0_1 = arith.constant 0 : index
    %c0_2 = arith.constant 0 : index
    %2 = vector.load %arg3[%c0_1, %c0_2] : memref<1x128xf32, #tpu.memory_space<vmem>>, vector<1x128xf32>
    %3 = vector.broadcast %2 : vector<1x128xf32> to vector<256x128xf32>
    %4 = arith.mulf %1, %3 : vector<256x128xf32>
    %c0_3 = arith.constant 0 : index
    %c0_4 = arith.constant 0 : index
    %5 = vector.load %arg4[%c0_3, %c0_4] : memref<1x128xf32, #tpu.memory_space<vmem>>, vector<1x128xf32>
    %6 = vector.broadcast %5 : vector<1x128xf32> to vector<256x128xf32>
    %7 = arith.addf %4, %6 : vector<256x128xf32>
    %cst = arith.constant 0.000000e+00 : f32
    %8 = vector.broadcast %cst : f32 to vector<256x128xf32>
    %9 = arith.maximumf %7, %8 : vector<256x128xf32>
    %c0_5 = arith.constant 0 : index
    %c0_6 = arith.constant 0 : index
    %10 = vector.load %arg2[%c0_5, %c0_6] : memref<256x128xbf16, #tpu.memory_space<vmem>>, vector<256x128xbf16>
    %11 = arith.extf %10 : vector<256x128xbf16> to vector<256x128xf32>
    %c0_7 = arith.constant 0 : index
    %c0_8 = arith.constant 0 : index
    %12 = vector.load %arg5[%c0_7, %c0_8] : memref<1x128xf32, #tpu.memory_space<vmem>>, vector<1x128xf32>
    %13 = vector.broadcast %12 : vector<1x128xf32> to vector<256x128xf32>
    %14 = arith.mulf %11, %13 : vector<256x128xf32>
    %c0_9 = arith.constant 0 : index
    %c0_10 = arith.constant 0 : index
    %15 = vector.load %arg6[%c0_9, %c0_10] : memref<1x128xf32, #tpu.memory_space<vmem>>, vector<1x128xf32>
    %16 = vector.broadcast %15 : vector<1x128xf32> to vector<256x128xf32>
    %17 = arith.addf %14, %16 : vector<256x128xf32>
    %cst_11 = arith.constant 0.000000e+00 : f32
    %18 = vector.broadcast %cst_11 : f32 to vector<256x128xf32>
    %19 = arith.maximumf %17, %18 : vector<256x128xf32>
    %20 = arith.truncf %9 : vector<256x128xf32> to vector<256x128xbf16>
    %21 = arith.truncf %19 : vector<256x128xf32> to vector<256x128xbf16>
    %22 = tpu.concatenate %20, %21 in 1 : vector<256x128xbf16>, vector<256x128xbf16> -> vector<256x256xbf16>
    %c0_12 = arith.constant 0 : index
    %c0_13 = arith.constant 0 : index
    %23 = vector.load %arg7[%c0_12, %c0_13] : memref<256x128xbf16, #tpu.memory_space<vmem>>, vector<256x128xbf16>
    %cst_14 = arith.constant dense<0.000000e+00> : vector<256x128xf32>
    %24 = tpu.matmul %22, %23, %cst_14 {dimension_numbers = #tpu.dot_dimension_numbers<[1], [0], [0], [1], [0, 0, 1, 1], [], []>} : vector<256x256xbf16>, vector<256x128xbf16>, vector<256x128xf32> -> vector<256x128xf32>
    %c0_15 = arith.constant 0 : index
    %c0_16 = arith.constant 0 : index
    %25 = vector.load %arg8[%c0_15, %c0_16] : memref<256x128xf32, #tpu.memory_space<vmem>>, vector<256x128xf32>
    tpu.vector_store %arg8[%c0_15, %c0_16], %24 {strides = array<i32>} : memref<256x128xf32, #tpu.memory_space<vmem>>, vector<256x128xf32>,
    return
  }
  func.func @transform_0(%arg0: i32) -> (i32, i32) {
    %c0_i32 = arith.constant 0 : i32
    %c0_i32_0 = arith.constant 0 : i32
    return %arg0, %c0_i32 : i32, i32
  }
  func.func @transform_1(%arg0: i32) -> (i32, i32) {
    %c0_i32 = arith.constant 0 : i32
    %c0_i32_0 = arith.constant 0 : i32
    return %arg0, %c0_i32 : i32, i32
  }
  func.func @transform_2(%arg0: i32) -> (i32, i32) {
    %c0_i32 = arith.constant 0 : i32
    %c0_i32_0 = arith.constant 0 : i32
    %c0_i32_1 = arith.constant 0 : i32
    return %c0_i32, %c0_i32_0 : i32, i32
  }
  func.func @transform_3(%arg0: i32) -> (i32, i32) {
    %c0_i32 = arith.constant 0 : i32
    %c0_i32_0 = arith.constant 0 : i32
    %c0_i32_1 = arith.constant 0 : i32
    return %c0_i32, %c0_i32_0 : i32, i32
  }
  func.func @transform_4(%arg0: i32) -> (i32, i32) {
    %c0_i32 = arith.constant 0 : i32
    %c0_i32_0 = arith.constant 0 : i32
    %c0_i32_1 = arith.constant 0 : i32
    return %c0_i32, %c0_i32_0 : i32, i32
  }
  func.func @transform_5(%arg0: i32) -> (i32, i32) {
    %c0_i32 = arith.constant 0 : i32
    %c0_i32_0 = arith.constant 0 : i32
    %c0_i32_1 = arith.constant 0 : i32
    return %c0_i32, %c0_i32_0 : i32, i32
  }
  func.func @transform_6(%arg0: i32) -> (i32, i32) {
    %c0_i32 = arith.constant 0 : i32
    %c0_i32_0 = arith.constant 0 : i32
    %c0_i32_1 = arith.constant 0 : i32
    return %c0_i32, %c0_i32_0 : i32, i32
  }
  func.func @transform_7(%arg0: i32) -> (i32, i32) {
    %c0_i32 = arith.constant 0 : i32
    %c0_i32_0 = arith.constant 0 : i32
    return %arg0, %c0_i32 : i32, i32
  }
}

</mosaic_0001>

<llo_original>
// kernel: preact_bottleneck_pallas.3
$region0: #{preact_bottleneck_pallas.3}
  #allocation0 [shape = 'u32[]', space=smem, size = 0x4, offset = 0x4, fixed_abs, tag = 'smem constant byte address 0x4 - core index']
  #allocation1 [shape = 'u32[144,128]{1,0:T(1,128)}', space=vmem, size = 0x12000, scoped, tag = 'internal scratch']
  %s0 = inlined_call_operand.vmem [shape: bf16[512,128], index: 0, kind: input, shape index: {}]
  %s1 = inlined_call_operand.vmem [shape: f32[1,128], index: 1, kind: input, shape index: {}]
  %s2 = inlined_call_operand.vmem [shape: f32[1,128], index: 2, kind: input, shape index: {}]
  %s3 = inlined_call_operand.vmem [shape: bf16[128,128], index: 3, kind: input, shape index: {}]
  %s4 = inlined_call_operand.vmem [shape: bf16[512,128], index: 4, kind: output, shape index: {0}]
  %s5 = inlined_call_operand.vmem [shape: f32[2,1,128], index: 5, kind: output, shape index: {1}]
  %s6 = inlined_call_operand.vmem [shape: f32[2,1,128], index: 6, kind: output, shape index: {2}]
  %7 = xla_tuple %s4, %s5, %s6
  %s8 = sld [smem:[#allocation0]]
  $region65: #{preact_bottleneck_pallas.3} parent=0
    _
  %s10 = ssub.s32 1, %s8
  %s11 = scalar_select 0, %s10, %s8
  loop: start=0, step=1, limit=4
  $region2: #{preact_bottleneck_pallas.3} parent=0 // loop_pre_header
    _
  $region3: #{preact_bottleneck_pallas.3} parent=0 // loop_header
    %s13 = sphi 0, %s17
    %p14 = scmp.ge.s32.totalorder %s13, 4
    %s23 = sphi 0, %s25
    %s26 = sphi 0, %s23
    %s27 = sphi 0, %s26
    %s43 = sphi 0, %s27
    %s47 = sphi 0, %s47
    %s49 = sphi 0, %s47
    %s50 = sphi 0, %s49
    %s64 = sphi 0, %s50
    %s68 = sphi 0, %s68
    %s70 = sphi 0, %s68
    %s71 = sphi 0, %s70
    %s85 = sphi 0, %s71
    %s89 = sphi 0, %s89
    %s91 = sphi 0, %s89
    %s92 = sphi 0, %s91
    %s106 = sphi 0, %s92
    %s112 = sphi 0, %s114
    %s115 = sphi 0, %s112
    %s116 = sphi 0, %s115
    %s132 = sphi 0, %s116
    %s138 = sphi 0, %s140
    %s141 = sphi 0, %s138
    %s142 = sphi 0, %s141
    %s158 = sphi 0, %s142
    %s164 = sphi 0, %s166
    %s167 = sphi 0, %s164
    %s168 = sphi 0, %s167
    %s184 = sphi 0, %s168
  $region4: #{preact_bottleneck_pallas.3} parent=0 // loop_header_branch
    %16 = sbr.rel (%p14) target = $region8
  $region5: #{preact_bottleneck_pallas.3} parent=0 // loop_body
    %s18 = ssub.s32 %s13, 1
    %s19 = ssub.s32 %s13, 2
    %s20 = sadd.s32 %s13, 1
    %s21 = ssub.s32 %s13, %s20
    %p22 = scmp.eq.s32.totalorder %s21, 0
    %s24 = sadd.s32 %s23, 1
    %s25 = scalar_select %p22, %s23, %s24
    %p28 = pneg %p22
    %p29 = scmp.eq.s32.totalorder %s13, 1
    %p30 = por %p28, %p29
    %p31 = scmp.ne.s32.totalorder %s23, %s26
    %p32 = scmp.eq.s32.totalorder %s13, 0
    %p33 = por %p31, %p32
    %p34 = scmp.ne.s32.totalorder %s23, %s26
    %p35 = scmp.eq.s32.totalorder %s18, 1
    %p36 = por %p34, %p35
    %p37 = scmp.ne.s32.totalorder %s26, %s27
    %p38 = scmp.eq.s32.totalorder %s18, 0
    %p39 = por %p37, %p38
    %p40 = scmp.ne.s32.totalorder %s26, %s27
    %p41 = scmp.eq.s32.totalorder %s19, 1
    %p42 = por %p40, %p41
    %p44 = scmp.ne.s32.totalorder %s27, %s43
    %p45 = scmp.eq.s32.totalorder %s19, 0
    %p46 = por %p44, %p45
    %s48 = sadd.s32 %s47, 1
    %p51 = scmp.eq.s32.totalorder %s13, 1
    %p52 = scmp.ne.s32.totalorder %s47, %s49
    %p53 = scmp.eq.s32.totalorder %s13, 0
    %p54 = por %p52, %p53
    %p55 = scmp.ne.s32.totalorder %s47, %s49
    %p56 = scmp.eq.s32.totalorder %s18, 1
    %p57 = por %p55, %p56
    %p58 = scmp.ne.s32.totalorder %s49, %s50
    %p59 = scmp.eq.s32.totalorder %s18, 0
    %p60 = por %p58, %p59
    %p61 = scmp.ne.s32.totalorder %s49, %s50
    %p62 = scmp.eq.s32.totalorder %s19, 1
    %p63 = por %p61, %p62
    %p65 = scmp.ne.s32.totalorder %s50, %s64
    %p66 = scmp.eq.s32.totalorder %s19, 0
    %p67 = por %p65, %p66
    %s69 = sadd.s32 %s68, 1
    %p72 = scmp.eq.s32.totalorder %s13, 1
    %p73 = scmp.ne.s32.totalorder %s68, %s70
    %p74 = scmp.eq.s32.totalorder %s13, 0
    %p75 = por %p73, %p74
    %p76 = scmp.ne.s32.totalorder %s68, %s70
    %p77 = scmp.eq.s32.totalorder %s18, 1
    %p78 = por %p76, %p77
    %p79 = scmp.ne.s32.totalorder %s70, %s71
    %p80 = scmp.eq.s32.totalorder %s18, 0
    %p81 = por %p79, %p80
    %p82 = scmp.ne.s32.totalorder %s70, %s71
    %p83 = scmp.eq.s32.totalorder %s19, 1
    %p84 = por %p82, %p83
    %p86 = scmp.ne.s32.totalorder %s71, %s85
    %p87 = scmp.eq.s32.totalorder %s19, 0
    %p88 = por %p86, %p87
    %s90 = sadd.s32 %s89, 1
    %p93 = scmp.eq.s32.totalorder %s13, 1
    %p94 = scmp.ne.s32.totalorder %s89, %s91
    %p95 = scmp.eq.s32.totalorder %s13, 0
    %p96 = por %p94, %p95
    %p97 = scmp.ne.s32.totalorder %s89, %s91
    %p98 = scmp.eq.s32.totalorder %s18, 1
    %p99 = por %p97, %p98
    %p100 = scmp.ne.s32.totalorder %s91, %s92
    %p101 = scmp.eq.s32.totalorder %s18, 0
    %p102 = por %p100, %p101
    %p103 = scmp.ne.s32.totalorder %s91, %s92
    %p104 = scmp.eq.s32.totalorder %s19, 1
    %p105 = por %p103, %p104
    %p107 = scmp.ne.s32.totalorder %s92, %s106
    %p108 = scmp.eq.s32.totalorder %s19, 0
    %p109 = por %p107, %p108
    %s110 = ssub.s32 %s13, %s20
    %p111 = scmp.eq.s32.totalorder %s110, 0
    %s113 = sadd.s32 %s112, 1
    %s114 = scalar_select %p111, %s112, %s113
    %p117 = pneg %p111
    %p118 = scmp.eq.s32.totalorder %s13, 1
    %p119 = por %p117, %p118
    %p120 = scmp.ne.s32.totalorder %s112, %s115
    %p121 = scmp.eq.s32.totalorder %s13, 0
    %p122 = por %p120, %p121
    %p123 = scmp.ne.s32.totalorder %s112, %s115
    %p124 = scmp.eq.s32.totalorder %s18, 1
    %p125 = por %p123, %p124
    %p126 = scmp.ne.s32.totalorder %s115, %s116
    %p127 = scmp.eq.s32.totalorder %s18, 0
    %p128 = por %p126, %p127
    %p129 = scmp.ne.s32.totalorder %s115, %s116
    %p130 = scmp.eq.s32.totalorder %s19, 1
    %p131 = por %p129, %p130
    %p133 = scmp.ne.s32.totalorder %s116, %s132
    %p134 = scmp.eq.s32.totalorder %s19, 0
    %p135 = por %p133, %p134
    %s136 = ssub.s32 %s13, %s20
    %p137 = scmp.eq.s32.totalorder %s136, 0
    %s139 = sadd.s32 %s138, 1
    %s140 = scalar_select %p137, %s138, %s139
    %p143 = pneg %p137
    %p144 = scmp.eq.s32.totalorder %s13, 1
    %p145 = por %p143, %p144
    %p146 = scmp.ne.s32.totalorder %s138, %s141
    %p147 = scmp.eq.s32.totalorder %s13, 0
    %p148 = por %p146, %p147
    %p149 = scmp.ne.s32.totalorder %s138, %s141
    %p150 = scmp.eq.s32.totalorder %s18, 1
    %p151 = por %p149, %p150
    %p152 = scmp.ne.s32.totalorder %s141, %s142
    %p153 = scmp.eq.s32.totalorder %s18, 0
    %p154 = por %p152, %p153
    %p155 = scmp.ne.s32.totalorder %s141, %s142
    %p156 = scmp.eq.s32.totalorder %s19, 1
    %p157 = por %p155, %p156
    %p159 = scmp.ne.s32.totalorder %s142, %s158
    %p160 = scmp.eq.s32.totalorder %s19, 0
    %p161 = por %p159, %p160
    %s162 = ssub.s32 %s13, %s20
    %p163 = scmp.eq.s32.totalorder %s162, 0
    %s165 = sadd.s32 %s164, 1
    %s166 = scalar_select %p163, %s164, %s165
    %p169 = pneg %p163
    %p170 = scmp.eq.s32.totalorder %s13, 1
    %p171 = por %p169, %p170
    %p172 = scmp.ne.s32.totalorder %s164, %s167
    %p173 = scmp.eq.s32.totalorder %s13, 0
    %p174 = por %p172, %p173
    %p175 = scmp.ne.s32.totalorder %s164, %s167
    %p176 = scmp.eq.s32.totalorder %s18, 1
    %p177 = por %p175, %p176
    %p178 = scmp.ne.s32.totalorder %s167, %s168
    %p179 = scmp.eq.s32.totalorder %s18, 0
    %p180 = por %p178, %p179
    %p181 = scmp.ne.s32.totalorder %s167, %s168
    %p182 = scmp.eq.s32.totalorder %s19, 1
    %p183 = por %p181, %p182
    %p185 = scmp.ne.s32.totalorder %s168, %s184
    %p186 = scmp.eq.s32.totalorder %s19, 0
    %p187 = por %p185, %p186
    %p188 = scmp.le.s32.totalorder 1, %s13
    %p189 = scmp.lt.s32.totalorder %s13, 3
    %p190 = pnand %p188, %p189
    %p191 = pneg %p190
    // Predicated region
    $region9: #{preact_bottleneck_pallas.3} parent=5 // pred_check
      _
    $region10: #{preact_bottleneck_pallas.3} parent=5 // pred_check_branch
      %193 = sbr.rel (%p190) target = $region12
    $region11: #{preact_bottleneck_pallas.3} parent=5 // pred_region
      %s194 = ssub.s32 %s13, 1
      // Predicated region
      $region13: #{preact_bottleneck_pallas.3} parent=11 // pred_check
        %p195 = pneg %p60
      $region14: #{preact_bottleneck_pallas.3} parent=11 // pred_check_branch
        %197 = sbr.rel (%p195) target = $region16
      $region15: #{preact_bottleneck_pallas.3} parent=11 // pred_region
        _
      $region16: #{preact_bottleneck_pallas.3} parent=11 // pred_fallthru
        _
      // Predicated region
      $region17: #{preact_bottleneck_pallas.3} parent=11 // pred_check
        %p198 = pneg %p81
      $region18: #{preact_bottleneck_pallas.3} parent=11 // pred_check_branch
        %200 = sbr.rel (%p198) target = $region20
      $region19: #{preact_bottleneck_pallas.3} parent=11 // pred_region
        _
      $region20: #{preact_bottleneck_pallas.3} parent=11 // pred_fallthru
        _
      // Predicated region
      $region21: #{preact_bottleneck_pallas.3} parent=11 // pred_check
        %p201 = pneg %p102
      $region22: #{preact_bottleneck_pallas.3} parent=11 // pred_check_branch
        %203 = sbr.rel (%p201) target = $region24
      $region23: #{preact_bottleneck_pallas.3} parent=11 // pred_region
        _
      $region24: #{preact_bottleneck_pallas.3} parent=11 // pred_fallthru
        _
    $region12: #{preact_bottleneck_pallas.3} parent=5 // pred_fallthru
      _
    %p204 = scmp.lt.s32.totalorder %s13, 2
    // Predicated region
    $region25: #{preact_bottleneck_pallas.3} parent=5 // pred_check
      %p205 = pneg %p204
    $region26: #{preact_bottleneck_pallas.3} parent=5 // pred_check_branch
      %207 = sbr.rel (%p205) target = $region28
    $region27: #{preact_bottleneck_pallas.3} parent=5 // pred_region
      // Predicated region
      $region29: #{preact_bottleneck_pallas.3} parent=27 // pred_check
        %p208 = pneg %p33
      $region30: #{preact_bottleneck_pallas.3} parent=27 // pred_check_branch
        %210 = sbr.rel (%p208) target = $region32
      $region31: #{preact_bottleneck_pallas.3} parent=27 // pred_region
        %s211 = smul.u32 32, %s13
        %p212 = scmp.lt.s32.totalorder %s211, 63
        %s213 = scalar_select %p212, %s211, 63
        %s214 = smul.addr %s213, 4
        %s215 = scalar_lea.vmem %s0, %s214
        %s216 = smul.u32 32, %s13
      $region32: #{preact_bottleneck_pallas.3} parent=27 // pred_fallthru
        _
    $region28: #{preact_bottleneck_pallas.3} parent=5 // pred_fallthru
      _
    %p217 = scmp.le.s32.totalorder 1, %s13
    %p218 = scmp.lt.s32.totalorder %s13, 3
    %p219 = pnand %p217, %p218
    %p220 = pneg %p219
    // Predicated region
    $region33: #{preact_bottleneck_pallas.3} parent=5 // pred_check
      _
    $region34: #{preact_bottleneck_pallas.3} parent=5 // pred_check_branch
      %222 = sbr.rel (%p219) target = $region36
    $region35: #{preact_bottleneck_pallas.3} parent=5 // pred_region
      %s223 = ssub.s32 %s13, 1
      %s224 = smul.u32 32, %s18
      %p225 = scmp.lt.s32.totalorder %s224, 63
      %s226 = scalar_select %p225, %s224, 63
      %s227 = smul.addr %s226, 4
      %s228 = scalar_lea.vmem %s0, %s227
      %p229 = pneg %p39
      %p230 = pneg %p36
      %p231 = pneg %p60
      %p232 = pneg %p57
      %p233 = pneg %p81
      %p234 = pneg %p78
      %p235 = pneg %p102
      %p236 = pneg %p99
      %p237 = pneg %p128
      %p238 = pneg %p125
      %s239 = smul.u32 32, %s18
      %p240 = scmp.lt.s32.totalorder %s239, 63
      %s241 = scalar_select %p240, %s239, 63
      %s242 = smul.addr %s241, 4
      %s243 = scalar_lea.vmem %s4, %s242
      %p244 = pneg %p154
      %p245 = pneg %p151
      %p246 = scmp.lt.s32.totalorder %s18, 1
      %s247 = scalar_select %p246, %s18, 1
      %s248 = scalar_lea.vmem %s5, %s247
      %p249 = pneg %p180
      %p250 = pneg %p177
      %p251 = scmp.lt.s32.totalorder %s18, 1
      %s252 = scalar_select %p251, %s18, 1
      %s253 = scalar_lea.vmem %s6, %s252
      %s254 = smul.u32 32, %s18
      %p255 = scmp.lt.s32.totalorder %s254, 63
      %s256 = scalar_select %p255, %s254, 63
      %s257 = smul.addr %s256, 4
      %s258 = scalar_lea.vmem %s0, %s257
      %s259 = smul.u32 32, %s18
      %s260 = smul.u32 32, %s18
      %p261 = scmp.lt.s32.totalorder %s260, 63
      %s262 = scalar_select %p261, %s260, 63
      %s263 = smul.addr %s262, 4
      %s264 = scalar_lea.vmem %s4, %s263
      %s265 = smul.u32 32, %s18
      %p266 = scmp.lt.s32.totalorder %s18, 1
      %s267 = scalar_select %p266, %s18, 1
      %s268 = scalar_lea.vmem %s5, %s267
      %p269 = scmp.lt.s32.totalorder %s18, 1
      %s270 = scalar_select %p269, %s18, 1
      %s271 = scalar_lea.vmem %s6, %s270
      %v273 = vld [vmem:[%s258] sm:$0xf]
      %v274 = vld [vmem:[%s258 + $0x4] sm:$0xf]
      %v275 = vld [vmem:[%s258 + $0x8] sm:$0xf]
      %v276 = vld [vmem:[%s258 + $0xc] sm:$0xf]
      %v277 = vld [vmem:[%s258 + $0x10] sm:$0xf]
      %v278 = vld [vmem:[%s258 + $0x14] sm:$0xf]
      %v279 = vld [vmem:[%s258 + $0x18] sm:$0xf]
      %v280 = vld [vmem:[%s258 + $0x1c] sm:$0xf]
      %v281 = vld [vmem:[%s258 + $0x20] sm:$0xf]
      %v282 = vld [vmem:[%s258 + $0x24] sm:$0xf]
      %v283 = vld [vmem:[%s258 + $0x28] sm:$0xf]
      %v284 = vld [vmem:[%s258 + $0x2c] sm:$0xf]
      %v285 = vld [vmem:[%s258 + $0x30] sm:$0xf]
      %v286 = vld [vmem:[%s258 + $0x34] sm:$0xf]
      %v287 = vld [vmem:[%s258 + $0x38] sm:$0xf]
      %v288 = vld [vmem:[%s258 + $0x3c] sm:$0xf]
      %v289 = vld [vmem:[%s258 + $0x40] sm:$0xf]
      %v290 = vld [vmem:[%s258 + $0x44] sm:$0xf]
      %v291 = vld [vmem:[%s258 + $0x48] sm:$0xf]
      %v292 = vld [vmem:[%s258 + $0x4c] sm:$0xf]
      %v293 = vld [vmem:[%s258 + $0x50] sm:$0xf]
      %v294 = vld [vmem:[%s258 + $0x54] sm:$0xf]
      %v295 = vld [vmem:[%s258 + $0x58] sm:$0xf]
      %v296 = vld [vmem:[%s258 + $0x5c] sm:$0xf]
      %v297 = vld [vmem:[%s258 + $0x60] sm:$0xf]
      %v298 = vld [vmem:[%s258 + $0x64] sm:$0xf]
      %v299 = vld [vmem:[%s258 + $0x68] sm:$0xf]
      %v300 = vld [vmem:[%s258 + $0x6c] sm:$0xf]
      %v301 = vld [vmem:[%s258 + $0x70] sm:$0xf]
      %v302 = vld [vmem:[%s258 + $0x74] sm:$0xf]
      %v303 = vld [vmem:[%s258 + $0x78] sm:$0xf]
      %v304 = vld [vmem:[%s258 + $0x7c] sm:$0xf]
      %v305 = vunpack.c.l.bf16 %v273
      %v306 = vunpack.c.l.bf16 %v274
      %v307 = vunpack.c.l.bf16 %v275
      %v308 = vunpack.c.l.bf16 %v276
      %v309 = vunpack.c.l.bf16 %v277
      %v310 = vunpack.c.l.bf16 %v278
      %v311 = vunpack.c.l.bf16 %v279
      %v312 = vunpack.c.l.bf16 %v280
      %v313 = vunpack.c.l.bf16 %v281
      %v314 = vunpack.c.l.bf16 %v282
      %v315 = vunpack.c.l.bf16 %v283
      %v316 = vunpack.c.l.bf16 %v284
      %v317 = vunpack.c.l.bf16 %v285
      %v318 = vunpack.c.l.bf16 %v286
      %v319 = vunpack.c.l.bf16 %v287
      %v320 = vunpack.c.l.bf16 %v288
      %v321 = vunpack.c.l.bf16 %v289
      %v322 = vunpack.c.l.bf16 %v290
      %v323 = vunpack.c.l.bf16 %v291
      %v324 = vunpack.c.l.bf16 %v292
      %v325 = vunpack.c.l.bf16 %v293
      %v326 = vunpack.c.l.bf16 %v294
      %v327 = vunpack.c.l.bf16 %v295
      %v328 = vunpack.c.l.bf16 %v296
      %v329 = vunpack.c.l.bf16 %v297
      %v330 = vunpack.c.l.bf16 %v298
      %v331 = vunpack.c.l.bf16 %v299
      %v332 = vunpack.c.l.bf16 %v300
      %v333 = vunpack.c.l.bf16 %v301
      %v334 = vunpack.c.l.bf16 %v302
      %v335 = vunpack.c.l.bf16 %v303
      %v336 = vunpack.c.l.bf16 %v304
      %v337 = vld [vmem:[%s1] sm:$0x1]
      %v339 = vlaneseq
      %v340 = vshrl.u32 %v339, 7
      %v341 = vsub.s32 0, %v340
      %v342 = vrot.slane %v337, %v341
      %v344 = vmul.f32 %v305, %v342
      %v345 = vmul.f32 %v306, %v342
      %v346 = vmul.f32 %v307, %v342
      %v347 = vmul.f32 %v308, %v342
      %v348 = vmul.f32 %v309, %v342
      %v349 = vmul.f32 %v310, %v342
      %v350 = vmul.f32 %v311, %v342
      %v351 = vmul.f32 %v312, %v342
      %v352 = vmul.f32 %v313, %v342
      %v353 = vmul.f32 %v314, %v342
      %v354 = vmul.f32 %v315, %v342
      %v355 = vmul.f32 %v316, %v342
      %v356 = vmul.f32 %v317, %v342
      %v357 = vmul.f32 %v318, %v342
      %v358 = vmul.f32 %v319, %v342
      %v359 = vmul.f32 %v320, %v342
      %v360 = vmul.f32 %v321, %v342
      %v361 = vmul.f32 %v322, %v342
      %v362 = vmul.f32 %v323, %v342
      %v363 = vmul.f32 %v324, %v342
      %v364 = vmul.f32 %v325, %v342
      %v365 = vmul.f32 %v326, %v342
      %v366 = vmul.f32 %v327, %v342
      %v367 = vmul.f32 %v328, %v342
      %v368 = vmul.f32 %v329, %v342
      %v369 = vmul.f32 %v330, %v342
      %v370 = vmul.f32 %v331, %v342
      %v371 = vmul.f32 %v332, %v342
      %v372 = vmul.f32 %v333, %v342
      %v373 = vmul.f32 %v334, %v342
      %v374 = vmul.f32 %v335, %v342
      %v375 = vmul.f32 %v336, %v342
      %v376 = vld [vmem:[%s2] sm:$0x1]
      %v378 = vlaneseq
      %v379 = vshrl.u32 %v378, 7
      %v380 = vsub.s32 0, %v379
      %v381 = vrot.slane %v376, %v380
      %v383 = vadd.f32 %v344, %v381
      %v384 = vadd.f32 %v345, %v381
      %v385 = vadd.f32 %v346, %v381
      %v386 = vadd.f32 %v347, %v381
      %v387 = vadd.f32 %v348, %v381
      %v388 = vadd.f32 %v349, %v381
      %v389 = vadd.f32 %v350, %v381
      %v390 = vadd.f32 %v351, %v381
      %v391 = vadd.f32 %v352, %v381
      %v392 = vadd.f32 %v353, %v381
      %v393 = vadd.f32 %v354, %v381
      %v394 = vadd.f32 %v355, %v381
      %v395 = vadd.f32 %v356, %v381
      %v396 = vadd.f32 %v357, %v381
      %v397 = vadd.f32 %v358, %v381
      %v398 = vadd.f32 %v359, %v381
      %v399 = vadd.f32 %v360, %v381
      %v400 = vadd.f32 %v361, %v381
      %v401 = vadd.f32 %v362, %v381
      %v402 = vadd.f32 %v363, %v381
      %v403 = vadd.f32 %v364, %v381
      %v404 = vadd.f32 %v365, %v381
      %v405 = vadd.f32 %v366, %v381
      %v406 = vadd.f32 %v367, %v381
      %v407 = vadd.f32 %v368, %v381
      %v408 = vadd.f32 %v369, %v381
      %v409 = vadd.f32 %v370, %v381
      %v410 = vadd.f32 %v371, %v381
      %v411 = vadd.f32 %v372, %v381
      %v412 = vadd.f32 %v373, %v381
      %v413 = vadd.f32 %v374, %v381
      %v414 = vadd.f32 %v375, %v381
      %v415 = vmax.f32 %v383, 0.0
      %v416 = vmax.f32 %v384, 0.0
      %v417 = vmax.f32 %v385, 0.0
      %v418 = vmax.f32 %v386, 0.0
      %v419 = vmax.f32 %v387, 0.0
      %v420 = vmax.f32 %v388, 0.0
      %v421 = vmax.f32 %v389, 0.0
      %v422 = vmax.f32 %v390, 0.0
      %v423 = vmax.f32 %v391, 0.0
      %v424 = vmax.f32 %v392, 0.0
      %v425 = vmax.f32 %v393, 0.0
      %v426 = vmax.f32 %v394, 0.0
      %v427 = vmax.f32 %v395, 0.0
      %v428 = vmax.f32 %v396, 0.0
      %v429 = vmax.f32 %v397, 0.0
      %v430 = vmax.f32 %v398, 0.0
      %v431 = vmax.f32 %v399, 0.0
      %v432 = vmax.f32 %v400, 0.0
      %v433 = vmax.f32 %v401, 0.0
      %v434 = vmax.f32 %v402, 0.0
      %v435 = vmax.f32 %v403, 0.0
      %v436 = vmax.f32 %v404, 0.0
      %v437 = vmax.f32 %v405, 0.0
      %v438 = vmax.f32 %v406, 0.0
      %v439 = vmax.f32 %v407, 0.0
      %v440 = vmax.f32 %v408, 0.0
      %v441 = vmax.f32 %v409, 0.0
      %v442 = vmax.f32 %v410, 0.0
      %v443 = vmax.f32 %v411, 0.0
      %v444 = vmax.f32 %v412, 0.0
      %v445 = vmax.f32 %v413, 0.0
      %v446 = vmax.f32 %v414, 0.0
      %v447 = vpack.c.bf16 %v416, %v415
      %v448 = vpack.c.bf16 %v418, %v417
      %v449 = vpack.c.bf16 %v420, %v419
      %v450 = vpack.c.bf16 %v422, %v421
      %v451 = vpack.c.bf16 %v424, %v423
      %v452 = vpack.c.bf16 %v426, %v425
      %v453 = vpack.c.bf16 %v428, %v427
      %v454 = vpack.c.bf16 %v430, %v429
      %v455 = vpack.c.bf16 %v432, %v431
      %v456 = vpack.c.bf16 %v434, %v433
      %v457 = vpack.c.bf16 %v436, %v435
      %v458 = vpack.c.bf16 %v438, %v437
      %v459 = vpack.c.bf16 %v440, %v439
      %v460 = vpack.c.bf16 %v442, %v441
      %v461 = vpack.c.bf16 %v444, %v443
      %v462 = vpack.c.bf16 %v446, %v445
      %v463 = vld [vmem:[%s3] sm:$0xf]
      %v464 = vld [vmem:[%s3 + $0x4] sm:$0xf]
      %v465 = vld [vmem:[%s3 + $0x8] sm:$0xf]
      %v466 = vld [vmem:[%s3 + $0xc] sm:$0xf]
      %v467 = vld [vmem:[%s3 + $0x10] sm:$0xf]
      %v468 = vld [vmem:[%s3 + $0x14] sm:$0xf]
      %v469 = vld [vmem:[%s3 + $0x18] sm:$0xf]
      %v470 = vld [vmem:[%s3 + $0x1c] sm:$0xf]
      %v471 = vld [vmem:[%s3 + $0x20] sm:$0xf]
      %v472 = vld [vmem:[%s3 + $0x24] sm:$0xf]
      %v473 = vld [vmem:[%s3 + $0x28] sm:$0xf]
      %v474 = vld [vmem:[%s3 + $0x2c] sm:$0xf]
      %v475 = vld [vmem:[%s3 + $0x30] sm:$0xf]
      %v476 = vld [vmem:[%s3 + $0x34] sm:$0xf]
      %v477 = vld [vmem:[%s3 + $0x38] sm:$0xf]
      %v478 = vld [vmem:[%s3 + $0x3c] sm:$0xf]
      %v495 = vunpack.c.l.b16 %v463
      %v496 = vunpack.c.l.b16 %v464
      %v497 = vunpack.c.l.b16 %v465
      %v498 = vunpack.c.l.b16 %v466
      %v499 = vunpack.c.l.b16 %v467
      %v500 = vunpack.c.l.b16 %v468
      %v501 = vunpack.c.l.b16 %v469
      %v502 = vunpack.c.l.b16 %v470
      %v503 = vunpack.c.l.b16 %v471
      %v504 = vunpack.c.l.b16 %v472
      %v505 = vunpack.c.l.b16 %v473
      %v506 = vunpack.c.l.b16 %v474
      %v507 = vunpack.c.l.b16 %v475
      %v508 = vunpack.c.l.b16 %v476
      %v509 = vunpack.c.l.b16 %v477
      %v510 = vunpack.c.l.b16 %v478
      %v511 = vpack.c.b16 %v496, %v495
      %v512 = vpack.c.b16 %v498, %v497
      %v513 = vpack.c.b16 %v500, %v499
      %v514 = vpack.c.b16 %v502, %v501
      %v515 = vpack.c.b16 %v504, %v503
      %v516 = vpack.c.b16 %v506, %v505
      %v517 = vpack.c.b16 %v508, %v507
      %v518 = vpack.c.b16 %v510, %v509
      %527 = vmatprep.subr.bf16.mxu0 0
      %528 = vmatpush1.bf16.msra.mxu0 %v511
      %529 = vmatprep.subr.bf16.mxu0 0
      %530 = vmatpush1.bf16.msra.mxu0 %v512
      %531 = vmatprep.subr.bf16.mxu0 0
      %532 = vmatpush1.bf16.msra.mxu0 %v513
      %533 = vmatprep.subr.bf16.mxu0 0
      %534 = vmatpush1.bf16.msra.mxu0 %v514
      %535 = vmatprep.subr.bf16.mxu0 0
      %536 = vmatpush1.bf16.msra.mxu0 %v515
      %537 = vmatprep.subr.bf16.mxu0 0
      %538 = vmatpush1.bf16.msra.mxu0 %v516
      %539 = vmatprep.subr.bf16.mxu0 0
      %540 = vmatpush1.bf16.msra.mxu0 %v517
      %541 = vmatprep.subr.bf16.mxu0 0
      %542 = vmatpush1.bf16.msra.mxu0 %v518
      %543 = vmatprep.subr.bf16.mxu0 0
      %544 = vmatpush1.bf16.msra.mxu0 0
      %545 = vmatprep.subr.bf16.mxu0 0
      %546 = vmatpush1.bf16.msra.mxu0 0
      %547 = vmatprep.subr.bf16.mxu0 0
      %548 = vmatpush1.bf16.msra.mxu0 0
      %549 = vmatprep.subr.bf16.mxu0 0
      %550 = vmatpush1.bf16.msra.mxu0 0
      %551 = vmatprep.subr.bf16.mxu0 0
      %552 = vmatpush1.bf16.msra.mxu0 0
      %553 = vmatprep.subr.bf16.mxu0 0
      %554 = vmatpush1.bf16.msra.mxu0 0
      %555 = vmatprep.subr.bf16.mxu0 0
      %556 = vmatpush1.bf16.msra.mxu0 0
      %557 = vmatprep.subr.bf16.mxu0 0
      %558 = vmatpush1.bf16.msra.mxu0 0
      %559 = vmatprep.mubr.bf16.mxu0 0
      %560 = vmatmul.mubr.bf16.gmra.mrb[0].mxu0 %v447
      %v561 = vpop.f32.mrb[0].mxu0
      %v562 = vadd.f32 0.0, %v561
      %v563 = vpop.f32.mrb[0].mxu0
      %v564 = vpop.f32.mrb[0].mxu0
      %v565 = vadd.f32 0.0, %v564
      %v566 = vpop.f32.mrb[0].mxu0
      %567 = vmatprep.mubr.bf16.mxu0 0
      %568 = vmatmul.mubr.bf16.gmra.mrb[0].mxu0 %v448
      %v569 = vpop.f32.mrb[0].mxu0
      %v570 = vadd.f32 0.0, %v569
      %v571 = vpop.f32.mrb[0].mxu0
      %v572 = vpop.f32.mrb[0].mxu0
      %v573 = vadd.f32 0.0, %v572
      %v574 = vpop.f32.mrb[0].mxu0
      %575 = vmatprep.mubr.bf16.mxu0 0
      %576 = vmatmul.mubr.bf16.gmra.mrb[0].mxu0 %v449
      %v577 = vpop.f32.mrb[0].mxu0
      %v578 = vadd.f32 0.0, %v577
      %v579 = vpop.f32.mrb[0].mxu0
      %v580 = vpop.f32.mrb[0].mxu0
      %v581 = vadd.f32 0.0, %v580
      %v582 = vpop.f32.mrb[0].mxu0
      %583 = vmatprep.mubr.bf16.mxu0 0
      %584 = vmatmul.mubr.bf16.gmra.mrb[0].mxu0 %v450
      %v585 = vpop.f32.mrb[0].mxu0
      %v586 = vadd.f32 0.0, %v585
      %v587 = vpop.f32.mrb[0].mxu0
      %v588 = vpop.f32.mrb[0].mxu0
      %v589 = vadd.f32 0.0, %v588
      %v590 = vpop.f32.mrb[0].mxu0
      %591 = vmatprep.mubr.bf16.mxu0 0
      %592 = vmatmul.mubr.bf16.gmra.mrb[0].mxu0 %v451
      %v593 = vpop.f32.mrb[0].mxu0
      %v594 = vadd.f32 0.0, %v593
      %v595 = vpop.f32.mrb[0].mxu0
      %v596 = vpop.f32.mrb[0].mxu0
      %v597 = vadd.f32 0.0, %v596
      %v598 = vpop.f32.mrb[0].mxu0
      %599 = vmatprep.mubr.bf16.mxu0 0
      %600 = vmatmul.mubr.bf16.gmra.mrb[0].mxu0 %v452
      %v601 = vpop.f32.mrb[0].mxu0
      %v602 = vadd.f32 0.0, %v601
      %v603 = vpop.f32.mrb[0].mxu0
      %v604 = vpop.f32.mrb[0].mxu0
      %v605 = vadd.f32 0.0, %v604
      %v606 = vpop.f32.mrb[0].mxu0
      %607 = vmatprep.mubr.bf16.mxu0 0
      %608 = vmatmul.mubr.bf16.gmra.mrb[0].mxu0 %v453
      %v609 = vpop.f32.mrb[0].mxu0
      %v610 = vadd.f32 0.0, %v609
      %v611 = vpop.f32.mrb[0].mxu0
      %v612 = vpop.f32.mrb[0].mxu0
      %v613 = vadd.f32 0.0, %v612
      %v614 = vpop.f32.mrb[0].mxu0
      %615 = vmatprep.mubr.bf16.mxu0 0
      %616 = vmatmul.mubr.bf16.gmra.mrb[0].mxu0 %v454
      %v617 = vpop.f32.mrb[0].mxu0
      %v618 = vadd.f32 0.0, %v617
      %v619 = vpop.f32.mrb[0].mxu0
      %v620 = vpop.f32.mrb[0].mxu0
      %v621 = vadd.f32 0.0, %v620
      %v622 = vpop.f32.mrb[0].mxu0
      %623 = vmatprep.mubr.bf16.mxu0 0
      %624 = vmatmul.mubr.bf16.gmra.mrb[0].mxu0 %v455
      %v625 = vpop.f32.mrb[0].mxu0
      %v626 = vadd.f32 0.0, %v625
      %v627 = vpop.f32.mrb[0].mxu0
      %v628 = vpop.f32.mrb[0].mxu0
      %v629 = vadd.f32 0.0, %v628
      %v630 = vpop.f32.mrb[0].mxu0
      %631 = vmatprep.mubr.bf16.mxu0 0
      %632 = vmatmul.mubr.bf16.gmra.mrb[0].mxu0 %v456
      %v633 = vpop.f32.mrb[0].mxu0
      %v634 = vadd.f32 0.0, %v633
      %v635 = vpop.f32.mrb[0].mxu0
      %v636 = vpop.f32.mrb[0].mxu0
      %v637 = vadd.f32 0.0, %v636
      %v638 = vpop.f32.mrb[0].mxu0
      %639 = vmatprep.mubr.bf16.mxu0 0
      %640 = vmatmul.mubr.bf16.gmra.mrb[0].mxu0 %v457
      %v641 = vpop.f32.mrb[0].mxu0
      %v642 = vadd.f32 0.0, %v641
      %v643 = vpop.f32.mrb[0].mxu0
      %v644 = vpop.f32.mrb[0].mxu0
      %v645 = vadd.f32 0.0, %v644
      %v646 = vpop.f32.mrb[0].mxu0
      %647 = vmatprep.mubr.bf16.mxu0 0
      %648 = vmatmul.mubr.bf16.gmra.mrb[0].mxu0 %v458
      %v649 = vpop.f32.mrb[0].mxu0
      %v650 = vadd.f32 0.0, %v649
      %v651 = vpop.f32.mrb[0].mxu0
      %v652 = vpop.f32.mrb[0].mxu0
      %v653 = vadd.f32 0.0, %v652
      %v654 = vpop.f32.mrb[0].mxu0
      %655 = vmatprep.mubr.bf16.mxu0 0
      %656 = vmatmul.mubr.bf16.gmra.mrb[0].mxu0 %v459
      %v657 = vpop.f32.mrb[0].mxu0
      %v658 = vadd.f32 0.0, %v657
      %v659 = vpop.f32.mrb[0].mxu0
      %v660 = vpop.f32.mrb[0].mxu0
      %v661 = vadd.f32 0.0, %v660
      %v662 = vpop.f32.mrb[0].mxu0
      %663 = vmatprep.mubr.bf16.mxu0 0
      %664 = vmatmul.mubr.bf16.gmra.mrb[0].mxu0 %v460
      %v665 = vpop.f32.mrb[0].mxu0
      %v666 = vadd.f32 0.0, %v665
      %v667 = vpop.f32.mrb[0].mxu0
      %v668 = vpop.f32.mrb[0].mxu0
      %v669 = vadd.f32 0.0, %v668
      %v670 = vpop.f32.mrb[0].mxu0
      %671 = vmatprep.mubr.bf16.mxu0 0
      %672 = vmatmul.mubr.bf16.gmra.mrb[0].mxu0 %v461
      %v673 = vpop.f32.mrb[0].mxu0
      %v674 = vadd.f32 0.0, %v673
      %v675 = vpop.f32.mrb[0].mxu0
      %v676 = vpop.f32.mrb[0].mxu0
      %v677 = vadd.f32 0.0, %v676
      %v678 = vpop.f32.mrb[0].mxu0
      %679 = vmatprep.mubr.bf16.mxu0 0
      %680 = vmatmul.mubr.bf16.gmra.mrb[0].mxu0 %v462
      %v681 = vpop.f32.mrb[0].mxu0
      %v682 = vadd.f32 0.0, %v681
      %v683 = vpop.f32.mrb[0].mxu0
      %v684 = vpop.f32.mrb[0].mxu0
      %v685 = vadd.f32 0.0, %v684
      %v686 = vpop.f32.mrb[0].mxu0
      %687 = vdwg.mxu0
      %v688 = vpack.c.bf16 %v565, %v562
      %v689 = vpack.c.bf16 %v573, %v570
      %v690 = vpack.c.bf16 %v581, %v578
      %v691 = vpack.c.bf16 %v589, %v586
      %v692 = vpack.c.bf16 %v597, %v594
      %v693 = vpack.c.bf16 %v605, %v602
      %v694 = vpack.c.bf16 %v613, %v610
      %v695 = vpack.c.bf16 %v621, %v618
      %v696 = vpack.c.bf16 %v629, %v626
      %v697 = vpack.c.bf16 %v637, %v634
      %v698 = vpack.c.bf16 %v645, %v642
      %v699 = vpack.c.bf16 %v653, %v650
      %v700 = vpack.c.bf16 %v661, %v658
      %v701 = vpack.c.bf16 %v669, %v666
      %v702 = vpack.c.bf16 %v677, %v674
      %v703 = vpack.c.bf16 %v685, %v682
      %v720 = vunpack.c.l.b16 %v688
      %v721 = vunpack.c.h.b16 %v688
      %v722 = vunpack.c.l.b16 %v689
      %v723 = vunpack.c.h.b16 %v689
      %v724 = vunpack.c.l.b16 %v690
      %v725 = vunpack.c.h.b16 %v690
      %v726 = vunpack.c.l.b16 %v691
      %v727 = vunpack.c.h.b16 %v691
      %v728 = vunpack.c.l.b16 %v692
      %v729 = vunpack.c.h.b16 %v692
      %v730 = vunpack.c.l.b16 %v693
      %v731 = vunpack.c.h.b16 %v693
      %v732 = vunpack.c.l.b16 %v694
      %v733 = vunpack.c.h.b16 %v694
      %v734 = vunpack.c.l.b16 %v695
      %v735 = vunpack.c.h.b16 %v695
      %v736 = vunpack.c.l.b16 %v696
      %v737 = vunpack.c.h.b16 %v696
      %v738 = vunpack.c.l.b16 %v697
      %v739 = vunpack.c.h.b16 %v697
      %v740 = vunpack.c.l.b16 %v698
      %v741 = vunpack.c.h.b16 %v698
      %v742 = vunpack.c.l.b16 %v699
      %v743 = vunpack.c.h.b16 %v699
      %v744 = vunpack.c.l.b16 %v700
      %v745 = vunpack.c.h.b16 %v700
      %v746 = vunpack.c.l.b16 %v701
      %v747 = vunpack.c.h.b16 %v701
      %v748 = vunpack.c.l.b16 %v702
      %v749 = vunpack.c.h.b16 %v702
      %v750 = vunpack.c.l.b16 %v703
      %v751 = vunpack.c.h.b16 %v703
      %v752 = vpack.c.b16 %v720, %v720
      %v753 = vpack.c.b16 %v721, %v721
      %v754 = vpack.c.b16 %v722, %v722
      %v755 = vpack.c.b16 %v723, %v723
      %v756 = vpack.c.b16 %v724, %v724
      %v757 = vpack.c.b16 %v725, %v725
      %v758 = vpack.c.b16 %v726, %v726
      %v759 = vpack.c.b16 %v727, %v727
      %v760 = vpack.c.b16 %v728, %v728
      %v761 = vpack.c.b16 %v729, %v729
      %v762 = vpack.c.b16 %v730, %v730
      %v763 = vpack.c.b16 %v731, %v731
      %v764 = vpack.c.b16 %v732, %v732
      %v765 = vpack.c.b16 %v733, %v733
      %v766 = vpack.c.b16 %v734, %v734
      %v767 = vpack.c.b16 %v735, %v735
      %v768 = vpack.c.b16 %v736, %v736
      %v769 = vpack.c.b16 %v737, %v737
      %v770 = vpack.c.b16 %v738, %v738
      %v771 = vpack.c.b16 %v739, %v739
      %v772 = vpack.c.b16 %v740, %v740
      %v773 = vpack.c.b16 %v741, %v741
      %v774 = vpack.c.b16 %v742, %v742
      %v775 = vpack.c.b16 %v743, %v743
      %v776 = vpack.c.b16 %v744, %v744
      %v777 = vpack.c.b16 %v745, %v745
      %v778 = vpack.c.b16 %v746, %v746
      %v779 = vpack.c.b16 %v747, %v747
      %v780 = vpack.c.b16 %v748, %v748
      %v781 = vpack.c.b16 %v749, %v749
      %v782 = vpack.c.b16 %v750, %v750
      %v783 = vpack.c.b16 %v751, %v751
      %816 = vst [vmem:[%s264] sm:$0xf] %v752
      %817 = vst [vmem:[%s264 + $0x4] sm:$0xf] %v753
      %818 = vst [vmem:[%s264 + $0x8] sm:$0xf] %v754
      %819 = vst [vmem:[%s264 + $0xc] sm:$0xf] %v755
      %820 = vst [vmem:[%s264 + $0x10] sm:$0xf] %v756
      %821 = vst [vmem:[%s264 + $0x14] sm:$0xf] %v757
      %822 = vst [vmem:[%s264 + $0x18] sm:$0xf] %v758
      %823 = vst [vmem:[%s264 + $0x1c] sm:$0xf] %v759
      %824 = vst [vmem:[%s264 + $0x20] sm:$0xf] %v760
      %825 = vst [vmem:[%s264 + $0x24] sm:$0xf] %v761
      %826 = vst [vmem:[%s264 + $0x28] sm:$0xf] %v762
      %827 = vst [vmem:[%s264 + $0x2c] sm:$0xf] %v763
      %828 = vst [vmem:[%s264 + $0x30] sm:$0xf] %v764
      %829 = vst [vmem:[%s264 + $0x34] sm:$0xf] %v765
      %830 = vst [vmem:[%s264 + $0x38] sm:$0xf] %v766
      %831 = vst [vmem:[%s264 + $0x3c] sm:$0xf] %v767
      %832 = vst [vmem:[%s264 + $0x40] sm:$0xf] %v768
      %833 = vst [vmem:[%s264 + $0x44] sm:$0xf] %v769
      %834 = vst [vmem:[%s264 + $0x48] sm:$0xf] %v770
      %835 = vst [vmem:[%s264 + $0x4c] sm:$0xf] %v771
      %836 = vst [vmem:[%s264 + $0x50] sm:$0xf] %v772
      %837 = vst [vmem:[%s264 + $0x54] sm:$0xf] %v773
      %838 = vst [vmem:[%s264 + $0x58] sm:$0xf] %v774
      %839 = vst [vmem:[%s264 + $0x5c] sm:$0xf] %v775
      %840 = vst [vmem:[%s264 + $0x60] sm:$0xf] %v776
      %841 = vst [vmem:[%s264 + $0x64] sm:$0xf] %v777
      %842 = vst [vmem:[%s264 + $0x68] sm:$0xf] %v778
      %843 = vst [vmem:[%s264 + $0x6c] sm:$0xf] %v779
      %844 = vst [vmem:[%s264 + $0x70] sm:$0xf] %v780
      %845 = vst [vmem:[%s264 + $0x74] sm:$0xf] %v781
      %846 = vst [vmem:[%s264 + $0x78] sm:$0xf] %v782
      %847 = vst [vmem:[%s264 + $0x7c] sm:$0xf] %v783
      %v848 = vunpack.c.l.bf16 %v688
      %v849 = vunpack.c.h.bf16 %v688
      %v850 = vunpack.c.l.bf16 %v689
      %v851 = vunpack.c.h.bf16 %v689
      %v852 = vunpack.c.l.bf16 %v690
      %v853 = vunpack.c.h.bf16 %v690
      %v854 = vunpack.c.l.bf16 %v691
      %v855 = vunpack.c.h.bf16 %v691
      %v856 = vunpack.c.l.bf16 %v692
      %v857 = vunpack.c.h.bf16 %v692
      %v858 = vunpack.c.l.bf16 %v693
      %v859 = vunpack.c.h.bf16 %v693
      %v860 = vunpack.c.l.bf16 %v694
      %v861 = vunpack.c.h.bf16 %v694
      %v862 = vunpack.c.l.bf16 %v695
      %v863 = vunpack.c.h.bf16 %v695
      %v864 = vunpack.c.l.bf16 %v696
      %v865 = vunpack.c.h.bf16 %v696
      %v866 = vunpack.c.l.bf16 %v697
      %v867 = vunpack.c.h.bf16 %v697
      %v868 = vunpack.c.l.bf16 %v698
      %v869 = vunpack.c.h.bf16 %v698
      %v870 = vunpack.c.l.bf16 %v699
      %v871 = vunpack.c.h.bf16 %v699
      %v872 = vunpack.c.l.bf16 %v700
      %v873 = vunpack.c.h.bf16 %v700
      %v874 = vunpack.c.l.bf16 %v701
      %v875 = vunpack.c.h.bf16 %v701
      %v876 = vunpack.c.l.bf16 %v702
      %v877 = vunpack.c.h.bf16 %v702
      %v878 = vunpack.c.l.bf16 %v703
      %v879 = vunpack.c.h.bf16 %v703
      %v880 = vadd.f32 %v848, %v849
      %v881 = vadd.f32 %v880, %v850
      %v882 = vadd.f32 %v881, %v851
      %v883 = vadd.f32 %v882, %v852
      %v884 = vadd.f32 %v883, %v853
      %v885 = vadd.f32 %v884, %v854
      %v886 = vadd.f32 %v885, %v855
      %v887 = vadd.f32 %v886, %v856
      %v888 = vadd.f32 %v887, %v857
      %v889 = vadd.f32 %v888, %v858
      %v890 = vadd.f32 %v889, %v859
      %v891 = vadd.f32 %v890, %v860
      %v892 = vadd.f32 %v891, %v861
      %v893 = vadd.f32 %v892, %v862
      %v894 = vadd.f32 %v893, %v863
      %v895 = vadd.f32 %v894, %v864
      %v896 = vadd.f32 %v895, %v865
      %v897 = vadd.f32 %v896, %v866
      %v898 = vadd.f32 %v897, %v867
      %v899 = vadd.f32 %v898, %v868
      %v900 = vadd.f32 %v899, %v869
      %v901 = vadd.f32 %v900, %v870
      %v902 = vadd.f32 %v901, %v871
      %v903 = vadd.f32 %v902, %v872
      %v904 = vadd.f32 %v903, %v873
      %v905 = vadd.f32 %v904, %v874
      %v906 = vadd.f32 %v905, %v875
      %v907 = vadd.f32 %v906, %v876
      %v908 = vadd.f32 %v907, %v877
      %v909 = vadd.f32 %v908, %v878
      %v910 = vadd.f32 %v909, %v879
      %v911 = vrot.slane %v910, 4
      %v912 = vadd.f32 %v910, %v911
      %v913 = vrot.slane %v912, 2
      %v914 = vadd.f32 %v912, %v913
      %v915 = vrot.slane %v914, 1
      %v916 = vadd.f32 %v914, %v915
      %917 = vst [vmem:[%s268] sm:$0x1] %v916
      %v918 = vmul.f32 %v848, %v848
      %v919 = vmul.f32 %v849, %v849
      %v920 = vmul.f32 %v850, %v850
      %v921 = vmul.f32 %v851, %v851
      %v922 = vmul.f32 %v852, %v852
      %v923 = vmul.f32 %v853, %v853
      %v924 = vmul.f32 %v854, %v854
      %v925 = vmul.f32 %v855, %v855
      %v926 = vmul.f32 %v856, %v856
      %v927 = vmul.f32 %v857, %v857
      %v928 = vmul.f32 %v858, %v858
      %v929 = vmul.f32 %v859, %v859
      %v930 = vmul.f32 %v860, %v860
      %v931 = vmul.f32 %v861, %v861
      %v932 = vmul.f32 %v862, %v862
      %v933 = vmul.f32 %v863, %v863
      %v934 = vmul.f32 %v864, %v864
      %v935 = vmul.f32 %v865, %v865
      %v936 = vmul.f32 %v866, %v866
      %v937 = vmul.f32 %v867, %v867
      %v938 = vmul.f32 %v868, %v868
      %v939 = vmul.f32 %v869, %v869
      %v940 = vmul.f32 %v870, %v870
      %v941 = vmul.f32 %v871, %v871
      %v942 = vmul.f32 %v872, %v872
      %v943 = vmul.f32 %v873, %v873
      %v944 = vmul.f32 %v874, %v874
      %v945 = vmul.f32 %v875, %v875
      %v946 = vmul.f32 %v876, %v876
      %v947 = vmul.f32 %v877, %v877
      %v948 = vmul.f32 %v878, %v878
      %v949 = vmul.f32 %v879, %v879
      %v950 = vadd.f32 %v918, %v919
      %v951 = vadd.f32 %v950, %v920
      %v952 = vadd.f32 %v951, %v921
      %v953 = vadd.f32 %v952, %v922
      %v954 = vadd.f32 %v953, %v923
      %v955 = vadd.f32 %v954, %v924
      %v956 = vadd.f32 %v955, %v925
      %v957 = vadd.f32 %v956, %v926
      %v958 = vadd.f32 %v957, %v927
      %v959 = vadd.f32 %v958, %v928
      %v960 = vadd.f32 %v959, %v929
      %v961 = vadd.f32 %v960, %v930
      %v962 = vadd.f32 %v961, %v931
      %v963 = vadd.f32 %v962, %v932
      %v964 = vadd.f32 %v963, %v933
      %v965 = vadd.f32 %v964, %v934
      %v966 = vadd.f32 %v965, %v935
      %v967 = vadd.f32 %v966, %v936
      %v968 = vadd.f32 %v967, %v937
      %v969 = vadd.f32 %v968, %v938
      %v970 = vadd.f32 %v969, %v939
      %v971 = vadd.f32 %v970, %v940
      %v972 = vadd.f32 %v971, %v941
      %v973 = vadd.f32 %v972, %v942
      %v974 = vadd.f32 %v973, %v943
      %v975 = vadd.f32 %v974, %v944
      %v976 = vadd.f32 %v975, %v945
      %v977 = vadd.f32 %v976, %v946
      %v978 = vadd.f32 %v977, %v947
      %v979 = vadd.f32 %v978, %v948
      %v980 = vadd.f32 %v979, %v949
      %v981 = vrot.slane %v980, 4
      %v982 = vadd.f32 %v980, %v981
      %v983 = vrot.slane %v982, 2
      %v984 = vadd.f32 %v982, %v983
      %v985 = vrot.slane %v984, 1
      %v986 = vadd.f32 %v984, %v985
      %987 = vst [vmem:[%s271] sm:$0x1] %v986
      %s988 = smul.u32 32, %s18
      %p989 = scmp.lt.s32.totalorder %s988, 63
      %s990 = scalar_select %p989, %s988, 63
      %s991 = smul.addr %s990, 4
      %s992 = scalar_lea.vmem %s4, %s991
      %p993 = scmp.lt.s32.totalorder %s18, 1
      %s994 = scalar_select %p993, %s18, 1
      %s995 = scalar_lea.vmem %s5, %s994
      %p996 = scmp.lt.s32.totalorder %s18, 1
      %s997 = scalar_select %p996, %s18, 1
      %s998 = scalar_lea.vmem %s6, %s997
      // Predicated region
      $region37: #{preact_bottleneck_pallas.3} parent=35 // pred_check
        %p999 = pneg %p125
      $region38: #{preact_bottleneck_pallas.3} parent=35 // pred_check_branch
        %1001 = sbr.rel (%p999) target = $region40
      $region39: #{preact_bottleneck_pallas.3} parent=35 // pred_region
        %s1002 = smul.u32 32, %s18
      $region40: #{preact_bottleneck_pallas.3} parent=35 // pred_fallthru
        _
      // Predicated region
      $region41: #{preact_bottleneck_pallas.3} parent=35 // pred_check
        %p1003 = pneg %p151
      $region42: #{preact_bottleneck_pallas.3} parent=35 // pred_check_branch
        %1005 = sbr.rel (%p1003) target = $region44
      $region43: #{preact_bottleneck_pallas.3} parent=35 // pred_region
        _
      $region44: #{preact_bottleneck_pallas.3} parent=35 // pred_fallthru
        _
      // Predicated region
      $region45: #{preact_bottleneck_pallas.3} parent=35 // pred_check
        %p1006 = pneg %p177
      $region46: #{preact_bottleneck_pallas.3} parent=35 // pred_check_branch
        %1008 = sbr.rel (%p1006) target = $region48
      $region47: #{preact_bottleneck_pallas.3} parent=35 // pred_region
        _
      $region48: #{preact_bottleneck_pallas.3} parent=35 // pred_fallthru
        _
    $region36: #{preact_bottleneck_pallas.3} parent=5 // pred_fallthru
      _
    %p1009 = scmp.le.s32.totalorder 2, %s13
    // Predicated region
    $region49: #{preact_bottleneck_pallas.3} parent=5 // pred_check
      %p1010 = pneg %p1009
    $region50: #{preact_bottleneck_pallas.3} parent=5 // pred_check_branch
      %1012 = sbr.rel (%p1010) target = $region52
    $region51: #{preact_bottleneck_pallas.3} parent=5 // pred_region
      %s1013 = ssub.s32 %s13, 2
      // Predicated region
      $region53: #{preact_bottleneck_pallas.3} parent=51 // pred_check
        %p1014 = pneg %p131
      $region54: #{preact_bottleneck_pallas.3} parent=51 // pred_check_branch
        %1016 = sbr.rel (%p1014) target = $region56
      $region55: #{preact_bottleneck_pallas.3} parent=51 // pred_region
        %s1017 = smul.u32 32, %s19
        %p1018 = scmp.lt.s32.totalorder %s1017, 63
        %s1019 = scalar_select %p1018, %s1017, 63
        %s1020 = smul.addr %s1019, 4
        %s1021 = scalar_lea.vmem %s4, %s1020
      $region56: #{preact_bottleneck_pallas.3} parent=51 // pred_fallthru
        _
      // Predicated region
      $region57: #{preact_bottleneck_pallas.3} parent=51 // pred_check
        %p1022 = pneg %p157
      $region58: #{preact_bottleneck_pallas.3} parent=51 // pred_check_branch
        %1024 = sbr.rel (%p1022) target = $region60
      $region59: #{preact_bottleneck_pallas.3} parent=51 // pred_region
        %p1025 = scmp.lt.s32.totalorder %s19, 1
        %s1026 = scalar_select %p1025, %s19, 1
        %s1027 = scalar_lea.vmem %s5, %s1026
      $region60: #{preact_bottleneck_pallas.3} parent=51 // pred_fallthru
        _
      // Predicated region
      $region61: #{preact_bottleneck_pallas.3} parent=51 // pred_check
        %p1028 = pneg %p183
      $region62: #{preact_bottleneck_pallas.3} parent=51 // pred_check_branch
        %1030 = sbr.rel (%p1028) target = $region64
      $region63: #{preact_bottleneck_pallas.3} parent=51 // pred_region
        %p1031 = scmp.lt.s32.totalorder %s19, 1
        %s1032 = scalar_select %p1031, %s19, 1
        %s1033 = scalar_lea.vmem %s6, %s1032
      $region64: #{preact_bottleneck_pallas.3} parent=51 // pred_fallthru
        _
    $region52: #{preact_bottleneck_pallas.3} parent=5 // pred_fallthru
      _
  $region6: #{preact_bottleneck_pallas.3} parent=0 // loop_footer
    %s17 = sadd.s32 1, %s13
  $region7: #{preact_bottleneck_pallas.3} parent=0 // loop_footer_branch
    %12 = sbr.rel target = $region3
  $region8: #{preact_bottleneck_pallas.3} parent=0 // loop_exit
    _

// kernel: preact_bottleneck_pallas.5
$region0: #{preact_bottleneck_pallas.5}
  #allocation0 [shape = 'u32[]', space=smem, size = 0x4, offset = 0x4, fixed_abs, tag = 'smem constant byte address 0x4 - core index']
  #allocation1 [shape = 'u32[144,128]{1,0:T(1,128)}', space=vmem, size = 0x12000, scoped, tag = 'internal scratch']
  %s0 = inlined_call_operand.vmem [shape: bf16[512,128], index: 0, kind: input, shape index: {}]
  %s1 = inlined_call_operand.vmem [shape: bf16[512,128], index: 1, kind: input, shape index: {}]
  %s2 = inlined_call_operand.vmem [shape: f32[1,128], index: 2, kind: input, shape index: {}]
  %s3 = inlined_call_operand.vmem [shape: f32[1,128], index: 3, kind: input, shape index: {}]
  %s4 = inlined_call_operand.vmem [shape: f32[1,128], index: 4, kind: input, shape index: {}]
  %s5 = inlined_call_operand.vmem [shape: f32[1,128], index: 5, kind: input, shape index: {}]
  %s6 = inlined_call_operand.vmem [shape: bf16[256,128], index: 6, kind: input, shape index: {}]
  %s7 = inlined_call_operand.vmem [shape: f32[512,128], index: 7, kind: output, shape index: {}]
  %s8 = sld [smem:[#allocation0]]
  $region61: #{preact_bottleneck_pallas.5} parent=0
    _
  %s10 = ssub.s32 1, %s8
  %s11 = scalar_select 0, %s10, %s8
  loop: start=0, step=1, limit=4
  $region2: #{preact_bottleneck_pallas.5} parent=0 // loop_pre_header
    _
  $region3: #{preact_bottleneck_pallas.5} parent=0 // loop_header
    %s13 = sphi 0, %s17
    %p14 = scmp.ge.s32.totalorder %s13, 4
    %s23 = sphi 0, %s25
    %s26 = sphi 0, %s23
    %s27 = sphi 0, %s26
    %s43 = sphi 0, %s27
    %s49 = sphi 0, %s51
    %s52 = sphi 0, %s49
    %s53 = sphi 0, %s52
    %s69 = sphi 0, %s53
    %s73 = sphi 0, %s73
    %s75 = sphi 0, %s73
    %s76 = sphi 0, %s75
    %s90 = sphi 0, %s76
    %s94 = sphi 0, %s94
    %s96 = sphi 0, %s94
    %s97 = sphi 0, %s96
    %s111 = sphi 0, %s97
    %s115 = sphi 0, %s115
    %s117 = sphi 0, %s115
    %s118 = sphi 0, %s117
    %s132 = sphi 0, %s118
    %s136 = sphi 0, %s136
    %s138 = sphi 0, %s136
    %s139 = sphi 0, %s138
    %s153 = sphi 0, %s139
    %s157 = sphi 0, %s157
    %s159 = sphi 0, %s157
    %s160 = sphi 0, %s159
    %s174 = sphi 0, %s160
    %s180 = sphi 0, %s182
    %s183 = sphi 0, %s180
    %s184 = sphi 0, %s183
    %s200 = sphi 0, %s184
  $region4: #{preact_bottleneck_pallas.5} parent=0 // loop_header_branch
    %16 = sbr.rel (%p14) target = $region8
  $region5: #{preact_bottleneck_pallas.5} parent=0 // loop_body
    %s18 = ssub.s32 %s13, 1
    %s19 = ssub.s32 %s13, 2
    %s20 = sadd.s32 %s13, 1
    %s21 = ssub.s32 %s13, %s20
    %p22 = scmp.eq.s32.totalorder %s21, 0
    %s24 = sadd.s32 %s23, 1
    %s25 = scalar_select %p22, %s23, %s24
    %p28 = pneg %p22
    %p29 = scmp.eq.s32.totalorder %s13, 1
    %p30 = por %p28, %p29
    %p31 = scmp.ne.s32.totalorder %s23, %s26
    %p32 = scmp.eq.s32.totalorder %s13, 0
    %p33 = por %p31, %p32
    %p34 = scmp.ne.s32.totalorder %s23, %s26
    %p35 = scmp.eq.s32.totalorder %s18, 1
    %p36 = por %p34, %p35
    %p37 = scmp.ne.s32.totalorder %s26, %s27
    %p38 = scmp.eq.s32.totalorder %s18, 0
    %p39 = por %p37, %p38
    %p40 = scmp.ne.s32.totalorder %s26, %s27
    %p41 = scmp.eq.s32.totalorder %s19, 1
    %p42 = por %p40, %p41
    %p44 = scmp.ne.s32.totalorder %s27, %s43
    %p45 = scmp.eq.s32.totalorder %s19, 0
    %p46 = por %p44, %p45
    %s47 = ssub.s32 %s13, %s20
    %p48 = scmp.eq.s32.totalorder %s47, 0
    %s50 = sadd.s32 %s49, 1
    %s51 = scalar_select %p48, %s49, %s50
    %p54 = pneg %p48
    %p55 = scmp.eq.s32.totalorder %s13, 1
    %p56 = por %p54, %p55
    %p57 = scmp.ne.s32.totalorder %s49, %s52
    %p58 = scmp.eq.s32.totalorder %s13, 0
    %p59 = por %p57, %p58
    %p60 = scmp.ne.s32.totalorder %s49, %s52
    %p61 = scmp.eq.s32.totalorder %s18, 1
    %p62 = por %p60, %p61
    %p63 = scmp.ne.s32.totalorder %s52, %s53
    %p64 = scmp.eq.s32.totalorder %s18, 0
    %p65 = por %p63, %p64
    %p66 = scmp.ne.s32.totalorder %s52, %s53
    %p67 = scmp.eq.s32.totalorder %s19, 1
    %p68 = por %p66, %p67
    %p70 = scmp.ne.s32.totalorder %s53, %s69
    %p71 = scmp.eq.s32.totalorder %s19, 0
    %p72 = por %p70, %p71
    %s74 = sadd.s32 %s73, 1
    %p77 = scmp.eq.s32.totalorder %s13, 1
    %p78 = scmp.ne.s32.totalorder %s73, %s75
    %p79 = scmp.eq.s32.totalorder %s13, 0
    %p80 = por %p78, %p79
    %p81 = scmp.ne.s32.totalorder %s73, %s75
    %p82 = scmp.eq.s32.totalorder %s18, 1
    %p83 = por %p81, %p82
    %p84 = scmp.ne.s32.totalorder %s75, %s76
    %p85 = scmp.eq.s32.totalorder %s18, 0
    %p86 = por %p84, %p85
    %p87 = scmp.ne.s32.totalorder %s75, %s76
    %p88 = scmp.eq.s32.totalorder %s19, 1
    %p89 = por %p87, %p88
    %p91 = scmp.ne.s32.totalorder %s76, %s90
    %p92 = scmp.eq.s32.totalorder %s19, 0
    %p93 = por %p91, %p92
    %s95 = sadd.s32 %s94, 1
    %p98 = scmp.eq.s32.totalorder %s13, 1
    %p99 = scmp.ne.s32.totalorder %s94, %s96
    %p100 = scmp.eq.s32.totalorder %s13, 0
    %p101 = por %p99, %p100
    %p102 = scmp.ne.s32.totalorder %s94, %s96
    %p103 = scmp.eq.s32.totalorder %s18, 1
    %p104 = por %p102, %p103
    %p105 = scmp.ne.s32.totalorder %s96, %s97
    %p106 = scmp.eq.s32.totalorder %s18, 0
    %p107 = por %p105, %p106
    %p108 = scmp.ne.s32.totalorder %s96, %s97
    %p109 = scmp.eq.s32.totalorder %s19, 1
    %p110 = por %p108, %p109
    %p112 = scmp.ne.s32.totalorder %s97, %s111
    %p113 = scmp.eq.s32.totalorder %s19, 0
    %p114 = por %p112, %p113
    %s116 = sadd.s32 %s115, 1
    %p119 = scmp.eq.s32.totalorder %s13, 1
    %p120 = scmp.ne.s32.totalorder %s115, %s117
    %p121 = scmp.eq.s32.totalorder %s13, 0
    %p122 = por %p120, %p121
    %p123 = scmp.ne.s32.totalorder %s115, %s117
    %p124 = scmp.eq.s32.totalorder %s18, 1
    %p125 = por %p123, %p124
    %p126 = scmp.ne.s32.totalorder %s117, %s118
    %p127 = scmp.eq.s32.totalorder %s18, 0
    %p128 = por %p126, %p127
    %p129 = scmp.ne.s32.totalorder %s117, %s118
    %p130 = scmp.eq.s32.totalorder %s19, 1
    %p131 = por %p129, %p130
    %p133 = scmp.ne.s32.totalorder %s118, %s132
    %p134 = scmp.eq.s32.totalorder %s19, 0
    %p135 = por %p133, %p134
    %s137 = sadd.s32 %s136, 1
    %p140 = scmp.eq.s32.totalorder %s13, 1
    %p141 = scmp.ne.s32.totalorder %s136, %s138
    %p142 = scmp.eq.s32.totalorder %s13, 0
    %p143 = por %p141, %p142
    %p144 = scmp.ne.s32.totalorder %s136, %s138
    %p145 = scmp.eq.s32.totalorder %s18, 1
    %p146 = por %p144, %p145
    %p147 = scmp.ne.s32.totalorder %s138, %s139
    %p148 = scmp.eq.s32.totalorder %s18, 0
    %p149 = por %p147, %p148
    %p150 = scmp.ne.s32.totalorder %s138, %s139
    %p151 = scmp.eq.s32.totalorder %s19, 1
    %p152 = por %p150, %p151
    %p154 = scmp.ne.s32.totalorder %s139, %s153
    %p155 = scmp.eq.s32.totalorder %s19, 0
    %p156 = por %p154, %p155
    %s158 = sadd.s32 %s157, 1
    %p161 = scmp.eq.s32.totalorder %s13, 1
    %p162 = scmp.ne.s32.totalorder %s157, %s159
    %p163 = scmp.eq.s32.totalorder %s13, 0
    %p164 = por %p162, %p163
    %p165 = scmp.ne.s32.totalorder %s157, %s159
    %p166 = scmp.eq.s32.totalorder %s18, 1
    %p167 = por %p165, %p166
    %p168 = scmp.ne.s32.totalorder %s159, %s160
    %p169 = scmp.eq.s32.totalorder %s18, 0
    %p170 = por %p168, %p169
    %p171 = scmp.ne.s32.totalorder %s159, %s160
    %p172 = scmp.eq.s32.totalorder %s19, 1
    %p173 = por %p171, %p172
    %p175 = scmp.ne.s32.totalorder %s160, %s174
    %p176 = scmp.eq.s32.totalorder %s19, 0
    %p177 = por %p175, %p176
    %s178 = ssub.s32 %s13, %s20
    %p179 = scmp.eq.s32.totalorder %s178, 0
    %s181 = sadd.s32 %s180, 1
    %s182 = scalar_select %p179, %s180, %s181
    %p185 = pneg %p179
    %p186 = scmp.eq.s32.totalorder %s13, 1
    %p187 = por %p185, %p186
    %p188 = scmp.ne.s32.totalorder %s180, %s183
    %p189 = scmp.eq.s32.totalorder %s13, 0
    %p190 = por %p188, %p189
    %p191 = scmp.ne.s32.totalorder %s180, %s183
    %p192 = scmp.eq.s32.totalorder %s18, 1
    %p193 = por %p191, %p192
    %p194 = scmp.ne.s32.totalorder %s183, %s184
    %p195 = scmp.eq.s32.totalorder %s18, 0
    %p196 = por %p194, %p195
    %p197 = scmp.ne.s32.totalorder %s183, %s184
    %p198 = scmp.eq.s32.totalorder %s19, 1
    %p199 = por %p197, %p198
    %p201 = scmp.ne.s32.totalorder %s184, %s200
    %p202 = scmp.eq.s32.totalorder %s19, 0
    %p203 = por %p201, %p202
    %p204 = scmp.le.s32.totalorder 1, %s13
    %p205 = scmp.lt.s32.totalorder %s13, 3
    %p206 = pnand %p204, %p205
    %p207 = pneg %p206
    // Predicated region
    $region9: #{preact_bottleneck_pallas.5} parent=5 // pred_check
      _
    $region10: #{preact_bottleneck_pallas.5} parent=5 // pred_check_branch
      %209 = sbr.rel (%p206) target = $region12
    $region11: #{preact_bottleneck_pallas.5} parent=5 // pred_region
      %s210 = ssub.s32 %s13, 1
      // Predicated region
      $region13: #{preact_bottleneck_pallas.5} parent=11 // pred_check
        %p211 = pneg %p86
      $region14: #{preact_bottleneck_pallas.5} parent=11 // pred_check_branch
        %213 = sbr.rel (%p211) target = $region16
      $region15: #{preact_bottleneck_pallas.5} parent=11 // pred_region
        _
      $region16: #{preact_bottleneck_pallas.5} parent=11 // pred_fallthru
        _
      // Predicated region
      $region17: #{preact_bottleneck_pallas.5} parent=11 // pred_check
        %p214 = pneg %p107
      $region18: #{preact_bottleneck_pallas.5} parent=11 // pred_check_branch
        %216 = sbr.rel (%p214) target = $region20
      $region19: #{preact_bottleneck_pallas.5} parent=11 // pred_region
        _
      $region20: #{preact_bottleneck_pallas.5} parent=11 // pred_fallthru
        _
      // Predicated region
      $region21: #{preact_bottleneck_pallas.5} parent=11 // pred_check
        %p217 = pneg %p128
      $region22: #{preact_bottleneck_pallas.5} parent=11 // pred_check_branch
        %219 = sbr.rel (%p217) target = $region24
      $region23: #{preact_bottleneck_pallas.5} parent=11 // pred_region
        _
      $region24: #{preact_bottleneck_pallas.5} parent=11 // pred_fallthru
        _
      // Predicated region
      $region25: #{preact_bottleneck_pallas.5} parent=11 // pred_check
        %p220 = pneg %p149
      $region26: #{preact_bottleneck_pallas.5} parent=11 // pred_check_branch
        %222 = sbr.rel (%p220) target = $region28
      $region27: #{preact_bottleneck_pallas.5} parent=11 // pred_region
        _
      $region28: #{preact_bottleneck_pallas.5} parent=11 // pred_fallthru
        _
      // Predicated region
      $region29: #{preact_bottleneck_pallas.5} parent=11 // pred_check
        %p223 = pneg %p170
      $region30: #{preact_bottleneck_pallas.5} parent=11 // pred_check_branch
        %225 = sbr.rel (%p223) target = $region32
      $region31: #{preact_bottleneck_pallas.5} parent=11 // pred_region
        _
      $region32: #{preact_bottleneck_pallas.5} parent=11 // pred_fallthru
        _
    $region12: #{preact_bottleneck_pallas.5} parent=5 // pred_fallthru
      _
    %p226 = scmp.lt.s32.totalorder %s13, 2
    // Predicated region
    $region33: #{preact_bottleneck_pallas.5} parent=5 // pred_check
      %p227 = pneg %p226
    $region34: #{preact_bottleneck_pallas.5} parent=5 // pred_check_branch
      %229 = sbr.rel (%p227) target = $region36
    $region35: #{preact_bottleneck_pallas.5} parent=5 // pred_region
      // Predicated region
      $region37: #{preact_bottleneck_pallas.5} parent=35 // pred_check
        %p230 = pneg %p33
      $region38: #{preact_bottleneck_pallas.5} parent=35 // pred_check_branch
        %232 = sbr.rel (%p230) target = $region40
      $region39: #{preact_bottleneck_pallas.5} parent=35 // pred_region
        %s233 = smul.u32 32, %s13
        %p234 = scmp.lt.s32.totalorder %s233, 63
        %s235 = scalar_select %p234, %s233, 63
        %s236 = smul.addr %s235, 4
        %s237 = scalar_lea.vmem %s0, %s236
        %s238 = smul.u32 32, %s13
      $region40: #{preact_bottleneck_pallas.5} parent=35 // pred_fallthru
        _
      // Predicated region
      $region41: #{preact_bottleneck_pallas.5} parent=35 // pred_check
        %p239 = pneg %p59
      $region42: #{preact_bottleneck_pallas.5} parent=35 // pred_check_branch
        %241 = sbr.rel (%p239) target = $region44
      $region43: #{preact_bottleneck_pallas.5} parent=35 // pred_region
        %s242 = smul.u32 32, %s13
        %p243 = scmp.lt.s32.totalorder %s242, 63
        %s244 = scalar_select %p243, %s242, 63
        %s245 = smul.addr %s244, 4
        %s246 = scalar_lea.vmem %s1, %s245
        %s247 = smul.u32 32, %s13
      $region44: #{preact_bottleneck_pallas.5} parent=35 // pred_fallthru
        _
    $region36: #{preact_bottleneck_pallas.5} parent=5 // pred_fallthru
      _
    %p248 = scmp.le.s32.totalorder 1, %s13
    %p249 = scmp.lt.s32.totalorder %s13, 3
    %p250 = pnand %p248, %p249
    %p251 = pneg %p250
    // Predicated region
    $region45: #{preact_bottleneck_pallas.5} parent=5 // pred_check
      _
    $region46: #{preact_bottleneck_pallas.5} parent=5 // pred_check_branch
      %253 = sbr.rel (%p250) target = $region48
    $region47: #{preact_bottleneck_pallas.5} parent=5 // pred_region
      %s254 = ssub.s32 %s13, 1
      %s255 = smul.u32 32, %s18
      %p256 = scmp.lt.s32.totalorder %s255, 63
      %s257 = scalar_select %p256, %s255, 63
      %s258 = smul.addr %s257, 4
      %s259 = scalar_lea.vmem %s0, %s258
      %p260 = pneg %p39
      %p261 = pneg %p36
      %s262 = smul.u32 32, %s18
      %p263 = scmp.lt.s32.totalorder %s262, 63
      %s264 = scalar_select %p263, %s262, 63
      %s265 = smul.addr %s264, 4
      %s266 = scalar_lea.vmem %s1, %s265
      %p267 = pneg %p65
      %p268 = pneg %p62
      %p269 = pneg %p86
      %p270 = pneg %p83
      %p271 = pneg %p107
      %p272 = pneg %p104
      %p273 = pneg %p128
      %p274 = pneg %p125
      %p275 = pneg %p149
      %p276 = pneg %p146
      %p277 = pneg %p170
      %p278 = pneg %p167
      %p279 = pneg %p196
      %p280 = pneg %p193
      %s281 = smul.u32 32, %s18
      %p282 = scmp.lt.s32.totalorder %s281, 63
      %s283 = scalar_select %p282, %s281, 63
      %s284 = smul.addr %s283, 8
      %s285 = scalar_lea.vmem %s7, %s284
      %s286 = smul.u32 32, %s18
      %p287 = scmp.lt.s32.totalorder %s286, 63
      %s288 = scalar_select %p287, %s286, 63
      %s289 = smul.addr %s288, 4
      %s290 = scalar_lea.vmem %s0, %s289
      %s291 = smul.u32 32, %s18
      %s292 = smul.u32 32, %s18
      %p293 = scmp.lt.s32.totalorder %s292, 63
      %s294 = scalar_select %p293, %s292, 63
      %s295 = smul.addr %s294, 4
      %s296 = scalar_lea.vmem %s1, %s295
      %s297 = smul.u32 32, %s18
      %s298 = smul.u32 32, %s18
      %p299 = scmp.lt.s32.totalorder %s298, 63
      %s300 = scalar_select %p299, %s298, 63
      %s301 = smul.addr %s300, 8
      %s302 = scalar_lea.vmem %s7, %s301
      %s303 = smul.u32 32, %s18
      %v305 = vld [vmem:[%s290] sm:$0xf]
      %v306 = vld [vmem:[%s290 + $0x4] sm:$0xf]
      %v307 = vld [vmem:[%s290 + $0x8] sm:$0xf]
      %v308 = vld [vmem:[%s290 + $0xc] sm:$0xf]
      %v309 = vld [vmem:[%s290 + $0x10] sm:$0xf]
      %v310 = vld [vmem:[%s290 + $0x14] sm:$0xf]
      %v311 = vld [vmem:[%s290 + $0x18] sm:$0xf]
      %v312 = vld [vmem:[%s290 + $0x1c] sm:$0xf]
      %v313 = vld [vmem:[%s290 + $0x20] sm:$0xf]
      %v314 = vld [vmem:[%s290 + $0x24] sm:$0xf]
      %v315 = vld [vmem:[%s290 + $0x28] sm:$0xf]
      %v316 = vld [vmem:[%s290 + $0x2c] sm:$0xf]
      %v317 = vld [vmem:[%s290 + $0x30] sm:$0xf]
      %v318 = vld [vmem:[%s290 + $0x34] sm:$0xf]
      %v319 = vld [vmem:[%s290 + $0x38] sm:$0xf]
      %v320 = vld [vmem:[%s290 + $0x3c] sm:$0xf]
      %v321 = vld [vmem:[%s290 + $0x40] sm:$0xf]
      %v322 = vld [vmem:[%s290 + $0x44] sm:$0xf]
      %v323 = vld [vmem:[%s290 + $0x48] sm:$0xf]
      %v324 = vld [vmem:[%s290 + $0x4c] sm:$0xf]
      %v325 = vld [vmem:[%s290 + $0x50] sm:$0xf]
      %v326 = vld [vmem:[%s290 + $0x54] sm:$0xf]
      %v327 = vld [vmem:[%s290 + $0x58] sm:$0xf]
      %v328 = vld [vmem:[%s290 + $0x5c] sm:$0xf]
      %v329 = vld [vmem:[%s290 + $0x60] sm:$0xf]
      %v330 = vld [vmem:[%s290 + $0x64] sm:$0xf]
      %v331 = vld [vmem:[%s290 + $0x68] sm:$0xf]
      %v332 = vld [vmem:[%s290 + $0x6c] sm:$0xf]
      %v333 = vld [vmem:[%s290 + $0x70] sm:$0xf]
      %v334 = vld [vmem:[%s290 + $0x74] sm:$0xf]
      %v335 = vld [vmem:[%s290 + $0x78] sm:$0xf]
      %v336 = vld [vmem:[%s290 + $0x7c] sm:$0xf]
      %v337 = vunpack.c.l.bf16 %v305
      %v338 = vunpack.c.l.bf16 %v306
      %v339 = vunpack.c.l.bf16 %v307
      %v340 = vunpack.c.l.bf16 %v308
      %v341 = vunpack.c.l.bf16 %v309
      %v342 = vunpack.c.l.bf16 %v310
      %v343 = vunpack.c.l.bf16 %v311
      %v344 = vunpack.c.l.bf16 %v312
      %v345 = vunpack.c.l.bf16 %v313
      %v346 = vunpack.c.l.bf16 %v314
      %v347 = vunpack.c.l.bf16 %v315
      %v348 = vunpack.c.l.bf16 %v316
      %v349 = vunpack.c.l.bf16 %v317
      %v350 = vunpack.c.l.bf16 %v318
      %v351 = vunpack.c.l.bf16 %v319
      %v352 = vunpack.c.l.bf16 %v320
      %v353 = vunpack.c.l.bf16 %v321
      %v354 = vunpack.c.l.bf16 %v322
      %v355 = vunpack.c.l.bf16 %v323
      %v356 = vunpack.c.l.bf16 %v324
      %v357 = vunpack.c.l.bf16 %v325
      %v358 = vunpack.c.l.bf16 %v326
      %v359 = vunpack.c.l.bf16 %v327
      %v360 = vunpack.c.l.bf16 %v328
      %v361 = vunpack.c.l.bf16 %v329
      %v362 = vunpack.c.l.bf16 %v330
      %v363 = vunpack.c.l.bf16 %v331
      %v364 = vunpack.c.l.bf16 %v332
      %v365 = vunpack.c.l.bf16 %v333
      %v366 = vunpack.c.l.bf16 %v334
      %v367 = vunpack.c.l.bf16 %v335
      %v368 = vunpack.c.l.bf16 %v336
      %v369 = vld [vmem:[%s2] sm:$0x1]
      %v371 = vlaneseq
      %v372 = vshrl.u32 %v371, 7
      %v373 = vsub.s32 0, %v372
      %v374 = vrot.slane %v369, %v373
      %v376 = vmul.f32 %v337, %v374
      %v377 = vmul.f32 %v338, %v374
      %v378 = vmul.f32 %v339, %v374
      %v379 = vmul.f32 %v340, %v374
      %v380 = vmul.f32 %v341, %v374
      %v381 = vmul.f32 %v342, %v374
      %v382 = vmul.f32 %v343, %v374
      %v383 = vmul.f32 %v344, %v374
      %v384 = vmul.f32 %v345, %v374
      %v385 = vmul.f32 %v346, %v374
      %v386 = vmul.f32 %v347, %v374
      %v387 = vmul.f32 %v348, %v374
      %v388 = vmul.f32 %v349, %v374
      %v389 = vmul.f32 %v350, %v374
      %v390 = vmul.f32 %v351, %v374
      %v391 = vmul.f32 %v352, %v374
      %v392 = vmul.f32 %v353, %v374
      %v393 = vmul.f32 %v354, %v374
      %v394 = vmul.f32 %v355, %v374
      %v395 = vmul.f32 %v356, %v374
      %v396 = vmul.f32 %v357, %v374
      %v397 = vmul.f32 %v358, %v374
      %v398 = vmul.f32 %v359, %v374
      %v399 = vmul.f32 %v360, %v374
      %v400 = vmul.f32 %v361, %v374
      %v401 = vmul.f32 %v362, %v374
      %v402 = vmul.f32 %v363, %v374
      %v403 = vmul.f32 %v364, %v374
      %v404 = vmul.f32 %v365, %v374
      %v405 = vmul.f32 %v366, %v374
      %v406 = vmul.f32 %v367, %v374
      %v407 = vmul.f32 %v368, %v374
      %v408 = vld [vmem:[%s3] sm:$0x1]
      %v410 = vlaneseq
      %v411 = vshrl.u32 %v410, 7
      %v412 = vsub.s32 0, %v411
      %v413 = vrot.slane %v408, %v412
      %v415 = vadd.f32 %v376, %v413
      %v416 = vadd.f32 %v377, %v413
      %v417 = vadd.f32 %v378, %v413
      %v418 = vadd.f32 %v379, %v413
      %v419 = vadd.f32 %v380, %v413
      %v420 = vadd.f32 %v381, %v413
      %v421 = vadd.f32 %v382, %v413
      %v422 = vadd.f32 %v383, %v413
      %v423 = vadd.f32 %v384, %v413
      %v424 = vadd.f32 %v385, %v413
      %v425 = vadd.f32 %v386, %v413
      %v426 = vadd.f32 %v387, %v413
      %v427 = vadd.f32 %v388, %v413
      %v428 = vadd.f32 %v389, %v413
      %v429 = vadd.f32 %v390, %v413
      %v430 = vadd.f32 %v391, %v413
      %v431 = vadd.f32 %v392, %v413
      %v432 = vadd.f32 %v393, %v413
      %v433 = vadd.f32 %v394, %v413
      %v434 = vadd.f32 %v395, %v413
      %v435 = vadd.f32 %v396, %v413
      %v436 = vadd.f32 %v397, %v413
      %v437 = vadd.f32 %v398, %v413
      %v438 = vadd.f32 %v399, %v413
      %v439 = vadd.f32 %v400, %v413
      %v440 = vadd.f32 %v401, %v413
      %v441 = vadd.f32 %v402, %v413
      %v442 = vadd.f32 %v403, %v413
      %v443 = vadd.f32 %v404, %v413
      %v444 = vadd.f32 %v405, %v413
      %v445 = vadd.f32 %v406, %v413
      %v446 = vadd.f32 %v407, %v413
      %v447 = vmax.f32 %v415, 0.0
      %v448 = vmax.f32 %v416, 0.0
      %v449 = vmax.f32 %v417, 0.0
      %v450 = vmax.f32 %v418, 0.0
      %v451 = vmax.f32 %v419, 0.0
      %v452 = vmax.f32 %v420, 0.0
      %v453 = vmax.f32 %v421, 0.0
      %v454 = vmax.f32 %v422, 0.0
      %v455 = vmax.f32 %v423, 0.0
      %v456 = vmax.f32 %v424, 0.0
      %v457 = vmax.f32 %v425, 0.0
      %v458 = vmax.f32 %v426, 0.0
      %v459 = vmax.f32 %v427, 0.0
      %v460 = vmax.f32 %v428, 0.0
      %v461 = vmax.f32 %v429, 0.0
      %v462 = vmax.f32 %v430, 0.0
      %v463 = vmax.f32 %v431, 0.0
      %v464 = vmax.f32 %v432, 0.0
      %v465 = vmax.f32 %v433, 0.0
      %v466 = vmax.f32 %v434, 0.0
      %v467 = vmax.f32 %v435, 0.0
      %v468 = vmax.f32 %v436, 0.0
      %v469 = vmax.f32 %v437, 0.0
      %v470 = vmax.f32 %v438, 0.0
      %v471 = vmax.f32 %v439, 0.0
      %v472 = vmax.f32 %v440, 0.0
      %v473 = vmax.f32 %v441, 0.0
      %v474 = vmax.f32 %v442, 0.0
      %v475 = vmax.f32 %v443, 0.0
      %v476 = vmax.f32 %v444, 0.0
      %v477 = vmax.f32 %v445, 0.0
      %v478 = vmax.f32 %v446, 0.0
      %v479 = vld [vmem:[%s296] sm:$0xf]
      %v480 = vld [vmem:[%s296 + $0x4] sm:$0xf]
      %v481 = vld [vmem:[%s296 + $0x8] sm:$0xf]
      %v482 = vld [vmem:[%s296 + $0xc] sm:$0xf]
      %v483 = vld [vmem:[%s296 + $0x10] sm:$0xf]
      %v484 = vld [vmem:[%s296 + $0x14] sm:$0xf]
      %v485 = vld [vmem:[%s296 + $0x18] sm:$0xf]
      %v486 = vld [vmem:[%s296 + $0x1c] sm:$0xf]
      %v487 = vld [vmem:[%s296 + $0x20] sm:$0xf]
      %v488 = vld [vmem:[%s296 + $0x24] sm:$0xf]
      %v489 = vld [vmem:[%s296 + $0x28] sm:$0xf]
      %v490 = vld [vmem:[%s296 + $0x2c] sm:$0xf]
      %v491 = vld [vmem:[%s296 + $0x30] sm:$0xf]
      %v492 = vld [vmem:[%s296 + $0x34] sm:$0xf]
      %v493 = vld [vmem:[%s296 + $0x38] sm:$0xf]
      %v494 = vld [vmem:[%s296 + $0x3c] sm:$0xf]
      %v495 = vld [vmem:[%s296 + $0x40] sm:$0xf]
      %v496 = vld [vmem:[%s296 + $0x44] sm:$0xf]
      %v497 = vld [vmem:[%s296 + $0x48] sm:$0xf]
      %v498 = vld [vmem:[%s296 + $0x4c] sm:$0xf]
      %v499 = vld [vmem:[%s296 + $0x50] sm:$0xf]
      %v500 = vld [vmem:[%s296 + $0x54] sm:$0xf]
      %v501 = vld [vmem:[%s296 + $0x58] sm:$0xf]
      %v502 = vld [vmem:[%s296 + $0x5c] sm:$0xf]
      %v503 = vld [vmem:[%s296 + $0x60] sm:$0xf]
      %v504 = vld [vmem:[%s296 + $0x64] sm:$0xf]
      %v505 = vld [vmem:[%s296 + $0x68] sm:$0xf]
      %v506 = vld [vmem:[%s296 + $0x6c] sm:$0xf]
      %v507 = vld [vmem:[%s296 + $0x70] sm:$0xf]
      %v508 = vld [vmem:[%s296 + $0x74] sm:$0xf]
      %v509 = vld [vmem:[%s296 + $0x78] sm:$0xf]
      %v510 = vld [vmem:[%s296 + $0x7c] sm:$0xf]
      %v511 = vunpack.c.l.bf16 %v479
      %v512 = vunpack.c.l.bf16 %v480
      %v513 = vunpack.c.l.bf16 %v481
      %v514 = vunpack.c.l.bf16 %v482
      %v515 = vunpack.c.l.bf16 %v483
      %v516 = vunpack.c.l.bf16 %v484
      %v517 = vunpack.c.l.bf16 %v485
      %v518 = vunpack.c.l.bf16 %v486
      %v519 = vunpack.c.l.bf16 %v487
      %v520 = vunpack.c.l.bf16 %v488
      %v521 = vunpack.c.l.bf16 %v489
      %v522 = vunpack.c.l.bf16 %v490
      %v523 = vunpack.c.l.bf16 %v491
      %v524 = vunpack.c.l.bf16 %v492
      %v525 = vunpack.c.l.bf16 %v493
      %v526 = vunpack.c.l.bf16 %v494
      %v527 = vunpack.c.l.bf16 %v495
      %v528 = vunpack.c.l.bf16 %v496
      %v529 = vunpack.c.l.bf16 %v497
      %v530 = vunpack.c.l.bf16 %v498
      %v531 = vunpack.c.l.bf16 %v499
      %v532 = vunpack.c.l.bf16 %v500
      %v533 = vunpack.c.l.bf16 %v501
      %v534 = vunpack.c.l.bf16 %v502
      %v535 = vunpack.c.l.bf16 %v503
      %v536 = vunpack.c.l.bf16 %v504
      %v537 = vunpack.c.l.bf16 %v505
      %v538 = vunpack.c.l.bf16 %v506
      %v539 = vunpack.c.l.bf16 %v507
      %v540 = vunpack.c.l.bf16 %v508
      %v541 = vunpack.c.l.bf16 %v509
      %v542 = vunpack.c.l.bf16 %v510
      %v543 = vld [vmem:[%s4] sm:$0x1]
      %v545 = vlaneseq
      %v546 = vshrl.u32 %v545, 7
      %v547 = vsub.s32 0, %v546
      %v548 = vrot.slane %v543, %v547
      %v550 = vmul.f32 %v511, %v548
      %v551 = vmul.f32 %v512, %v548
      %v552 = vmul.f32 %v513, %v548
      %v553 = vmul.f32 %v514, %v548
      %v554 = vmul.f32 %v515, %v548
      %v555 = vmul.f32 %v516, %v548
      %v556 = vmul.f32 %v517, %v548
      %v557 = vmul.f32 %v518, %v548
      %v558 = vmul.f32 %v519, %v548
      %v559 = vmul.f32 %v520, %v548
      %v560 = vmul.f32 %v521, %v548
      %v561 = vmul.f32 %v522, %v548
      %v562 = vmul.f32 %v523, %v548
      %v563 = vmul.f32 %v524, %v548
      %v564 = vmul.f32 %v525, %v548
      %v565 = vmul.f32 %v526, %v548
      %v566 = vmul.f32 %v527, %v548
      %v567 = vmul.f32 %v528, %v548
      %v568 = vmul.f32 %v529, %v548
      %v569 = vmul.f32 %v530, %v548
      %v570 = vmul.f32 %v531, %v548
      %v571 = vmul.f32 %v532, %v548
      %v572 = vmul.f32 %v533, %v548
      %v573 = vmul.f32 %v534, %v548
      %v574 = vmul.f32 %v535, %v548
      %v575 = vmul.f32 %v536, %v548
      %v576 = vmul.f32 %v537, %v548
      %v577 = vmul.f32 %v538, %v548
      %v578 = vmul.f32 %v539, %v548
      %v579 = vmul.f32 %v540, %v548
      %v580 = vmul.f32 %v541, %v548
      %v581 = vmul.f32 %v542, %v548
      %v582 = vld [vmem:[%s5] sm:$0x1]
      %v584 = vlaneseq
      %v585 = vshrl.u32 %v584, 7
      %v586 = vsub.s32 0, %v585
      %v587 = vrot.slane %v582, %v586
      %v589 = vadd.f32 %v550, %v587
      %v590 = vadd.f32 %v551, %v587
      %v591 = vadd.f32 %v552, %v587
      %v592 = vadd.f32 %v553, %v587
      %v593 = vadd.f32 %v554, %v587
      %v594 = vadd.f32 %v555, %v587
      %v595 = vadd.f32 %v556, %v587
      %v596 = vadd.f32 %v557, %v587
      %v597 = vadd.f32 %v558, %v587
      %v598 = vadd.f32 %v559, %v587
      %v599 = vadd.f32 %v560, %v587
      %v600 = vadd.f32 %v561, %v587
      %v601 = vadd.f32 %v562, %v587
      %v602 = vadd.f32 %v563, %v587
      %v603 = vadd.f32 %v564, %v587
      %v604 = vadd.f32 %v565, %v587
      %v605 = vadd.f32 %v566, %v587
      %v606 = vadd.f32 %v567, %v587
      %v607 = vadd.f32 %v568, %v587
      %v608 = vadd.f32 %v569, %v587
      %v609 = vadd.f32 %v570, %v587
      %v610 = vadd.f32 %v571, %v587
      %v611 = vadd.f32 %v572, %v587
      %v612 = vadd.f32 %v573, %v587
      %v613 = vadd.f32 %v574, %v587
      %v614 = vadd.f32 %v575, %v587
      %v615 = vadd.f32 %v576, %v587
      %v616 = vadd.f32 %v577, %v587
      %v617 = vadd.f32 %v578, %v587
      %v618 = vadd.f32 %v579, %v587
      %v619 = vadd.f32 %v580, %v587
      %v620 = vadd.f32 %v581, %v587
      %v621 = vmax.f32 %v589, 0.0
      %v622 = vmax.f32 %v590, 0.0
      %v623 = vmax.f32 %v591, 0.0
      %v624 = vmax.f32 %v592, 0.0
      %v625 = vmax.f32 %v593, 0.0
      %v626 = vmax.f32 %v594, 0.0
      %v627 = vmax.f32 %v595, 0.0
      %v628 = vmax.f32 %v596, 0.0
      %v629 = vmax.f32 %v597, 0.0
      %v630 = vmax.f32 %v598, 0.0
      %v631 = vmax.f32 %v599, 0.0
      %v632 = vmax.f32 %v600, 0.0
      %v633 = vmax.f32 %v601, 0.0
      %v634 = vmax.f32 %v602, 0.0
      %v635 = vmax.f32 %v603, 0.0
      %v636 = vmax.f32 %v604, 0.0
      %v637 = vmax.f32 %v605, 0.0
      %v638 = vmax.f32 %v606, 0.0
      %v639 = vmax.f32 %v607, 0.0
      %v640 = vmax.f32 %v608, 0.0
      %v641 = vmax.f32 %v609, 0.0
      %v642 = vmax.f32 %v610, 0.0
      %v643 = vmax.f32 %v611, 0.0
      %v644 = vmax.f32 %v612, 0.0
      %v645 = vmax.f32 %v613, 0.0
      %v646 = vmax.f32 %v614, 0.0
      %v647 = vmax.f32 %v615, 0.0
      %v648 = vmax.f32 %v616, 0.0
      %v649 = vmax.f32 %v617, 0.0
      %v650 = vmax.f32 %v618, 0.0
      %v651 = vmax.f32 %v619, 0.0
      %v652 = vmax.f32 %v620, 0.0
      %v653 = vpack.c.bf16 %v448, %v447
      %v654 = vpack.c.bf16 %v450, %v449
      %v655 = vpack.c.bf16 %v452, %v451
      %v656 = vpack.c.bf16 %v454, %v453
      %v657 = vpack.c.bf16 %v456, %v455
      %v658 = vpack.c.bf16 %v458, %v457
      %v659 = vpack.c.bf16 %v460, %v459
      %v660 = vpack.c.bf16 %v462, %v461
      %v661 = vpack.c.bf16 %v464, %v463
      %v662 = vpack.c.bf16 %v466, %v465
      %v663 = vpack.c.bf16 %v468, %v467
      %v664 = vpack.c.bf16 %v470, %v469
      %v665 = vpack.c.bf16 %v472, %v471
      %v666 = vpack.c.bf16 %v474, %v473
      %v667 = vpack.c.bf16 %v476, %v475
      %v668 = vpack.c.bf16 %v478, %v477
      %v669 = vpack.c.bf16 %v622, %v621
      %v670 = vpack.c.bf16 %v624, %v623
      %v671 = vpack.c.bf16 %v626, %v625
      %v672 = vpack.c.bf16 %v628, %v627
      %v673 = vpack.c.bf16 %v630, %v629
      %v674 = vpack.c.bf16 %v632, %v631
      %v675 = vpack.c.bf16 %v634, %v633
      %v676 = vpack.c.bf16 %v636, %v635
      %v677 = vpack.c.bf16 %v638, %v637
      %v678 = vpack.c.bf16 %v640, %v639
      %v679 = vpack.c.bf16 %v642, %v641
      %v680 = vpack.c.bf16 %v644, %v643
      %v681 = vpack.c.bf16 %v646, %v645
      %v682 = vpack.c.bf16 %v648, %v647
      %v683 = vpack.c.bf16 %v650, %v649
      %v684 = vpack.c.bf16 %v652, %v651
      %v685 = vld [vmem:[%s6] sm:$0xf]
      %v686 = vld [vmem:[%s6 + $0x4] sm:$0xf]
      %v687 = vld [vmem:[%s6 + $0x8] sm:$0xf]
      %v688 = vld [vmem:[%s6 + $0xc] sm:$0xf]
      %v689 = vld [vmem:[%s6 + $0x10] sm:$0xf]
      %v690 = vld [vmem:[%s6 + $0x14] sm:$0xf]
      %v691 = vld [vmem:[%s6 + $0x18] sm:$0xf]
      %v692 = vld [vmem:[%s6 + $0x1c] sm:$0xf]
      %v693 = vld [vmem:[%s6 + $0x20] sm:$0xf]
      %v694 = vld [vmem:[%s6 + $0x24] sm:$0xf]
      %v695 = vld [vmem:[%s6 + $0x28] sm:$0xf]
      %v696 = vld [vmem:[%s6 + $0x2c] sm:$0xf]
      %v697 = vld [vmem:[%s6 + $0x30] sm:$0xf]
      %v698 = vld [vmem:[%s6 + $0x34] sm:$0xf]
      %v699 = vld [vmem:[%s6 + $0x38] sm:$0xf]
      %v700 = vld [vmem:[%s6 + $0x3c] sm:$0xf]
      %v701 = vld [vmem:[%s6 + $0x40] sm:$0xf]
      %v702 = vld [vmem:[%s6 + $0x44] sm:$0xf]
      %v703 = vld [vmem:[%s6 + $0x48] sm:$0xf]
      %v704 = vld [vmem:[%s6 + $0x4c] sm:$0xf]
      %v705 = vld [vmem:[%s6 + $0x50] sm:$0xf]
      %v706 = vld [vmem:[%s6 + $0x54] sm:$0xf]
      %v707 = vld [vmem:[%s6 + $0x58] sm:$0xf]
      %v708 = vld [vmem:[%s6 + $0x5c] sm:$0xf]
      %v709 = vld [vmem:[%s6 + $0x60] sm:$0xf]
      %v710 = vld [vmem:[%s6 + $0x64] sm:$0xf]
      %v711 = vld [vmem:[%s6 + $0x68] sm:$0xf]
      %v712 = vld [vmem:[%s6 + $0x6c] sm:$0xf]
      %v713 = vld [vmem:[%s6 + $0x70] sm:$0xf]
      %v714 = vld [vmem:[%s6 + $0x74] sm:$0xf]
      %v715 = vld [vmem:[%s6 + $0x78] sm:$0xf]
      %v716 = vld [vmem:[%s6 + $0x7c] sm:$0xf]
      %v749 = vunpack.c.l.b16 %v685
      %v750 = vunpack.c.l.b16 %v686
      %v751 = vunpack.c.l.b16 %v687
      %v752 = vunpack.c.l.b16 %v688
      %v753 = vunpack.c.l.b16 %v689
      %v754 = vunpack.c.l.b16 %v690
      %v755 = vunpack.c.l.b16 %v691
      %v756 = vunpack.c.l.b16 %v692
      %v757 = vunpack.c.l.b16 %v693
      %v758 = vunpack.c.l.b16 %v694
      %v759 = vunpack.c.l.b16 %v695
      %v760 = vunpack.c.l.b16 %v696
      %v761 = vunpack.c.l.b16 %v697
      %v762 = vunpack.c.l.b16 %v698
      %v763 = vunpack.c.l.b16 %v699
      %v764 = vunpack.c.l.b16 %v700
      %v765 = vunpack.c.l.b16 %v701
      %v766 = vunpack.c.l.b16 %v702
      %v767 = vunpack.c.l.b16 %v703
      %v768 = vunpack.c.l.b16 %v704
      %v769 = vunpack.c.l.b16 %v705
      %v770 = vunpack.c.l.b16 %v706
      %v771 = vunpack.c.l.b16 %v707
      %v772 = vunpack.c.l.b16 %v708
      %v773 = vunpack.c.l.b16 %v709
      %v774 = vunpack.c.l.b16 %v710
      %v775 = vunpack.c.l.b16 %v711
      %v776 = vunpack.c.l.b16 %v712
      %v777 = vunpack.c.l.b16 %v713
      %v778 = vunpack.c.l.b16 %v714
      %v779 = vunpack.c.l.b16 %v715
      %v780 = vunpack.c.l.b16 %v716
      %v781 = vpack.c.b16 %v750, %v749
      %v782 = vpack.c.b16 %v752, %v751
      %v783 = vpack.c.b16 %v754, %v753
      %v784 = vpack.c.b16 %v756, %v755
      %v785 = vpack.c.b16 %v758, %v757
      %v786 = vpack.c.b16 %v760, %v759
      %v787 = vpack.c.b16 %v762, %v761
      %v788 = vpack.c.b16 %v764, %v763
      %v789 = vpack.c.b16 %v766, %v765
      %v790 = vpack.c.b16 %v768, %v767
      %v791 = vpack.c.b16 %v770, %v769
      %v792 = vpack.c.b16 %v772, %v771
      %v793 = vpack.c.b16 %v774, %v773
      %v794 = vpack.c.b16 %v776, %v775
      %v795 = vpack.c.b16 %v778, %v777
      %v796 = vpack.c.b16 %v780, %v779
      %813 = vmatprep.subr.bf16.mxu0 0
      %814 = vmatpush1.bf16.msra.mxu0 %v781
      %815 = vmatprep.subr.bf16.mxu0 0
      %816 = vmatpush1.bf16.msra.mxu0 %v782
      %817 = vmatprep.subr.bf16.mxu0 0
      %818 = vmatpush1.bf16.msra.mxu0 %v783
      %819 = vmatprep.subr.bf16.mxu0 0
      %820 = vmatpush1.bf16.msra.mxu0 %v784
      %821 = vmatprep.subr.bf16.mxu0 0
      %822 = vmatpush1.bf16.msra.mxu0 %v785
      %823 = vmatprep.subr.bf16.mxu0 0
      %824 = vmatpush1.bf16.msra.mxu0 %v786
      %825 = vmatprep.subr.bf16.mxu0 0
      %826 = vmatpush1.bf16.msra.mxu0 %v787
      %827 = vmatprep.subr.bf16.mxu0 0
      %828 = vmatpush1.bf16.msra.mxu0 %v788
      %829 = vmatprep.subr.bf16.mxu0 0
      %830 = vmatpush1.bf16.msra.mxu0 %v789
      %831 = vmatprep.subr.bf16.mxu0 0
      %832 = vmatpush1.bf16.msra.mxu0 %v790
      %833 = vmatprep.subr.bf16.mxu0 0
      %834 = vmatpush1.bf16.msra.mxu0 %v791
      %835 = vmatprep.subr.bf16.mxu0 0
      %836 = vmatpush1.bf16.msra.mxu0 %v792
      %837 = vmatprep.subr.bf16.mxu0 0
      %838 = vmatpush1.bf16.msra.mxu0 %v793
      %839 = vmatprep.subr.bf16.mxu0 0
      %840 = vmatpush1.bf16.msra.mxu0 %v794
      %841 = vmatprep.subr.bf16.mxu0 0
      %842 = vmatpush1.bf16.msra.mxu0 %v795
      %843 = vmatprep.subr.bf16.mxu0 0
      %844 = vmatpush1.bf16.msra.mxu0 %v796
      %845 = vmatprep.mubr.bf16.mxu0 %v669
      %846 = vmatmul.mubr.bf16.gmra.mrb[0].mxu0 %v653
      %v847 = vpop.f32.mrb[0].mxu0
      %v848 = vadd.f32 0.0, %v847
      %v849 = vpop.f32.mrb[0].mxu0
      %v850 = vpop.f32.mrb[0].mxu0
      %v851 = vadd.f32 0.0, %v850
      %v852 = vpop.f32.mrb[0].mxu0
      %853 = vmatprep.mubr.bf16.mxu0 %v670
      %854 = vmatmul.mubr.bf16.gmra.mrb[0].mxu0 %v654
      %v855 = vpop.f32.mrb[0].mxu0
      %v856 = vadd.f32 0.0, %v855
      %v857 = vpop.f32.mrb[0].mxu0
      %v858 = vpop.f32.mrb[0].mxu0
      %v859 = vadd.f32 0.0, %v858
      %v860 = vpop.f32.mrb[0].mxu0
      %861 = vmatprep.mubr.bf16.mxu0 %v671
      %862 = vmatmul.mubr.bf16.gmra.mrb[0].mxu0 %v655
      %v863 = vpop.f32.mrb[0].mxu0
      %v864 = vadd.f32 0.0, %v863
      %v865 = vpop.f32.mrb[0].mxu0
      %v866 = vpop.f32.mrb[0].mxu0
      %v867 = vadd.f32 0.0, %v866
      %v868 = vpop.f32.mrb[0].mxu0
      %869 = vmatprep.mubr.bf16.mxu0 %v672
      %870 = vmatmul.mubr.bf16.gmra.mrb[0].mxu0 %v656
      %v871 = vpop.f32.mrb[0].mxu0
      %v872 = vadd.f32 0.0, %v871
      %v873 = vpop.f32.mrb[0].mxu0
      %v874 = vpop.f32.mrb[0].mxu0
      %v875 = vadd.f32 0.0, %v874
      %v876 = vpop.f32.mrb[0].mxu0
      %877 = vmatprep.mubr.bf16.mxu0 %v673
      %878 = vmatmul.mubr.bf16.gmra.mrb[0].mxu0 %v657
      %v879 = vpop.f32.mrb[0].mxu0
      %v880 = vadd.f32 0.0, %v879
      %v881 = vpop.f32.mrb[0].mxu0
      %v882 = vpop.f32.mrb[0].mxu0
      %v883 = vadd.f32 0.0, %v882
      %v884 = vpop.f32.mrb[0].mxu0
      %885 = vmatprep.mubr.bf16.mxu0 %v674
      %886 = vmatmul.mubr.bf16.gmra.mrb[0].mxu0 %v658
      %v887 = vpop.f32.mrb[0].mxu0
      %v888 = vadd.f32 0.0, %v887
      %v889 = vpop.f32.mrb[0].mxu0
      %v890 = vpop.f32.mrb[0].mxu0
      %v891 = vadd.f32 0.0, %v890
      %v892 = vpop.f32.mrb[0].mxu0
      %893 = vmatprep.mubr.bf16.mxu0 %v675
      %894 = vmatmul.mubr.bf16.gmra.mrb[0].mxu0 %v659
      %v895 = vpop.f32.mrb[0].mxu0
      %v896 = vadd.f32 0.0, %v895
      %v897 = vpop.f32.mrb[0].mxu0
      %v898 = vpop.f32.mrb[0].mxu0
      %v899 = vadd.f32 0.0, %v898
      %v900 = vpop.f32.mrb[0].mxu0
      %901 = vmatprep.mubr.bf16.mxu0 %v676
      %902 = vmatmul.mubr.bf16.gmra.mrb[0].mxu0 %v660
      %v903 = vpop.f32.mrb[0].mxu0
      %v904 = vadd.f32 0.0, %v903
      %v905 = vpop.f32.mrb[0].mxu0
      %v906 = vpop.f32.mrb[0].mxu0
      %v907 = vadd.f32 0.0, %v906
      %v908 = vpop.f32.mrb[0].mxu0
      %909 = vmatprep.mubr.bf16.mxu0 %v677
      %910 = vmatmul.mubr.bf16.gmra.mrb[0].mxu0 %v661
      %v911 = vpop.f32.mrb[0].mxu0
      %v912 = vadd.f32 0.0, %v911
      %v913 = vpop.f32.mrb[0].mxu0
      %v914 = vpop.f32.mrb[0].mxu0
      %v915 = vadd.f32 0.0, %v914
      %v916 = vpop.f32.mrb[0].mxu0
      %917 = vmatprep.mubr.bf16.mxu0 %v678
      %918 = vmatmul.mubr.bf16.gmra.mrb[0].mxu0 %v662
      %v919 = vpop.f32.mrb[0].mxu0
      %v920 = vadd.f32 0.0, %v919
      %v921 = vpop.f32.mrb[0].mxu0
      %v922 = vpop.f32.mrb[0].mxu0
      %v923 = vadd.f32 0.0, %v922
      %v924 = vpop.f32.mrb[0].mxu0
      %925 = vmatprep.mubr.bf16.mxu0 %v679
      %926 = vmatmul.mubr.bf16.gmra.mrb[0].mxu0 %v663
      %v927 = vpop.f32.mrb[0].mxu0
      %v928 = vadd.f32 0.0, %v927
      %v929 = vpop.f32.mrb[0].mxu0
      %v930 = vpop.f32.mrb[0].mxu0
      %v931 = vadd.f32 0.0, %v930
      %v932 = vpop.f32.mrb[0].mxu0
      %933 = vmatprep.mubr.bf16.mxu0 %v680
      %934 = vmatmul.mubr.bf16.gmra.mrb[0].mxu0 %v664
      %v935 = vpop.f32.mrb[0].mxu0
      %v936 = vadd.f32 0.0, %v935
      %v937 = vpop.f32.mrb[0].mxu0
      %v938 = vpop.f32.mrb[0].mxu0
      %v939 = vadd.f32 0.0, %v938
      %v940 = vpop.f32.mrb[0].mxu0
      %941 = vmatprep.mubr.bf16.mxu0 %v681
      %942 = vmatmul.mubr.bf16.gmra.mrb[0].mxu0 %v665
      %v943 = vpop.f32.mrb[0].mxu0
      %v944 = vadd.f32 0.0, %v943
      %v945 = vpop.f32.mrb[0].mxu0
      %v946 = vpop.f32.mrb[0].mxu0
      %v947 = vadd.f32 0.0, %v946
      %v948 = vpop.f32.mrb[0].mxu0
      %949 = vmatprep.mubr.bf16.mxu0 %v682
      %950 = vmatmul.mubr.bf16.gmra.mrb[0].mxu0 %v666
      %v951 = vpop.f32.mrb[0].mxu0
      %v952 = vadd.f32 0.0, %v951
      %v953 = vpop.f32.mrb[0].mxu0
      %v954 = vpop.f32.mrb[0].mxu0
      %v955 = vadd.f32 0.0, %v954
      %v956 = vpop.f32.mrb[0].mxu0
      %957 = vmatprep.mubr.bf16.mxu0 %v683
      %958 = vmatmul.mubr.bf16.gmra.mrb[0].mxu0 %v667
      %v959 = vpop.f32.mrb[0].mxu0
      %v960 = vadd.f32 0.0, %v959
      %v961 = vpop.f32.mrb[0].mxu0
      %v962 = vpop.f32.mrb[0].mxu0
      %v963 = vadd.f32 0.0, %v962
      %v964 = vpop.f32.mrb[0].mxu0
      %965 = vmatprep.mubr.bf16.mxu0 %v684
      %966 = vmatmul.mubr.bf16.gmra.mrb[0].mxu0 %v668
      %v967 = vpop.f32.mrb[0].mxu0
      %v968 = vadd.f32 0.0, %v967
      %v969 = vpop.f32.mrb[0].mxu0
      %v970 = vpop.f32.mrb[0].mxu0
      %v971 = vadd.f32 0.0, %v970
      %v972 = vpop.f32.mrb[0].mxu0
      %973 = vdwg.mxu0
      %974 = vst [vmem:[%s302] sm:$0xff] %v848
      %975 = vst [vmem:[%s302 + $0x8] sm:$0xff] %v851
      %976 = vst [vmem:[%s302 + $0x10] sm:$0xff] %v856
      %977 = vst [vmem:[%s302 + $0x18] sm:$0xff] %v859
      %978 = vst [vmem:[%s302 + $0x20] sm:$0xff] %v864
      %979 = vst [vmem:[%s302 + $0x28] sm:$0xff] %v867
      %980 = vst [vmem:[%s302 + $0x30] sm:$0xff] %v872
      %981 = vst [vmem:[%s302 + $0x38] sm:$0xff] %v875
      %982 = vst [vmem:[%s302 + $0x40] sm:$0xff] %v880
      %983 = vst [vmem:[%s302 + $0x48] sm:$0xff] %v883
      %984 = vst [vmem:[%s302 + $0x50] sm:$0xff] %v888
      %985 = vst [vmem:[%s302 + $0x58] sm:$0xff] %v891
      %986 = vst [vmem:[%s302 + $0x60] sm:$0xff] %v896
      %987 = vst [vmem:[%s302 + $0x68] sm:$0xff] %v899
      %988 = vst [vmem:[%s302 + $0x70] sm:$0xff] %v904
      %989 = vst [vmem:[%s302 + $0x78] sm:$0xff] %v907
      %990 = vst [vmem:[%s302 + $0x80] sm:$0xff] %v912
      %991 = vst [vmem:[%s302 + $0x88] sm:$0xff] %v915
      %992 = vst [vmem:[%s302 + $0x90] sm:$0xff] %v920
      %993 = vst [vmem:[%s302 + $0x98] sm:$0xff] %v923
      %994 = vst [vmem:[%s302 + $0xa0] sm:$0xff] %v928
      %995 = vst [vmem:[%s302 + $0xa8] sm:$0xff] %v931
      %996 = vst [vmem:[%s302 + $0xb0] sm:$0xff] %v936
      %997 = vst [vmem:[%s302 + $0xb8] sm:$0xff] %v939
      %998 = vst [vmem:[%s302 + $0xc0] sm:$0xff] %v944
      %999 = vst [vmem:[%s302 + $0xc8] sm:$0xff] %v947
      %1000 = vst [vmem:[%s302 + $0xd0] sm:$0xff] %v952
      %1001 = vst [vmem:[%s302 + $0xd8] sm:$0xff] %v955
      %1002 = vst [vmem:[%s302 + $0xe0] sm:$0xff] %v960
      %1003 = vst [vmem:[%s302 + $0xe8] sm:$0xff] %v963
      %1004 = vst [vmem:[%s302 + $0xf0] sm:$0xff] %v968
      %1005 = vst [vmem:[%s302 + $0xf8] sm:$0xff] %v971
      %s1006 = smul.u32 32, %s18
      %p1007 = scmp.lt.s32.totalorder %s1006, 63
      %s1008 = scalar_select %p1007, %s1006, 63
      %s1009 = smul.addr %s1008, 8
      %s1010 = scalar_lea.vmem %s7, %s1009
      // Predicated region
      $region49: #{preact_bottleneck_pallas.5} parent=47 // pred_check
        %p1011 = pneg %p193
      $region50: #{preact_bottleneck_pallas.5} parent=47 // pred_check_branch
        %1013 = sbr.rel (%p1011) target = $region52
      $region51: #{preact_bottleneck_pallas.5} parent=47 // pred_region
        %s1014 = smul.u32 32, %s18
      $region52: #{preact_bottleneck_pallas.5} parent=47 // pred_fallthru
        _
    $region48: #{preact_bottleneck_pallas.5} parent=5 // pred_fallthru
      _
    %p1015 = scmp.le.s32.totalorder 2, %s13
    // Predicated region
    $region53: #{preact_bottleneck_pallas.5} parent=5 // pred_check
      %p1016 = pneg %p1015
    $region54: #{preact_bottleneck_pallas.5} parent=5 // pred_check_branch
      %1018 = sbr.rel (%p1016) target = $region56
    $region55: #{preact_bottleneck_pallas.5} parent=5 // pred_region
      %s1019 = ssub.s32 %s13, 2
      // Predicated region
      $region57: #{preact_bottleneck_pallas.5} parent=55 // pred_check
        %p1020 = pneg %p199
      $region58: #{preact_bottleneck_pallas.5} parent=55 // pred_check_branch
        %1022 = sbr.rel (%p1020) target = $region60
      $region59: #{preact_bottleneck_pallas.5} parent=55 // pred_region
        %s1023 = smul.u32 32, %s19
        %p1024 = scmp.lt.s32.totalorder %s1023, 63
        %s1025 = scalar_select %p1024, %s1023, 63
        %s1026 = smul.addr %s1025, 8
        %s1027 = scalar_lea.vmem %s7, %s1026
      $region60: #{preact_bottleneck_pallas.5} parent=55 // pred_fallthru
        _
    $region56: #{preact_bottleneck_pallas.5} parent=5 // pred_fallthru
      _
  $region6: #{preact_bottleneck_pallas.5} parent=0 // loop_footer
    %s17 = sadd.s32 1, %s13
  $region7: #{preact_bottleneck_pallas.5} parent=0 // loop_footer_branch
    %12 = sbr.rel target = $region3
  $region8: #{preact_bottleneck_pallas.5} parent=0 // loop_exit
    _

// kernel: preact_bottleneck_pallas.4
$region0: #{preact_bottleneck_pallas.4}
  #allocation0 [shape = 'u32[]', space=smem, size = 0x4, offset = 0x4, fixed_abs, tag = 'smem constant byte address 0x4 - core index']
  #allocation1 [shape = 'u32[144,128]{1,0:T(1,128)}', space=vmem, size = 0x12000, scoped, tag = 'internal scratch']
  #allocation2 [shape = 'bf16[18,32,128]{2,1,0:T(16,128)(2,1)}', space=vmem, size = 0x24000, scoped, tag = 'scratch operand']
  #allocation3 [shape = 'bf16[256,1152]{1,0:T(16,128)(2,1)}', space=vmem, size = 0x90000, scoped, tag = 'scratch operand']
  %s0 = inlined_call_operand.vmem [shape: bf16[2,16,16,128], index: 0, kind: input, shape index: {}]
  %s1 = inlined_call_operand.vmem [shape: f32[1,128], index: 1, kind: input, shape index: {}]
  %s2 = inlined_call_operand.vmem [shape: f32[1,128], index: 2, kind: input, shape index: {}]
  %s3 = inlined_call_operand.vmem [shape: bf16[1152,128], index: 3, kind: input, shape index: {}]
  %s4 = inlined_call_operand.vmem [shape: bf16[2,16,16,128], index: 4, kind: output, shape index: {0}]
  %s5 = inlined_call_operand.vmem [shape: f32[2,1,128], index: 5, kind: output, shape index: {1}]
  %s6 = inlined_call_operand.vmem [shape: f32[2,1,128], index: 6, kind: output, shape index: {2}]
  %7 = xla_tuple %s4, %s5, %s6
  %s8 = sld [smem:[#allocation0]]
  $region65: #{preact_bottleneck_pallas.4} parent=0
    _
  %s10 = ssub.s32 1, %s8
  %s11 = scalar_select 0, %s10, %s8
  loop: start=0, step=1, limit=4
  $region2: #{preact_bottleneck_pallas.4} parent=0 // loop_pre_header
    _
  $region3: #{preact_bottleneck_pallas.4} parent=0 // loop_header
    %s13 = sphi 0, %s17
    %p14 = scmp.ge.s32.totalorder %s13, 4
    %s23 = sphi 0, %s25
    %s26 = sphi 0, %s23
    %s27 = sphi 0, %s26
    %s43 = sphi 0, %s27
    %s47 = sphi 0, %s47
    %s49 = sphi 0, %s47
    %s50 = sphi 0, %s49
    %s64 = sphi 0, %s50
    %s68 = sphi 0, %s68
    %s70 = sphi 0, %s68
    %s71 = sphi 0, %s70
    %s85 = sphi 0, %s71
    %s89 = sphi 0, %s89
    %s91 = sphi 0, %s89
    %s92 = sphi 0, %s91
    %s106 = sphi 0, %s92
    %s112 = sphi 0, %s114
    %s115 = sphi 0, %s112
    %s116 = sphi 0, %s115
    %s132 = sphi 0, %s116
    %s138 = sphi 0, %s140
    %s141 = sphi 0, %s138
    %s142 = sphi 0, %s141
    %s158 = sphi 0, %s142
    %s164 = sphi 0, %s166
    %s167 = sphi 0, %s164
    %s168 = sphi 0, %s167
    %s184 = sphi 0, %s168
  $region4: #{preact_bottleneck_pallas.4} parent=0 // loop_header_branch
    %16 = sbr.rel (%p14) target = $region8
  $region5: #{preact_bottleneck_pallas.4} parent=0 // loop_body
    %s18 = ssub.s32 %s13, 1
    %s19 = ssub.s32 %s13, 2
    %s20 = sadd.s32 %s13, 1
    %s21 = ssub.s32 %s13, %s20
    %p22 = scmp.eq.s32.totalorder %s21, 0
    %s24 = sadd.s32 %s23, 1
    %s25 = scalar_select %p22, %s23, %s24
    %p28 = pneg %p22
    %p29 = scmp.eq.s32.totalorder %s13, 1
    %p30 = por %p28, %p29
    %p31 = scmp.ne.s32.totalorder %s23, %s26
    %p32 = scmp.eq.s32.totalorder %s13, 0
    %p33 = por %p31, %p32
    %p34 = scmp.ne.s32.totalorder %s23, %s26
    %p35 = scmp.eq.s32.totalorder %s18, 1
    %p36 = por %p34, %p35
    %p37 = scmp.ne.s32.totalorder %s26, %s27
    %p38 = scmp.eq.s32.totalorder %s18, 0
    %p39 = por %p37, %p38
    %p40 = scmp.ne.s32.totalorder %s26, %s27
    %p41 = scmp.eq.s32.totalorder %s19, 1
    %p42 = por %p40, %p41
    %p44 = scmp.ne.s32.totalorder %s27, %s43
    %p45 = scmp.eq.s32.totalorder %s19, 0
    %p46 = por %p44, %p45
    %s48 = sadd.s32 %s47, 1
    %p51 = scmp.eq.s32.totalorder %s13, 1
    %p52 = scmp.ne.s32.totalorder %s47, %s49
    %p53 = scmp.eq.s32.totalorder %s13, 0
    %p54 = por %p52, %p53
    %p55 = scmp.ne.s32.totalorder %s47, %s49
    %p56 = scmp.eq.s32.totalorder %s18, 1
    %p57 = por %p55, %p56
    %p58 = scmp.ne.s32.totalorder %s49, %s50
    %p59 = scmp.eq.s32.totalorder %s18, 0
    %p60 = por %p58, %p59
    %p61 = scmp.ne.s32.totalorder %s49, %s50
    %p62 = scmp.eq.s32.totalorder %s19, 1
    %p63 = por %p61, %p62
    %p65 = scmp.ne.s32.totalorder %s50, %s64
    %p66 = scmp.eq.s32.totalorder %s19, 0
    %p67 = por %p65, %p66
    %s69 = sadd.s32 %s68, 1
    %p72 = scmp.eq.s32.totalorder %s13, 1
    %p73 = scmp.ne.s32.totalorder %s68, %s70
    %p74 = scmp.eq.s32.totalorder %s13, 0
    %p75 = por %p73, %p74
    %p76 = scmp.ne.s32.totalorder %s68, %s70
    %p77 = scmp.eq.s32.totalorder %s18, 1
    %p78 = por %p76, %p77
    %p79 = scmp.ne.s32.totalorder %s70, %s71
    %p80 = scmp.eq.s32.totalorder %s18, 0
    %p81 = por %p79, %p80
    %p82 = scmp.ne.s32.totalorder %s70, %s71
    %p83 = scmp.eq.s32.totalorder %s19, 1
    %p84 = por %p82, %p83
    %p86 = scmp.ne.s32.totalorder %s71, %s85
    %p87 = scmp.eq.s32.totalorder %s19, 0
    %p88 = por %p86, %p87
    %s90 = sadd.s32 %s89, 1
    %p93 = scmp.eq.s32.totalorder %s13, 1
    %p94 = scmp.ne.s32.totalorder %s89, %s91
    %p95 = scmp.eq.s32.totalorder %s13, 0
    %p96 = por %p94, %p95
    %p97 = scmp.ne.s32.totalorder %s89, %s91
    %p98 = scmp.eq.s32.totalorder %s18, 1
    %p99 = por %p97, %p98
    %p100 = scmp.ne.s32.totalorder %s91, %s92
    %p101 = scmp.eq.s32.totalorder %s18, 0
    %p102 = por %p100, %p101
    %p103 = scmp.ne.s32.totalorder %s91, %s92
    %p104 = scmp.eq.s32.totalorder %s19, 1
    %p105 = por %p103, %p104
    %p107 = scmp.ne.s32.totalorder %s92, %s106
    %p108 = scmp.eq.s32.totalorder %s19, 0
    %p109 = por %p107, %p108
    %s110 = ssub.s32 %s13, %s20
    %p111 = scmp.eq.s32.totalorder %s110, 0
    %s113 = sadd.s32 %s112, 1
    %s114 = scalar_select %p111, %s112, %s113
    %p117 = pneg %p111
    %p118 = scmp.eq.s32.totalorder %s13, 1
    %p119 = por %p117, %p118
    %p120 = scmp.ne.s32.totalorder %s112, %s115
    %p121 = scmp.eq.s32.totalorder %s13, 0
    %p122 = por %p120, %p121
    %p123 = scmp.ne.s32.totalorder %s112, %s115
    %p124 = scmp.eq.s32.totalorder %s18, 1
    %p125 = por %p123, %p124
    %p126 = scmp.ne.s32.totalorder %s115, %s116
    %p127 = scmp.eq.s32.totalorder %s18, 0
    %p128 = por %p126, %p127
    %p129 = scmp.ne.s32.totalorder %s115, %s116
    %p130 = scmp.eq.s32.totalorder %s19, 1
    %p131 = por %p129, %p130
    %p133 = scmp.ne.s32.totalorder %s116, %s132
    %p134 = scmp.eq.s32.totalorder %s19, 0
    %p135 = por %p133, %p134
    %s136 = ssub.s32 %s13, %s20
    %p137 = scmp.eq.s32.totalorder %s136, 0
    %s139 = sadd.s32 %s138, 1
    %s140 = scalar_select %p137, %s138, %s139
    %p143 = pneg %p137
    %p144 = scmp.eq.s32.totalorder %s13, 1
    %p145 = por %p143, %p144
    %p146 = scmp.ne.s32.totalorder %s138, %s141
    %p147 = scmp.eq.s32.totalorder %s13, 0
    %p148 = por %p146, %p147
    %p149 = scmp.ne.s32.totalorder %s138, %s141
    %p150 = scmp.eq.s32.totalorder %s18, 1
    %p151 = por %p149, %p150
    %p152 = scmp.ne.s32.totalorder %s141, %s142
    %p153 = scmp.eq.s32.totalorder %s18, 0
    %p154 = por %p152, %p153
    %p155 = scmp.ne.s32.totalorder %s141, %s142
    %p156 = scmp.eq.s32.totalorder %s19, 1
    %p157 = por %p155, %p156
    %p159 = scmp.ne.s32.totalorder %s142, %s158
    %p160 = scmp.eq.s32.totalorder %s19, 0
    %p161 = por %p159, %p160
    %s162 = ssub.s32 %s13, %s20
    %p163 = scmp.eq.s32.totalorder %s162, 0
    %s165 = sadd.s32 %s164, 1
    %s166 = scalar_select %p163, %s164, %s165
    %p169 = pneg %p163
    %p170 = scmp.eq.s32.totalorder %s13, 1
    %p171 = por %p169, %p170
    %p172 = scmp.ne.s32.totalorder %s164, %s167
    %p173 = scmp.eq.s32.totalorder %s13, 0
    %p174 = por %p172, %p173
    %p175 = scmp.ne.s32.totalorder %s164, %s167
    %p176 = scmp.eq.s32.totalorder %s18, 1
    %p177 = por %p175, %p176
    %p178 = scmp.ne.s32.totalorder %s167, %s168
    %p179 = scmp.eq.s32.totalorder %s18, 0
    %p180 = por %p178, %p179
    %p181 = scmp.ne.s32.totalorder %s167, %s168
    %p182 = scmp.eq.s32.totalorder %s19, 1
    %p183 = por %p181, %p182
    %p185 = scmp.ne.s32.totalorder %s168, %s184
    %p186 = scmp.eq.s32.totalorder %s19, 0
    %p187 = por %p185, %p186
    %p188 = scmp.le.s32.totalorder 1, %s13
    %p189 = scmp.lt.s32.totalorder %s13, 3
    %p190 = pnand %p188, %p189
    %p191 = pneg %p190
    // Predicated region
    $region9: #{preact_bottleneck_pallas.4} parent=5 // pred_check
      _
    $region10: #{preact_bottleneck_pallas.4} parent=5 // pred_check_branch
      %193 = sbr.rel (%p190) target = $region12
    $region11: #{preact_bottleneck_pallas.4} parent=5 // pred_region
      %s194 = ssub.s32 %s13, 1
      // Predicated region
      $region13: #{preact_bottleneck_pallas.4} parent=11 // pred_check
        %p195 = pneg %p60
      $region14: #{preact_bottleneck_pallas.4} parent=11 // pred_check_branch
        %197 = sbr.rel (%p195) target = $region16
      $region15: #{preact_bottleneck_pallas.4} parent=11 // pred_region
        _
      $region16: #{preact_bottleneck_pallas.4} parent=11 // pred_fallthru
        _
      // Predicated region
      $region17: #{preact_bottleneck_pallas.4} parent=11 // pred_check
        %p198 = pneg %p81
      $region18: #{preact_bottleneck_pallas.4} parent=11 // pred_check_branch
        %200 = sbr.rel (%p198) target = $region20
      $region19: #{preact_bottleneck_pallas.4} parent=11 // pred_region
        _
      $region20: #{preact_bottleneck_pallas.4} parent=11 // pred_fallthru
        _
      // Predicated region
      $region21: #{preact_bottleneck_pallas.4} parent=11 // pred_check
        %p201 = pneg %p102
      $region22: #{preact_bottleneck_pallas.4} parent=11 // pred_check_branch
        %203 = sbr.rel (%p201) target = $region24
      $region23: #{preact_bottleneck_pallas.4} parent=11 // pred_region
        _
      $region24: #{preact_bottleneck_pallas.4} parent=11 // pred_fallthru
        _
    $region12: #{preact_bottleneck_pallas.4} parent=5 // pred_fallthru
      _
    %p204 = scmp.lt.s32.totalorder %s13, 2
    // Predicated region
    $region25: #{preact_bottleneck_pallas.4} parent=5 // pred_check
      %p205 = pneg %p204
    $region26: #{preact_bottleneck_pallas.4} parent=5 // pred_check_branch
      %207 = sbr.rel (%p205) target = $region28
    $region27: #{preact_bottleneck_pallas.4} parent=5 // pred_region
      // Predicated region
      $region29: #{preact_bottleneck_pallas.4} parent=27 // pred_check
        %p208 = pneg %p33
      $region30: #{preact_bottleneck_pallas.4} parent=27 // pred_check_branch
        %210 = sbr.rel (%p208) target = $region32
      $region31: #{preact_bottleneck_pallas.4} parent=27 // pred_region
        %p211 = scmp.lt.s32.totalorder %s13, 1
        %s212 = scalar_select %p211, %s13, 1
        %s213 = smul.addr %s212, 32
        %s214 = smul.addr %s213, 4
        %s215 = scalar_lea.vmem %s0, %s214
      $region32: #{preact_bottleneck_pallas.4} parent=27 // pred_fallthru
        _
    $region28: #{preact_bottleneck_pallas.4} parent=5 // pred_fallthru
      _
    %p216 = scmp.le.s32.totalorder 1, %s13
    %p217 = scmp.lt.s32.totalorder %s13, 3
    %p218 = pnand %p216, %p217
    %p219 = pneg %p218
    // Predicated region
    $region33: #{preact_bottleneck_pallas.4} parent=5 // pred_check
      _
    $region34: #{preact_bottleneck_pallas.4} parent=5 // pred_check_branch
      %221 = sbr.rel (%p218) target = $region36
    $region35: #{preact_bottleneck_pallas.4} parent=5 // pred_region
      %s222 = ssub.s32 %s13, 1
      %p223 = scmp.lt.s32.totalorder %s18, 1
      %s224 = scalar_select %p223, %s18, 1
      %s225 = smul.addr %s224, 32
      %s226 = smul.addr %s225, 4
      %s227 = scalar_lea.vmem %s0, %s226
      %p228 = pneg %p39
      %p229 = pneg %p36
      %p230 = pneg %p60
      %p231 = pneg %p57
      %p232 = pneg %p81
      %p233 = pneg %p78
      %p234 = pneg %p102
      %p235 = pneg %p99
      %p236 = pneg %p128
      %p237 = pneg %p125
      %p238 = scmp.lt.s32.totalorder %s18, 1
      %s239 = scalar_select %p238, %s18, 1
      %s240 = smul.addr %s239, 32
      %s241 = smul.addr %s240, 4
      %s242 = scalar_lea.vmem %s4, %s241
      %p243 = pneg %p154
      %p244 = pneg %p151
      %p245 = scmp.lt.s32.totalorder %s18, 1
      %s246 = scalar_select %p245, %s18, 1
      %s247 = scalar_lea.vmem %s5, %s246
      %p248 = pneg %p180
      %p249 = pneg %p177
      %p250 = scmp.lt.s32.totalorder %s18, 1
      %s251 = scalar_select %p250, %s18, 1
      %s252 = scalar_lea.vmem %s6, %s251
      %p253 = scmp.lt.s32.totalorder %s18, 1
      %s254 = scalar_select %p253, %s18, 1
      %s255 = smul.addr %s254, 32
      %s256 = smul.addr %s255, 4
      %s257 = scalar_lea.vmem %s0, %s256
      %p258 = scmp.lt.s32.totalorder %s18, 1
      %s259 = scalar_select %p258, %s18, 1
      %s260 = smul.addr %s259, 32
      %s261 = smul.addr %s260, 4
      %s262 = scalar_lea.vmem %s4, %s261
      %p263 = scmp.lt.s32.totalorder %s18, 1
      %s264 = scalar_select %p263, %s18, 1
      %s265 = scalar_lea.vmem %s5, %s264
      %p266 = scmp.lt.s32.totalorder %s18, 1
      %s267 = scalar_select %p266, %s18, 1
      %s268 = scalar_lea.vmem %s6, %s267
      %vm270 = vcmask 1047555
      %vm271 = vsmask.f32 7950
      %vm272 = vmand %vm270, %vm271
      %v273 = vld [vmem:[#allocation2] sm:$0xf8]
      %v274 = vsel %vm272, 0, %v273
      %275 = vst [vmem:[#allocation2] sm:$0xf8] %v274
      %vm276 = vcmask 1044480
      %vm277 = vsmask.f32 4352
      %vm278 = vmand %vm276, %vm277
      %v279 = vld [vmem:[#allocation2 + $0x8] sm:$0x1f]
      %v280 = vsel %vm278, 0, %v279
      %281 = vst [vmem:[#allocation2 + $0x8] sm:$0x1f] %v280
      %s282 = scalar_lea.vmem [#allocation2], 272
      %v283 = vld [vmem:[%s282] sm:$0xf8]
      %v284 = vsel %vm272, 0, %v283
      %285 = vst [vmem:[%s282] sm:$0xf8] %v284
      %v286 = vld [vmem:[%s282 + $0x8] sm:$0x1f]
      %v287 = vsel %vm278, 0, %v286
      %288 = vst [vmem:[%s282 + $0x8] sm:$0x1f] %v287
      %s289 = scalar_lea.vmem [#allocation2], 16
      %vm290 = vcmask 1043459
      %vm291 = vmand %vm290, %vm271
      %v292 = vld [vmem:[%s289] sm:$0x8]
      %v293 = vsel %vm291, 0, %v292
      %294 = vst [vmem:[%s289] sm:$0x8] %v293
      %v295 = vld [vmem:[%s289 + $0x10] sm:$0x8]
      %v296 = vsel %vm291, 0, %v295
      %297 = vst [vmem:[%s289 + $0x10] sm:$0x8] %v296
      %v298 = vld [vmem:[%s289 + $0x20] sm:$0x8]
      %v299 = vsel %vm291, 0, %v298
      %300 = vst [vmem:[%s289 + $0x20] sm:$0x8] %v299
      %v301 = vld [vmem:[%s289 + $0x30] sm:$0x8]
      %v302 = vsel %vm291, 0, %v301
      %303 = vst [vmem:[%s289 + $0x30] sm:$0x8] %v302
      %v304 = vld [vmem:[%s289 + $0x40] sm:$0x8]
      %v305 = vsel %vm291, 0, %v304
      %306 = vst [vmem:[%s289 + $0x40] sm:$0x8] %v305
      %v307 = vld [vmem:[%s289 + $0x50] sm:$0x8]
      %v308 = vsel %vm291, 0, %v307
      %309 = vst [vmem:[%s289 + $0x50] sm:$0x8] %v308
      %v310 = vld [vmem:[%s289 + $0x60] sm:$0x8]
      %v311 = vsel %vm291, 0, %v310
      %312 = vst [vmem:[%s289 + $0x60] sm:$0x8] %v311
      %v313 = vld [vmem:[%s289 + $0x70] sm:$0x8]
      %v314 = vsel %vm291, 0, %v313
      %315 = vst [vmem:[%s289 + $0x70] sm:$0x8] %v314
      %v316 = vld [vmem:[%s289 + $0x80] sm:$0x8]
      %v317 = vsel %vm291, 0, %v316
      %318 = vst [vmem:[%s289 + $0x80] sm:$0x8] %v317
      %v319 = vld [vmem:[%s289 + $0x90] sm:$0x8]
      %v320 = vsel %vm291, 0, %v319
      %321 = vst [vmem:[%s289 + $0x90] sm:$0x8] %v320
      %v322 = vld [vmem:[%s289 + $0xa0] sm:$0x8]
      %v323 = vsel %vm291, 0, %v322
      %324 = vst [vmem:[%s289 + $0xa0] sm:$0x8] %v323
      %v325 = vld [vmem:[%s289 + $0xb0] sm:$0x8]
      %v326 = vsel %vm291, 0, %v325
      %327 = vst [vmem:[%s289 + $0xb0] sm:$0x8] %v326
      %v328 = vld [vmem:[%s289 + $0xc0] sm:$0x8]
      %v329 = vsel %vm291, 0, %v328
      %330 = vst [vmem:[%s289 + $0xc0] sm:$0x8] %v329
      %v331 = vld [vmem:[%s289 + $0xd0] sm:$0x8]
      %v332 = vsel %vm291, 0, %v331
      %333 = vst [vmem:[%s289 + $0xd0] sm:$0x8] %v332
      %v334 = vld [vmem:[%s289 + $0xe0] sm:$0x8]
      %v335 = vsel %vm291, 0, %v334
      %336 = vst [vmem:[%s289 + $0xe0] sm:$0x8] %v335
      %v337 = vld [vmem:[%s289 + $0xf0] sm:$0x8]
      %v338 = vsel %vm291, 0, %v337
      %339 = vst [vmem:[%s289 + $0xf0] sm:$0x8] %v338
      %vm340 = vcmask 1044484
      %vm341 = vmand %vm340, %vm277
      %v342 = vld [vmem:[%s289 + $0x8] sm:$0x10]
      %v343 = vsel %vm341, 0, %v342
      %344 = vst [vmem:[%s289 + $0x8] sm:$0x10] %v343
      %v345 = vld [vmem:[%s289 + $0x18] sm:$0x10]
      %v346 = vsel %vm341, 0, %v345
      %347 = vst [vmem:[%s289 + $0x18] sm:$0x10] %v346
      %v348 = vld [vmem:[%s289 + $0x28] sm:$0x10]
      %v349 = vsel %vm341, 0, %v348
      %350 = vst [vmem:[%s289 + $0x28] sm:$0x10] %v349
      %v351 = vld [vmem:[%s289 + $0x38] sm:$0x10]
      %v352 = vsel %vm341, 0, %v351
      %353 = vst [vmem:[%s289 + $0x38] sm:$0x10] %v352
      %v354 = vld [vmem:[%s289 + $0x48] sm:$0x10]
      %v355 = vsel %vm341, 0, %v354
      %356 = vst [vmem:[%s289 + $0x48] sm:$0x10] %v355
      %v357 = vld [vmem:[%s289 + $0x58] sm:$0x10]
      %v358 = vsel %vm341, 0, %v357
      %359 = vst [vmem:[%s289 + $0x58] sm:$0x10] %v358
      %v360 = vld [vmem:[%s289 + $0x68] sm:$0x10]
      %v361 = vsel %vm341, 0, %v360
      %362 = vst [vmem:[%s289 + $0x68] sm:$0x10] %v361
      %v363 = vld [vmem:[%s289 + $0x78] sm:$0x10]
      %v364 = vsel %vm341, 0, %v363
      %365 = vst [vmem:[%s289 + $0x78] sm:$0x10] %v364
      %v366 = vld [vmem:[%s289 + $0x88] sm:$0x10]
      %v367 = vsel %vm341, 0, %v366
      %368 = vst [vmem:[%s289 + $0x88] sm:$0x10] %v367
      %v369 = vld [vmem:[%s289 + $0x98] sm:$0x10]
      %v370 = vsel %vm341, 0, %v369
      %371 = vst [vmem:[%s289 + $0x98] sm:$0x10] %v370
      %v372 = vld [vmem:[%s289 + $0xa8] sm:$0x10]
      %v373 = vsel %vm341, 0, %v372
      %374 = vst [vmem:[%s289 + $0xa8] sm:$0x10] %v373
      %v375 = vld [vmem:[%s289 + $0xb8] sm:$0x10]
      %v376 = vsel %vm341, 0, %v375
      %377 = vst [vmem:[%s289 + $0xb8] sm:$0x10] %v376
      %v378 = vld [vmem:[%s289 + $0xc8] sm:$0x10]
      %v379 = vsel %vm341, 0, %v378
      %380 = vst [vmem:[%s289 + $0xc8] sm:$0x10] %v379
      %v381 = vld [vmem:[%s289 + $0xd8] sm:$0x10]
      %v382 = vsel %vm341, 0, %v381
      %383 = vst [vmem:[%s289 + $0xd8] sm:$0x10] %v382
      %v384 = vld [vmem:[%s289 + $0xe8] sm:$0x10]
      %v385 = vsel %vm341, 0, %v384
      %386 = vst [vmem:[%s289 + $0xe8] sm:$0x10] %v385
      %v387 = vld [vmem:[%s289 + $0xf8] sm:$0x10]
      %v388 = vsel %vm341, 0, %v387
      %389 = vst [vmem:[%s289 + $0xf8] sm:$0x10] %v388
      %v390 = vld [vmem:[%s257] sm:$0xf]
      %v391 = vld [vmem:[%s257 + $0x4] sm:$0xf]
      %v392 = vld [vmem:[%s257 + $0x8] sm:$0xf]
      %v393 = vld [vmem:[%s257 + $0xc] sm:$0xf]
      %v394 = vld [vmem:[%s257 + $0x10] sm:$0xf]
      %v395 = vld [vmem:[%s257 + $0x14] sm:$0xf]
      %v396 = vld [vmem:[%s257 + $0x18] sm:$0xf]
      %v397 = vld [vmem:[%s257 + $0x1c] sm:$0xf]
      %v398 = vld [vmem:[%s257 + $0x20] sm:$0xf]
      %v399 = vld [vmem:[%s257 + $0x24] sm:$0xf]
      %v400 = vld [vmem:[%s257 + $0x28] sm:$0xf]
      %v401 = vld [vmem:[%s257 + $0x2c] sm:$0xf]
      %v402 = vld [vmem:[%s257 + $0x30] sm:$0xf]
      %v403 = vld [vmem:[%s257 + $0x34] sm:$0xf]
      %v404 = vld [vmem:[%s257 + $0x38] sm:$0xf]
      %v405 = vld [vmem:[%s257 + $0x3c] sm:$0xf]
      %v406 = vld [vmem:[%s257 + $0x40] sm:$0xf]
      %v407 = vld [vmem:[%s257 + $0x44] sm:$0xf]
      %v408 = vld [vmem:[%s257 + $0x48] sm:$0xf]
      %v409 = vld [vmem:[%s257 + $0x4c] sm:$0xf]
      %v410 = vld [vmem:[%s257 + $0x50] sm:$0xf]
      %v411 = vld [vmem:[%s257 + $0x54] sm:$0xf]
      %v412 = vld [vmem:[%s257 + $0x58] sm:$0xf]
      %v413 = vld [vmem:[%s257 + $0x5c] sm:$0xf]
      %v414 = vld [vmem:[%s257 + $0x60] sm:$0xf]
      %v415 = vld [vmem:[%s257 + $0x64] sm:$0xf]
      %v416 = vld [vmem:[%s257 + $0x68] sm:$0xf]
      %v417 = vld [vmem:[%s257 + $0x6c] sm:$0xf]
      %v418 = vld [vmem:[%s257 + $0x70] sm:$0xf]
      %v419 = vld [vmem:[%s257 + $0x74] sm:$0xf]
      %v420 = vld [vmem:[%s257 + $0x78] sm:$0xf]
      %v421 = vld [vmem:[%s257 + $0x7c] sm:$0xf]
      %v422 = vunpack.c.l.bf16 %v390
      %v423 = vunpack.c.l.bf16 %v391
      %v424 = vunpack.c.l.bf16 %v392
      %v425 = vunpack.c.l.bf16 %v393
      %v426 = vunpack.c.l.bf16 %v394
      %v427 = vunpack.c.l.bf16 %v395
      %v428 = vunpack.c.l.bf16 %v396
      %v429 = vunpack.c.l.bf16 %v397
      %v430 = vunpack.c.l.bf16 %v398
      %v431 = vunpack.c.l.bf16 %v399
      %v432 = vunpack.c.l.bf16 %v400
      %v433 = vunpack.c.l.bf16 %v401
      %v434 = vunpack.c.l.bf16 %v402
      %v435 = vunpack.c.l.bf16 %v403
      %v436 = vunpack.c.l.bf16 %v404
      %v437 = vunpack.c.l.bf16 %v405
      %v438 = vunpack.c.l.bf16 %v406
      %v439 = vunpack.c.l.bf16 %v407
      %v440 = vunpack.c.l.bf16 %v408
      %v441 = vunpack.c.l.bf16 %v409
      %v442 = vunpack.c.l.bf16 %v410
      %v443 = vunpack.c.l.bf16 %v411
      %v444 = vunpack.c.l.bf16 %v412
      %v445 = vunpack.c.l.bf16 %v413
      %v446 = vunpack.c.l.bf16 %v414
      %v447 = vunpack.c.l.bf16 %v415
      %v448 = vunpack.c.l.bf16 %v416
      %v449 = vunpack.c.l.bf16 %v417
      %v450 = vunpack.c.l.bf16 %v418
      %v451 = vunpack.c.l.bf16 %v419
      %v452 = vunpack.c.l.bf16 %v420
      %v453 = vunpack.c.l.bf16 %v421
      %v454 = vld [vmem:[%s1] sm:$0x1]
      %v456 = vlaneseq
      %v457 = vshrl.u32 %v456, 7
      %v458 = vsub.s32 0, %v457
      %v459 = vrot.slane %v454, %v458
      %v461 = vmul.f32 %v422, %v459
      %v462 = vmul.f32 %v423, %v459
      %v463 = vmul.f32 %v424, %v459
      %v464 = vmul.f32 %v425, %v459
      %v465 = vmul.f32 %v426, %v459
      %v466 = vmul.f32 %v427, %v459
      %v467 = vmul.f32 %v428, %v459
      %v468 = vmul.f32 %v429, %v459
      %v469 = vmul.f32 %v430, %v459
      %v470 = vmul.f32 %v431, %v459
      %v471 = vmul.f32 %v432, %v459
      %v472 = vmul.f32 %v433, %v459
      %v473 = vmul.f32 %v434, %v459
      %v474 = vmul.f32 %v435, %v459
      %v475 = vmul.f32 %v436, %v459
      %v476 = vmul.f32 %v437, %v459
      %v477 = vmul.f32 %v438, %v459
      %v478 = vmul.f32 %v439, %v459
      %v479 = vmul.f32 %v440, %v459
      %v480 = vmul.f32 %v441, %v459
      %v481 = vmul.f32 %v442, %v459
      %v482 = vmul.f32 %v443, %v459
      %v483 = vmul.f32 %v444, %v459
      %v484 = vmul.f32 %v445, %v459
      %v485 = vmul.f32 %v446, %v459
      %v486 = vmul.f32 %v447, %v459
      %v487 = vmul.f32 %v448, %v459
      %v488 = vmul.f32 %v449, %v459
      %v489 = vmul.f32 %v450, %v459
      %v490 = vmul.f32 %v451, %v459
      %v491 = vmul.f32 %v452, %v459
      %v492 = vmul.f32 %v453, %v459
      %v493 = vld [vmem:[%s2] sm:$0x1]
      %v495 = vlaneseq
      %v496 = vshrl.u32 %v495, 7
      %v497 = vsub.s32 0, %v496
      %v498 = vrot.slane %v493, %v497
      %v500 = vadd.f32 %v461, %v498
      %v501 = vadd.f32 %v462, %v498
      %v502 = vadd.f32 %v463, %v498
      %v503 = vadd.f32 %v464, %v498
      %v504 = vadd.f32 %v465, %v498
      %v505 = vadd.f32 %v466, %v498
      %v506 = vadd.f32 %v467, %v498
      %v507 = vadd.f32 %v468, %v498
      %v508 = vadd.f32 %v469, %v498
      %v509 = vadd.f32 %v470, %v498
      %v510 = vadd.f32 %v471, %v498
      %v511 = vadd.f32 %v472, %v498
      %v512 = vadd.f32 %v473, %v498
      %v513 = vadd.f32 %v474, %v498
      %v514 = vadd.f32 %v475, %v498
      %v515 = vadd.f32 %v476, %v498
      %v516 = vadd.f32 %v477, %v498
      %v517 = vadd.f32 %v478, %v498
      %v518 = vadd.f32 %v479, %v498
      %v519 = vadd.f32 %v480, %v498
      %v520 = vadd.f32 %v481, %v498
      %v521 = vadd.f32 %v482, %v498
      %v522 = vadd.f32 %v483, %v498
      %v523 = vadd.f32 %v484, %v498
      %v524 = vadd.f32 %v485, %v498
      %v525 = vadd.f32 %v486, %v498
      %v526 = vadd.f32 %v487, %v498
      %v527 = vadd.f32 %v488, %v498
      %v528 = vadd.f32 %v489, %v498
      %v529 = vadd.f32 %v490, %v498
      %v530 = vadd.f32 %v491, %v498
      %v531 = vadd.f32 %v492, %v498
      %v532 = vmax.f32 %v500, 0.0
      %v533 = vmax.f32 %v501, 0.0
      %v534 = vmax.f32 %v502, 0.0
      %v535 = vmax.f32 %v503, 0.0
      %v536 = vmax.f32 %v504, 0.0
      %v537 = vmax.f32 %v505, 0.0
      %v538 = vmax.f32 %v506, 0.0
      %v539 = vmax.f32 %v507, 0.0
      %v540 = vmax.f32 %v508, 0.0
      %v541 = vmax.f32 %v509, 0.0
      %v542 = vmax.f32 %v510, 0.0
      %v543 = vmax.f32 %v511, 0.0
      %v544 = vmax.f32 %v512, 0.0
      %v545 = vmax.f32 %v513, 0.0
      %v546 = vmax.f32 %v514, 0.0
      %v547 = vmax.f32 %v515, 0.0
      %v548 = vmax.f32 %v516, 0.0
      %v549 = vmax.f32 %v517, 0.0
      %v550 = vmax.f32 %v518, 0.0
      %v551 = vmax.f32 %v519, 0.0
      %v552 = vmax.f32 %v520, 0.0
      %v553 = vmax.f32 %v521, 0.0
      %v554 = vmax.f32 %v522, 0.0
      %v555 = vmax.f32 %v523, 0.0
      %v556 = vmax.f32 %v524, 0.0
      %v557 = vmax.f32 %v525, 0.0
      %v558 = vmax.f32 %v526, 0.0
      %v559 = vmax.f32 %v527, 0.0
      %v560 = vmax.f32 %v528, 0.0
      %v561 = vmax.f32 %v529, 0.0
      %v562 = vmax.f32 %v530, 0.0
      %v563 = vmax.f32 %v531, 0.0
      %v564 = vpack.c.bf16 %v533, %v532
      %v565 = vpack.c.bf16 %v535, %v534
      %v566 = vpack.c.bf16 %v537, %v536
      %v567 = vpack.c.bf16 %v539, %v538
      %v568 = vpack.c.bf16 %v541, %v540
      %v569 = vpack.c.bf16 %v543, %v542
      %v570 = vpack.c.bf16 %v545, %v544
      %v571 = vpack.c.bf16 %v547, %v546
      %v572 = vpack.c.bf16 %v549, %v548
      %v573 = vpack.c.bf16 %v551, %v550
      %v574 = vpack.c.bf16 %v553, %v552
      %v575 = vpack.c.bf16 %v555, %v554
      %v576 = vpack.c.bf16 %v557, %v556
      %v577 = vpack.c.bf16 %v559, %v558
      %v578 = vpack.c.bf16 %v561, %v560
      %v579 = vpack.c.bf16 %v563, %v562
      %v596 = vrot.slane %v564, 4
      %v597 = vrot.slane %v565, 4
      %v598 = vrot.slane %v566, 4
      %v599 = vrot.slane %v567, 4
      %v600 = vrot.slane %v568, 4
      %v601 = vrot.slane %v569, 4
      %v602 = vrot.slane %v570, 4
      %v603 = vrot.slane %v571, 4
      %v604 = vrot.slane %v572, 4
      %v605 = vrot.slane %v573, 4
      %v606 = vrot.slane %v574, 4
      %v607 = vrot.slane %v575, 4
      %v608 = vrot.slane %v576, 4
      %v609 = vrot.slane %v577, 4
      %v610 = vrot.slane %v578, 4
      %v611 = vrot.slane %v579, 4
      %628 = vst [vmem:[%s289] sm:$0xf0] %v596
      %629 = vst [vmem:[%s289 + $0x8] sm:$0xf] %v596
      %630 = vst [vmem:[%s289 + $0x10] sm:$0xf0] %v597
      %631 = vst [vmem:[%s289 + $0x18] sm:$0xf] %v597
      %632 = vst [vmem:[%s289 + $0x20] sm:$0xf0] %v598
      %633 = vst [vmem:[%s289 + $0x28] sm:$0xf] %v598
      %634 = vst [vmem:[%s289 + $0x30] sm:$0xf0] %v599
      %635 = vst [vmem:[%s289 + $0x38] sm:$0xf] %v599
      %636 = vst [vmem:[%s289 + $0x40] sm:$0xf0] %v600
      %637 = vst [vmem:[%s289 + $0x48] sm:$0xf] %v600
      %638 = vst [vmem:[%s289 + $0x50] sm:$0xf0] %v601
      %639 = vst [vmem:[%s289 + $0x58] sm:$0xf] %v601
      %640 = vst [vmem:[%s289 + $0x60] sm:$0xf0] %v602
      %641 = vst [vmem:[%s289 + $0x68] sm:$0xf] %v602
      %642 = vst [vmem:[%s289 + $0x70] sm:$0xf0] %v603
      %643 = vst [vmem:[%s289 + $0x78] sm:$0xf] %v603
      %644 = vst [vmem:[%s289 + $0x80] sm:$0xf0] %v604
      %645 = vst [vmem:[%s289 + $0x88] sm:$0xf] %v604
      %646 = vst [vmem:[%s289 + $0x90] sm:$0xf0] %v605
      %647 = vst [vmem:[%s289 + $0x98] sm:$0xf] %v605
      %648 = vst [vmem:[%s289 + $0xa0] sm:$0xf0] %v606
      %649 = vst [vmem:[%s289 + $0xa8] sm:$0xf] %v606
      %650 = vst [vmem:[%s289 + $0xb0] sm:$0xf0] %v607
      %651 = vst [vmem:[%s289 + $0xb8] sm:$0xf] %v607
      %652 = vst [vmem:[%s289 + $0xc0] sm:$0xf0] %v608
      %653 = vst [vmem:[%s289 + $0xc8] sm:$0xf] %v608
      %654 = vst [vmem:[%s289 + $0xd0] sm:$0xf0] %v609
      %655 = vst [vmem:[%s289 + $0xd8] sm:$0xf] %v609
      %656 = vst [vmem:[%s289 + $0xe0] sm:$0xf0] %v610
      %657 = vst [vmem:[%s289 + $0xe8] sm:$0xf] %v610
      %658 = vst [vmem:[%s289 + $0xf0] sm:$0xf0] %v611
      %659 = vst [vmem:[%s289 + $0xf8] sm:$0xf] %v611
      %v660 = vld [vmem:[#allocation2] sm:$0xf8]
      %v661 = vld [vmem:[#allocation2 + $0x8] sm:$0xf]
      %v662 = vld [vmem:[#allocation2 + $0x10] sm:$0xf8]
      %v663 = vld [vmem:[#allocation2 + $0x18] sm:$0xf]
      %v664 = vld [vmem:[#allocation2 + $0x20] sm:$0xf8]
      %v665 = vld [vmem:[#allocation2 + $0x28] sm:$0xf]
      %v666 = vld [vmem:[#allocation2 + $0x30] sm:$0xf8]
      %v667 = vld [vmem:[#allocation2 + $0x38] sm:$0xf]
      %v668 = vld [vmem:[#allocation2 + $0x40] sm:$0xf8]
      %v669 = vld [vmem:[#allocation2 + $0x48] sm:$0xf]
      %v670 = vld [vmem:[#allocation2 + $0x50] sm:$0xf8]
      %v671 = vld [vmem:[#allocation2 + $0x58] sm:$0xf]
      %v672 = vld [vmem:[#allocation2 + $0x60] sm:$0xf8]
      %v673 = vld [vmem:[#allocation2 + $0x68] sm:$0xf]
      %v674 = vld [vmem:[#allocation2 + $0x70] sm:$0xf8]
      %v675 = vld [vmem:[#allocation2 + $0x78] sm:$0xf]
      %v676 = vld [vmem:[#allocation2 + $0x80] sm:$0xf8]
      %v677 = vld [vmem:[#allocation2 + $0x88] sm:$0xf]
      %v678 = vld [vmem:[#allocation2 + $0x90] sm:$0xf8]
      %v679 = vld [vmem:[#allocation2 + $0x98] sm:$0xf]
      %v680 = vld [vmem:[#allocation2 + $0xa0] sm:$0xf8]
      %v681 = vld [vmem:[#allocation2 + $0xa8] sm:$0xf]
      %v682 = vld [vmem:[#allocation2 + $0xb0] sm:$0xf8]
      %v683 = vld [vmem:[#allocation2 + $0xb8] sm:$0xf]
      %v684 = vld [vmem:[#allocation2 + $0xc0] sm:$0xf8]
      %v685 = vld [vmem:[#allocation2 + $0xc8] sm:$0xf]
      %v686 = vld [vmem:[#allocation2 + $0xd0] sm:$0xf8]
      %v687 = vld [vmem:[#allocation2 + $0xd8] sm:$0xf]
      %v688 = vld [vmem:[#allocation2 + $0xe0] sm:$0xf8]
      %v689 = vld [vmem:[#allocation2 + $0xe8] sm:$0xf]
      %v690 = vld [vmem:[#allocation2 + $0xf0] sm:$0xf8]
      %v691 = vld [vmem:[#allocation2 + $0xf8] sm:$0xf]
      %v693 = vshrl.u32 %v660, 16
      %v695 = vrot.slane %v693, 3
      %v696 = vshll.u32 %v660, 16
      %v698 = vrot.slane %v696, 4
      %v699 = vor.u32 %v695, %v698
      %v701 = vshrl.u32 %v661, 16
      %v703 = vrot.slane %v701, 3
      %v704 = vshll.u32 %v661, 16
      %v706 = vrot.slane %v704, 4
      %v707 = vor.u32 %v703, %v706
      %v708 = vsel %vm277, %v699, %v707
      %v710 = vshrl.u32 %v662, 16
      %v712 = vrot.slane %v710, 3
      %v713 = vshll.u32 %v662, 16
      %v715 = vrot.slane %v713, 4
      %v716 = vor.u32 %v712, %v715
      %v718 = vshrl.u32 %v663, 16
      %v720 = vrot.slane %v718, 3
      %v721 = vshll.u32 %v663, 16
      %v723 = vrot.slane %v721, 4
      %v724 = vor.u32 %v720, %v723
      %v725 = vsel %vm277, %v716, %v724
      %v727 = vshrl.u32 %v664, 16
      %v729 = vrot.slane %v727, 3
      %v730 = vshll.u32 %v664, 16
      %v732 = vrot.slane %v730, 4
      %v733 = vor.u32 %v729, %v732
      %v735 = vshrl.u32 %v665, 16
      %v737 = vrot.slane %v735, 3
      %v738 = vshll.u32 %v665, 16
      %v740 = vrot.slane %v738, 4
      %v741 = vor.u32 %v737, %v740
      %v742 = vsel %vm277, %v733, %v741
      %v744 = vshrl.u32 %v666, 16
      %v746 = vrot.slane %v744, 3
      %v747 = vshll.u32 %v666, 16
      %v749 = vrot.slane %v747, 4
      %v750 = vor.u32 %v746, %v749
      %v752 = vshrl.u32 %v667, 16
      %v754 = vrot.slane %v752, 3
      %v755 = vshll.u32 %v667, 16
      %v757 = vrot.slane %v755, 4
      %v758 = vor.u32 %v754, %v757
      %v759 = vsel %vm277, %v750, %v758
      %v761 = vshrl.u32 %v668, 16
      %v763 = vrot.slane %v761, 3
      %v764 = vshll.u32 %v668, 16
      %v766 = vrot.slane %v764, 4
      %v767 = vor.u32 %v763, %v766
      %v769 = vshrl.u32 %v669, 16
      %v771 = vrot.slane %v769, 3
      %v772 = vshll.u32 %v669, 16
      %v774 = vrot.slane %v772, 4
      %v775 = vor.u32 %v771, %v774
      %v776 = vsel %vm277, %v767, %v775
      %v778 = vshrl.u32 %v670, 16
      %v780 = vrot.slane %v778, 3
      %v781 = vshll.u32 %v670, 16
      %v783 = vrot.slane %v781, 4
      %v784 = vor.u32 %v780, %v783
      %v786 = vshrl.u32 %v671, 16
      %v788 = vrot.slane %v786, 3
      %v789 = vshll.u32 %v671, 16
      %v791 = vrot.slane %v789, 4
      %v792 = vor.u32 %v788, %v791
      %v793 = vsel %vm277, %v784, %v792
      %v795 = vshrl.u32 %v672, 16
      %v797 = vrot.slane %v795, 3
      %v798 = vshll.u32 %v672, 16
      %v800 = vrot.slane %v798, 4
      %v801 = vor.u32 %v797, %v800
      %v803 = vshrl.u32 %v673, 16
      %v805 = vrot.slane %v803, 3
      %v806 = vshll.u32 %v673, 16
      %v808 = vrot.slane %v806, 4
      %v809 = vor.u32 %v805, %v808
      %v810 = vsel %vm277, %v801, %v809
      %v812 = vshrl.u32 %v674, 16
      %v814 = vrot.slane %v812, 3
      %v815 = vshll.u32 %v674, 16
      %v817 = vrot.slane %v815, 4
      %v818 = vor.u32 %v814, %v817
      %v820 = vshrl.u32 %v675, 16
      %v822 = vrot.slane %v820, 3
      %v823 = vshll.u32 %v675, 16
      %v825 = vrot.slane %v823, 4
      %v826 = vor.u32 %v822, %v825
      %v827 = vsel %vm277, %v818, %v826
      %v829 = vshrl.u32 %v676, 16
      %v831 = vrot.slane %v829, 3
      %v832 = vshll.u32 %v676, 16
      %v834 = vrot.slane %v832, 4
      %v835 = vor.u32 %v831, %v834
      %v837 = vshrl.u32 %v677, 16
      %v839 = vrot.slane %v837, 3
      %v840 = vshll.u32 %v677, 16
      %v842 = vrot.slane %v840, 4
      %v843 = vor.u32 %v839, %v842
      %v844 = vsel %vm277, %v835, %v843
      %v846 = vshrl.u32 %v678, 16
      %v848 = vrot.slane %v846, 3
      %v849 = vshll.u32 %v678, 16
      %v851 = vrot.slane %v849, 4
      %v852 = vor.u32 %v848, %v851
      %v854 = vshrl.u32 %v679, 16
      %v856 = vrot.slane %v854, 3
      %v857 = vshll.u32 %v679, 16
      %v859 = vrot.slane %v857, 4
      %v860 = vor.u32 %v856, %v859
      %v861 = vsel %vm277, %v852, %v860
      %v863 = vshrl.u32 %v680, 16
      %v865 = vrot.slane %v863, 3
      %v866 = vshll.u32 %v680, 16
      %v868 = vrot.slane %v866, 4
      %v869 = vor.u32 %v865, %v868
      %v871 = vshrl.u32 %v681, 16
      %v873 = vrot.slane %v871, 3
      %v874 = vshll.u32 %v681, 16
      %v876 = vrot.slane %v874, 4
      %v877 = vor.u32 %v873, %v876
      %v878 = vsel %vm277, %v869, %v877
      %v880 = vshrl.u32 %v682, 16
      %v882 = vrot.slane %v880, 3
      %v883 = vshll.u32 %v682, 16
      %v885 = vrot.slane %v883, 4
      %v886 = vor.u32 %v882, %v885
      %v888 = vshrl.u32 %v683, 16
      %v890 = vrot.slane %v888, 3
      %v891 = vshll.u32 %v683, 16
      %v893 = vrot.slane %v891, 4
      %v894 = vor.u32 %v890, %v893
      %v895 = vsel %vm277, %v886, %v894
      %v897 = vshrl.u32 %v684, 16
      %v899 = vrot.slane %v897, 3
      %v900 = vshll.u32 %v684, 16
      %v902 = vrot.slane %v900, 4
      %v903 = vor.u32 %v899, %v902
      %v905 = vshrl.u32 %v685, 16
      %v907 = vrot.slane %v905, 3
      %v908 = vshll.u32 %v685, 16
      %v910 = vrot.slane %v908, 4
      %v911 = vor.u32 %v907, %v910
      %v912 = vsel %vm277, %v903, %v911
      %v914 = vshrl.u32 %v686, 16
      %v916 = vrot.slane %v914, 3
      %v917 = vshll.u32 %v686, 16
      %v919 = vrot.slane %v917, 4
      %v920 = vor.u32 %v916, %v919
      %v922 = vshrl.u32 %v687, 16
      %v924 = vrot.slane %v922, 3
      %v925 = vshll.u32 %v687, 16
      %v927 = vrot.slane %v925, 4
      %v928 = vor.u32 %v924, %v927
      %v929 = vsel %vm277, %v920, %v928
      %v931 = vshrl.u32 %v688, 16
      %v933 = vrot.slane %v931, 3
      %v934 = vshll.u32 %v688, 16
      %v936 = vrot.slane %v934, 4
      %v937 = vor.u32 %v933, %v936
      %v939 = vshrl.u32 %v689, 16
      %v941 = vrot.slane %v939, 3
      %v942 = vshll.u32 %v689, 16
      %v944 = vrot.slane %v942, 4
      %v945 = vor.u32 %v941, %v944
      %v946 = vsel %vm277, %v937, %v945
      %v948 = vshrl.u32 %v690, 16
      %v950 = vrot.slane %v948, 3
      %v951 = vshll.u32 %v690, 16
      %v953 = vrot.slane %v951, 4
      %v954 = vor.u32 %v950, %v953
      %v956 = vshrl.u32 %v691, 16
      %v958 = vrot.slane %v956, 3
      %v959 = vshll.u32 %v691, 16
      %v961 = vrot.slane %v959, 4
      %v962 = vor.u32 %v958, %v961
      %v963 = vsel %vm277, %v954, %v962
      %980 = vst [vmem:[#allocation3] sm:$0xff] %v708
      %981 = vst [vmem:[#allocation3 + $0x48] sm:$0xff] %v725
      %982 = vst [vmem:[#allocation3 + $0x90] sm:$0xff] %v742
      %983 = vst [vmem:[#allocation3 + $0xd8] sm:$0xff] %v759
      %984 = vst [vmem:[#allocation3 + $0x120] sm:$0xff] %v776
      %985 = vst [vmem:[#allocation3 + $0x168] sm:$0xff] %v793
      %986 = vst [vmem:[#allocation3 + $0x1b0] sm:$0xff] %v810
      %987 = vst [vmem:[#allocation3 + $0x1f8] sm:$0xff] %v827
      %988 = vst [vmem:[#allocation3 + $0x240] sm:$0xff] %v844
      %989 = vst [vmem:[#allocation3 + $0x288] sm:$0xff] %v861
      %990 = vst [vmem:[#allocation3 + $0x2d0] sm:$0xff] %v878
      %991 = vst [vmem:[#allocation3 + $0x318] sm:$0xff] %v895
      %992 = vst [vmem:[#allocation3 + $0x360] sm:$0xff] %v912
      %993 = vst [vmem:[#allocation3 + $0x3a8] sm:$0xff] %v929
      %994 = vst [vmem:[#allocation3 + $0x3f0] sm:$0xff] %v946
      %995 = vst [vmem:[#allocation3 + $0x438] sm:$0xff] %v963
      %v996 = vld [vmem:[#allocation2] sm:$0xf0]
      %v997 = vld [vmem:[#allocation2 + $0x8] sm:$0xf]
      %v998 = vld [vmem:[#allocation2 + $0x10] sm:$0xf0]
      %v999 = vld [vmem:[#allocation2 + $0x18] sm:$0xf]
      %v1000 = vld [vmem:[#allocation2 + $0x20] sm:$0xf0]
      %v1001 = vld [vmem:[#allocation2 + $0x28] sm:$0xf]
      %v1002 = vld [vmem:[#allocation2 + $0x30] sm:$0xf0]
      %v1003 = vld [vmem:[#allocation2 + $0x38] sm:$0xf]
      %v1004 = vld [vmem:[#allocation2 + $0x40] sm:$0xf0]
      %v1005 = vld [vmem:[#allocation2 + $0x48] sm:$0xf]
      %v1006 = vld [vmem:[#allocation2 + $0x50] sm:$0xf0]
      %v1007 = vld [vmem:[#allocation2 + $0x58] sm:$0xf]
      %v1008 = vld [vmem:[#allocation2 + $0x60] sm:$0xf0]
      %v1009 = vld [vmem:[#allocation2 + $0x68] sm:$0xf]
      %v1010 = vld [vmem:[#allocation2 + $0x70] sm:$0xf0]
      %v1011 = vld [vmem:[#allocation2 + $0x78] sm:$0xf]
      %v1012 = vld [vmem:[#allocation2 + $0x80] sm:$0xf0]
      %v1013 = vld [vmem:[#allocation2 + $0x88] sm:$0xf]
      %v1014 = vld [vmem:[#allocation2 + $0x90] sm:$0xf0]
      %v1015 = vld [vmem:[#allocation2 + $0x98] sm:$0xf]
      %v1016 = vld [vmem:[#allocation2 + $0xa0] sm:$0xf0]
      %v1017 = vld [vmem:[#allocation2 + $0xa8] sm:$0xf]
      %v1018 = vld [vmem:[#allocation2 + $0xb0] sm:$0xf0]
      %v1019 = vld [vmem:[#allocation2 + $0xb8] sm:$0xf]
      %v1020 = vld [vmem:[#allocation2 + $0xc0] sm:$0xf0]
      %v1021 = vld [vmem:[#allocation2 + $0xc8] sm:$0xf]
      %v1022 = vld [vmem:[#allocation2 + $0xd0] sm:$0xf0]
      %v1023 = vld [vmem:[#allocation2 + $0xd8] sm:$0xf]
      %v1024 = vld [vmem:[#allocation2 + $0xe0] sm:$0xf0]
      %v1025 = vld [vmem:[#allocation2 + $0xe8] sm:$0xf]
      %v1026 = vld [vmem:[#allocation2 + $0xf0] sm:$0xf0]
      %v1027 = vld [vmem:[#allocation2 + $0xf8] sm:$0xf]
      %vm1060 = vcmask 1043456
      %v1061 = vrot.slane %v996, 4
      %v1062 = vrot.slane %v997, 4
      %v1063 = vsel %vm1060, %v1061, %v1062
      %v1064 = vrot.slane %v998, 4
      %v1065 = vrot.slane %v999, 4
      %v1066 = vsel %vm1060, %v1064, %v1065
      %v1067 = vrot.slane %v1000, 4
      %v1068 = vrot.slane %v1001, 4
      %v1069 = vsel %vm1060, %v1067, %v1068
      %v1070 = vrot.slane %v1002, 4
      %v1071 = vrot.slane %v1003, 4
      %v1072 = vsel %vm1060, %v1070, %v1071
      %v1073 = vrot.slane %v1004, 4
      %v1074 = vrot.slane %v1005, 4
      %v1075 = vsel %vm1060, %v1073, %v1074
      %v1076 = vrot.slane %v1006, 4
      %v1077 = vrot.slane %v1007, 4
      %v1078 = vsel %vm1060, %v1076, %v1077
      %v1079 = vrot.slane %v1008, 4
      %v1080 = vrot.slane %v1009, 4
      %v1081 = vsel %vm1060, %v1079, %v1080
      %v1082 = vrot.slane %v1010, 4
      %v1083 = vrot.slane %v1011, 4
      %v1084 = vsel %vm1060, %v1082, %v1083
      %v1085 = vrot.slane %v1012, 4
      %v1086 = vrot.slane %v1013, 4
      %v1087 = vsel %vm1060, %v1085, %v1086
      %v1088 = vrot.slane %v1014, 4
      %v1089 = vrot.slane %v1015, 4
      %v1090 = vsel %vm1060, %v1088, %v1089
      %v1091 = vrot.slane %v1016, 4
      %v1092 = vrot.slane %v1017, 4
      %v1093 = vsel %vm1060, %v1091, %v1092
      %v1094 = vrot.slane %v1018, 4
      %v1095 = vrot.slane %v1019, 4
      %v1096 = vsel %vm1060, %v1094, %v1095
      %v1097 = vrot.slane %v1020, 4
      %v1098 = vrot.slane %v1021, 4
      %v1099 = vsel %vm1060, %v1097, %v1098
      %v1100 = vrot.slane %v1022, 4
      %v1101 = vrot.slane %v1023, 4
      %v1102 = vsel %vm1060, %v1100, %v1101
      %v1103 = vrot.slane %v1024, 4
      %v1104 = vrot.slane %v1025, 4
      %v1105 = vsel %vm1060, %v1103, %v1104
      %v1106 = vrot.slane %v1026, 4
      %v1107 = vrot.slane %v1027, 4
      %v1108 = vsel %vm1060, %v1106, %v1107
      %1125 = vst [vmem:[#allocation3 + $0x8] sm:$0xff] %v1063
      %1126 = vst [vmem:[#allocation3 + $0x50] sm:$0xff] %v1066
      %1127 = vst [vmem:[#allocation3 + $0x98] sm:$0xff] %v1069
      %1128 = vst [vmem:[#allocation3 + $0xe0] sm:$0xff] %v1072
      %1129 = vst [vmem:[#allocation3 + $0x128] sm:$0xff] %v1075
      %1130 = vst [vmem:[#allocation3 + $0x170] sm:$0xff] %v1078
      %1131 = vst [vmem:[#allocation3 + $0x1b8] sm:$0xff] %v1081
      %1132 = vst [vmem:[#allocation3 + $0x200] sm:$0xff] %v1084
      %1133 = vst [vmem:[#allocation3 + $0x248] sm:$0xff] %v1087
      %1134 = vst [vmem:[#allocation3 + $0x290] sm:$0xff] %v1090
      %1135 = vst [vmem:[#allocation3 + $0x2d8] sm:$0xff] %v1093
      %1136 = vst [vmem:[#allocation3 + $0x320] sm:$0xff] %v1096
      %1137 = vst [vmem:[#allocation3 + $0x368] sm:$0xff] %v1099
      %1138 = vst [vmem:[#allocation3 + $0x3b0] sm:$0xff] %v1102
      %1139 = vst [vmem:[#allocation3 + $0x3f8] sm:$0xff] %v1105
      %1140 = vst [vmem:[#allocation3 + $0x440] sm:$0xff] %v1108
      %v1141 = vld [vmem:[#allocation2] sm:$0xf0]
      %v1142 = vld [vmem:[#allocation2 + $0x8] sm:$0x1f]
      %v1143 = vld [vmem:[#allocation2 + $0x10] sm:$0xf0]
      %v1144 = vld [vmem:[#allocation2 + $0x18] sm:$0x1f]
      %v1145 = vld [vmem:[#allocation2 + $0x20] sm:$0xf0]
      %v1146 = vld [vmem:[#allocation2 + $0x28] sm:$0x1f]
      %v1147 = vld [vmem:[#allocation2 + $0x30] sm:$0xf0]
      %v1148 = vld [vmem:[#allocation2 + $0x38] sm:$0x1f]
      %v1149 = vld [vmem:[#allocation2 + $0x40] sm:$0xf0]
      %v1150 = vld [vmem:[#allocation2 + $0x48] sm:$0x1f]
      %v1151 = vld [vmem:[#allocation2 + $0x50] sm:$0xf0]
      %v1152 = vld [vmem:[#allocation2 + $0x58] sm:$0x1f]
      %v1153 = vld [vmem:[#allocation2 + $0x60] sm:$0xf0]
      %v1154 = vld [vmem:[#allocation2 + $0x68] sm:$0x1f]
      %v1155 = vld [vmem:[#allocation2 + $0x70] sm:$0xf0]
      %v1156 = vld [vmem:[#allocation2 + $0x78] sm:$0x1f]
      %v1157 = vld [vmem:[#allocation2 + $0x80] sm:$0xf0]
      %v1158 = vld [vmem:[#allocation2 + $0x88] sm:$0x1f]
      %v1159 = vld [vmem:[#allocation2 + $0x90] sm:$0xf0]
      %v1160 = vld [vmem:[#allocation2 + $0x98] sm:$0x1f]
      %v1161 = vld [vmem:[#allocation2 + $0xa0] sm:$0xf0]
      %v1162 = vld [vmem:[#allocation2 + $0xa8] sm:$0x1f]
      %v1163 = vld [vmem:[#allocation2 + $0xb0] sm:$0xf0]
      %v1164 = vld [vmem:[#allocation2 + $0xb8] sm:$0x1f]
      %v1165 = vld [vmem:[#allocation2 + $0xc0] sm:$0xf0]
      %v1166 = vld [vmem:[#allocation2 + $0xc8] sm:$0x1f]
      %v1167 = vld [vmem:[#allocation2 + $0xd0] sm:$0xf0]
      %v1168 = vld [vmem:[#allocation2 + $0xd8] sm:$0x1f]
      %v1169 = vld [vmem:[#allocation2 + $0xe0] sm:$0xf0]
      %v1170 = vld [vmem:[#allocation2 + $0xe8] sm:$0x1f]
      %v1171 = vld [vmem:[#allocation2 + $0xf0] sm:$0xf0]
      %v1172 = vld [vmem:[#allocation2 + $0xf8] sm:$0x1f]
      %vm1173 = vsmask.f32 3328
      %v1175 = vshrl.u32 %v1141, 16
      %v1177 = vrot.slane %v1175, 4
      %v1178 = vshll.u32 %v1141, 16
      %v1180 = vrot.slane %v1178, 5
      %v1181 = vor.u32 %v1177, %v1180
      %v1183 = vshrl.u32 %v1142, 16
      %v1185 = vrot.slane %v1183, 4
      %v1186 = vshll.u32 %v1142, 16
      %v1188 = vrot.slane %v1186, 5
      %v1189 = vor.u32 %v1185, %v1188
      %v1190 = vsel %vm1173, %v1181, %v1189
      %v1192 = vshrl.u32 %v1143, 16
      %v1194 = vrot.slane %v1192, 4
      %v1195 = vshll.u32 %v1143, 16
      %v1197 = vrot.slane %v1195, 5
      %v1198 = vor.u32 %v1194, %v1197
      %v1200 = vshrl.u32 %v1144, 16
      %v1202 = vrot.slane %v1200, 4
      %v1203 = vshll.u32 %v1144, 16
      %v1205 = vrot.slane %v1203, 5
      %v1206 = vor.u32 %v1202, %v1205
      %v1207 = vsel %vm1173, %v1198, %v1206
      %v1209 = vshrl.u32 %v1145, 16
      %v1211 = vrot.slane %v1209, 4
      %v1212 = vshll.u32 %v1145, 16
      %v1214 = vrot.slane %v1212, 5
      %v1215 = vor.u32 %v1211, %v1214
      %v1217 = vshrl.u32 %v1146, 16
      %v1219 = vrot.slane %v1217, 4
      %v1220 = vshll.u32 %v1146, 16
      %v1222 = vrot.slane %v1220, 5
      %v1223 = vor.u32 %v1219, %v1222
      %v1224 = vsel %vm1173, %v1215, %v1223
      %v1226 = vshrl.u32 %v1147, 16
      %v1228 = vrot.slane %v1226, 4
      %v1229 = vshll.u32 %v1147, 16
      %v1231 = vrot.slane %v1229, 5
      %v1232 = vor.u32 %v1228, %v1231
      %v1234 = vshrl.u32 %v1148, 16
      %v1236 = vrot.slane %v1234, 4
      %v1237 = vshll.u32 %v1148, 16
      %v1239 = vrot.slane %v1237, 5
      %v1240 = vor.u32 %v1236, %v1239
      %v1241 = vsel %vm1173, %v1232, %v1240
      %v1243 = vshrl.u32 %v1149, 16
      %v1245 = vrot.slane %v1243, 4
      %v1246 = vshll.u32 %v1149, 16
      %v1248 = vrot.slane %v1246, 5
      %v1249 = vor.u32 %v1245, %v1248
      %v1251 = vshrl.u32 %v1150, 16
      %v1253 = vrot.slane %v1251, 4
      %v1254 = vshll.u32 %v1150, 16
      %v1256 = vrot.slane %v1254, 5
      %v1257 = vor.u32 %v1253, %v1256
      %v1258 = vsel %vm1173, %v1249, %v1257
      %v1260 = vshrl.u32 %v1151, 16
      %v1262 = vrot.slane %v1260, 4
      %v1263 = vshll.u32 %v1151, 16
      %v1265 = vrot.slane %v1263, 5
      %v1266 = vor.u32 %v1262, %v1265
      %v1268 = vshrl.u32 %v1152, 16
      %v1270 = vrot.slane %v1268, 4
      %v1271 = vshll.u32 %v1152, 16
      %v1273 = vrot.slane %v1271, 5
      %v1274 = vor.u32 %v1270, %v1273
      %v1275 = vsel %vm1173, %v1266, %v1274
      %v1277 = vshrl.u32 %v1153, 16
      %v1279 = vrot.slane %v1277, 4
      %v1280 = vshll.u32 %v1153, 16
      %v1282 = vrot.slane %v1280, 5
      %v1283 = vor.u32 %v1279, %v1282
      %v1285 = vshrl.u32 %v1154, 16
      %v1287 = vrot.slane %v1285, 4
      %v1288 = vshll.u32 %v1154, 16
      %v1290 = vrot.slane %v1288, 5
      %v1291 = vor.u32 %v1287, %v1290
      %v1292 = vsel %vm1173, %v1283, %v1291
      %v1294 = vshrl.u32 %v1155, 16
      %v1296 = vrot.slane %v1294, 4
      %v1297 = vshll.u32 %v1155, 16
      %v1299 = vrot.slane %v1297, 5
      %v1300 = vor.u32 %v1296, %v1299
      %v1302 = vshrl.u32 %v1156, 16
      %v1304 = vrot.slane %v1302, 4
      %v1305 = vshll.u32 %v1156, 16
      %v1307 = vrot.slane %v1305, 5
      %v1308 = vor.u32 %v1304, %v1307
      %v1309 = vsel %vm1173, %v1300, %v1308
      %v1311 = vshrl.u32 %v1157, 16
      %v1313 = vrot.slane %v1311, 4
      %v1314 = vshll.u32 %v1157, 16
      %v1316 = vrot.slane %v1314, 5
      %v1317 = vor.u32 %v1313, %v1316
      %v1319 = vshrl.u32 %v1158, 16
      %v1321 = vrot.slane %v1319, 4
      %v1322 = vshll.u32 %v1158, 16
      %v1324 = vrot.slane %v1322, 5
      %v1325 = vor.u32 %v1321, %v1324
      %v1326 = vsel %vm1173, %v1317, %v1325
      %v1328 = vshrl.u32 %v1159, 16
      %v1330 = vrot.slane %v1328, 4
      %v1331 = vshll.u32 %v1159, 16
      %v1333 = vrot.slane %v1331, 5
      %v1334 = vor.u32 %v1330, %v1333
      %v1336 = vshrl.u32 %v1160, 16
      %v1338 = vrot.slane %v1336, 4
      %v1339 = vshll.u32 %v1160, 16
      %v1341 = vrot.slane %v1339, 5
      %v1342 = vor.u32 %v1338, %v1341
      %v1343 = vsel %vm1173, %v1334, %v1342
      %v1345 = vshrl.u32 %v1161, 16
      %v1347 = vrot.slane %v1345, 4
      %v1348 = vshll.u32 %v1161, 16
      %v1350 = vrot.slane %v1348, 5
      %v1351 = vor.u32 %v1347, %v1350
      %v1353 = vshrl.u32 %v1162, 16
      %v1355 = vrot.slane %v1353, 4
      %v1356 = vshll.u32 %v1162, 16
      %v1358 = vrot.slane %v1356, 5
      %v1359 = vor.u32 %v1355, %v1358
      %v1360 = vsel %vm1173, %v1351, %v1359
      %v1362 = vshrl.u32 %v1163, 16
      %v1364 = vrot.slane %v1362, 4
      %v1365 = vshll.u32 %v1163, 16
      %v1367 = vrot.slane %v1365, 5
      %v1368 = vor.u32 %v1364, %v1367
      %v1370 = vshrl.u32 %v1164, 16
      %v1372 = vrot.slane %v1370, 4
      %v1373 = vshll.u32 %v1164, 16
      %v1375 = vrot.slane %v1373, 5
      %v1376 = vor.u32 %v1372, %v1375
      %v1377 = vsel %vm1173, %v1368, %v1376
      %v1379 = vshrl.u32 %v1165, 16
      %v1381 = vrot.slane %v1379, 4
      %v1382 = vshll.u32 %v1165, 16
      %v1384 = vrot.slane %v1382, 5
      %v1385 = vor.u32 %v1381, %v1384
      %v1387 = vshrl.u32 %v1166, 16
      %v1389 = vrot.slane %v1387, 4
      %v1390 = vshll.u32 %v1166, 16
      %v1392 = vrot.slane %v1390, 5
      %v1393 = vor.u32 %v1389, %v1392
      %v1394 = vsel %vm1173, %v1385, %v1393
      %v1396 = vshrl.u32 %v1167, 16
      %v1398 = vrot.slane %v1396, 4
      %v1399 = vshll.u32 %v1167, 16
      %v1401 = vrot.slane %v1399, 5
      %v1402 = vor.u32 %v1398, %v1401
      %v1404 = vshrl.u32 %v1168, 16
      %v1406 = vrot.slane %v1404, 4
      %v1407 = vshll.u32 %v1168, 16
      %v1409 = vrot.slane %v1407, 5
      %v1410 = vor.u32 %v1406, %v1409
      %v1411 = vsel %vm1173, %v1402, %v1410
      %v1413 = vshrl.u32 %v1169, 16
      %v1415 = vrot.slane %v1413, 4
      %v1416 = vshll.u32 %v1169, 16
      %v1418 = vrot.slane %v1416, 5
      %v1419 = vor.u32 %v1415, %v1418
      %v1421 = vshrl.u32 %v1170, 16
      %v1423 = vrot.slane %v1421, 4
      %v1424 = vshll.u32 %v1170, 16
      %v1426 = vrot.slane %v1424, 5
      %v1427 = vor.u32 %v1423, %v1426
      %v1428 = vsel %vm1173, %v1419, %v1427
      %v1430 = vshrl.u32 %v1171, 16
      %v1432 = vrot.slane %v1430, 4
      %v1433 = vshll.u32 %v1171, 16
      %v1435 = vrot.slane %v1433, 5
      %v1436 = vor.u32 %v1432, %v1435
      %v1438 = vshrl.u32 %v1172, 16
      %v1440 = vrot.slane %v1438, 4
      %v1441 = vshll.u32 %v1172, 16
      %v1443 = vrot.slane %v1441, 5
      %v1444 = vor.u32 %v1440, %v1443
      %v1445 = vsel %vm1173, %v1436, %v1444
      %1462 = vst [vmem:[#allocation3 + $0x10] sm:$0xff] %v1190
      %1463 = vst [vmem:[#allocation3 + $0x58] sm:$0xff] %v1207
      %1464 = vst [vmem:[#allocation3 + $0xa0] sm:$0xff] %v1224
      %1465 = vst [vmem:[#allocation3 + $0xe8] sm:$0xff] %v1241
      %1466 = vst [vmem:[#allocation3 + $0x130] sm:$0xff] %v1258
      %1467 = vst [vmem:[#allocation3 + $0x178] sm:$0xff] %v1275
      %1468 = vst [vmem:[#allocation3 + $0x1c0] sm:$0xff] %v1292
      %1469 = vst [vmem:[#allocation3 + $0x208] sm:$0xff] %v1309
      %1470 = vst [vmem:[#allocation3 + $0x250] sm:$0xff] %v1326
      %1471 = vst [vmem:[#allocation3 + $0x298] sm:$0xff] %v1343
      %1472 = vst [vmem:[#allocation3 + $0x2e0] sm:$0xff] %v1360
      %1473 = vst [vmem:[#allocation3 + $0x328] sm:$0xff] %v1377
      %1474 = vst [vmem:[#allocation3 + $0x370] sm:$0xff] %v1394
      %1475 = vst [vmem:[#allocation3 + $0x3b8] sm:$0xff] %v1411
      %1476 = vst [vmem:[#allocation3 + $0x400] sm:$0xff] %v1428
      %1477 = vst [vmem:[#allocation3 + $0x448] sm:$0xff] %v1445
      %v1478 = vld [vmem:[%s289] sm:$0xf8]
      %v1479 = vld [vmem:[%s289 + $0x8] sm:$0xf]
      %v1480 = vld [vmem:[%s289 + $0x10] sm:$0xf8]
      %v1481 = vld [vmem:[%s289 + $0x18] sm:$0xf]
      %v1482 = vld [vmem:[%s289 + $0x20] sm:$0xf8]
      %v1483 = vld [vmem:[%s289 + $0x28] sm:$0xf]
      %v1484 = vld [vmem:[%s289 + $0x30] sm:$0xf8]
      %v1485 = vld [vmem:[%s289 + $0x38] sm:$0xf]
      %v1486 = vld [vmem:[%s289 + $0x40] sm:$0xf8]
      %v1487 = vld [vmem:[%s289 + $0x48] sm:$0xf]
      %v1488 = vld [vmem:[%s289 + $0x50] sm:$0xf8]
      %v1489 = vld [vmem:[%s289 + $0x58] sm:$0xf]
      %v1490 = vld [vmem:[%s289 + $0x60] sm:$0xf8]
      %v1491 = vld [vmem:[%s289 + $0x68] sm:$0xf]
      %v1492 = vld [vmem:[%s289 + $0x70] sm:$0xf8]
      %v1493 = vld [vmem:[%s289 + $0x78] sm:$0xf]
      %v1494 = vld [vmem:[%s289 + $0x80] sm:$0xf8]
      %v1495 = vld [vmem:[%s289 + $0x88] sm:$0xf]
      %v1496 = vld [vmem:[%s289 + $0x90] sm:$0xf8]
      %v1497 = vld [vmem:[%s289 + $0x98] sm:$0xf]
      %v1498 = vld [vmem:[%s289 + $0xa0] sm:$0xf8]
      %v1499 = vld [vmem:[%s289 + $0xa8] sm:$0xf]
      %v1500 = vld [vmem:[%s289 + $0xb0] sm:$0xf8]
      %v1501 = vld [vmem:[%s289 + $0xb8] sm:$0xf]
      %v1502 = vld [vmem:[%s289 + $0xc0] sm:$0xf8]
      %v1503 = vld [vmem:[%s289 + $0xc8] sm:$0xf]
      %v1504 = vld [vmem:[%s289 + $0xd0] sm:$0xf8]
      %v1505 = vld [vmem:[%s289 + $0xd8] sm:$0xf]
      %v1506 = vld [vmem:[%s289 + $0xe0] sm:$0xf8]
      %v1507 = vld [vmem:[%s289 + $0xe8] sm:$0xf]
      %v1508 = vld [vmem:[%s289 + $0xf0] sm:$0xf8]
      %v1509 = vld [vmem:[%s289 + $0xf8] sm:$0xf]
      %v1511 = vshrl.u32 %v1478, 16
      %v1513 = vrot.slane %v1511, 3
      %v1514 = vshll.u32 %v1478, 16
      %v1516 = vrot.slane %v1514, 4
      %v1517 = vor.u32 %v1513, %v1516
      %v1519 = vshrl.u32 %v1479, 16
      %v1521 = vrot.slane %v1519, 3
      %v1522 = vshll.u32 %v1479, 16
      %v1524 = vrot.slane %v1522, 4
      %v1525 = vor.u32 %v1521, %v1524
      %v1526 = vsel %vm277, %v1517, %v1525
      %v1528 = vshrl.u32 %v1480, 16
      %v1530 = vrot.slane %v1528, 3
      %v1531 = vshll.u32 %v1480, 16
      %v1533 = vrot.slane %v1531, 4
      %v1534 = vor.u32 %v1530, %v1533
      %v1536 = vshrl.u32 %v1481, 16
      %v1538 = vrot.slane %v1536, 3
      %v1539 = vshll.u32 %v1481, 16
      %v1541 = vrot.slane %v1539, 4
      %v1542 = vor.u32 %v1538, %v1541
      %v1543 = vsel %vm277, %v1534, %v1542
      %v1545 = vshrl.u32 %v1482, 16
      %v1547 = vrot.slane %v1545, 3
      %v1548 = vshll.u32 %v1482, 16
      %v1550 = vrot.slane %v1548, 4
      %v1551 = vor.u32 %v1547, %v1550
      %v1553 = vshrl.u32 %v1483, 16
      %v1555 = vrot.slane %v1553, 3
      %v1556 = vshll.u32 %v1483, 16
      %v1558 = vrot.slane %v1556, 4
      %v1559 = vor.u32 %v1555, %v1558
      %v1560 = vsel %vm277, %v1551, %v1559
      %v1562 = vshrl.u32 %v1484, 16
      %v1564 = vrot.slane %v1562, 3
      %v1565 = vshll.u32 %v1484, 16
      %v1567 = vrot.slane %v1565, 4
      %v1568 = vor.u32 %v1564, %v1567
      %v1570 = vshrl.u32 %v1485, 16
      %v1572 = vrot.slane %v1570, 3
      %v1573 = vshll.u32 %v1485, 16
      %v1575 = vrot.slane %v1573, 4
      %v1576 = vor.u32 %v1572, %v1575
      %v1577 = vsel %vm277, %v1568, %v1576
      %v1579 = vshrl.u32 %v1486, 16
      %v1581 = vrot.slane %v1579, 3
      %v1582 = vshll.u32 %v1486, 16
      %v1584 = vrot.slane %v1582, 4
      %v1585 = vor.u32 %v1581, %v1584
      %v1587 = vshrl.u32 %v1487, 16
      %v1589 = vrot.slane %v1587, 3
      %v1590 = vshll.u32 %v1487, 16
      %v1592 = vrot.slane %v1590, 4
      %v1593 = vor.u32 %v1589, %v1592
      %v1594 = vsel %vm277, %v1585, %v1593
      %v1596 = vshrl.u32 %v1488, 16
      %v1598 = vrot.slane %v1596, 3
      %v1599 = vshll.u32 %v1488, 16
      %v1601 = vrot.slane %v1599, 4
      %v1602 = vor.u32 %v1598, %v1601
      %v1604 = vshrl.u32 %v1489, 16
      %v1606 = vrot.slane %v1604, 3
      %v1607 = vshll.u32 %v1489, 16
      %v1609 = vrot.slane %v1607, 4
      %v1610 = vor.u32 %v1606, %v1609
      %v1611 = vsel %vm277, %v1602, %v1610
      %v1613 = vshrl.u32 %v1490, 16
      %v1615 = vrot.slane %v1613, 3
      %v1616 = vshll.u32 %v1490, 16
      %v1618 = vrot.slane %v1616, 4
      %v1619 = vor.u32 %v1615, %v1618
      %v1621 = vshrl.u32 %v1491, 16
      %v1623 = vrot.slane %v1621, 3
      %v1624 = vshll.u32 %v1491, 16
      %v1626 = vrot.slane %v1624, 4
      %v1627 = vor.u32 %v1623, %v1626
      %v1628 = vsel %vm277, %v1619, %v1627
      %v1630 = vshrl.u32 %v1492, 16
      %v1632 = vrot.slane %v1630, 3
      %v1633 = vshll.u32 %v1492, 16
      %v1635 = vrot.slane %v1633, 4
      %v1636 = vor.u32 %v1632, %v1635
      %v1638 = vshrl.u32 %v1493, 16
      %v1640 = vrot.slane %v1638, 3
      %v1641 = vshll.u32 %v1493, 16
      %v1643 = vrot.slane %v1641, 4
      %v1644 = vor.u32 %v1640, %v1643
      %v1645 = vsel %vm277, %v1636, %v1644
      %v1647 = vshrl.u32 %v1494, 16
      %v1649 = vrot.slane %v1647, 3
      %v1650 = vshll.u32 %v1494, 16
      %v1652 = vrot.slane %v1650, 4
      %v1653 = vor.u32 %v1649, %v1652
      %v1655 = vshrl.u32 %v1495, 16
      %v1657 = vrot.slane %v1655, 3
      %v1658 = vshll.u32 %v1495, 16
      %v1660 = vrot.slane %v1658, 4
      %v1661 = vor.u32 %v1657, %v1660
      %v1662 = vsel %vm277, %v1653, %v1661
      %v1664 = vshrl.u32 %v1496, 16
      %v1666 = vrot.slane %v1664, 3
      %v1667 = vshll.u32 %v1496, 16
      %v1669 = vrot.slane %v1667, 4
      %v1670 = vor.u32 %v1666, %v1669
      %v1672 = vshrl.u32 %v1497, 16
      %v1674 = vrot.slane %v1672, 3
      %v1675 = vshll.u32 %v1497, 16
      %v1677 = vrot.slane %v1675, 4
      %v1678 = vor.u32 %v1674, %v1677
      %v1679 = vsel %vm277, %v1670, %v1678
      %v1681 = vshrl.u32 %v1498, 16
      %v1683 = vrot.slane %v1681, 3
      %v1684 = vshll.u32 %v1498, 16
      %v1686 = vrot.slane %v1684, 4
      %v1687 = vor.u32 %v1683, %v1686
      %v1689 = vshrl.u32 %v1499, 16
      %v1691 = vrot.slane %v1689, 3
      %v1692 = vshll.u32 %v1499, 16
      %v1694 = vrot.slane %v1692, 4
      %v1695 = vor.u32 %v1691, %v1694
      %v1696 = vsel %vm277, %v1687, %v1695
      %v1698 = vshrl.u32 %v1500, 16
      %v1700 = vrot.slane %v1698, 3
      %v1701 = vshll.u32 %v1500, 16
      %v1703 = vrot.slane %v1701, 4
      %v1704 = vor.u32 %v1700, %v1703
      %v1706 = vshrl.u32 %v1501, 16
      %v1708 = vrot.slane %v1706, 3
      %v1709 = vshll.u32 %v1501, 16
      %v1711 = vrot.slane %v1709, 4
      %v1712 = vor.u32 %v1708, %v1711
      %v1713 = vsel %vm277, %v1704, %v1712
      %v1715 = vshrl.u32 %v1502, 16
      %v1717 = vrot.slane %v1715, 3
      %v1718 = vshll.u32 %v1502, 16
      %v1720 = vrot.slane %v1718, 4
      %v1721 = vor.u32 %v1717, %v1720
      %v1723 = vshrl.u32 %v1503, 16
      %v1725 = vrot.slane %v1723, 3
      %v1726 = vshll.u32 %v1503, 16
      %v1728 = vrot.slane %v1726, 4
      %v1729 = vor.u32 %v1725, %v1728
      %v1730 = vsel %vm277, %v1721, %v1729
      %v1732 = vshrl.u32 %v1504, 16
      %v1734 = vrot.slane %v1732, 3
      %v1735 = vshll.u32 %v1504, 16
      %v1737 = vrot.slane %v1735, 4
      %v1738 = vor.u32 %v1734, %v1737
      %v1740 = vshrl.u32 %v1505, 16
      %v1742 = vrot.slane %v1740, 3
      %v1743 = vshll.u32 %v1505, 16
      %v1745 = vrot.slane %v1743, 4
      %v1746 = vor.u32 %v1742, %v1745
      %v1747 = vsel %vm277, %v1738, %v1746
      %v1749 = vshrl.u32 %v1506, 16
      %v1751 = vrot.slane %v1749, 3
      %v1752 = vshll.u32 %v1506, 16
      %v1754 = vrot.slane %v1752, 4
      %v1755 = vor.u32 %v1751, %v1754
      %v1757 = vshrl.u32 %v1507, 16
      %v1759 = vrot.slane %v1757, 3
      %v1760 = vshll.u32 %v1507, 16
      %v1762 = vrot.slane %v1760, 4
      %v1763 = vor.u32 %v1759, %v1762
      %v1764 = vsel %vm277, %v1755, %v1763
      %v1766 = vshrl.u32 %v1508, 16
      %v1768 = vrot.slane %v1766, 3
      %v1769 = vshll.u32 %v1508, 16
      %v1771 = vrot.slane %v1769, 4
      %v1772 = vor.u32 %v1768, %v1771
      %v1774 = vshrl.u32 %v1509, 16
      %v1776 = vrot.slane %v1774, 3
      %v1777 = vshll.u32 %v1509, 16
      %v1779 = vrot.slane %v1777, 4
      %v1780 = vor.u32 %v1776, %v1779
      %v1781 = vsel %vm277, %v1772, %v1780
      %1798 = vst [vmem:[#allocation3 + $0x18] sm:$0xff] %v1526
      %1799 = vst [vmem:[#allocation3 + $0x60] sm:$0xff] %v1543
      %1800 = vst [vmem:[#allocation3 + $0xa8] sm:$0xff] %v1560
      %1801 = vst [vmem:[#allocation3 + $0xf0] sm:$0xff] %v1577
      %1802 = vst [vmem:[#allocation3 + $0x138] sm:$0xff] %v1594
      %1803 = vst [vmem:[#allocation3 + $0x180] sm:$0xff] %v1611
      %1804 = vst [vmem:[#allocation3 + $0x1c8] sm:$0xff] %v1628
      %1805 = vst [vmem:[#allocation3 + $0x210] sm:$0xff] %v1645
      %1806 = vst [vmem:[#allocation3 + $0x258] sm:$0xff] %v1662
      %1807 = vst [vmem:[#allocation3 + $0x2a0] sm:$0xff] %v1679
      %1808 = vst [vmem:[#allocation3 + $0x2e8] sm:$0xff] %v1696
      %1809 = vst [vmem:[#allocation3 + $0x330] sm:$0xff] %v1713
      %1810 = vst [vmem:[#allocation3 + $0x378] sm:$0xff] %v1730
      %1811 = vst [vmem:[#allocation3 + $0x3c0] sm:$0xff] %v1747
      %1812 = vst [vmem:[#allocation3 + $0x408] sm:$0xff] %v1764
      %1813 = vst [vmem:[#allocation3 + $0x450] sm:$0xff] %v1781
      %v1814 = vld [vmem:[%s289] sm:$0xf0]
      %v1815 = vld [vmem:[%s289 + $0x8] sm:$0xf]
      %v1816 = vld [vmem:[%s289 + $0x10] sm:$0xf0]
      %v1817 = vld [vmem:[%s289 + $0x18] sm:$0xf]
      %v1818 = vld [vmem:[%s289 + $0x20] sm:$0xf0]
      %v1819 = vld [vmem:[%s289 + $0x28] sm:$0xf]
      %v1820 = vld [vmem:[%s289 + $0x30] sm:$0xf0]
      %v1821 = vld [vmem:[%s289 + $0x38] sm:$0xf]
      %v1822 = vld [vmem:[%s289 + $0x40] sm:$0xf0]
      %v1823 = vld [vmem:[%s289 + $0x48] sm:$0xf]
      %v1824 = vld [vmem:[%s289 + $0x50] sm:$0xf0]
      %v1825 = vld [vmem:[%s289 + $0x58] sm:$0xf]
      %v1826 = vld [vmem:[%s289 + $0x60] sm:$0xf0]
      %v1827 = vld [vmem:[%s289 + $0x68] sm:$0xf]
      %v1828 = vld [vmem:[%s289 + $0x70] sm:$0xf0]
      %v1829 = vld [vmem:[%s289 + $0x78] sm:$0xf]
      %v1830 = vld [vmem:[%s289 + $0x80] sm:$0xf0]
      %v1831 = vld [vmem:[%s289 + $0x88] sm:$0xf]
      %v1832 = vld [vmem:[%s289 + $0x90] sm:$0xf0]
      %v1833 = vld [vmem:[%s289 + $0x98] sm:$0xf]
      %v1834 = vld [vmem:[%s289 + $0xa0] sm:$0xf0]
      %v1835 = vld [vmem:[%s289 + $0xa8] sm:$0xf]
      %v1836 = vld [vmem:[%s289 + $0xb0] sm:$0xf0]
      %v1837 = vld [vmem:[%s289 + $0xb8] sm:$0xf]
      %v1838 = vld [vmem:[%s289 + $0xc0] sm:$0xf0]
      %v1839 = vld [vmem:[%s289 + $0xc8] sm:$0xf]
      %v1840 = vld [vmem:[%s289 + $0xd0] sm:$0xf0]
      %v1841 = vld [vmem:[%s289 + $0xd8] sm:$0xf]
      %v1842 = vld [vmem:[%s289 + $0xe0] sm:$0xf0]
      %v1843 = vld [vmem:[%s289 + $0xe8] sm:$0xf]
      %v1844 = vld [vmem:[%s289 + $0xf0] sm:$0xf0]
      %v1845 = vld [vmem:[%s289 + $0xf8] sm:$0xf]
      %v1878 = vrot.slane %v1814, 4
      %v1879 = vrot.slane %v1815, 4
      %v1880 = vsel %vm1060, %v1878, %v1879
      %v1881 = vrot.slane %v1816, 4
      %v1882 = vrot.slane %v1817, 4
      %v1883 = vsel %vm1060, %v1881, %v1882
      %v1884 = vrot.slane %v1818, 4
      %v1885 = vrot.slane %v1819, 4
      %v1886 = vsel %vm1060, %v1884, %v1885
      %v1887 = vrot.slane %v1820, 4
      %v1888 = vrot.slane %v1821, 4
      %v1889 = vsel %vm1060, %v1887, %v1888
      %v1890 = vrot.slane %v1822, 4
      %v1891 = vrot.slane %v1823, 4
      %v1892 = vsel %vm1060, %v1890, %v1891
      %v1893 = vrot.slane %v1824, 4
      %v1894 = vrot.slane %v1825, 4
      %v1895 = vsel %vm1060, %v1893, %v1894
      %v1896 = vrot.slane %v1826, 4
      %v1897 = vrot.slane %v1827, 4
      %v1898 = vsel %vm1060, %v1896, %v1897
      %v1899 = vrot.slane %v1828, 4
      %v1900 = vrot.slane %v1829, 4
      %v1901 = vsel %vm1060, %v1899, %v1900
      %v1902 = vrot.slane %v1830, 4
      %v1903 = vrot.slane %v1831, 4
      %v1904 = vsel %vm1060, %v1902, %v1903
      %v1905 = vrot.slane %v1832, 4
      %v1906 = vrot.slane %v1833, 4
      %v1907 = vsel %vm1060, %v1905, %v1906
      %v1908 = vrot.slane %v1834, 4
      %v1909 = vrot.slane %v1835, 4
      %v1910 = vsel %vm1060, %v1908, %v1909
      %v1911 = vrot.slane %v1836, 4
      %v1912 = vrot.slane %v1837, 4
      %v1913 = vsel %vm1060, %v1911, %v1912
      %v1914 = vrot.slane %v1838, 4
      %v1915 = vrot.slane %v1839, 4
      %v1916 = vsel %vm1060, %v1914, %v1915
      %v1917 = vrot.slane %v1840, 4
      %v1918 = vrot.slane %v1841, 4
      %v1919 = vsel %vm1060, %v1917, %v1918
      %v1920 = vrot.slane %v1842, 4
      %v1921 = vrot.slane %v1843, 4
      %v1922 = vsel %vm1060, %v1920, %v1921
      %v1923 = vrot.slane %v1844, 4
      %v1924 = vrot.slane %v1845, 4
      %v1925 = vsel %vm1060, %v1923, %v1924
      %1942 = vst [vmem:[#allocation3 + $0x20] sm:$0xff] %v1880
      %1943 = vst [vmem:[#allocation3 + $0x68] sm:$0xff] %v1883
      %1944 = vst [vmem:[#allocation3 + $0xb0] sm:$0xff] %v1886
      %1945 = vst [vmem:[#allocation3 + $0xf8] sm:$0xff] %v1889
      %1946 = vst [vmem:[#allocation3 + $0x140] sm:$0xff] %v1892
      %1947 = vst [vmem:[#allocation3 + $0x188] sm:$0xff] %v1895
      %1948 = vst [vmem:[#allocation3 + $0x1d0] sm:$0xff] %v1898
      %1949 = vst [vmem:[#allocation3 + $0x218] sm:$0xff] %v1901
      %1950 = vst [vmem:[#allocation3 + $0x260] sm:$0xff] %v1904
      %1951 = vst [vmem:[#allocation3 + $0x2a8] sm:$0xff] %v1907
      %1952 = vst [vmem:[#allocation3 + $0x2f0] sm:$0xff] %v1910
      %1953 = vst [vmem:[#allocation3 + $0x338] sm:$0xff] %v1913
      %1954 = vst [vmem:[#allocation3 + $0x380] sm:$0xff] %v1916
      %1955 = vst [vmem:[#allocation3 + $0x3c8] sm:$0xff] %v1919
      %1956 = vst [vmem:[#allocation3 + $0x410] sm:$0xff] %v1922
      %1957 = vst [vmem:[#allocation3 + $0x458] sm:$0xff] %v1925
      %v1958 = vld [vmem:[%s289] sm:$0xf0]
      %v1959 = vld [vmem:[%s289 + $0x8] sm:$0x1f]
      %v1960 = vld [vmem:[%s289 + $0x10] sm:$0xf0]
      %v1961 = vld [vmem:[%s289 + $0x18] sm:$0x1f]
      %v1962 = vld [vmem:[%s289 + $0x20] sm:$0xf0]
      %v1963 = vld [vmem:[%s289 + $0x28] sm:$0x1f]
      %v1964 = vld [vmem:[%s289 + $0x30] sm:$0xf0]
      %v1965 = vld [vmem:[%s289 + $0x38] sm:$0x1f]
      %v1966 = vld [vmem:[%s289 + $0x40] sm:$0xf0]
      %v1967 = vld [vmem:[%s289 + $0x48] sm:$0x1f]
      %v1968 = vld [vmem:[%s289 + $0x50] sm:$0xf0]
      %v1969 = vld [vmem:[%s289 + $0x58] sm:$0x1f]
      %v1970 = vld [vmem:[%s289 + $0x60] sm:$0xf0]
      %v1971 = vld [vmem:[%s289 + $0x68] sm:$0x1f]
      %v1972 = vld [vmem:[%s289 + $0x70] sm:$0xf0]
      %v1973 = vld [vmem:[%s289 + $0x78] sm:$0x1f]
      %v1974 = vld [vmem:[%s289 + $0x80] sm:$0xf0]
      %v1975 = vld [vmem:[%s289 + $0x88] sm:$0x1f]
      %v1976 = vld [vmem:[%s289 + $0x90] sm:$0xf0]
      %v1977 = vld [vmem:[%s289 + $0x98] sm:$0x1f]
      %v1978 = vld [vmem:[%s289 + $0xa0] sm:$0xf0]
      %v1979 = vld [vmem:[%s289 + $0xa8] sm:$0x1f]
      %v1980 = vld [vmem:[%s289 + $0xb0] sm:$0xf0]
      %v1981 = vld [vmem:[%s289 + $0xb8] sm:$0x1f]
      %v1982 = vld [vmem:[%s289 + $0xc0] sm:$0xf0]
      %v1983 = vld [vmem:[%s289 + $0xc8] sm:$0x1f]
      %v1984 = vld [vmem:[%s289 + $0xd0] sm:$0xf0]
      %v1985 = vld [vmem:[%s289 + $0xd8] sm:$0x1f]
      %v1986 = vld [vmem:[%s289 + $0xe0] sm:$0xf0]
      %v1987 = vld [vmem:[%s289 + $0xe8] sm:$0x1f]
      %v1988 = vld [vmem:[%s289 + $0xf0] sm:$0xf0]
      %v1989 = vld [vmem:[%s289 + $0xf8] sm:$0x1f]
      %v1991 = vshrl.u32 %v1958, 16
      %v1993 = vrot.slane %v1991, 4
      %v1994 = vshll.u32 %v1958, 16
      %v1996 = vrot.slane %v1994, 5
      %v1997 = vor.u32 %v1993, %v1996
      %v1999 = vshrl.u32 %v1959, 16
      %v2001 = vrot.slane %v1999, 4
      %v2002 = vshll.u32 %v1959, 16
      %v2004 = vrot.slane %v2002, 5
      %v2005 = vor.u32 %v2001, %v2004
      %v2006 = vsel %vm1173, %v1997, %v2005
      %v2008 = vshrl.u32 %v1960, 16
      %v2010 = vrot.slane %v2008, 4
      %v2011 = vshll.u32 %v1960, 16
      %v2013 = vrot.slane %v2011, 5
      %v2014 = vor.u32 %v2010, %v2013
      %v2016 = vshrl.u32 %v1961, 16
      %v2018 = vrot.slane %v2016, 4
      %v2019 = vshll.u32 %v1961, 16
      %v2021 = vrot.slane %v2019, 5
      %v2022 = vor.u32 %v2018, %v2021
      %v2023 = vsel %vm1173, %v2014, %v2022
      %v2025 = vshrl.u32 %v1962, 16
      %v2027 = vrot.slane %v2025, 4
      %v2028 = vshll.u32 %v1962, 16
      %v2030 = vrot.slane %v2028, 5
      %v2031 = vor.u32 %v2027, %v2030
      %v2033 = vshrl.u32 %v1963, 16
      %v2035 = vrot.slane %v2033, 4
      %v2036 = vshll.u32 %v1963, 16
      %v2038 = vrot.slane %v2036, 5
      %v2039 = vor.u32 %v2035, %v2038
      %v2040 = vsel %vm1173, %v2031, %v2039
      %v2042 = vshrl.u32 %v1964, 16
      %v2044 = vrot.slane %v2042, 4
      %v2045 = vshll.u32 %v1964, 16
      %v2047 = vrot.slane %v2045, 5
      %v2048 = vor.u32 %v2044, %v2047
      %v2050 = vshrl.u32 %v1965, 16
      %v2052 = vrot.slane %v2050, 4
      %v2053 = vshll.u32 %v1965, 16
      %v2055 = vrot.slane %v2053, 5
      %v2056 = vor.u32 %v2052, %v2055
      %v2057 = vsel %vm1173, %v2048, %v2056
      %v2059 = vshrl.u32 %v1966, 16
      %v2061 = vrot.slane %v2059, 4
      %v2062 = vshll.u32 %v1966, 16
      %v2064 = vrot.slane %v2062, 5
      %v2065 = vor.u32 %v2061, %v2064
      %v2067 = vshrl.u32 %v1967, 16
      %v2069 = vrot.slane %v2067, 4
      %v2070 = vshll.u32 %v1967, 16
      %v2072 = vrot.slane %v2070, 5
      %v2073 = vor.u32 %v2069, %v2072
      %v2074 = vsel %vm1173, %v2065, %v2073
      %v2076 = vshrl.u32 %v1968, 16
      %v2078 = vrot.slane %v2076, 4
      %v2079 = vshll.u32 %v1968, 16
      %v2081 = vrot.slane %v2079, 5
      %v2082 = vor.u32 %v2078, %v2081
      %v2084 = vshrl.u32 %v1969, 16
      %v2086 = vrot.slane %v2084, 4
      %v2087 = vshll.u32 %v1969, 16
      %v2089 = vrot.slane %v2087, 5
      %v2090 = vor.u32 %v2086, %v2089
      %v2091 = vsel %vm1173, %v2082, %v2090
      %v2093 = vshrl.u32 %v1970, 16
      %v2095 = vrot.slane %v2093, 4
      %v2096 = vshll.u32 %v1970, 16
      %v2098 = vrot.slane %v2096, 5
      %v2099 = vor.u32 %v2095, %v2098
      %v2101 = vshrl.u32 %v1971, 16
      %v2103 = vrot.slane %v2101, 4
      %v2104 = vshll.u32 %v1971, 16
      %v2106 = vrot.slane %v2104, 5
      %v2107 = vor.u32 %v2103, %v2106
      %v2108 = vsel %vm1173, %v2099, %v2107
      %v2110 = vshrl.u32 %v1972, 16
      %v2112 = vrot.slane %v2110, 4
      %v2113 = vshll.u32 %v1972, 16
      %v2115 = vrot.slane %v2113, 5
      %v2116 = vor.u32 %v2112, %v2115
      %v2118 = vshrl.u32 %v1973, 16
      %v2120 = vrot.slane %v2118, 4
      %v2121 = vshll.u32 %v1973, 16
      %v2123 = vrot.slane %v2121, 5
      %v2124 = vor.u32 %v2120, %v2123
      %v2125 = vsel %vm1173, %v2116, %v2124
      %v2127 = vshrl.u32 %v1974, 16
      %v2129 = vrot.slane %v2127, 4
      %v2130 = vshll.u32 %v1974, 16
      %v2132 = vrot.slane %v2130, 5
      %v2133 = vor.u32 %v2129, %v2132
      %v2135 = vshrl.u32 %v1975, 16
      %v2137 = vrot.slane %v2135, 4
      %v2138 = vshll.u32 %v1975, 16
      %v2140 = vrot.slane %v2138, 5
      %v2141 = vor.u32 %v2137, %v2140
      %v2142 = vsel %vm1173, %v2133, %v2141
      %v2144 = vshrl.u32 %v1976, 16
      %v2146 = vrot.slane %v2144, 4
      %v2147 = vshll.u32 %v1976, 16
      %v2149 = vrot.slane %v2147, 5
      %v2150 = vor.u32 %v2146, %v2149
      %v2152 = vshrl.u32 %v1977, 16
      %v2154 = vrot.slane %v2152, 4
      %v2155 = vshll.u32 %v1977, 16
      %v2157 = vrot.slane %v2155, 5
      %v2158 = vor.u32 %v2154, %v2157
      %v2159 = vsel %vm1173, %v2150, %v2158
      %v2161 = vshrl.u32 %v1978, 16
      %v2163 = vrot.slane %v2161, 4
      %v2164 = vshll.u32 %v1978, 16
      %v2166 = vrot.slane %v2164, 5
      %v2167 = vor.u32 %v2163, %v2166
      %v2169 = vshrl.u32 %v1979, 16
      %v2171 = vrot.slane %v2169, 4
      %v2172 = vshll.u32 %v1979, 16
      %v2174 = vrot.slane %v2172, 5
      %v2175 = vor.u32 %v2171, %v2174
      %v2176 = vsel %vm1173, %v2167, %v2175
      %v2178 = vshrl.u32 %v1980, 16
      %v2180 = vrot.slane %v2178, 4
      %v2181 = vshll.u32 %v1980, 16
      %v2183 = vrot.slane %v2181, 5
      %v2184 = vor.u32 %v2180, %v2183
      %v2186 = vshrl.u32 %v1981, 16
      %v2188 = vrot.slane %v2186, 4
      %v2189 = vshll.u32 %v1981, 16
      %v2191 = vrot.slane %v2189, 5
      %v2192 = vor.u32 %v2188, %v2191
      %v2193 = vsel %vm1173, %v2184, %v2192
      %v2195 = vshrl.u32 %v1982, 16
      %v2197 = vrot.slane %v2195, 4
      %v2198 = vshll.u32 %v1982, 16
      %v2200 = vrot.slane %v2198, 5
      %v2201 = vor.u32 %v2197, %v2200
      %v2203 = vshrl.u32 %v1983, 16
      %v2205 = vrot.slane %v2203, 4
      %v2206 = vshll.u32 %v1983, 16
      %v2208 = vrot.slane %v2206, 5
      %v2209 = vor.u32 %v2205, %v2208
      %v2210 = vsel %vm1173, %v2201, %v2209
      %v2212 = vshrl.u32 %v1984, 16
      %v2214 = vrot.slane %v2212, 4
      %v2215 = vshll.u32 %v1984, 16
      %v2217 = vrot.slane %v2215, 5
      %v2218 = vor.u32 %v2214, %v2217
      %v2220 = vshrl.u32 %v1985, 16
      %v2222 = vrot.slane %v2220, 4
      %v2223 = vshll.u32 %v1985, 16
      %v2225 = vrot.slane %v2223, 5
      %v2226 = vor.u32 %v2222, %v2225
      %v2227 = vsel %vm1173, %v2218, %v2226
      %v2229 = vshrl.u32 %v1986, 16
      %v2231 = vrot.slane %v2229, 4
      %v2232 = vshll.u32 %v1986, 16
      %v2234 = vrot.slane %v2232, 5
      %v2235 = vor.u32 %v2231, %v2234
      %v2237 = vshrl.u32 %v1987, 16
      %v2239 = vrot.slane %v2237, 4
      %v2240 = vshll.u32 %v1987, 16
      %v2242 = vrot.slane %v2240, 5
      %v2243 = vor.u32 %v2239, %v2242
      %v2244 = vsel %vm1173, %v2235, %v2243
      %v2246 = vshrl.u32 %v1988, 16
      %v2248 = vrot.slane %v2246, 4
      %v2249 = vshll.u32 %v1988, 16
      %v2251 = vrot.slane %v2249, 5
      %v2252 = vor.u32 %v2248, %v2251
      %v2254 = vshrl.u32 %v1989, 16
      %v2256 = vrot.slane %v2254, 4
      %v2257 = vshll.u32 %v1989, 16
      %v2259 = vrot.slane %v2257, 5
      %v2260 = vor.u32 %v2256, %v2259
      %v2261 = vsel %vm1173, %v2252, %v2260
      %2278 = vst [vmem:[#allocation3 + $0x28] sm:$0xff] %v2006
      %2279 = vst [vmem:[#allocation3 + $0x70] sm:$0xff] %v2023
      %2280 = vst [vmem:[#allocation3 + $0xb8] sm:$0xff] %v2040
      %2281 = vst [vmem:[#allocation3 + $0x100] sm:$0xff] %v2057
      %2282 = vst [vmem:[#allocation3 + $0x148] sm:$0xff] %v2074
      %2283 = vst [vmem:[#allocation3 + $0x190] sm:$0xff] %v2091
      %2284 = vst [vmem:[#allocation3 + $0x1d8] sm:$0xff] %v2108
      %2285 = vst [vmem:[#allocation3 + $0x220] sm:$0xff] %v2125
      %2286 = vst [vmem:[#allocation3 + $0x268] sm:$0xff] %v2142
      %2287 = vst [vmem:[#allocation3 + $0x2b0] sm:$0xff] %v2159
      %2288 = vst [vmem:[#allocation3 + $0x2f8] sm:$0xff] %v2176
      %2289 = vst [vmem:[#allocation3 + $0x340] sm:$0xff] %v2193
      %2290 = vst [vmem:[#allocation3 + $0x388] sm:$0xff] %v2210
      %2291 = vst [vmem:[#allocation3 + $0x3d0] sm:$0xff] %v2227
      %2292 = vst [vmem:[#allocation3 + $0x418] sm:$0xff] %v2244
      %2293 = vst [vmem:[#allocation3 + $0x460] sm:$0xff] %v2261
      %s2294 = scalar_lea.vmem [#allocation2], 32
      %v2295 = vld [vmem:[%s2294] sm:$0xf8]
      %v2296 = vld [vmem:[%s2294 + $0x8] sm:$0xf]
      %v2297 = vld [vmem:[%s2294 + $0x10] sm:$0xf8]
      %v2298 = vld [vmem:[%s2294 + $0x18] sm:$0xf]
      %v2299 = vld [vmem:[%s2294 + $0x20] sm:$0xf8]
      %v2300 = vld [vmem:[%s2294 + $0x28] sm:$0xf]
      %v2301 = vld [vmem:[%s2294 + $0x30] sm:$0xf8]
      %v2302 = vld [vmem:[%s2294 + $0x38] sm:$0xf]
      %v2303 = vld [vmem:[%s2294 + $0x40] sm:$0xf8]
      %v2304 = vld [vmem:[%s2294 + $0x48] sm:$0xf]
      %v2305 = vld [vmem:[%s2294 + $0x50] sm:$0xf8]
      %v2306 = vld [vmem:[%s2294 + $0x58] sm:$0xf]
      %v2307 = vld [vmem:[%s2294 + $0x60] sm:$0xf8]
      %v2308 = vld [vmem:[%s2294 + $0x68] sm:$0xf]
      %v2309 = vld [vmem:[%s2294 + $0x70] sm:$0xf8]
      %v2310 = vld [vmem:[%s2294 + $0x78] sm:$0xf]
      %v2311 = vld [vmem:[%s2294 + $0x80] sm:$0xf8]
      %v2312 = vld [vmem:[%s2294 + $0x88] sm:$0xf]
      %v2313 = vld [vmem:[%s2294 + $0x90] sm:$0xf8]
      %v2314 = vld [vmem:[%s2294 + $0x98] sm:$0xf]
      %v2315 = vld [vmem:[%s2294 + $0xa0] sm:$0xf8]
      %v2316 = vld [vmem:[%s2294 + $0xa8] sm:$0xf]
      %v2317 = vld [vmem:[%s2294 + $0xb0] sm:$0xf8]
      %v2318 = vld [vmem:[%s2294 + $0xb8] sm:$0xf]
      %v2319 = vld [vmem:[%s2294 + $0xc0] sm:$0xf8]
      %v2320 = vld [vmem:[%s2294 + $0xc8] sm:$0xf]
      %v2321 = vld [vmem:[%s2294 + $0xd0] sm:$0xf8]
      %v2322 = vld [vmem:[%s2294 + $0xd8] sm:$0xf]
      %v2323 = vld [vmem:[%s2294 + $0xe0] sm:$0xf8]
      %v2324 = vld [vmem:[%s2294 + $0xe8] sm:$0xf]
      %v2325 = vld [vmem:[%s2294 + $0xf0] sm:$0xf8]
      %v2326 = vld [vmem:[%s2294 + $0xf8] sm:$0xf]
      %v2328 = vshrl.u32 %v2295, 16
      %v2330 = vrot.slane %v2328, 3
      %v2331 = vshll.u32 %v2295, 16
      %v2333 = vrot.slane %v2331, 4
      %v2334 = vor.u32 %v2330, %v2333
      %v2336 = vshrl.u32 %v2296, 16
      %v2338 = vrot.slane %v2336, 3
      %v2339 = vshll.u32 %v2296, 16
      %v2341 = vrot.slane %v2339, 4
      %v2342 = vor.u32 %v2338, %v2341
      %v2343 = vsel %vm277, %v2334, %v2342
      %v2345 = vshrl.u32 %v2297, 16
      %v2347 = vrot.slane %v2345, 3
      %v2348 = vshll.u32 %v2297, 16
      %v2350 = vrot.slane %v2348, 4
      %v2351 = vor.u32 %v2347, %v2350
      %v2353 = vshrl.u32 %v2298, 16
      %v2355 = vrot.slane %v2353, 3
      %v2356 = vshll.u32 %v2298, 16
      %v2358 = vrot.slane %v2356, 4
      %v2359 = vor.u32 %v2355, %v2358
      %v2360 = vsel %vm277, %v2351, %v2359
      %v2362 = vshrl.u32 %v2299, 16
      %v2364 = vrot.slane %v2362, 3
      %v2365 = vshll.u32 %v2299, 16
      %v2367 = vrot.slane %v2365, 4
      %v2368 = vor.u32 %v2364, %v2367
      %v2370 = vshrl.u32 %v2300, 16
      %v2372 = vrot.slane %v2370, 3
      %v2373 = vshll.u32 %v2300, 16
      %v2375 = vrot.slane %v2373, 4
      %v2376 = vor.u32 %v2372, %v2375
      %v2377 = vsel %vm277, %v2368, %v2376
      %v2379 = vshrl.u32 %v2301, 16
      %v2381 = vrot.slane %v2379, 3
      %v2382 = vshll.u32 %v2301, 16
      %v2384 = vrot.slane %v2382, 4
      %v2385 = vor.u32 %v2381, %v2384
      %v2387 = vshrl.u32 %v2302, 16
      %v2389 = vrot.slane %v2387, 3
      %v2390 = vshll.u32 %v2302, 16
      %v2392 = vrot.slane %v2390, 4
      %v2393 = vor.u32 %v2389, %v2392
      %v2394 = vsel %vm277, %v2385, %v2393
      %v2396 = vshrl.u32 %v2303, 16
      %v2398 = vrot.slane %v2396, 3
      %v2399 = vshll.u32 %v2303, 16
      %v2401 = vrot.slane %v2399, 4
      %v2402 = vor.u32 %v2398, %v2401
      %v2404 = vshrl.u32 %v2304, 16
      %v2406 = vrot.slane %v2404, 3
      %v2407 = vshll.u32 %v2304, 16
      %v2409 = vrot.slane %v2407, 4
      %v2410 = vor.u32 %v2406, %v2409
      %v2411 = vsel %vm277, %v2402, %v2410
      %v2413 = vshrl.u32 %v2305, 16
      %v2415 = vrot.slane %v2413, 3
      %v2416 = vshll.u32 %v2305, 16
      %v2418 = vrot.slane %v2416, 4
      %v2419 = vor.u32 %v2415, %v2418
      %v2421 = vshrl.u32 %v2306, 16
      %v2423 = vrot.slane %v2421, 3
      %v2424 = vshll.u32 %v2306, 16
      %v2426 = vrot.slane %v2424, 4
      %v2427 = vor.u32 %v2423, %v2426
      %v2428 = vsel %vm277, %v2419, %v2427
      %v2430 = vshrl.u32 %v2307, 16
      %v2432 = vrot.slane %v2430, 3
      %v2433 = vshll.u32 %v2307, 16
      %v2435 = vrot.slane %v2433, 4
      %v2436 = vor.u32 %v2432, %v2435
      %v2438 = vshrl.u32 %v2308, 16
      %v2440 = vrot.slane %v2438, 3
      %v2441 = vshll.u32 %v2308, 16
      %v2443 = vrot.slane %v2441, 4
      %v2444 = vor.u32 %v2440, %v2443
      %v2445 = vsel %vm277, %v2436, %v2444
      %v2447 = vshrl.u32 %v2309, 16
      %v2449 = vrot.slane %v2447, 3
      %v2450 = vshll.u32 %v2309, 16
      %v2452 = vrot.slane %v2450, 4
      %v2453 = vor.u32 %v2449, %v2452
      %v2455 = vshrl.u32 %v2310, 16
      %v2457 = vrot.slane %v2455, 3
      %v2458 = vshll.u32 %v2310, 16
      %v2460 = vrot.slane %v2458, 4
      %v2461 = vor.u32 %v2457, %v2460
      %v2462 = vsel %vm277, %v2453, %v2461
      %v2464 = vshrl.u32 %v2311, 16
      %v2466 = vrot.slane %v2464, 3
      %v2467 = vshll.u32 %v2311, 16
      %v2469 = vrot.slane %v2467, 4
      %v2470 = vor.u32 %v2466, %v2469
      %v2472 = vshrl.u32 %v2312, 16
      %v2474 = vrot.slane %v2472, 3
      %v2475 = vshll.u32 %v2312, 16
      %v2477 = vrot.slane %v2475, 4
      %v2478 = vor.u32 %v2474, %v2477
      %v2479 = vsel %vm277, %v2470, %v2478
      %v2481 = vshrl.u32 %v2313, 16
      %v2483 = vrot.slane %v2481, 3
      %v2484 = vshll.u32 %v2313, 16
      %v2486 = vrot.slane %v2484, 4
      %v2487 = vor.u32 %v2483, %v2486
      %v2489 = vshrl.u32 %v2314, 16
      %v2491 = vrot.slane %v2489, 3
      %v2492 = vshll.u32 %v2314, 16
      %v2494 = vrot.slane %v2492, 4
      %v2495 = vor.u32 %v2491, %v2494
      %v2496 = vsel %vm277, %v2487, %v2495
      %v2498 = vshrl.u32 %v2315, 16
      %v2500 = vrot.slane %v2498, 3
      %v2501 = vshll.u32 %v2315, 16
      %v2503 = vrot.slane %v2501, 4
      %v2504 = vor.u32 %v2500, %v2503
      %v2506 = vshrl.u32 %v2316, 16
      %v2508 = vrot.slane %v2506, 3
      %v2509 = vshll.u32 %v2316, 16
      %v2511 = vrot.slane %v2509, 4
      %v2512 = vor.u32 %v2508, %v2511
      %v2513 = vsel %vm277, %v2504, %v2512
      %v2515 = vshrl.u32 %v2317, 16
      %v2517 = vrot.slane %v2515, 3
      %v2518 = vshll.u32 %v2317, 16
      %v2520 = vrot.slane %v2518, 4
      %v2521 = vor.u32 %v2517, %v2520
      %v2523 = vshrl.u32 %v2318, 16
      %v2525 = vrot.slane %v2523, 3
      %v2526 = vshll.u32 %v2318, 16
      %v2528 = vrot.slane %v2526, 4
      %v2529 = vor.u32 %v2525, %v2528
      %v2530 = vsel %vm277, %v2521, %v2529
      %v2532 = vshrl.u32 %v2319, 16
      %v2534 = vrot.slane %v2532, 3
      %v2535 = vshll.u32 %v2319, 16
      %v2537 = vrot.slane %v2535, 4
      %v2538 = vor.u32 %v2534, %v2537
      %v2540 = vshrl.u32 %v2320, 16
      %v2542 = vrot.slane %v2540, 3
      %v2543 = vshll.u32 %v2320, 16
      %v2545 = vrot.slane %v2543, 4
      %v2546 = vor.u32 %v2542, %v2545
      %v2547 = vsel %vm277, %v2538, %v2546
      %v2549 = vshrl.u32 %v2321, 16
      %v2551 = vrot.slane %v2549, 3
      %v2552 = vshll.u32 %v2321, 16
      %v2554 = vrot.slane %v2552, 4
      %v2555 = vor.u32 %v2551, %v2554
      %v2557 = vshrl.u32 %v2322, 16
      %v2559 = vrot.slane %v2557, 3
      %v2560 = vshll.u32 %v2322, 16
      %v2562 = vrot.slane %v2560, 4
      %v2563 = vor.u32 %v2559, %v2562
      %v2564 = vsel %vm277, %v2555, %v2563
      %v2566 = vshrl.u32 %v2323, 16
      %v2568 = vrot.slane %v2566, 3
      %v2569 = vshll.u32 %v2323, 16
      %v2571 = vrot.slane %v2569, 4
      %v2572 = vor.u32 %v2568, %v2571
      %v2574 = vshrl.u32 %v2324, 16
      %v2576 = vrot.slane %v2574, 3
      %v2577 = vshll.u32 %v2324, 16
      %v2579 = vrot.slane %v2577, 4
      %v2580 = vor.u32 %v2576, %v2579
      %v2581 = vsel %vm277, %v2572, %v2580
      %v2583 = vshrl.u32 %v2325, 16
      %v2585 = vrot.slane %v2583, 3
      %v2586 = vshll.u32 %v2325, 16
      %v2588 = vrot.slane %v2586, 4
      %v2589 = vor.u32 %v2585, %v2588
      %v2591 = vshrl.u32 %v2326, 16
      %v2593 = vrot.slane %v2591, 3
      %v2594 = vshll.u32 %v2326, 16
      %v2596 = vrot.slane %v2594, 4
      %v2597 = vor.u32 %v2593, %v2596
      %v2598 = vsel %vm277, %v2589, %v2597
      %2615 = vst [vmem:[#allocation3 + $0x30] sm:$0xff] %v2343
      %2616 = vst [vmem:[#allocation3 + $0x78] sm:$0xff] %v2360
      %2617 = vst [vmem:[#allocation3 + $0xc0] sm:$0xff] %v2377
      %2618 = vst [vmem:[#allocation3 + $0x108] sm:$0xff] %v2394
      %2619 = vst [vmem:[#allocation3 + $0x150] sm:$0xff] %v2411
      %2620 = vst [vmem:[#allocation3 + $0x198] sm:$0xff] %v2428
      %2621 = vst [vmem:[#allocation3 + $0x1e0] sm:$0xff] %v2445
      %2622 = vst [vmem:[#allocation3 + $0x228] sm:$0xff] %v2462
      %2623 = vst [vmem:[#allocation3 + $0x270] sm:$0xff] %v2479
      %2624 = vst [vmem:[#allocation3 + $0x2b8] sm:$0xff] %v2496
      %2625 = vst [vmem:[#allocation3 + $0x300] sm:$0xff] %v2513
      %2626 = vst [vmem:[#allocation3 + $0x348] sm:$0xff] %v2530
      %2627 = vst [vmem:[#allocation3 + $0x390] sm:$0xff] %v2547
      %2628 = vst [vmem:[#allocation3 + $0x3d8] sm:$0xff] %v2564
      %2629 = vst [vmem:[#allocation3 + $0x420] sm:$0xff] %v2581
      %2630 = vst [vmem:[#allocation3 + $0x468] sm:$0xff] %v2598
      %v2631 = vld [vmem:[%s2294] sm:$0xf0]
      %v2632 = vld [vmem:[%s2294 + $0x8] sm:$0xf]
      %v2633 = vld [vmem:[%s2294 + $0x10] sm:$0xf0]
      %v2634 = vld [vmem:[%s2294 + $0x18] sm:$0xf]
      %v2635 = vld [vmem:[%s2294 + $0x20] sm:$0xf0]
      %v2636 = vld [vmem:[%s2294 + $0x28] sm:$0xf]
      %v2637 = vld [vmem:[%s2294 + $0x30] sm:$0xf0]
      %v2638 = vld [vmem:[%s2294 + $0x38] sm:$0xf]
      %v2639 = vld [vmem:[%s2294 + $0x40] sm:$0xf0]
      %v2640 = vld [vmem:[%s2294 + $0x48] sm:$0xf]
      %v2641 = vld [vmem:[%s2294 + $0x50] sm:$0xf0]
      %v2642 = vld [vmem:[%s2294 + $0x58] sm:$0xf]
      %v2643 = vld [vmem:[%s2294 + $0x60] sm:$0xf0]
      %v2644 = vld [vmem:[%s2294 + $0x68] sm:$0xf]
      %v2645 = vld [vmem:[%s2294 + $0x70] sm:$0xf0]
      %v2646 = vld [vmem:[%s2294 + $0x78] sm:$0xf]
      %v2647 = vld [vmem:[%s2294 + $0x80] sm:$0xf0]
      %v2648 = vld [vmem:[%s2294 + $0x88] sm:$0xf]
      %v2649 = vld [vmem:[%s2294 + $0x90] sm:$0xf0]
      %v2650 = vld [vmem:[%s2294 + $0x98] sm:$0xf]
      %v2651 = vld [vmem:[%s2294 + $0xa0] sm:$0xf0]
      %v2652 = vld [vmem:[%s2294 + $0xa8] sm:$0xf]
      %v2653 = vld [vmem:[%s2294 + $0xb0] sm:$0xf0]
      %v2654 = vld [vmem:[%s2294 + $0xb8] sm:$0xf]
      %v2655 = vld [vmem:[%s2294 + $0xc0] sm:$0xf0]
      %v2656 = vld [vmem:[%s2294 + $0xc8] sm:$0xf]
      %v2657 = vld [vmem:[%s2294 + $0xd0] sm:$0xf0]
      %v2658 = vld [vmem:[%s2294 + $0xd8] sm:$0xf]
      %v2659 = vld [vmem:[%s2294 + $0xe0] sm:$0xf0]
      %v2660 = vld [vmem:[%s2294 + $0xe8] sm:$0xf]
      %v2661 = vld [vmem:[%s2294 + $0xf0] sm:$0xf0]
      %v2662 = vld [vmem:[%s2294 + $0xf8] sm:$0xf]
      %v2695 = vrot.slane %v2631, 4
      %v2696 = vrot.slane %v2632, 4
      %v2697 = vsel %vm1060, %v2695, %v2696
      %v2698 = vrot.slane %v2633, 4
      %v2699 = vrot.slane %v2634, 4
      %v2700 = vsel %vm1060, %v2698, %v2699
      %v2701 = vrot.slane %v2635, 4
      %v2702 = vrot.slane %v2636, 4
      %v2703 = vsel %vm1060, %v2701, %v2702
      %v2704 = vrot.slane %v2637, 4
      %v2705 = vrot.slane %v2638, 4
      %v2706 = vsel %vm1060, %v2704, %v2705
      %v2707 = vrot.slane %v2639, 4
      %v2708 = vrot.slane %v2640, 4
      %v2709 = vsel %vm1060, %v2707, %v2708
      %v2710 = vrot.slane %v2641, 4
      %v2711 = vrot.slane %v2642, 4
      %v2712 = vsel %vm1060, %v2710, %v2711
      %v2713 = vrot.slane %v2643, 4
      %v2714 = vrot.slane %v2644, 4
      %v2715 = vsel %vm1060, %v2713, %v2714
      %v2716 = vrot.slane %v2645, 4
      %v2717 = vrot.slane %v2646, 4
      %v2718 = vsel %vm1060, %v2716, %v2717
      %v2719 = vrot.slane %v2647, 4
      %v2720 = vrot.slane %v2648, 4
      %v2721 = vsel %vm1060, %v2719, %v2720
      %v2722 = vrot.slane %v2649, 4
      %v2723 = vrot.slane %v2650, 4
      %v2724 = vsel %vm1060, %v2722, %v2723
      %v2725 = vrot.slane %v2651, 4
      %v2726 = vrot.slane %v2652, 4
      %v2727 = vsel %vm1060, %v2725, %v2726
      %v2728 = vrot.slane %v2653, 4
      %v2729 = vrot.slane %v2654, 4
      %v2730 = vsel %vm1060, %v2728, %v2729
      %v2731 = vrot.slane %v2655, 4
      %v2732 = vrot.slane %v2656, 4
      %v2733 = vsel %vm1060, %v2731, %v2732
      %v2734 = vrot.slane %v2657, 4
      %v2735 = vrot.slane %v2658, 4
      %v2736 = vsel %vm1060, %v2734, %v2735
      %v2737 = vrot.slane %v2659, 4
      %v2738 = vrot.slane %v2660, 4
      %v2739 = vsel %vm1060, %v2737, %v2738
      %v2740 = vrot.slane %v2661, 4
      %v2741 = vrot.slane %v2662, 4
      %v2742 = vsel %vm1060, %v2740, %v2741
      %2759 = vst [vmem:[#allocation3 + $0x38] sm:$0xff] %v2697
      %2760 = vst [vmem:[#allocation3 + $0x80] sm:$0xff] %v2700
      %2761 = vst [vmem:[#allocation3 + $0xc8] sm:$0xff] %v2703
      %2762 = vst [vmem:[#allocation3 + $0x110] sm:$0xff] %v2706
      %2763 = vst [vmem:[#allocation3 + $0x158] sm:$0xff] %v2709
      %2764 = vst [vmem:[#allocation3 + $0x1a0] sm:$0xff] %v2712
      %2765 = vst [vmem:[#allocation3 + $0x1e8] sm:$0xff] %v2715
      %2766 = vst [vmem:[#allocation3 + $0x230] sm:$0xff] %v2718
      %2767 = vst [vmem:[#allocation3 + $0x278] sm:$0xff] %v2721
      %2768 = vst [vmem:[#allocation3 + $0x2c0] sm:$0xff] %v2724
      %2769 = vst [vmem:[#allocation3 + $0x308] sm:$0xff] %v2727
      %2770 = vst [vmem:[#allocation3 + $0x350] sm:$0xff] %v2730
      %2771 = vst [vmem:[#allocation3 + $0x398] sm:$0xff] %v2733
      %2772 = vst [vmem:[#allocation3 + $0x3e0] sm:$0xff] %v2736
      %2773 = vst [vmem:[#allocation3 + $0x428] sm:$0xff] %v2739
      %2774 = vst [vmem:[#allocation3 + $0x470] sm:$0xff] %v2742
      %v2775 = vld [vmem:[%s2294] sm:$0xf0]
      %v2776 = vld [vmem:[%s2294 + $0x8] sm:$0x1f]
      %v2777 = vld [vmem:[%s2294 + $0x10] sm:$0xf0]
      %v2778 = vld [vmem:[%s2294 + $0x18] sm:$0x1f]
      %v2779 = vld [vmem:[%s2294 + $0x20] sm:$0xf0]
      %v2780 = vld [vmem:[%s2294 + $0x28] sm:$0x1f]
      %v2781 = vld [vmem:[%s2294 + $0x30] sm:$0xf0]
      %v2782 = vld [vmem:[%s2294 + $0x38] sm:$0x1f]
      %v2783 = vld [vmem:[%s2294 + $0x40] sm:$0xf0]
      %v2784 = vld [vmem:[%s2294 + $0x48] sm:$0x1f]
      %v2785 = vld [vmem:[%s2294 + $0x50] sm:$0xf0]
      %v2786 = vld [vmem:[%s2294 + $0x58] sm:$0x1f]
      %v2787 = vld [vmem:[%s2294 + $0x60] sm:$0xf0]
      %v2788 = vld [vmem:[%s2294 + $0x68] sm:$0x1f]
      %v2789 = vld [vmem:[%s2294 + $0x70] sm:$0xf0]
      %v2790 = vld [vmem:[%s2294 + $0x78] sm:$0x1f]
      %v2791 = vld [vmem:[%s2294 + $0x80] sm:$0xf0]
      %v2792 = vld [vmem:[%s2294 + $0x88] sm:$0x1f]
      %v2793 = vld [vmem:[%s2294 + $0x90] sm:$0xf0]
      %v2794 = vld [vmem:[%s2294 + $0x98] sm:$0x1f]
      %v2795 = vld [vmem:[%s2294 + $0xa0] sm:$0xf0]
      %v2796 = vld [vmem:[%s2294 + $0xa8] sm:$0x1f]
      %v2797 = vld [vmem:[%s2294 + $0xb0] sm:$0xf0]
      %v2798 = vld [vmem:[%s2294 + $0xb8] sm:$0x1f]
      %v2799 = vld [vmem:[%s2294 + $0xc0] sm:$0xf0]
      %v2800 = vld [vmem:[%s2294 + $0xc8] sm:$0x1f]
      %v2801 = vld [vmem:[%s2294 + $0xd0] sm:$0xf0]
      %v2802 = vld [vmem:[%s2294 + $0xd8] sm:$0x1f]
      %v2803 = vld [vmem:[%s2294 + $0xe0] sm:$0xf0]
      %v2804 = vld [vmem:[%s2294 + $0xe8] sm:$0x1f]
      %v2805 = vld [vmem:[%s2294 + $0xf0] sm:$0xf0]
      %v2806 = vld [vmem:[%s2294 + $0xf8] sm:$0x1f]
      %v2808 = vshrl.u32 %v2775, 16
      %v2810 = vrot.slane %v2808, 4
      %v2811 = vshll.u32 %v2775, 16
      %v2813 = vrot.slane %v2811, 5
      %v2814 = vor.u32 %v2810, %v2813
      %v2816 = vshrl.u32 %v2776, 16
      %v2818 = vrot.slane %v2816, 4
      %v2819 = vshll.u32 %v2776, 16
      %v2821 = vrot.slane %v2819, 5
      %v2822 = vor.u32 %v2818, %v2821
      %v2823 = vsel %vm1173, %v2814, %v2822
      %v2825 = vshrl.u32 %v2777, 16
      %v2827 = vrot.slane %v2825, 4
      %v2828 = vshll.u32 %v2777, 16
      %v2830 = vrot.slane %v2828, 5
      %v2831 = vor.u32 %v2827, %v2830
      %v2833 = vshrl.u32 %v2778, 16
      %v2835 = vrot.slane %v2833, 4
      %v2836 = vshll.u32 %v2778, 16
      %v2838 = vrot.slane %v2836, 5
      %v2839 = vor.u32 %v2835, %v2838
      %v2840 = vsel %vm1173, %v2831, %v2839
      %v2842 = vshrl.u32 %v2779, 16
      %v2844 = vrot.slane %v2842, 4
      %v2845 = vshll.u32 %v2779, 16
      %v2847 = vrot.slane %v2845, 5
      %v2848 = vor.u32 %v2844, %v2847
      %v2850 = vshrl.u32 %v2780, 16
      %v2852 = vrot.slane %v2850, 4
      %v2853 = vshll.u32 %v2780, 16
      %v2855 = vrot.slane %v2853, 5
      %v2856 = vor.u32 %v2852, %v2855
      %v2857 = vsel %vm1173, %v2848, %v2856
      %v2859 = vshrl.u32 %v2781, 16
      %v2861 = vrot.slane %v2859, 4
      %v2862 = vshll.u32 %v2781, 16
      %v2864 = vrot.slane %v2862, 5
      %v2865 = vor.u32 %v2861, %v2864
      %v2867 = vshrl.u32 %v2782, 16
      %v2869 = vrot.slane %v2867, 4
      %v2870 = vshll.u32 %v2782, 16
      %v2872 = vrot.slane %v2870, 5
      %v2873 = vor.u32 %v2869, %v2872
      %v2874 = vsel %vm1173, %v2865, %v2873
      %v2876 = vshrl.u32 %v2783, 16
      %v2878 = vrot.slane %v2876, 4
      %v2879 = vshll.u32 %v2783, 16
      %v2881 = vrot.slane %v2879, 5
      %v2882 = vor.u32 %v2878, %v2881
      %v2884 = vshrl.u32 %v2784, 16
      %v2886 = vrot.slane %v2884, 4
      %v2887 = vshll.u32 %v2784, 16
      %v2889 = vrot.slane %v2887, 5
      %v2890 = vor.u32 %v2886, %v2889
      %v2891 = vsel %vm1173, %v2882, %v2890
      %v2893 = vshrl.u32 %v2785, 16
      %v2895 = vrot.slane %v2893, 4
      %v2896 = vshll.u32 %v2785, 16
      %v2898 = vrot.slane %v2896, 5
      %v2899 = vor.u32 %v2895, %v2898
      %v2901 = vshrl.u32 %v2786, 16
      %v2903 = vrot.slane %v2901, 4
      %v2904 = vshll.u32 %v2786, 16
      %v2906 = vrot.slane %v2904, 5
      %v2907 = vor.u32 %v2903, %v2906
      %v2908 = vsel %vm1173, %v2899, %v2907
      %v2910 = vshrl.u32 %v2787, 16
      %v2912 = vrot.slane %v2910, 4
      %v2913 = vshll.u32 %v2787, 16
      %v2915 = vrot.slane %v2913, 5
      %v2916 = vor.u32 %v2912, %v2915
      %v2918 = vshrl.u32 %v2788, 16
      %v2920 = vrot.slane %v2918, 4
      %v2921 = vshll.u32 %v2788, 16
      %v2923 = vrot.slane %v2921, 5
      %v2924 = vor.u32 %v2920, %v2923
      %v2925 = vsel %vm1173, %v2916, %v2924
      %v2927 = vshrl.u32 %v2789, 16
      %v2929 = vrot.slane %v2927, 4
      %v2930 = vshll.u32 %v2789, 16
      %v2932 = vrot.slane %v2930, 5
      %v2933 = vor.u32 %v2929, %v2932
      %v2935 = vshrl.u32 %v2790, 16
      %v2937 = vrot.slane %v2935, 4
      %v2938 = vshll.u32 %v2790, 16
      %v2940 = vrot.slane %v2938, 5
      %v2941 = vor.u32 %v2937, %v2940
      %v2942 = vsel %vm1173, %v2933, %v2941
      %v2944 = vshrl.u32 %v2791, 16
      %v2946 = vrot.slane %v2944, 4
      %v2947 = vshll.u32 %v2791, 16
      %v2949 = vrot.slane %v2947, 5
      %v2950 = vor.u32 %v2946, %v2949
      %v2952 = vshrl.u32 %v2792, 16
      %v2954 = vrot.slane %v2952, 4
      %v2955 = vshll.u32 %v2792, 16
      %v2957 = vrot.slane %v2955, 5
      %v2958 = vor.u32 %v2954, %v2957
      %v2959 = vsel %vm1173, %v2950, %v2958
      %v2961 = vshrl.u32 %v2793, 16
      %v2963 = vrot.slane %v2961, 4
      %v2964 = vshll.u32 %v2793, 16
      %v2966 = vrot.slane %v2964, 5
      %v2967 = vor.u32 %v2963, %v2966
      %v2969 = vshrl.u32 %v2794, 16
      %v2971 = vrot.slane %v2969, 4
      %v2972 = vshll.u32 %v2794, 16
      %v2974 = vrot.slane %v2972, 5
      %v2975 = vor.u32 %v2971, %v2974
      %v2976 = vsel %vm1173, %v2967, %v2975
      %v2978 = vshrl.u32 %v2795, 16
      %v2980 = vrot.slane %v2978, 4
      %v2981 = vshll.u32 %v2795, 16
      %v2983 = vrot.slane %v2981, 5
      %v2984 = vor.u32 %v2980, %v2983
      %v2986 = vshrl.u32 %v2796, 16
      %v2988 = vrot.slane %v2986, 4
      %v2989 = vshll.u32 %v2796, 16
      %v2991 = vrot.slane %v2989, 5
      %v2992 = vor.u32 %v2988, %v2991
      %v2993 = vsel %vm1173, %v2984, %v2992
      %v2995 = vshrl.u32 %v2797, 16
      %v2997 = vrot.slane %v2995, 4
      %v2998 = vshll.u32 %v2797, 16
      %v3000 = vrot.slane %v2998, 5
      %v3001 = vor.u32 %v2997, %v3000
      %v3003 = vshrl.u32 %v2798, 16
      %v3005 = vrot.slane %v3003, 4
      %v3006 = vshll.u32 %v2798, 16
      %v3008 = vrot.slane %v3006, 5
      %v3009 = vor.u32 %v3005, %v3008
      %v3010 = vsel %vm1173, %v3001, %v3009
      %v3012 = vshrl.u32 %v2799, 16
      %v3014 = vrot.slane %v3012, 4
      %v3015 = vshll.u32 %v2799, 16
      %v3017 = vrot.slane %v3015, 5
      %v3018 = vor.u32 %v3014, %v3017
      %v3020 = vshrl.u32 %v2800, 16
      %v3022 = vrot.slane %v3020, 4
      %v3023 = vshll.u32 %v2800, 16
      %v3025 = vrot.slane %v3023, 5
      %v3026 = vor.u32 %v3022, %v3025
      %v3027 = vsel %vm1173, %v3018, %v3026
      %v3029 = vshrl.u32 %v2801, 16
      %v3031 = vrot.slane %v3029, 4
      %v3032 = vshll.u32 %v2801, 16
      %v3034 = vrot.slane %v3032, 5
      %v3035 = vor.u32 %v3031, %v3034
      %v3037 = vshrl.u32 %v2802, 16
      %v3039 = vrot.slane %v3037, 4
      %v3040 = vshll.u32 %v2802, 16
      %v3042 = vrot.slane %v3040, 5
      %v3043 = vor.u32 %v3039, %v3042
      %v3044 = vsel %vm1173, %v3035, %v3043
      %v3046 = vshrl.u32 %v2803, 16
      %v3048 = vrot.slane %v3046, 4
      %v3049 = vshll.u32 %v2803, 16
      %v3051 = vrot.slane %v3049, 5
      %v3052 = vor.u32 %v3048, %v3051
      %v3054 = vshrl.u32 %v2804, 16
      %v3056 = vrot.slane %v3054, 4
      %v3057 = vshll.u32 %v2804, 16
      %v3059 = vrot.slane %v3057, 5
      %v3060 = vor.u32 %v3056, %v3059
      %v3061 = vsel %vm1173, %v3052, %v3060
      %v3063 = vshrl.u32 %v2805, 16
      %v3065 = vrot.slane %v3063, 4
      %v3066 = vshll.u32 %v2805, 16
      %v3068 = vrot.slane %v3066, 5
      %v3069 = vor.u32 %v3065, %v3068
      %v3071 = vshrl.u32 %v2806, 16
      %v3073 = vrot.slane %v3071, 4
      %v3074 = vshll.u32 %v2806, 16
      %v3076 = vrot.slane %v3074, 5
      %v3077 = vor.u32 %v3073, %v3076
      %v3078 = vsel %vm1173, %v3069, %v3077
      %3095 = vst [vmem:[#allocation3 + $0x40] sm:$0xff] %v2823
      %3096 = vst [vmem:[#allocation3 + $0x88] sm:$0xff] %v2840
      %3097 = vst [vmem:[#allocation3 + $0xd0] sm:$0xff] %v2857
      %3098 = vst [vmem:[#allocation3 + $0x118] sm:$0xff] %v2874
      %3099 = vst [vmem:[#allocation3 + $0x160] sm:$0xff] %v2891
      %3100 = vst [vmem:[#allocation3 + $0x1a8] sm:$0xff] %v2908
      %3101 = vst [vmem:[#allocation3 + $0x1f0] sm:$0xff] %v2925
      %3102 = vst [vmem:[#allocation3 + $0x238] sm:$0xff] %v2942
      %3103 = vst [vmem:[#allocation3 + $0x280] sm:$0xff] %v2959
      %3104 = vst [vmem:[#allocation3 + $0x2c8] sm:$0xff] %v2976
      %3105 = vst [vmem:[#allocation3 + $0x310] sm:$0xff] %v2993
      %3106 = vst [vmem:[#allocation3 + $0x358] sm:$0xff] %v3010
      %3107 = vst [vmem:[#allocation3 + $0x3a0] sm:$0xff] %v3027
      %3108 = vst [vmem:[#allocation3 + $0x3e8] sm:$0xff] %v3044
      %3109 = vst [vmem:[#allocation3 + $0x430] sm:$0xff] %v3061
      %3110 = vst [vmem:[#allocation3 + $0x478] sm:$0xff] %v3078
      %v3111 = vld [vmem:[#allocation3] sm:$0xff]
      %v3112 = vld [vmem:[#allocation3 + $0x8] sm:$0xff]
      %v3113 = vld [vmem:[#allocation3 + $0x10] sm:$0xff]
      %v3114 = vld [vmem:[#allocation3 + $0x18] sm:$0xff]
      %v3115 = vld [vmem:[#allocation3 + $0x20] sm:$0xff]
      %v3116 = vld [vmem:[#allocation3 + $0x28] sm:$0xff]
      %v3117 = vld [vmem:[#allocation3 + $0x30] sm:$0xff]
      %v3118 = vld [vmem:[#allocation3 + $0x38] sm:$0xff]
      %v3119 = vld [vmem:[#allocation3 + $0x40] sm:$0xff]
      %v3120 = vld [vmem:[#allocation3 + $0x48] sm:$0xff]
      %v3121 = vld [vmem:[#allocation3 + $0x50] sm:$0xff]
      %v3122 = vld [vmem:[#allocation3 + $0x58] sm:$0xff]
      %v3123 = vld [vmem:[#allocation3 + $0x60] sm:$0xff]
      %v3124 = vld [vmem:[#allocation3 + $0x68] sm:$0xff]
      %v3125 = vld [vmem:[#allocation3 + $0x70] sm:$0xff]
      %v3126 = vld [vmem:[#allocation3 + $0x78] sm:$0xff]
      %v3127 = vld [vmem:[#allocation3 + $0x80] sm:$0xff]
      %v3128 = vld [vmem:[#allocation3 + $0x88] sm:$0xff]
      %v3129 = vld [vmem:[#allocation3 + $0x90] sm:$0xff]
      %v3130 = vld [vmem:[#allocation3 + $0x98] sm:$0xff]
      %v3131 = vld [vmem:[#allocation3 + $0xa0] sm:$0xff]
      %v3132 = vld [vmem:[#allocation3 + $0xa8] sm:$0xff]
      %v3133 = vld [vmem:[#allocation3 + $0xb0] sm:$0xff]
      %v3134 = vld [vmem:[#allocation3 + $0xb8] sm:$0xff]
      %v3135 = vld [vmem:[#allocation3 + $0xc0] sm:$0xff]
      %v3136 = vld [vmem:[#allocation3 + $0xc8] sm:$0xff]
      %v3137 = vld [vmem:[#allocation3 + $0xd0] sm:$0xff]
      %v3138 = vld [vmem:[#allocation3 + $0xd8] sm:$0xff]
      %v3139 = vld [vmem:[#allocation3 + $0xe0] sm:$0xff]
      %v3140 = vld [vmem:[#allocation3 + $0xe8] sm:$0xff]
      %v3141 = vld [vmem:[#allocation3 + $0xf0] sm:$0xff]
      %v3142 = vld [vmem:[#allocation3 + $0xf8] sm:$0xff]
      %v3143 = vld [vmem:[#allocation3 + $0x100] sm:$0xff]
      %v3144 = vld [vmem:[#allocation3 + $0x108] sm:$0xff]
      %v3145 = vld [vmem:[#allocation3 + $0x110] sm:$0xff]
      %v3146 = vld [vmem:[#allocation3 + $0x118] sm:$0xff]
      %v3147 = vld [vmem:[#allocation3 + $0x120] sm:$0xff]
      %v3148 = vld [vmem:[#allocation3 + $0x128] sm:$0xff]
      %v3149 = vld [vmem:[#allocation3 + $0x130] sm:$0xff]
      %v3150 = vld [vmem:[#allocation3 + $0x138] sm:$0xff]
      %v3151 = vld [vmem:[#allocation3 + $0x140] sm:$0xff]
      %v3152 = vld [vmem:[#allocation3 + $0x148] sm:$0xff]
      %v3153 = vld [vmem:[#allocation3 + $0x150] sm:$0xff]
      %v3154 = vld [vmem:[#allocation3 + $0x158] sm:$0xff]
      %v3155 = vld [vmem:[#allocation3 + $0x160] sm:$0xff]
      %v3156 = vld [vmem:[#allocation3 + $0x168] sm:$0xff]
      %v3157 = vld [vmem:[#allocation3 + $0x170] sm:$0xff]
      %v3158 = vld [vmem:[#allocation3 + $0x178] sm:$0xff]
      %v3159 = vld [vmem:[#allocation3 + $0x180] sm:$0xff]
      %v3160 = vld [vmem:[#allocation3 + $0x188] sm:$0xff]
      %v3161 = vld [vmem:[#allocation3 + $0x190] sm:$0xff]
      %v3162 = vld [vmem:[#allocation3 + $0x198] sm:$0xff]
      %v3163 = vld [vmem:[#allocation3 + $0x1a0] sm:$0xff]
      %v3164 = vld [vmem:[#allocation3 + $0x1a8] sm:$0xff]
      %v3165 = vld [vmem:[#allocation3 + $0x1b0] sm:$0xff]
      %v3166 = vld [vmem:[#allocation3 + $0x1b8] sm:$0xff]
      %v3167 = vld [vmem:[#allocation3 + $0x1c0] sm:$0xff]
      %v3168 = vld [vmem:[#allocation3 + $0x1c8] sm:$0xff]
      %v3169 = vld [vmem:[#allocation3 + $0x1d0] sm:$0xff]
      %v3170 = vld [vmem:[#allocation3 + $0x1d8] sm:$0xff]
      %v3171 = vld [vmem:[#allocation3 + $0x1e0] sm:$0xff]
      %v3172 = vld [vmem:[#allocation3 + $0x1e8] sm:$0xff]
      %v3173 = vld [vmem:[#allocation3 + $0x1f0] sm:$0xff]
      %v3174 = vld [vmem:[#allocation3 + $0x1f8] sm:$0xff]
      %v3175 = vld [vmem:[#allocation3 + $0x200] sm:$0xff]
      %v3176 = vld [vmem:[#allocation3 + $0x208] sm:$0xff]
      %v3177 = vld [vmem:[#allocation3 + $0x210] sm:$0xff]
      %v3178 = vld [vmem:[#allocation3 + $0x218] sm:$0xff]
      %v3179 = vld [vmem:[#allocation3 + $0x220] sm:$0xff]
      %v3180 = vld [vmem:[#allocation3 + $0x228] sm:$0xff]
      %v3181 = vld [vmem:[#allocation3 + $0x230] sm:$0xff]
      %v3182 = vld [vmem:[#allocation3 + $0x238] sm:$0xff]
      %v3183 = vld [vmem:[#allocation3 + $0x240] sm:$0xff]
      %v3184 = vld [vmem:[#allocation3 + $0x248] sm:$0xff]
      %v3185 = vld [vmem:[#allocation3 + $0x250] sm:$0xff]
      %v3186 = vld [vmem:[#allocation3 + $0x258] sm:$0xff]
      %v3187 = vld [vmem:[#allocation3 + $0x260] sm:$0xff]
      %v3188 = vld [vmem:[#allocation3 + $0x268] sm:$0xff]
      %v3189 = vld [vmem:[#allocation3 + $0x270] sm:$0xff]
      %v3190 = vld [vmem:[#allocation3 + $0x278] sm:$0xff]
      %v3191 = vld [vmem:[#allocation3 + $0x280] sm:$0xff]
      %v3192 = vld [vmem:[#allocation3 + $0x288] sm:$0xff]
      %v3193 = vld [vmem:[#allocation3 + $0x290] sm:$0xff]
      %v3194 = vld [vmem:[#allocation3 + $0x298] sm:$0xff]
      %v3195 = vld [vmem:[#allocation3 + $0x2a0] sm:$0xff]
      %v3196 = vld [vmem:[#allocation3 + $0x2a8] sm:$0xff]
      %v3197 = vld [vmem:[#allocation3 + $0x2b0] sm:$0xff]
      %v3198 = vld [vmem:[#allocation3 + $0x2b8] sm:$0xff]
      %v3199 = vld [vmem:[#allocation3 + $0x2c0] sm:$0xff]
      %v3200 = vld [vmem:[#allocation3 + $0x2c8] sm:$0xff]
      %v3201 = vld [vmem:[#allocation3 + $0x2d0] sm:$0xff]
      %v3202 = vld [vmem:[#allocation3 + $0x2d8] sm:$0xff]
      %v3203 = vld [vmem:[#allocation3 + $0x2e0] sm:$0xff]
      %v3204 = vld [vmem:[#allocation3 + $0x2e8] sm:$0xff]
      %v3205 = vld [vmem:[#allocation3 + $0x2f0] sm:$0xff]
      %v3206 = vld [vmem:[#allocation3 + $0x2f8] sm:$0xff]
      %v3207 = vld [vmem:[#allocation3 + $0x300] sm:$0xff]
      %v3208 = vld [vmem:[#allocation3 + $0x308] sm:$0xff]
      %v3209 = vld [vmem:[#allocation3 + $0x310] sm:$0xff]
      %v3210 = vld [vmem:[#allocation3 + $0x318] sm:$0xff]
      %v3211 = vld [vmem:[#allocation3 + $0x320] sm:$0xff]
      %v3212 = vld [vmem:[#allocation3 + $0x328] sm:$0xff]
      %v3213 = vld [vmem:[#allocation3 + $0x330] sm:$0xff]
      %v3214 = vld [vmem:[#allocation3 + $0x338] sm:$0xff]
      %v3215 = vld [vmem:[#allocation3 + $0x340] sm:$0xff]
      %v3216 = vld [vmem:[#allocation3 + $0x348] sm:$0xff]
      %v3217 = vld [vmem:[#allocation3 + $0x350] sm:$0xff]
      %v3218 = vld [vmem:[#allocation3 + $0x358] sm:$0xff]
      %v3219 = vld [vmem:[#allocation3 + $0x360] sm:$0xff]
      %v3220 = vld [vmem:[#allocation3 + $0x368] sm:$0xff]
      %v3221 = vld [vmem:[#allocation3 + $0x370] sm:$0xff]
      %v3222 = vld [vmem:[#allocation3 + $0x378] sm:$0xff]
      %v3223 = vld [vmem:[#allocation3 + $0x380] sm:$0xff]
      %v3224 = vld [vmem:[#allocation3 + $0x388] sm:$0xff]
      %v3225 = vld [vmem:[#allocation3 + $0x390] sm:$0xff]
      %v3226 = vld [vmem:[#allocation3 + $0x398] sm:$0xff]
      %v3227 = vld [vmem:[#allocation3 + $0x3a0] sm:$0xff]
      %v3228 = vld [vmem:[#allocation3 + $0x3a8] sm:$0xff]
      %v3229 = vld [vmem:[#allocation3 + $0x3b0] sm:$0xff]
      %v3230 = vld [vmem:[#allocation3 + $0x3b8] sm:$0xff]
      %v3231 = vld [vmem:[#allocation3 + $0x3c0] sm:$0xff]
      %v3232 = vld [vmem:[#allocation3 + $0x3c8] sm:$0xff]
      %v3233 = vld [vmem:[#allocation3 + $0x3d0] sm:$0xff]
      %v3234 = vld [vmem:[#allocation3 + $0x3d8] sm:$0xff]
      %v3235 = vld [vmem:[#allocation3 + $0x3e0] sm:$0xff]
      %v3236 = vld [vmem:[#allocation3 + $0x3e8] sm:$0xff]
      %v3237 = vld [vmem:[#allocation3 + $0x3f0] sm:$0xff]
      %v3238 = vld [vmem:[#allocation3 + $0x3f8] sm:$0xff]
      %v3239 = vld [vmem:[#allocation3 + $0x400] sm:$0xff]
      %v3240 = vld [vmem:[#allocation3 + $0x408] sm:$0xff]
      %v3241 = vld [vmem:[#allocation3 + $0x410] sm:$0xff]
      %v3242 = vld [vmem:[#allocation3 + $0x418] sm:$0xff]
      %v3243 = vld [vmem:[#allocation3 + $0x420] sm:$0xff]
      %v3244 = vld [vmem:[#allocation3 + $0x428] sm:$0xff]
      %v3245 = vld [vmem:[#allocation3 + $0x430] sm:$0xff]
      %v3246 = vld [vmem:[#allocation3 + $0x438] sm:$0xff]
      %v3247 = vld [vmem:[#allocation3 + $0x440] sm:$0xff]
      %v3248 = vld [vmem:[#allocation3 + $0x448] sm:$0xff]
      %v3249 = vld [vmem:[#allocation3 + $0x450] sm:$0xff]
      %v3250 = vld [vmem:[#allocation3 + $0x458] sm:$0xff]
      %v3251 = vld [vmem:[#allocation3 + $0x460] sm:$0xff]
      %v3252 = vld [vmem:[#allocation3 + $0x468] sm:$0xff]
      %v3253 = vld [vmem:[#allocation3 + $0x470] sm:$0xff]
      %v3254 = vld [vmem:[#allocation3 + $0x478] sm:$0xff]
      %v3255 = vld [vmem:[%s3] sm:$0xf]
      %v3256 = vld [vmem:[%s3 + $0x4] sm:$0xf]
      %v3257 = vld [vmem:[%s3 + $0x8] sm:$0xf]
      %v3258 = vld [vmem:[%s3 + $0xc] sm:$0xf]
      %v3259 = vld [vmem:[%s3 + $0x10] sm:$0xf]
      %v3260 = vld [vmem:[%s3 + $0x14] sm:$0xf]
      %v3261 = vld [vmem:[%s3 + $0x18] sm:$0xf]
      %v3262 = vld [vmem:[%s3 + $0x1c] sm:$0xf]
      %v3263 = vld [vmem:[%s3 + $0x20] sm:$0xf]
      %v3264 = vld [vmem:[%s3 + $0x24] sm:$0xf]
      %v3265 = vld [vmem:[%s3 + $0x28] sm:$0xf]
      %v3266 = vld [vmem:[%s3 + $0x2c] sm:$0xf]
      %v3267 = vld [vmem:[%s3 + $0x30] sm:$0xf]
      %v3268 = vld [vmem:[%s3 + $0x34] sm:$0xf]
      %v3269 = vld [vmem:[%s3 + $0x38] sm:$0xf]
      %v3270 = vld [vmem:[%s3 + $0x3c] sm:$0xf]
      %v3271 = vld [vmem:[%s3 + $0x40] sm:$0xf]
      %v3272 = vld [vmem:[%s3 + $0x44] sm:$0xf]
      %v3273 = vld [vmem:[%s3 + $0x48] sm:$0xf]
      %v3274 = vld [vmem:[%s3 + $0x4c] sm:$0xf]
      %v3275 = vld [vmem:[%s3 + $0x50] sm:$0xf]
      %v3276 = vld [vmem:[%s3 + $0x54] sm:$0xf]
      %v3277 = vld [vmem:[%s3 + $0x58] sm:$0xf]
      %v3278 = vld [vmem:[%s3 + $0x5c] sm:$0xf]
      %v3279 = vld [vmem:[%s3 + $0x60] sm:$0xf]
      %v3280 = vld [vmem:[%s3 + $0x64] sm:$0xf]
      %v3281 = vld [vmem:[%s3 + $0x68] sm:$0xf]
      %v3282 = vld [vmem:[%s3 + $0x6c] sm:$0xf]
      %v3283 = vld [vmem:[%s3 + $0x70] sm:$0xf]
      %v3284 = vld [vmem:[%s3 + $0x74] sm:$0xf]
      %v3285 = vld [vmem:[%s3 + $0x78] sm:$0xf]
      %v3286 = vld [vmem:[%s3 + $0x7c] sm:$0xf]
      %v3287 = vld [vmem:[%s3 + $0x80] sm:$0xf]
      %v3288 = vld [vmem:[%s3 + $0x84] sm:$0xf]
      %v3289 = vld [vmem:[%s3 + $0x88] sm:$0xf]
      %v3290 = vld [vmem:[%s3 + $0x8c] sm:$0xf]
      %v3291 = vld [vmem:[%s3 + $0x90] sm:$0xf]
      %v3292 = vld [vmem:[%s3 + $0x94] sm:$0xf]
      %v3293 = vld [vmem:[%s3 + $0x98] sm:$0xf]
      %v3294 = vld [vmem:[%s3 + $0x9c] sm:$0xf]
      %v3295 = vld [vmem:[%s3 + $0xa0] sm:$0xf]
      %v3296 = vld [vmem:[%s3 + $0xa4] sm:$0xf]
      %v3297 = vld [vmem:[%s3 + $0xa8] sm:$0xf]
      %v3298 = vld [vmem:[%s3 + $0xac] sm:$0xf]
      %v3299 = vld [vmem:[%s3 + $0xb0] sm:$0xf]
      %v3300 = vld [vmem:[%s3 + $0xb4] sm:$0xf]
      %v3301 = vld [vmem:[%s3 + $0xb8] sm:$0xf]
      %v3302 = vld [vmem:[%s3 + $0xbc] sm:$0xf]
      %v3303 = vld [vmem:[%s3 + $0xc0] sm:$0xf]
      %v3304 = vld [vmem:[%s3 + $0xc4] sm:$0xf]
      %v3305 = vld [vmem:[%s3 + $0xc8] sm:$0xf]
      %v3306 = vld [vmem:[%s3 + $0xcc] sm:$0xf]
      %v3307 = vld [vmem:[%s3 + $0xd0] sm:$0xf]
      %v3308 = vld [vmem:[%s3 + $0xd4] sm:$0xf]
      %v3309 = vld [vmem:[%s3 + $0xd8] sm:$0xf]
      %v3310 = vld [vmem:[%s3 + $0xdc] sm:$0xf]
      %v3311 = vld [vmem:[%s3 + $0xe0] sm:$0xf]
      %v3312 = vld [vmem:[%s3 + $0xe4] sm:$0xf]
      %v3313 = vld [vmem:[%s3 + $0xe8] sm:$0xf]
      %v3314 = vld [vmem:[%s3 + $0xec] sm:$0xf]
      %v3315 = vld [vmem:[%s3 + $0xf0] sm:$0xf]
      %v3316 = vld [vmem:[%s3 + $0xf4] sm:$0xf]
      %v3317 = vld [vmem:[%s3 + $0xf8] sm:$0xf]
      %v3318 = vld [vmem:[%s3 + $0xfc] sm:$0xf]
      %v3319 = vld [vmem:[%s3 + $0x100] sm:$0xf]
      %v3320 = vld [vmem:[%s3 + $0x104] sm:$0xf]
      %v3321 = vld [vmem:[%s3 + $0x108] sm:$0xf]
      %v3322 = vld [vmem:[%s3 + $0x10c] sm:$0xf]
      %v3323 = vld [vmem:[%s3 + $0x110] sm:$0xf]
      %v3324 = vld [vmem:[%s3 + $0x114] sm:$0xf]
      %v3325 = vld [vmem:[%s3 + $0x118] sm:$0xf]
      %v3326 = vld [vmem:[%s3 + $0x11c] sm:$0xf]
      %v3327 = vld [vmem:[%s3 + $0x120] sm:$0xf]
      %v3328 = vld [vmem:[%s3 + $0x124] sm:$0xf]
      %v3329 = vld [vmem:[%s3 + $0x128] sm:$0xf]
      %v3330 = vld [vmem:[%s3 + $0x12c] sm:$0xf]
      %v3331 = vld [vmem:[%s3 + $0x130] sm:$0xf]
      %v3332 = vld [vmem:[%s3 + $0x134] sm:$0xf]
      %v3333 = vld [vmem:[%s3 + $0x138] sm:$0xf]
      %v3334 = vld [vmem:[%s3 + $0x13c] sm:$0xf]
      %v3335 = vld [vmem:[%s3 + $0x140] sm:$0xf]
      %v3336 = vld [vmem:[%s3 + $0x144] sm:$0xf]
      %v3337 = vld [vmem:[%s3 + $0x148] sm:$0xf]
      %v3338 = vld [vmem:[%s3 + $0x14c] sm:$0xf]
      %v3339 = vld [vmem:[%s3 + $0x150] sm:$0xf]
      %v3340 = vld [vmem:[%s3 + $0x154] sm:$0xf]
      %v3341 = vld [vmem:[%s3 + $0x158] sm:$0xf]
      %v3342 = vld [vmem:[%s3 + $0x15c] sm:$0xf]
      %v3343 = vld [vmem:[%s3 + $0x160] sm:$0xf]
      %v3344 = vld [vmem:[%s3 + $0x164] sm:$0xf]
      %v3345 = vld [vmem:[%s3 + $0x168] sm:$0xf]
      %v3346 = vld [vmem:[%s3 + $0x16c] sm:$0xf]
      %v3347 = vld [vmem:[%s3 + $0x170] sm:$0xf]
      %v3348 = vld [vmem:[%s3 + $0x174] sm:$0xf]
      %v3349 = vld [vmem:[%s3 + $0x178] sm:$0xf]
      %v3350 = vld [vmem:[%s3 + $0x17c] sm:$0xf]
      %v3351 = vld [vmem:[%s3 + $0x180] sm:$0xf]
      %v3352 = vld [vmem:[%s3 + $0x184] sm:$0xf]
      %v3353 = vld [vmem:[%s3 + $0x188] sm:$0xf]
      %v3354 = vld [vmem:[%s3 + $0x18c] sm:$0xf]
      %v3355 = vld [vmem:[%s3 + $0x190] sm:$0xf]
      %v3356 = vld [vmem:[%s3 + $0x194] sm:$0xf]
      %v3357 = vld [vmem:[%s3 + $0x198] sm:$0xf]
      %v3358 = vld [vmem:[%s3 + $0x19c] sm:$0xf]
      %v3359 = vld [vmem:[%s3 + $0x1a0] sm:$0xf]
      %v3360 = vld [vmem:[%s3 + $0x1a4] sm:$0xf]
      %v3361 = vld [vmem:[%s3 + $0x1a8] sm:$0xf]
      %v3362 = vld [vmem:[%s3 + $0x1ac] sm:$0xf]
      %v3363 = vld [vmem:[%s3 + $0x1b0] sm:$0xf]
      %v3364 = vld [vmem:[%s3 + $0x1b4] sm:$0xf]
      %v3365 = vld [vmem:[%s3 + $0x1b8] sm:$0xf]
      %v3366 = vld [vmem:[%s3 + $0x1bc] sm:$0xf]
      %v3367 = vld [vmem:[%s3 + $0x1c0] sm:$0xf]
      %v3368 = vld [vmem:[%s3 + $0x1c4] sm:$0xf]
      %v3369 = vld [vmem:[%s3 + $0x1c8] sm:$0xf]
      %v3370 = vld [vmem:[%s3 + $0x1cc] sm:$0xf]
      %v3371 = vld [vmem:[%s3 + $0x1d0] sm:$0xf]
      %v3372 = vld [vmem:[%s3 + $0x1d4] sm:$0xf]
      %v3373 = vld [vmem:[%s3 + $0x1d8] sm:$0xf]
      %v3374 = vld [vmem:[%s3 + $0x1dc] sm:$0xf]
      %v3375 = vld [vmem:[%s3 + $0x1e0] sm:$0xf]
      %v3376 = vld [vmem:[%s3 + $0x1e4] sm:$0xf]
      %v3377 = vld [vmem:[%s3 + $0x1e8] sm:$0xf]
      %v3378 = vld [vmem:[%s3 + $0x1ec] sm:$0xf]
      %v3379 = vld [vmem:[%s3 + $0x1f0] sm:$0xf]
      %v3380 = vld [vmem:[%s3 + $0x1f4] sm:$0xf]
      %v3381 = vld [vmem:[%s3 + $0x1f8] sm:$0xf]
      %v3382 = vld [vmem:[%s3 + $0x1fc] sm:$0xf]
      %v3383 = vld [vmem:[%s3 + $0x200] sm:$0xf]
      %v3384 = vld [vmem:[%s3 + $0x204] sm:$0xf]
      %v3385 = vld [vmem:[%s3 + $0x208] sm:$0xf]
      %v3386 = vld [vmem:[%s3 + $0x20c] sm:$0xf]
      %v3387 = vld [vmem:[%s3 + $0x210] sm:$0xf]
      %v3388 = vld [vmem:[%s3 + $0x214] sm:$0xf]
      %v3389 = vld [vmem:[%s3 + $0x218] sm:$0xf]
      %v3390 = vld [vmem:[%s3 + $0x21c] sm:$0xf]
      %v3391 = vld [vmem:[%s3 + $0x220] sm:$0xf]
      %v3392 = vld [vmem:[%s3 + $0x224] sm:$0xf]
      %v3393 = vld [vmem:[%s3 + $0x228] sm:$0xf]
      %v3394 = vld [vmem:[%s3 + $0x22c] sm:$0xf]
      %v3395 = vld [vmem:[%s3 + $0x230] sm:$0xf]
      %v3396 = vld [vmem:[%s3 + $0x234] sm:$0xf]
      %v3397 = vld [vmem:[%s3 + $0x238] sm:$0xf]
      %v3398 = vld [vmem:[%s3 + $0x23c] sm:$0xf]
      %v3543 = vunpack.c.l.b16 %v3255
      %v3544 = vunpack.c.l.b16 %v3256
      %v3545 = vunpack.c.l.b16 %v3257
      %v3546 = vunpack.c.l.b16 %v3258
      %v3547 = vunpack.c.l.b16 %v3259
      %v3548 = vunpack.c.l.b16 %v3260
      %v3549 = vunpack.c.l.b16 %v3261
      %v3550 = vunpack.c.l.b16 %v3262
      %v3551 = vunpack.c.l.b16 %v3263
      %v3552 = vunpack.c.l.b16 %v3264
      %v3553 = vunpack.c.l.b16 %v3265
      %v3554 = vunpack.c.l.b16 %v3266
      %v3555 = vunpack.c.l.b16 %v3267
      %v3556 = vunpack.c.l.b16 %v3268
      %v3557 = vunpack.c.l.b16 %v3269
      %v3558 = vunpack.c.l.b16 %v3270
      %v3559 = vunpack.c.l.b16 %v3271
      %v3560 = vunpack.c.l.b16 %v3272
      %v3561 = vunpack.c.l.b16 %v3273
      %v3562 = vunpack.c.l.b16 %v3274
      %v3563 = vunpack.c.l.b16 %v3275
      %v3564 = vunpack.c.l.b16 %v3276
      %v3565 = vunpack.c.l.b16 %v3277
      %v3566 = vunpack.c.l.b16 %v3278
      %v3567 = vunpack.c.l.b16 %v3279
      %v3568 = vunpack.c.l.b16 %v3280
      %v3569 = vunpack.c.l.b16 %v3281
      %v3570 = vunpack.c.l.b16 %v3282
      %v3571 = vunpack.c.l.b16 %v3283
      %v3572 = vunpack.c.l.b16 %v3284
      %v3573 = vunpack.c.l.b16 %v3285
      %v3574 = vunpack.c.l.b16 %v3286
      %v3575 = vunpack.c.l.b16 %v3287
      %v3576 = vunpack.c.l.b16 %v3288
      %v3577 = vunpack.c.l.b16 %v3289
      %v3578 = vunpack.c.l.b16 %v3290
      %v3579 = vunpack.c.l.b16 %v3291
      %v3580 = vunpack.c.l.b16 %v3292
      %v3581 = vunpack.c.l.b16 %v3293
      %v3582 = vunpack.c.l.b16 %v3294
      %v3583 = vunpack.c.l.b16 %v3295
      %v3584 = vunpack.c.l.b16 %v3296
      %v3585 = vunpack.c.l.b16 %v3297
      %v3586 = vunpack.c.l.b16 %v3298
      %v3587 = vunpack.c.l.b16 %v3299
      %v3588 = vunpack.c.l.b16 %v3300
      %v3589 = vunpack.c.l.b16 %v3301
      %v3590 = vunpack.c.l.b16 %v3302
      %v3591 = vunpack.c.l.b16 %v3303
      %v3592 = vunpack.c.l.b16 %v3304
      %v3593 = vunpack.c.l.b16 %v3305
      %v3594 = vunpack.c.l.b16 %v3306
      %v3595 = vunpack.c.l.b16 %v3307
      %v3596 = vunpack.c.l.b16 %v3308
      %v3597 = vunpack.c.l.b16 %v3309
      %v3598 = vunpack.c.l.b16 %v3310
      %v3599 = vunpack.c.l.b16 %v3311
      %v3600 = vunpack.c.l.b16 %v3312
      %v3601 = vunpack.c.l.b16 %v3313
      %v3602 = vunpack.c.l.b16 %v3314
      %v3603 = vunpack.c.l.b16 %v3315
      %v3604 = vunpack.c.l.b16 %v3316
      %v3605 = vunpack.c.l.b16 %v3317
      %v3606 = vunpack.c.l.b16 %v3318
      %v3607 = vunpack.c.l.b16 %v3319
      %v3608 = vunpack.c.l.b16 %v3320
      %v3609 = vunpack.c.l.b16 %v3321
      %v3610 = vunpack.c.l.b16 %v3322
      %v3611 = vunpack.c.l.b16 %v3323
      %v3612 = vunpack.c.l.b16 %v3324
      %v3613 = vunpack.c.l.b16 %v3325
      %v3614 = vunpack.c.l.b16 %v3326
      %v3615 = vunpack.c.l.b16 %v3327
      %v3616 = vunpack.c.l.b16 %v3328
      %v3617 = vunpack.c.l.b16 %v3329
      %v3618 = vunpack.c.l.b16 %v3330
      %v3619 = vunpack.c.l.b16 %v3331
      %v3620 = vunpack.c.l.b16 %v3332
      %v3621 = vunpack.c.l.b16 %v3333
      %v3622 = vunpack.c.l.b16 %v3334
      %v3623 = vunpack.c.l.b16 %v3335
      %v3624 = vunpack.c.l.b16 %v3336
      %v3625 = vunpack.c.l.b16 %v3337
      %v3626 = vunpack.c.l.b16 %v3338
      %v3627 = vunpack.c.l.b16 %v3339
      %v3628 = vunpack.c.l.b16 %v3340
      %v3629 = vunpack.c.l.b16 %v3341
      %v3630 = vunpack.c.l.b16 %v3342
      %v3631 = vunpack.c.l.b16 %v3343
      %v3632 = vunpack.c.l.b16 %v3344
      %v3633 = vunpack.c.l.b16 %v3345
      %v3634 = vunpack.c.l.b16 %v3346
      %v3635 = vunpack.c.l.b16 %v3347
      %v3636 = vunpack.c.l.b16 %v3348
      %v3637 = vunpack.c.l.b16 %v3349
      %v3638 = vunpack.c.l.b16 %v3350
      %v3639 = vunpack.c.l.b16 %v3351
      %v3640 = vunpack.c.l.b16 %v3352
      %v3641 = vunpack.c.l.b16 %v3353
      %v3642 = vunpack.c.l.b16 %v3354
      %v3643 = vunpack.c.l.b16 %v3355
      %v3644 = vunpack.c.l.b16 %v3356
      %v3645 = vunpack.c.l.b16 %v3357
      %v3646 = vunpack.c.l.b16 %v3358
      %v3647 = vunpack.c.l.b16 %v3359
      %v3648 = vunpack.c.l.b16 %v3360
      %v3649 = vunpack.c.l.b16 %v3361
      %v3650 = vunpack.c.l.b16 %v3362
      %v3651 = vunpack.c.l.b16 %v3363
      %v3652 = vunpack.c.l.b16 %v3364
      %v3653 = vunpack.c.l.b16 %v3365
      %v3654 = vunpack.c.l.b16 %v3366
      %v3655 = vunpack.c.l.b16 %v3367
      %v3656 = vunpack.c.l.b16 %v3368
      %v3657 = vunpack.c.l.b16 %v3369
      %v3658 = vunpack.c.l.b16 %v3370
      %v3659 = vunpack.c.l.b16 %v3371
      %v3660 = vunpack.c.l.b16 %v3372
      %v3661 = vunpack.c.l.b16 %v3373
      %v3662 = vunpack.c.l.b16 %v3374
      %v3663 = vunpack.c.l.b16 %v3375
      %v3664 = vunpack.c.l.b16 %v3376
      %v3665 = vunpack.c.l.b16 %v3377
      %v3666 = vunpack.c.l.b16 %v3378
      %v3667 = vunpack.c.l.b16 %v3379
      %v3668 = vunpack.c.l.b16 %v3380
      %v3669 = vunpack.c.l.b16 %v3381
      %v3670 = vunpack.c.l.b16 %v3382
      %v3671 = vunpack.c.l.b16 %v3383
      %v3672 = vunpack.c.l.b16 %v3384
      %v3673 = vunpack.c.l.b16 %v3385
      %v3674 = vunpack.c.l.b16 %v3386
      %v3675 = vunpack.c.l.b16 %v3387
      %v3676 = vunpack.c.l.b16 %v3388
      %v3677 = vunpack.c.l.b16 %v3389
      %v3678 = vunpack.c.l.b16 %v3390
      %v3679 = vunpack.c.l.b16 %v3391
      %v3680 = vunpack.c.l.b16 %v3392
      %v3681 = vunpack.c.l.b16 %v3393
      %v3682 = vunpack.c.l.b16 %v3394
      %v3683 = vunpack.c.l.b16 %v3395
      %v3684 = vunpack.c.l.b16 %v3396
      %v3685 = vunpack.c.l.b16 %v3397
      %v3686 = vunpack.c.l.b16 %v3398
      %v3687 = vpack.c.b16 %v3544, %v3543
      %v3688 = vpack.c.b16 %v3546, %v3545
      %v3689 = vpack.c.b16 %v3548, %v3547
      %v3690 = vpack.c.b16 %v3550, %v3549
      %v3691 = vpack.c.b16 %v3552, %v3551
      %v3692 = vpack.c.b16 %v3554, %v3553
      %v3693 = vpack.c.b16 %v3556, %v3555
      %v3694 = vpack.c.b16 %v3558, %v3557
      %v3695 = vpack.c.b16 %v3560, %v3559
      %v3696 = vpack.c.b16 %v3562, %v3561
      %v3697 = vpack.c.b16 %v3564, %v3563
      %v3698 = vpack.c.b16 %v3566, %v3565
      %v3699 = vpack.c.b16 %v3568, %v3567
      %v3700 = vpack.c.b16 %v3570, %v3569
      %v3701 = vpack.c.b16 %v3572, %v3571
      %v3702 = vpack.c.b16 %v3574, %v3573
      %v3703 = vpack.c.b16 %v3576, %v3575
      %v3704 = vpack.c.b16 %v3578, %v3577
      %v3705 = vpack.c.b16 %v3580, %v3579
      %v3706 = vpack.c.b16 %v3582, %v3581
      %v3707 = vpack.c.b16 %v3584, %v3583
      %v3708 = vpack.c.b16 %v3586, %v3585
      %v3709 = vpack.c.b16 %v3588, %v3587
      %v3710 = vpack.c.b16 %v3590, %v3589
      %v3711 = vpack.c.b16 %v3592, %v3591
      %v3712 = vpack.c.b16 %v3594, %v3593
      %v3713 = vpack.c.b16 %v3596, %v3595
      %v3714 = vpack.c.b16 %v3598, %v3597
      %v3715 = vpack.c.b16 %v3600, %v3599
      %v3716 = vpack.c.b16 %v3602, %v3601
      %v3717 = vpack.c.b16 %v3604, %v3603
      %v3718 = vpack.c.b16 %v3606, %v3605
      %v3719 = vpack.c.b16 %v3608, %v3607
      %v3720 = vpack.c.b16 %v3610, %v3609
      %v3721 = vpack.c.b16 %v3612, %v3611
      %v3722 = vpack.c.b16 %v3614, %v3613
      %v3723 = vpack.c.b16 %v3616, %v3615
      %v3724 = vpack.c.b16 %v3618, %v3617
      %v3725 = vpack.c.b16 %v3620, %v3619
      %v3726 = vpack.c.b16 %v3622, %v3621
      %v3727 = vpack.c.b16 %v3624, %v3623
      %v3728 = vpack.c.b16 %v3626, %v3625
      %v3729 = vpack.c.b16 %v3628, %v3627
      %v3730 = vpack.c.b16 %v3630, %v3629
      %v3731 = vpack.c.b16 %v3632, %v3631
      %v3732 = vpack.c.b16 %v3634, %v3633
      %v3733 = vpack.c.b16 %v3636, %v3635
      %v3734 = vpack.c.b16 %v3638, %v3637
      %v3735 = vpack.c.b16 %v3640, %v3639
      %v3736 = vpack.c.b16 %v3642, %v3641
      %v3737 = vpack.c.b16 %v3644, %v3643
      %v3738 = vpack.c.b16 %v3646, %v3645
      %v3739 = vpack.c.b16 %v3648, %v3647
      %v3740 = vpack.c.b16 %v3650, %v3649
      %v3741 = vpack.c.b16 %v3652, %v3651
      %v3742 = vpack.c.b16 %v3654, %v3653
      %v3743 = vpack.c.b16 %v3656, %v3655
      %v3744 = vpack.c.b16 %v3658, %v3657
      %v3745 = vpack.c.b16 %v3660, %v3659
      %v3746 = vpack.c.b16 %v3662, %v3661
      %v3747 = vpack.c.b16 %v3664, %v3663
      %v3748 = vpack.c.b16 %v3666, %v3665
      %v3749 = vpack.c.b16 %v3668, %v3667
      %v3750 = vpack.c.b16 %v3670, %v3669
      %v3751 = vpack.c.b16 %v3672, %v3671
      %v3752 = vpack.c.b16 %v3674, %v3673
      %v3753 = vpack.c.b16 %v3676, %v3675
      %v3754 = vpack.c.b16 %v3678, %v3677
      %v3755 = vpack.c.b16 %v3680, %v3679
      %v3756 = vpack.c.b16 %v3682, %v3681
      %v3757 = vpack.c.b16 %v3684, %v3683
      %v3758 = vpack.c.b16 %v3686, %v3685
      %3831 = vmatprep.subr.bf16.mxu0 0
      %3832 = vmatpush1.bf16.msra.mxu0 %v3687
      %3833 = vmatprep.subr.bf16.mxu0 0
      %3834 = vmatpush1.bf16.msra.mxu0 %v3688
      %3835 = vmatprep.subr.bf16.mxu0 0
      %3836 = vmatpush1.bf16.msra.mxu0 %v3689
      %3837 = vmatprep.subr.bf16.mxu0 0
      %3838 = vmatpush1.bf16.msra.mxu0 %v3690
      %3839 = vmatprep.subr.bf16.mxu0 0
      %3840 = vmatpush1.bf16.msra.mxu0 %v3691
      %3841 = vmatprep.subr.bf16.mxu0 0
      %3842 = vmatpush1.bf16.msra.mxu0 %v3692
      %3843 = vmatprep.subr.bf16.mxu0 0
      %3844 = vmatpush1.bf16.msra.mxu0 %v3693
      %3845 = vmatprep.subr.bf16.mxu0 0
      %3846 = vmatpush1.bf16.msra.mxu0 %v3694
      %3847 = vmatprep.subr.bf16.mxu0 0
      %3848 = vmatpush1.bf16.msra.mxu0 %v3695
      %3849 = vmatprep.subr.bf16.mxu0 0
      %3850 = vmatpush1.bf16.msra.mxu0 %v3696
      %3851 = vmatprep.subr.bf16.mxu0 0
      %3852 = vmatpush1.bf16.msra.mxu0 %v3697
      %3853 = vmatprep.subr.bf16.mxu0 0
      %3854 = vmatpush1.bf16.msra.mxu0 %v3698
      %3855 = vmatprep.subr.bf16.mxu0 0
      %3856 = vmatpush1.bf16.msra.mxu0 %v3699
      %3857 = vmatprep.subr.bf16.mxu0 0
      %3858 = vmatpush1.bf16.msra.mxu0 %v3700
      %3859 = vmatprep.subr.bf16.mxu0 0
      %3860 = vmatpush1.bf16.msra.mxu0 %v3701
      %3861 = vmatprep.subr.bf16.mxu0 0
      %3862 = vmatpush1.bf16.msra.mxu0 %v3702
      %3863 = vmatprep.mubr.bf16.mxu0 %v3112
      %3864 = vmatmul.mubr.bf16.gmra.mrb[0].mxu0 %v3111
      %v3865 = vpop.f32.mrb[0].mxu0
      %v3866 = vadd.f32 0.0, %v3865
      %v3867 = vpop.f32.mrb[0].mxu0
      %v3868 = vpop.f32.mrb[0].mxu0
      %v3869 = vadd.f32 0.0, %v3868
      %v3870 = vpop.f32.mrb[0].mxu0
      %3871 = vmatprep.mubr.bf16.mxu0 %v3121
      %3872 = vmatmul.mubr.bf16.gmra.mrb[0].mxu0 %v3120
      %v3873 = vpop.f32.mrb[0].mxu0
      %v3874 = vadd.f32 0.0, %v3873
      %v3875 = vpop.f32.mrb[0].mxu0
      %v3876 = vpop.f32.mrb[0].mxu0
      %v3877 = vadd.f32 0.0, %v3876
      %v3878 = vpop.f32.mrb[0].mxu0
      %3879 = vmatprep.mubr.bf16.mxu0 %v3130
      %3880 = vmatmul.mubr.bf16.gmra.mrb[0].mxu0 %v3129
      %v3881 = vpop.f32.mrb[0].mxu0
      %v3882 = vadd.f32 0.0, %v3881
      %v3883 = vpop.f32.mrb[0].mxu0
      %v3884 = vpop.f32.mrb[0].mxu0
      %v3885 = vadd.f32 0.0, %v3884
      %v3886 = vpop.f32.mrb[0].mxu0
      %3887 = vmatprep.mubr.bf16.mxu0 %v3139
      %3888 = vmatmul.mubr.bf16.gmra.mrb[0].mxu0 %v3138
      %v3889 = vpop.f32.mrb[0].mxu0
      %v3890 = vadd.f32 0.0, %v3889
      %v3891 = vpop.f32.mrb[0].mxu0
      %v3892 = vpop.f32.mrb[0].mxu0
      %v3893 = vadd.f32 0.0, %v3892
      %v3894 = vpop.f32.mrb[0].mxu0
      %3895 = vmatprep.mubr.bf16.mxu0 %v3148
      %3896 = vmatmul.mubr.bf16.gmra.mrb[0].mxu0 %v3147
      %v3897 = vpop.f32.mrb[0].mxu0
      %v3898 = vadd.f32 0.0, %v3897
      %v3899 = vpop.f32.mrb[0].mxu0
      %v3900 = vpop.f32.mrb[0].mxu0
      %v3901 = vadd.f32 0.0, %v3900
      %v3902 = vpop.f32.mrb[0].mxu0
      %3903 = vmatprep.mubr.bf16.mxu0 %v3157
      %3904 = vmatmul.mubr.bf16.gmra.mrb[0].mxu0 %v3156
      %v3905 = vpop.f32.mrb[0].mxu0
      %v3906 = vadd.f32 0.0, %v3905
      %v3907 = vpop.f32.mrb[0].mxu0
      %v3908 = vpop.f32.mrb[0].mxu0
      %v3909 = vadd.f32 0.0, %v3908
      %v3910 = vpop.f32.mrb[0].mxu0
      %3911 = vmatprep.mubr.bf16.mxu0 %v3166
      %3912 = vmatmul.mubr.bf16.gmra.mrb[0].mxu0 %v3165
      %v3913 = vpop.f32.mrb[0].mxu0
      %v3914 = vadd.f32 0.0, %v3913
      %v3915 = vpop.f32.mrb[0].mxu0
      %v3916 = vpop.f32.mrb[0].mxu0
      %v3917 = vadd.f32 0.0, %v3916
      %v3918 = vpop.f32.mrb[0].mxu0
      %3919 = vmatprep.mubr.bf16.mxu0 %v3175
      %3920 = vmatmul.mubr.bf16.gmra.mrb[0].mxu0 %v3174
      %v3921 = vpop.f32.mrb[0].mxu0
      %v3922 = vadd.f32 0.0, %v3921
      %v3923 = vpop.f32.mrb[0].mxu0
      %v3924 = vpop.f32.mrb[0].mxu0
      %v3925 = vadd.f32 0.0, %v3924
      %v3926 = vpop.f32.mrb[0].mxu0
      %3927 = vmatprep.mubr.bf16.mxu0 %v3184
      %3928 = vmatmul.mubr.bf16.gmra.mrb[0].mxu0 %v3183
      %v3929 = vpop.f32.mrb[0].mxu0
      %v3930 = vadd.f32 0.0, %v3929
      %v3931 = vpop.f32.mrb[0].mxu0
      %v3932 = vpop.f32.mrb[0].mxu0
      %v3933 = vadd.f32 0.0, %v3932
      %v3934 = vpop.f32.mrb[0].mxu0
      %3935 = vmatprep.mubr.bf16.mxu0 %v3193
      %3936 = vmatmul.mubr.bf16.gmra.mrb[0].mxu0 %v3192
      %v3937 = vpop.f32.mrb[0].mxu0
      %v3938 = vadd.f32 0.0, %v3937
      %v3939 = vpop.f32.mrb[0].mxu0
      %v3940 = vpop.f32.mrb[0].mxu0
      %v3941 = vadd.f32 0.0, %v3940
      %v3942 = vpop.f32.mrb[0].mxu0
      %3943 = vmatprep.mubr.bf16.mxu0 %v3202
      %3944 = vmatmul.mubr.bf16.gmra.mrb[0].mxu0 %v3201
      %v3945 = vpop.f32.mrb[0].mxu0
      %v3946 = vadd.f32 0.0, %v3945
      %v3947 = vpop.f32.mrb[0].mxu0
      %v3948 = vpop.f32.mrb[0].mxu0
      %v3949 = vadd.f32 0.0, %v3948
      %v3950 = vpop.f32.mrb[0].mxu0
      %3951 = vmatprep.mubr.bf16.mxu0 %v3211
      %3952 = vmatmul.mubr.bf16.gmra.mrb[0].mxu0 %v3210
      %v3953 = vpop.f32.mrb[0].mxu0
      %v3954 = vadd.f32 0.0, %v3953
      %v3955 = vpop.f32.mrb[0].mxu0
      %v3956 = vpop.f32.mrb[0].mxu0
      %v3957 = vadd.f32 0.0, %v3956
      %v3958 = vpop.f32.mrb[0].mxu0
      %3959 = vmatprep.mubr.bf16.mxu0 %v3220
      %3960 = vmatmul.mubr.bf16.gmra.mrb[0].mxu0 %v3219
      %v3961 = vpop.f32.mrb[0].mxu0
      %v3962 = vadd.f32 0.0, %v3961
      %v3963 = vpop.f32.mrb[0].mxu0
      %v3964 = vpop.f32.mrb[0].mxu0
      %v3965 = vadd.f32 0.0, %v3964
      %v3966 = vpop.f32.mrb[0].mxu0
      %3967 = vmatprep.mubr.bf16.mxu0 %v3229
      %3968 = vmatmul.mubr.bf16.gmra.mrb[0].mxu0 %v3228
      %v3969 = vpop.f32.mrb[0].mxu0
      %v3970 = vadd.f32 0.0, %v3969
      %v3971 = vpop.f32.mrb[0].mxu0
      %v3972 = vpop.f32.mrb[0].mxu0
      %v3973 = vadd.f32 0.0, %v3972
      %v3974 = vpop.f32.mrb[0].mxu0
      %3975 = vmatprep.mubr.bf16.mxu0 %v3238
      %3976 = vmatmul.mubr.bf16.gmra.mrb[0].mxu0 %v3237
      %v3977 = vpop.f32.mrb[0].mxu0
      %v3978 = vadd.f32 0.0, %v3977
      %v3979 = vpop.f32.mrb[0].mxu0
      %v3980 = vpop.f32.mrb[0].mxu0
      %v3981 = vadd.f32 0.0, %v3980
      %v3982 = vpop.f32.mrb[0].mxu0
      %3983 = vmatprep.mubr.bf16.mxu0 %v3247
      %3984 = vmatmul.mubr.bf16.gmra.mrb[0].mxu0 %v3246
      %v3985 = vpop.f32.mrb[0].mxu0
      %v3986 = vadd.f32 0.0, %v3985
      %v3987 = vpop.f32.mrb[0].mxu0
      %v3988 = vpop.f32.mrb[0].mxu0
      %v3989 = vadd.f32 0.0, %v3988
      %v3990 = vpop.f32.mrb[0].mxu0
      %3991 = vdwg.mxu0
      %3992 = vmatprep.subr.bf16.mxu0 0
      %3993 = vmatpush1.bf16.msra.mxu0 %v3703
      %3994 = vmatprep.subr.bf16.mxu0 0
      %3995 = vmatpush1.bf16.msra.mxu0 %v3704
      %3996 = vmatprep.subr.bf16.mxu0 0
      %3997 = vmatpush1.bf16.msra.mxu0 %v3705
      %3998 = vmatprep.subr.bf16.mxu0 0
      %3999 = vmatpush1.bf16.msra.mxu0 %v3706
      %4000 = vmatprep.subr.bf16.mxu0 0
      %4001 = vmatpush1.bf16.msra.mxu0 %v3707
      %4002 = vmatprep.subr.bf16.mxu0 0
      %4003 = vmatpush1.bf16.msra.mxu0 %v3708
      %4004 = vmatprep.subr.bf16.mxu0 0
      %4005 = vmatpush1.bf16.msra.mxu0 %v3709
      %4006 = vmatprep.subr.bf16.mxu0 0
      %4007 = vmatpush1.bf16.msra.mxu0 %v3710
      %4008 = vmatprep.subr.bf16.mxu0 0
      %4009 = vmatpush1.bf16.msra.mxu0 %v3711
      %4010 = vmatprep.subr.bf16.mxu0 0
      %4011 = vmatpush1.bf16.msra.mxu0 %v3712
      %4012 = vmatprep.subr.bf16.mxu0 0
      %4013 = vmatpush1.bf16.msra.mxu0 %v3713
      %4014 = vmatprep.subr.bf16.mxu0 0
      %4015 = vmatpush1.bf16.msra.mxu0 %v3714
      %4016 = vmatprep.subr.bf16.mxu0 0
      %4017 = vmatpush1.bf16.msra.mxu0 %v3715
      %4018 = vmatprep.subr.bf16.mxu0 0
      %4019 = vmatpush1.bf16.msra.mxu0 %v3716
      %4020 = vmatprep.subr.bf16.mxu0 0
      %4021 = vmatpush1.bf16.msra.mxu0 %v3717
      %4022 = vmatprep.subr.bf16.mxu0 0
      %4023 = vmatpush1.bf16.msra.mxu0 %v3718
      %4024 = vmatprep.mubr.bf16.mxu0 %v3114
      %4025 = vmatmul.mubr.bf16.gmra.mrb[0].mxu0 %v3113
      %v4026 = vpop.f32.mrb[0].mxu0
      %v4027 = vadd.f32 %v3866, %v4026
      %v4028 = vpop.f32.mrb[0].mxu0
      %v4029 = vpop.f32.mrb[0].mxu0
      %v4030 = vadd.f32 %v3869, %v4029
      %v4031 = vpop.f32.mrb[0].mxu0
      %4032 = vmatprep.mubr.bf16.mxu0 %v3123
      %4033 = vmatmul.mubr.bf16.gmra.mrb[0].mxu0 %v3122
      %v4034 = vpop.f32.mrb[0].mxu0
      %v4035 = vadd.f32 %v3874, %v4034
      %v4036 = vpop.f32.mrb[0].mxu0
      %v4037 = vpop.f32.mrb[0].mxu0
      %v4038 = vadd.f32 %v3877, %v4037
      %v4039 = vpop.f32.mrb[0].mxu0
      %4040 = vmatprep.mubr.bf16.mxu0 %v3132
      %4041 = vmatmul.mubr.bf16.gmra.mrb[0].mxu0 %v3131
      %v4042 = vpop.f32.mrb[0].mxu0
      %v4043 = vadd.f32 %v3882, %v4042
      %v4044 = vpop.f32.mrb[0].mxu0
      %v4045 = vpop.f32.mrb[0].mxu0
      %v4046 = vadd.f32 %v3885, %v4045
      %v4047 = vpop.f32.mrb[0].mxu0
      %4048 = vmatprep.mubr.bf16.mxu0 %v3141
      %4049 = vmatmul.mubr.bf16.gmra.mrb[0].mxu0 %v3140
      %v4050 = vpop.f32.mrb[0].mxu0
      %v4051 = vadd.f32 %v3890, %v4050
      %v4052 = vpop.f32.mrb[0].mxu0
      %v4053 = vpop.f32.mrb[0].mxu0
      %v4054 = vadd.f32 %v3893, %v4053
      %v4055 = vpop.f32.mrb[0].mxu0
      %4056 = vmatprep.mubr.bf16.mxu0 %v3150
      %4057 = vmatmul.mubr.bf16.gmra.mrb[0].mxu0 %v3149
      %v4058 = vpop.f32.mrb[0].mxu0
      %v4059 = vadd.f32 %v3898, %v4058
      %v4060 = vpop.f32.mrb[0].mxu0
      %v4061 = vpop.f32.mrb[0].mxu0
      %v4062 = vadd.f32 %v3901, %v4061
      %v4063 = vpop.f32.mrb[0].mxu0
      %4064 = vmatprep.mubr.bf16.mxu0 %v3159
      %4065 = vmatmul.mubr.bf16.gmra.mrb[0].mxu0 %v3158
      %v4066 = vpop.f32.mrb[0].mxu0
      %v4067 = vadd.f32 %v3906, %v4066
      %v4068 = vpop.f32.mrb[0].mxu0
      %v4069 = vpop.f32.mrb[0].mxu0
      %v4070 = vadd.f32 %v3909, %v4069
      %v4071 = vpop.f32.mrb[0].mxu0
      %4072 = vmatprep.mubr.bf16.mxu0 %v3168
      %4073 = vmatmul.mubr.bf16.gmra.mrb[0].mxu0 %v3167
      %v4074 = vpop.f32.mrb[0].mxu0
      %v4075 = vadd.f32 %v3914, %v4074
      %v4076 = vpop.f32.mrb[0].mxu0
      %v4077 = vpop.f32.mrb[0].mxu0
      %v4078 = vadd.f32 %v3917, %v4077
      %v4079 = vpop.f32.mrb[0].mxu0
      %4080 = vmatprep.mubr.bf16.mxu0 %v3177
      %4081 = vmatmul.mubr.bf16.gmra.mrb[0].mxu0 %v3176
      %v4082 = vpop.f32.mrb[0].mxu0
      %v4083 = vadd.f32 %v3922, %v4082
      %v4084 = vpop.f32.mrb[0].mxu0
      %v4085 = vpop.f32.mrb[0].mxu0
      %v4086 = vadd.f32 %v3925, %v4085
      %v4087 = vpop.f32.mrb[0].mxu0
      %4088 = vmatprep.mubr.bf16.mxu0 %v3186
      %4089 = vmatmul.mubr.bf16.gmra.mrb[0].mxu0 %v3185
      %v4090 = vpop.f32.mrb[0].mxu0
      %v4091 = vadd.f32 %v3930, %v4090
      %v4092 = vpop.f32.mrb[0].mxu0
      %v4093 = vpop.f32.mrb[0].mxu0
      %v4094 = vadd.f32 %v3933, %v4093
      %v4095 = vpop.f32.mrb[0].mxu0
      %4096 = vmatprep.mubr.bf16.mxu0 %v3195
      %4097 = vmatmul.mubr.bf16.gmra.mrb[0].mxu0 %v3194
      %v4098 = vpop.f32.mrb[0].mxu0
      %v4099 = vadd.f32 %v3938, %v4098
      %v4100 = vpop.f32.mrb[0].mxu0
      %v4101 = vpop.f32.mrb[0].mxu0
      %v4102 = vadd.f32 %v3941, %v4101
      %v4103 = vpop.f32.mrb[0].mxu0
      %4104 = vmatprep.mubr.bf16.mxu0 %v3204
      %4105 = vmatmul.mubr.bf16.gmra.mrb[0].mxu0 %v3203
      %v4106 = vpop.f32.mrb[0].mxu0
      %v4107 = vadd.f32 %v3946, %v4106
      %v4108 = vpop.f32.mrb[0].mxu0
      %v4109 = vpop.f32.mrb[0].mxu0
      %v4110 = vadd.f32 %v3949, %v4109
      %v4111 = vpop.f32.mrb[0].mxu0
      %4112 = vmatprep.mubr.bf16.mxu0 %v3213
      %4113 = vmatmul.mubr.bf16.gmra.mrb[0].mxu0 %v3212
      %v4114 = vpop.f32.mrb[0].mxu0
      %v4115 = vadd.f32 %v3954, %v4114
      %v4116 = vpop.f32.mrb[0].mxu0
      %v4117 = vpop.f32.mrb[0].mxu0
      %v4118 = vadd.f32 %v3957, %v4117
      %v4119 = vpop.f32.mrb[0].mxu0
      %4120 = vmatprep.mubr.bf16.mxu0 %v3222
      %4121 = vmatmul.mubr.bf16.gmra.mrb[0].mxu0 %v3221
      %v4122 = vpop.f32.mrb[0].mxu0
      %v4123 = vadd.f32 %v3962, %v4122
      %v4124 = vpop.f32.mrb[0].mxu0
      %v4125 = vpop.f32.mrb[0].mxu0
      %v4126 = vadd.f32 %v3965, %v4125
      %v4127 = vpop.f32.mrb[0].mxu0
      %4128 = vmatprep.mubr.bf16.mxu0 %v3231
      %4129 = vmatmul.mubr.bf16.gmra.mrb[0].mxu0 %v3230
      %v4130 = vpop.f32.mrb[0].mxu0
      %v4131 = vadd.f32 %v3970, %v4130
      %v4132 = vpop.f32.mrb[0].mxu0
      %v4133 = vpop.f32.mrb[0].mxu0
      %v4134 = vadd.f32 %v3973, %v4133
      %v4135 = vpop.f32.mrb[0].mxu0
      %4136 = vmatprep.mubr.bf16.mxu0 %v3240
      %4137 = vmatmul.mubr.bf16.gmra.mrb[0].mxu0 %v3239
      %v4138 = vpop.f32.mrb[0].mxu0
      %v4139 = vadd.f32 %v3978, %v4138
      %v4140 = vpop.f32.mrb[0].mxu0
      %v4141 = vpop.f32.mrb[0].mxu0
      %v4142 = vadd.f32 %v3981, %v4141
      %v4143 = vpop.f32.mrb[0].mxu0
      %4144 = vmatprep.mubr.bf16.mxu0 %v3249
      %4145 = vmatmul.mubr.bf16.gmra.mrb[0].mxu0 %v3248
      %v4146 = vpop.f32.mrb[0].mxu0
      %v4147 = vadd.f32 %v3986, %v4146
      %v4148 = vpop.f32.mrb[0].mxu0
      %v4149 = vpop.f32.mrb[0].mxu0
      %v4150 = vadd.f32 %v3989, %v4149
      %v4151 = vpop.f32.mrb[0].mxu0
      %4152 = vdwg.mxu0
      %4153 = vmatprep.subr.bf16.mxu0 0
      %4154 = vmatpush1.bf16.msra.mxu0 %v3719
      %4155 = vmatprep.subr.bf16.mxu0 0
      %4156 = vmatpush1.bf16.msra.mxu0 %v3720
      %4157 = vmatprep.subr.bf16.mxu0 0
      %4158 = vmatpush1.bf16.msra.mxu0 %v3721
      %4159 = vmatprep.subr.bf16.mxu0 0
      %4160 = vmatpush1.bf16.msra.mxu0 %v3722
      %4161 = vmatprep.subr.bf16.mxu0 0
      %4162 = vmatpush1.bf16.msra.mxu0 %v3723
      %4163 = vmatprep.subr.bf16.mxu0 0
      %4164 = vmatpush1.bf16.msra.mxu0 %v3724
      %4165 = vmatprep.subr.bf16.mxu0 0
      %4166 = vmatpush1.bf16.msra.mxu0 %v3725
      %4167 = vmatprep.subr.bf16.mxu0 0
      %4168 = vmatpush1.bf16.msra.mxu0 %v3726
      %4169 = vmatprep.subr.bf16.mxu0 0
      %4170 = vmatpush1.bf16.msra.mxu0 %v3727
      %4171 = vmatprep.subr.bf16.mxu0 0
      %4172 = vmatpush1.bf16.msra.mxu0 %v3728
      %4173 = vmatprep.subr.bf16.mxu0 0
      %4174 = vmatpush1.bf16.msra.mxu0 %v3729
      %4175 = vmatprep.subr.bf16.mxu0 0
      %4176 = vmatpush1.bf16.msra.mxu0 %v3730
      %4177 = vmatprep.subr.bf16.mxu0 0
      %4178 = vmatpush1.bf16.msra.mxu0 %v3731
      %4179 = vmatprep.subr.bf16.mxu0 0
      %4180 = vmatpush1.bf16.msra.mxu0 %v3732
      %4181 = vmatprep.subr.bf16.mxu0 0
      %4182 = vmatpush1.bf16.msra.mxu0 %v3733
      %4183 = vmatprep.subr.bf16.mxu0 0
      %4184 = vmatpush1.bf16.msra.mxu0 %v3734
      %4185 = vmatprep.mubr.bf16.mxu0 %v3116
      %4186 = vmatmul.mubr.bf16.gmra.mrb[0].mxu0 %v3115
      %v4187 = vpop.f32.mrb[0].mxu0
      %v4188 = vadd.f32 %v4027, %v4187
      %v4189 = vpop.f32.mrb[0].mxu0
      %v4190 = vpop.f32.mrb[0].mxu0
      %v4191 = vadd.f32 %v4030, %v4190
      %v4192 = vpop.f32.mrb[0].mxu0
      %4193 = vmatprep.mubr.bf16.mxu0 %v3125
      %4194 = vmatmul.mubr.bf16.gmra.mrb[0].mxu0 %v3124
      %v4195 = vpop.f32.mrb[0].mxu0
      %v4196 = vadd.f32 %v4035, %v4195
      %v4197 = vpop.f32.mrb[0].mxu0
      %v4198 = vpop.f32.mrb[0].mxu0
      %v4199 = vadd.f32 %v4038, %v4198
      %v4200 = vpop.f32.mrb[0].mxu0
      %4201 = vmatprep.mubr.bf16.mxu0 %v3134
      %4202 = vmatmul.mubr.bf16.gmra.mrb[0].mxu0 %v3133
      %v4203 = vpop.f32.mrb[0].mxu0
      %v4204 = vadd.f32 %v4043, %v4203
      %v4205 = vpop.f32.mrb[0].mxu0
      %v4206 = vpop.f32.mrb[0].mxu0
      %v4207 = vadd.f32 %v4046, %v4206
      %v4208 = vpop.f32.mrb[0].mxu0
      %4209 = vmatprep.mubr.bf16.mxu0 %v3143
      %4210 = vmatmul.mubr.bf16.gmra.mrb[0].mxu0 %v3142
      %v4211 = vpop.f32.mrb[0].mxu0
      %v4212 = vadd.f32 %v4051, %v4211
      %v4213 = vpop.f32.mrb[0].mxu0
      %v4214 = vpop.f32.mrb[0].mxu0
      %v4215 = vadd.f32 %v4054, %v4214
      %v4216 = vpop.f32.mrb[0].mxu0
      %4217 = vmatprep.mubr.bf16.mxu0 %v3152
      %4218 = vmatmul.mubr.bf16.gmra.mrb[0].mxu0 %v3151
      %v4219 = vpop.f32.mrb[0].mxu0
      %v4220 = vadd.f32 %v4059, %v4219
      %v4221 = vpop.f32.mrb[0].mxu0
      %v4222 = vpop.f32.mrb[0].mxu0
      %v4223 = vadd.f32 %v4062, %v4222
      %v4224 = vpop.f32.mrb[0].mxu0
      %4225 = vmatprep.mubr.bf16.mxu0 %v3161
      %4226 = vmatmul.mubr.bf16.gmra.mrb[0].mxu0 %v3160
      %v4227 = vpop.f32.mrb[0].mxu0
      %v4228 = vadd.f32 %v4067, %v4227
      %v4229 = vpop.f32.mrb[0].mxu0
      %v4230 = vpop.f32.mrb[0].mxu0
      %v4231 = vadd.f32 %v4070, %v4230
      %v4232 = vpop.f32.mrb[0].mxu0
      %4233 = vmatprep.mubr.bf16.mxu0 %v3170
      %4234 = vmatmul.mubr.bf16.gmra.mrb[0].mxu0 %v3169
      %v4235 = vpop.f32.mrb[0].mxu0
      %v4236 = vadd.f32 %v4075, %v4235
      %v4237 = vpop.f32.mrb[0].mxu0
      %v4238 = vpop.f32.mrb[0].mxu0
      %v4239 = vadd.f32 %v4078, %v4238
      %v4240 = vpop.f32.mrb[0].mxu0
      %4241 = vmatprep.mubr.bf16.mxu0 %v3179
      %4242 = vmatmul.mubr.bf16.gmra.mrb[0].mxu0 %v3178
      %v4243 = vpop.f32.mrb[0].mxu0
      %v4244 = vadd.f32 %v4083, %v4243
      %v4245 = vpop.f32.mrb[0].mxu0
      %v4246 = vpop.f32.mrb[0].mxu0
      %v4247 = vadd.f32 %v4086, %v4246
      %v4248 = vpop.f32.mrb[0].mxu0
      %4249 = vmatprep.mubr.bf16.mxu0 %v3188
      %4250 = vmatmul.mubr.bf16.gmra.mrb[0].mxu0 %v3187
      %v4251 = vpop.f32.mrb[0].mxu0
      %v4252 = vadd.f32 %v4091, %v4251
      %v4253 = vpop.f32.mrb[0].mxu0
      %v4254 = vpop.f32.mrb[0].mxu0
      %v4255 = vadd.f32 %v4094, %v4254
      %v4256 = vpop.f32.mrb[0].mxu0
      %4257 = vmatprep.mubr.bf16.mxu0 %v3197
      %4258 = vmatmul.mubr.bf16.gmra.mrb[0].mxu0 %v3196
      %v4259 = vpop.f32.mrb[0].mxu0
      %v4260 = vadd.f32 %v4099, %v4259
      %v4261 = vpop.f32.mrb[0].mxu0
      %v4262 = vpop.f32.mrb[0].mxu0
      %v4263 = vadd.f32 %v4102, %v4262
      %v4264 = vpop.f32.mrb[0].mxu0
      %4265 = vmatprep.mubr.bf16.mxu0 %v3206
      %4266 = vmatmul.mubr.bf16.gmra.mrb[0].mxu0 %v3205
      %v4267 = vpop.f32.mrb[0].mxu0
      %v4268 = vadd.f32 %v4107, %v4267
      %v4269 = vpop.f32.mrb[0].mxu0
      %v4270 = vpop.f32.mrb[0].mxu0
      %v4271 = vadd.f32 %v4110, %v4270
      %v4272 = vpop.f32.mrb[0].mxu0
      %4273 = vmatprep.mubr.bf16.mxu0 %v3215
      %4274 = vmatmul.mubr.bf16.gmra.mrb[0].mxu0 %v3214
      %v4275 = vpop.f32.mrb[0].mxu0
      %v4276 = vadd.f32 %v4115, %v4275
      %v4277 = vpop.f32.mrb[0].mxu0
      %v4278 = vpop.f32.mrb[0].mxu0
      %v4279 = vadd.f32 %v4118, %v4278
      %v4280 = vpop.f32.mrb[0].mxu0
      %4281 = vmatprep.mubr.bf16.mxu0 %v3224
      %4282 = vmatmul.mubr.bf16.gmra.mrb[0].mxu0 %v3223
      %v4283 = vpop.f32.mrb[0].mxu0
      %v4284 = vadd.f32 %v4123, %v4283
      %v4285 = vpop.f32.mrb[0].mxu0
      %v4286 = vpop.f32.mrb[0].mxu0
      %v4287 = vadd.f32 %v4126, %v4286
      %v4288 = vpop.f32.mrb[0].mxu0
      %4289 = vmatprep.mubr.bf16.mxu0 %v3233
      %4290 = vmatmul.mubr.bf16.gmra.mrb[0].mxu0 %v3232
      %v4291 = vpop.f32.mrb[0].mxu0
      %v4292 = vadd.f32 %v4131, %v4291
      %v4293 = vpop.f32.mrb[0].mxu0
      %v4294 = vpop.f32.mrb[0].mxu0
      %v4295 = vadd.f32 %v4134, %v4294
      %v4296 = vpop.f32.mrb[0].mxu0
      %4297 = vmatprep.mubr.bf16.mxu0 %v3242
      %4298 = vmatmul.mubr.bf16.gmra.mrb[0].mxu0 %v3241
      %v4299 = vpop.f32.mrb[0].mxu0
      %v4300 = vadd.f32 %v4139, %v4299
      %v4301 = vpop.f32.mrb[0].mxu0
      %v4302 = vpop.f32.mrb[0].mxu0
      %v4303 = vadd.f32 %v4142, %v4302
      %v4304 = vpop.f32.mrb[0].mxu0
      %4305 = vmatprep.mubr.bf16.mxu0 %v3251
      %4306 = vmatmul.mubr.bf16.gmra.mrb[0].mxu0 %v3250
      %v4307 = vpop.f32.mrb[0].mxu0
      %v4308 = vadd.f32 %v4147, %v4307
      %v4309 = vpop.f32.mrb[0].mxu0
      %v4310 = vpop.f32.mrb[0].mxu0
      %v4311 = vadd.f32 %v4150, %v4310
      %v4312 = vpop.f32.mrb[0].mxu0
      %4313 = vdwg.mxu0
      %4314 = vmatprep.subr.bf16.mxu0 0
      %4315 = vmatpush1.bf16.msra.mxu0 %v3735
      %4316 = vmatprep.subr.bf16.mxu0 0
      %4317 = vmatpush1.bf16.msra.mxu0 %v3736
      %4318 = vmatprep.subr.bf16.mxu0 0
      %4319 = vmatpush1.bf16.msra.mxu0 %v3737
      %4320 = vmatprep.subr.bf16.mxu0 0
      %4321 = vmatpush1.bf16.msra.mxu0 %v3738
      %4322 = vmatprep.subr.bf16.mxu0 0
      %4323 = vmatpush1.bf16.msra.mxu0 %v3739
      %4324 = vmatprep.subr.bf16.mxu0 0
      %4325 = vmatpush1.bf16.msra.mxu0 %v3740
      %4326 = vmatprep.subr.bf16.mxu0 0
      %4327 = vmatpush1.bf16.msra.mxu0 %v3741
      %4328 = vmatprep.subr.bf16.mxu0 0
      %4329 = vmatpush1.bf16.msra.mxu0 %v3742
      %4330 = vmatprep.subr.bf16.mxu0 0
      %4331 = vmatpush1.bf16.msra.mxu0 %v3743
      %4332 = vmatprep.subr.bf16.mxu0 0
      %4333 = vmatpush1.bf16.msra.mxu0 %v3744
      %4334 = vmatprep.subr.bf16.mxu0 0
      %4335 = vmatpush1.bf16.msra.mxu0 %v3745
      %4336 = vmatprep.subr.bf16.mxu0 0
      %4337 = vmatpush1.bf16.msra.mxu0 %v3746
      %4338 = vmatprep.subr.bf16.mxu0 0
      %4339 = vmatpush1.bf16.msra.mxu0 %v3747
      %4340 = vmatprep.subr.bf16.mxu0 0
      %4341 = vmatpush1.bf16.msra.mxu0 %v3748
      %4342 = vmatprep.subr.bf16.mxu0 0
      %4343 = vmatpush1.bf16.msra.mxu0 %v3749
      %4344 = vmatprep.subr.bf16.mxu0 0
      %4345 = vmatpush1.bf16.msra.mxu0 %v3750
      %4346 = vmatprep.mubr.bf16.mxu0 %v3118
      %4347 = vmatmul.mubr.bf16.gmra.mrb[0].mxu0 %v3117
      %v4348 = vpop.f32.mrb[0].mxu0
      %v4349 = vadd.f32 %v4188, %v4348
      %v4350 = vpop.f32.mrb[0].mxu0
      %v4351 = vpop.f32.mrb[0].mxu0
      %v4352 = vadd.f32 %v4191, %v4351
      %v4353 = vpop.f32.mrb[0].mxu0
      %4354 = vmatprep.mubr.bf16.mxu0 %v3127
      %4355 = vmatmul.mubr.bf16.gmra.mrb[0].mxu0 %v3126
      %v4356 = vpop.f32.mrb[0].mxu0
      %v4357 = vadd.f32 %v4196, %v4356
      %v4358 = vpop.f32.mrb[0].mxu0
      %v4359 = vpop.f32.mrb[0].mxu0
      %v4360 = vadd.f32 %v4199, %v4359
      %v4361 = vpop.f32.mrb[0].mxu0
      %4362 = vmatprep.mubr.bf16.mxu0 %v3136
      %4363 = vmatmul.mubr.bf16.gmra.mrb[0].mxu0 %v3135
      %v4364 = vpop.f32.mrb[0].mxu0
      %v4365 = vadd.f32 %v4204, %v4364
      %v4366 = vpop.f32.mrb[0].mxu0
      %v4367 = vpop.f32.mrb[0].mxu0
      %v4368 = vadd.f32 %v4207, %v4367
      %v4369 = vpop.f32.mrb[0].mxu0
      %4370 = vmatprep.mubr.bf16.mxu0 %v3145
      %4371 = vmatmul.mubr.bf16.gmra.mrb[0].mxu0 %v3144
      %v4372 = vpop.f32.mrb[0].mxu0
      %v4373 = vadd.f32 %v4212, %v4372
      %v4374 = vpop.f32.mrb[0].mxu0
      %v4375 = vpop.f32.mrb[0].mxu0
      %v4376 = vadd.f32 %v4215, %v4375
      %v4377 = vpop.f32.mrb[0].mxu0
      %4378 = vmatprep.mubr.bf16.mxu0 %v3154
      %4379 = vmatmul.mubr.bf16.gmra.mrb[0].mxu0 %v3153
      %v4380 = vpop.f32.mrb[0].mxu0
      %v4381 = vadd.f32 %v4220, %v4380
      %v4382 = vpop.f32.mrb[0].mxu0
      %v4383 = vpop.f32.mrb[0].mxu0
      %v4384 = vadd.f32 %v4223, %v4383
      %v4385 = vpop.f32.mrb[0].mxu0
      %4386 = vmatprep.mubr.bf16.mxu0 %v3163
      %4387 = vmatmul.mubr.bf16.gmra.mrb[0].mxu0 %v3162
      %v4388 = vpop.f32.mrb[0].mxu0
      %v4389 = vadd.f32 %v4228, %v4388
      %v4390 = vpop.f32.mrb[0].mxu0
      %v4391 = vpop.f32.mrb[0].mxu0
      %v4392 = vadd.f32 %v4231, %v4391
      %v4393 = vpop.f32.mrb[0].mxu0
      %4394 = vmatprep.mubr.bf16.mxu0 %v3172
      %4395 = vmatmul.mubr.bf16.gmra.mrb[0].mxu0 %v3171
      %v4396 = vpop.f32.mrb[0].mxu0
      %v4397 = vadd.f32 %v4236, %v4396
      %v4398 = vpop.f32.mrb[0].mxu0
      %v4399 = vpop.f32.mrb[0].mxu0
      %v4400 = vadd.f32 %v4239, %v4399
      %v4401 = vpop.f32.mrb[0].mxu0
      %4402 = vmatprep.mubr.bf16.mxu0 %v3181
      %4403 = vmatmul.mubr.bf16.gmra.mrb[0].mxu0 %v3180
      %v4404 = vpop.f32.mrb[0].mxu0
      %v4405 = vadd.f32 %v4244, %v4404
      %v4406 = vpop.f32.mrb[0].mxu0
      %v4407 = vpop.f32.mrb[0].mxu0
      %v4408 = vadd.f32 %v4247, %v4407
      %v4409 = vpop.f32.mrb[0].mxu0
      %4410 = vmatprep.mubr.bf16.mxu0 %v3190
      %4411 = vmatmul.mubr.bf16.gmra.mrb[0].mxu0 %v3189
      %v4412 = vpop.f32.mrb[0].mxu0
      %v4413 = vadd.f32 %v4252, %v4412
      %v4414 = vpop.f32.mrb[0].mxu0
      %v4415 = vpop.f32.mrb[0].mxu0
      %v4416 = vadd.f32 %v4255, %v4415
      %v4417 = vpop.f32.mrb[0].mxu0
      %4418 = vmatprep.mubr.bf16.mxu0 %v3199
      %4419 = vmatmul.mubr.bf16.gmra.mrb[0].mxu0 %v3198
      %v4420 = vpop.f32.mrb[0].mxu0
      %v4421 = vadd.f32 %v4260, %v4420
      %v4422 = vpop.f32.mrb[0].mxu0
      %v4423 = vpop.f32.mrb[0].mxu0
      %v4424 = vadd.f32 %v4263, %v4423
      %v4425 = vpop.f32.mrb[0].mxu0
      %4426 = vmatprep.mubr.bf16.mxu0 %v3208
      %4427 = vmatmul.mubr.bf16.gmra.mrb[0].mxu0 %v3207
      %v4428 = vpop.f32.mrb[0].mxu0
      %v4429 = vadd.f32 %v4268, %v4428
      %v4430 = vpop.f32.mrb[0].mxu0
      %v4431 = vpop.f32.mrb[0].mxu0
      %v4432 = vadd.f32 %v4271, %v4431
      %v4433 = vpop.f32.mrb[0].mxu0
      %4434 = vmatprep.mubr.bf16.mxu0 %v3217
      %4435 = vmatmul.mubr.bf16.gmra.mrb[0].mxu0 %v3216
      %v4436 = vpop.f32.mrb[0].mxu0
      %v4437 = vadd.f32 %v4276, %v4436
      %v4438 = vpop.f32.mrb[0].mxu0
      %v4439 = vpop.f32.mrb[0].mxu0
      %v4440 = vadd.f32 %v4279, %v4439
      %v4441 = vpop.f32.mrb[0].mxu0
      %4442 = vmatprep.mubr.bf16.mxu0 %v3226
      %4443 = vmatmul.mubr.bf16.gmra.mrb[0].mxu0 %v3225
      %v4444 = vpop.f32.mrb[0].mxu0
      %v4445 = vadd.f32 %v4284, %v4444
      %v4446 = vpop.f32.mrb[0].mxu0
      %v4447 = vpop.f32.mrb[0].mxu0
      %v4448 = vadd.f32 %v4287, %v4447
      %v4449 = vpop.f32.mrb[0].mxu0
      %4450 = vmatprep.mubr.bf16.mxu0 %v3235
      %4451 = vmatmul.mubr.bf16.gmra.mrb[0].mxu0 %v3234
      %v4452 = vpop.f32.mrb[0].mxu0
      %v4453 = vadd.f32 %v4292, %v4452
      %v4454 = vpop.f32.mrb[0].mxu0
      %v4455 = vpop.f32.mrb[0].mxu0
      %v4456 = vadd.f32 %v4295, %v4455
      %v4457 = vpop.f32.mrb[0].mxu0
      %4458 = vmatprep.mubr.bf16.mxu0 %v3244
      %4459 = vmatmul.mubr.bf16.gmra.mrb[0].mxu0 %v3243
      %v4460 = vpop.f32.mrb[0].mxu0
      %v4461 = vadd.f32 %v4300, %v4460
      %v4462 = vpop.f32.mrb[0].mxu0
      %v4463 = vpop.f32.mrb[0].mxu0
      %v4464 = vadd.f32 %v4303, %v4463
      %v4465 = vpop.f32.mrb[0].mxu0
      %4466 = vmatprep.mubr.bf16.mxu0 %v3253
      %4467 = vmatmul.mubr.bf16.gmra.mrb[0].mxu0 %v3252
      %v4468 = vpop.f32.mrb[0].mxu0
      %v4469 = vadd.f32 %v4308, %v4468
      %v4470 = vpop.f32.mrb[0].mxu0
      %v4471 = vpop.f32.mrb[0].mxu0
      %v4472 = vadd.f32 %v4311, %v4471
      %v4473 = vpop.f32.mrb[0].mxu0
      %4474 = vdwg.mxu0
      %4475 = vmatprep.subr.bf16.mxu0 0
      %4476 = vmatpush1.bf16.msra.mxu0 %v3751
      %4477 = vmatprep.subr.bf16.mxu0 0
      %4478 = vmatpush1.bf16.msra.mxu0 %v3752
      %4479 = vmatprep.subr.bf16.mxu0 0
      %4480 = vmatpush1.bf16.msra.mxu0 %v3753
      %4481 = vmatprep.subr.bf16.mxu0 0
      %4482 = vmatpush1.bf16.msra.mxu0 %v3754
      %4483 = vmatprep.subr.bf16.mxu0 0
      %4484 = vmatpush1.bf16.msra.mxu0 %v3755
      %4485 = vmatprep.subr.bf16.mxu0 0
      %4486 = vmatpush1.bf16.msra.mxu0 %v3756
      %4487 = vmatprep.subr.bf16.mxu0 0
      %4488 = vmatpush1.bf16.msra.mxu0 %v3757
      %4489 = vmatprep.subr.bf16.mxu0 0
      %4490 = vmatpush1.bf16.msra.mxu0 %v3758
      %4491 = vmatprep.subr.bf16.mxu0 0
      %4492 = vmatpush1.bf16.msra.mxu0 0
      %4493 = vmatprep.subr.bf16.mxu0 0
      %4494 = vmatpush1.bf16.msra.mxu0 0
      %4495 = vmatprep.subr.bf16.mxu0 0
      %4496 = vmatpush1.bf16.msra.mxu0 0
      %4497 = vmatprep.subr.bf16.mxu0 0
      %4498 = vmatpush1.bf16.msra.mxu0 0
      %4499 = vmatprep.subr.bf16.mxu0 0
      %4500 = vmatpush1.bf16.msra.mxu0 0
      %4501 = vmatprep.subr.bf16.mxu0 0
      %4502 = vmatpush1.bf16.msra.mxu0 0
      %4503 = vmatprep.subr.bf16.mxu0 0
      %4504 = vmatpush1.bf16.msra.mxu0 0
      %4505 = vmatprep.subr.bf16.mxu0 0
      %4506 = vmatpush1.bf16.msra.mxu0 0
      %4507 = vmatprep.mubr.bf16.mxu0 0
      %4508 = vmatmul.mubr.bf16.gmra.mrb[0].mxu0 %v3119
      %v4509 = vpop.f32.mrb[0].mxu0
      %v4510 = vadd.f32 %v4349, %v4509
      %v4511 = vpop.f32.mrb[0].mxu0
      %v4512 = vpop.f32.mrb[0].mxu0
      %v4513 = vadd.f32 %v4352, %v4512
      %v4514 = vpop.f32.mrb[0].mxu0
      %4515 = vmatprep.mubr.bf16.mxu0 0
      %4516 = vmatmul.mubr.bf16.gmra.mrb[0].mxu0 %v3128
      %v4517 = vpop.f32.mrb[0].mxu0
      %v4518 = vadd.f32 %v4357, %v4517
      %v4519 = vpop.f32.mrb[0].mxu0
      %v4520 = vpop.f32.mrb[0].mxu0
      %v4521 = vadd.f32 %v4360, %v4520
      %v4522 = vpop.f32.mrb[0].mxu0
      %4523 = vmatprep.mubr.bf16.mxu0 0
      %4524 = vmatmul.mubr.bf16.gmra.mrb[0].mxu0 %v3137
      %v4525 = vpop.f32.mrb[0].mxu0
      %v4526 = vadd.f32 %v4365, %v4525
      %v4527 = vpop.f32.mrb[0].mxu0
      %v4528 = vpop.f32.mrb[0].mxu0
      %v4529 = vadd.f32 %v4368, %v4528
      %v4530 = vpop.f32.mrb[0].mxu0
      %4531 = vmatprep.mubr.bf16.mxu0 0
      %4532 = vmatmul.mubr.bf16.gmra.mrb[0].mxu0 %v3146
      %v4533 = vpop.f32.mrb[0].mxu0
      %v4534 = vadd.f32 %v4373, %v4533
      %v4535 = vpop.f32.mrb[0].mxu0
      %v4536 = vpop.f32.mrb[0].mxu0
      %v4537 = vadd.f32 %v4376, %v4536
      %v4538 = vpop.f32.mrb[0].mxu0
      %4539 = vmatprep.mubr.bf16.mxu0 0
      %4540 = vmatmul.mubr.bf16.gmra.mrb[0].mxu0 %v3155
      %v4541 = vpop.f32.mrb[0].mxu0
      %v4542 = vadd.f32 %v4381, %v4541
      %v4543 = vpop.f32.mrb[0].mxu0
      %v4544 = vpop.f32.mrb[0].mxu0
      %v4545 = vadd.f32 %v4384, %v4544
      %v4546 = vpop.f32.mrb[0].mxu0
      %4547 = vmatprep.mubr.bf16.mxu0 0
      %4548 = vmatmul.mubr.bf16.gmra.mrb[0].mxu0 %v3164
      %v4549 = vpop.f32.mrb[0].mxu0
      %v4550 = vadd.f32 %v4389, %v4549
      %v4551 = vpop.f32.mrb[0].mxu0
      %v4552 = vpop.f32.mrb[0].mxu0
      %v4553 = vadd.f32 %v4392, %v4552
      %v4554 = vpop.f32.mrb[0].mxu0
      %4555 = vmatprep.mubr.bf16.mxu0 0
      %4556 = vmatmul.mubr.bf16.gmra.mrb[0].mxu0 %v3173
      %v4557 = vpop.f32.mrb[0].mxu0
      %v4558 = vadd.f32 %v4397, %v4557
      %v4559 = vpop.f32.mrb[0].mxu0
      %v4560 = vpop.f32.mrb[0].mxu0
      %v4561 = vadd.f32 %v4400, %v4560
      %v4562 = vpop.f32.mrb[0].mxu0
      %4563 = vmatprep.mubr.bf16.mxu0 0
      %4564 = vmatmul.mubr.bf16.gmra.mrb[0].mxu0 %v3182
      %v4565 = vpop.f32.mrb[0].mxu0
      %v4566 = vadd.f32 %v4405, %v4565
      %v4567 = vpop.f32.mrb[0].mxu0
      %v4568 = vpop.f32.mrb[0].mxu0
      %v4569 = vadd.f32 %v4408, %v4568
      %v4570 = vpop.f32.mrb[0].mxu0
      %4571 = vmatprep.mubr.bf16.mxu0 0
      %4572 = vmatmul.mubr.bf16.gmra.mrb[0].mxu0 %v3191
      %v4573 = vpop.f32.mrb[0].mxu0
      %v4574 = vadd.f32 %v4413, %v4573
      %v4575 = vpop.f32.mrb[0].mxu0
      %v4576 = vpop.f32.mrb[0].mxu0
      %v4577 = vadd.f32 %v4416, %v4576
      %v4578 = vpop.f32.mrb[0].mxu0
      %4579 = vmatprep.mubr.bf16.mxu0 0
      %4580 = vmatmul.mubr.bf16.gmra.mrb[0].mxu0 %v3200
      %v4581 = vpop.f32.mrb[0].mxu0
      %v4582 = vadd.f32 %v4421, %v4581
      %v4583 = vpop.f32.mrb[0].mxu0
      %v4584 = vpop.f32.mrb[0].mxu0
      %v4585 = vadd.f32 %v4424, %v4584
      %v4586 = vpop.f32.mrb[0].mxu0
      %4587 = vmatprep.mubr.bf16.mxu0 0
      %4588 = vmatmul.mubr.bf16.gmra.mrb[0].mxu0 %v3209
      %v4589 = vpop.f32.mrb[0].mxu0
      %v4590 = vadd.f32 %v4429, %v4589
      %v4591 = vpop.f32.mrb[0].mxu0
      %v4592 = vpop.f32.mrb[0].mxu0
      %v4593 = vadd.f32 %v4432, %v4592
      %v4594 = vpop.f32.mrb[0].mxu0
      %4595 = vmatprep.mubr.bf16.mxu0 0
      %4596 = vmatmul.mubr.bf16.gmra.mrb[0].mxu0 %v3218
      %v4597 = vpop.f32.mrb[0].mxu0
      %v4598 = vadd.f32 %v4437, %v4597
      %v4599 = vpop.f32.mrb[0].mxu0
      %v4600 = vpop.f32.mrb[0].mxu0
      %v4601 = vadd.f32 %v4440, %v4600
      %v4602 = vpop.f32.mrb[0].mxu0
      %4603 = vmatprep.mubr.bf16.mxu0 0
      %4604 = vmatmul.mubr.bf16.gmra.mrb[0].mxu0 %v3227
      %v4605 = vpop.f32.mrb[0].mxu0
      %v4606 = vadd.f32 %v4445, %v4605
      %v4607 = vpop.f32.mrb[0].mxu0
      %v4608 = vpop.f32.mrb[0].mxu0
      %v4609 = vadd.f32 %v4448, %v4608
      %v4610 = vpop.f32.mrb[0].mxu0
      %4611 = vmatprep.mubr.bf16.mxu0 0
      %4612 = vmatmul.mubr.bf16.gmra.mrb[0].mxu0 %v3236
      %v4613 = vpop.f32.mrb[0].mxu0
      %v4614 = vadd.f32 %v4453, %v4613
      %v4615 = vpop.f32.mrb[0].mxu0
      %v4616 = vpop.f32.mrb[0].mxu0
      %v4617 = vadd.f32 %v4456, %v4616
      %v4618 = vpop.f32.mrb[0].mxu0
      %4619 = vmatprep.mubr.bf16.mxu0 0
      %4620 = vmatmul.mubr.bf16.gmra.mrb[0].mxu0 %v3245
      %v4621 = vpop.f32.mrb[0].mxu0
      %v4622 = vadd.f32 %v4461, %v4621
      %v4623 = vpop.f32.mrb[0].mxu0
      %v4624 = vpop.f32.mrb[0].mxu0
      %v4625 = vadd.f32 %v4464, %v4624
      %v4626 = vpop.f32.mrb[0].mxu0
      %4627 = vmatprep.mubr.bf16.mxu0 0
      %4628 = vmatmul.mubr.bf16.gmra.mrb[0].mxu0 %v3254
      %v4629 = vpop.f32.mrb[0].mxu0
      %v4630 = vadd.f32 %v4469, %v4629
      %v4631 = vpop.f32.mrb[0].mxu0
      %v4632 = vpop.f32.mrb[0].mxu0
      %v4633 = vadd.f32 %v4472, %v4632
      %v4634 = vpop.f32.mrb[0].mxu0
      %4635 = vdwg.mxu0
      %v4636 = vpack.c.bf16 %v4513, %v4510
      %v4637 = vpack.c.bf16 %v4521, %v4518
      %v4638 = vpack.c.bf16 %v4529, %v4526
      %v4639 = vpack.c.bf16 %v4537, %v4534
      %v4640 = vpack.c.bf16 %v4545, %v4542
      %v4641 = vpack.c.bf16 %v4553, %v4550
      %v4642 = vpack.c.bf16 %v4561, %v4558
      %v4643 = vpack.c.bf16 %v4569, %v4566
      %v4644 = vpack.c.bf16 %v4577, %v4574
      %v4645 = vpack.c.bf16 %v4585, %v4582
      %v4646 = vpack.c.bf16 %v4593, %v4590
      %v4647 = vpack.c.bf16 %v4601, %v4598
      %v4648 = vpack.c.bf16 %v4609, %v4606
      %v4649 = vpack.c.bf16 %v4617, %v4614
      %v4650 = vpack.c.bf16 %v4625, %v4622
      %v4651 = vpack.c.bf16 %v4633, %v4630
      %v4668 = vunpack.c.l.b16 %v4636
      %v4669 = vunpack.c.h.b16 %v4636
      %v4670 = vunpack.c.l.b16 %v4637
      %v4671 = vunpack.c.h.b16 %v4637
      %v4672 = vunpack.c.l.b16 %v4638
      %v4673 = vunpack.c.h.b16 %v4638
      %v4674 = vunpack.c.l.b16 %v4639
      %v4675 = vunpack.c.h.b16 %v4639
      %v4676 = vunpack.c.l.b16 %v4640
      %v4677 = vunpack.c.h.b16 %v4640
      %v4678 = vunpack.c.l.b16 %v4641
      %v4679 = vunpack.c.h.b16 %v4641
      %v4680 = vunpack.c.l.b16 %v4642
      %v4681 = vunpack.c.h.b16 %v4642
      %v4682 = vunpack.c.l.b16 %v4643
      %v4683 = vunpack.c.h.b16 %v4643
      %v4684 = vunpack.c.l.b16 %v4644
      %v4685 = vunpack.c.h.b16 %v4644
      %v4686 = vunpack.c.l.b16 %v4645
      %v4687 = vunpack.c.h.b16 %v4645
      %v4688 = vunpack.c.l.b16 %v4646
      %v4689 = vunpack.c.h.b16 %v4646
      %v4690 = vunpack.c.l.b16 %v4647
      %v4691 = vunpack.c.h.b16 %v4647
      %v4692 = vunpack.c.l.b16 %v4648
      %v4693 = vunpack.c.h.b16 %v4648
      %v4694 = vunpack.c.l.b16 %v4649
      %v4695 = vunpack.c.h.b16 %v4649
      %v4696 = vunpack.c.l.b16 %v4650
      %v4697 = vunpack.c.h.b16 %v4650
      %v4698 = vunpack.c.l.b16 %v4651
      %v4699 = vunpack.c.h.b16 %v4651
      %v4700 = vpack.c.b16 %v4668, %v4668
      %v4701 = vpack.c.b16 %v4669, %v4669
      %v4702 = vpack.c.b16 %v4670, %v4670
      %v4703 = vpack.c.b16 %v4671, %v4671
      %v4704 = vpack.c.b16 %v4672, %v4672
      %v4705 = vpack.c.b16 %v4673, %v4673
      %v4706 = vpack.c.b16 %v4674, %v4674
      %v4707 = vpack.c.b16 %v4675, %v4675
      %v4708 = vpack.c.b16 %v4676, %v4676
      %v4709 = vpack.c.b16 %v4677, %v4677
      %v4710 = vpack.c.b16 %v4678, %v4678
      %v4711 = vpack.c.b16 %v4679, %v4679
      %v4712 = vpack.c.b16 %v4680, %v4680
      %v4713 = vpack.c.b16 %v4681, %v4681
      %v4714 = vpack.c.b16 %v4682, %v4682
      %v4715 = vpack.c.b16 %v4683, %v4683
      %v4716 = vpack.c.b16 %v4684, %v4684
      %v4717 = vpack.c.b16 %v4685, %v4685
      %v4718 = vpack.c.b16 %v4686, %v4686
      %v4719 = vpack.c.b16 %v4687, %v4687
      %v4720 = vpack.c.b16 %v4688, %v4688
      %v4721 = vpack.c.b16 %v4689, %v4689
      %v4722 = vpack.c.b16 %v4690, %v4690
      %v4723 = vpack.c.b16 %v4691, %v4691
      %v4724 = vpack.c.b16 %v4692, %v4692
      %v4725 = vpack.c.b16 %v4693, %v4693
      %v4726 = vpack.c.b16 %v4694, %v4694
      %v4727 = vpack.c.b16 %v4695, %v4695
      %v4728 = vpack.c.b16 %v4696, %v4696
      %v4729 = vpack.c.b16 %v4697, %v4697
      %v4730 = vpack.c.b16 %v4698, %v4698
      %v4731 = vpack.c.b16 %v4699, %v4699
      %4764 = vst [vmem:[%s262] sm:$0xf] %v4700
      %4765 = vst [vmem:[%s262 + $0x4] sm:$0xf] %v4701
      %4766 = vst [vmem:[%s262 + $0x8] sm:$0xf] %v4702
      %4767 = vst [vmem:[%s262 + $0xc] sm:$0xf] %v4703
      %4768 = vst [vmem:[%s262 + $0x10] sm:$0xf] %v4704
      %4769 = vst [vmem:[%s262 + $0x14] sm:$0xf] %v4705
      %4770 = vst [vmem:[%s262 + $0x18] sm:$0xf] %v4706
      %4771 = vst [vmem:[%s262 + $0x1c] sm:$0xf] %v4707
      %4772 = vst [vmem:[%s262 + $0x20] sm:$0xf] %v4708
      %4773 = vst [vmem:[%s262 + $0x24] sm:$0xf] %v4709
      %4774 = vst [vmem:[%s262 + $0x28] sm:$0xf] %v4710
      %4775 = vst [vmem:[%s262 + $0x2c] sm:$0xf] %v4711
      %4776 = vst [vmem:[%s262 + $0x30] sm:$0xf] %v4712
      %4777 = vst [vmem:[%s262 + $0x34] sm:$0xf] %v4713
      %4778 = vst [vmem:[%s262 + $0x38] sm:$0xf] %v4714
      %4779 = vst [vmem:[%s262 + $0x3c] sm:$0xf] %v4715
      %4780 = vst [vmem:[%s262 + $0x40] sm:$0xf] %v4716
      %4781 = vst [vmem:[%s262 + $0x44] sm:$0xf] %v4717
      %4782 = vst [vmem:[%s262 + $0x48] sm:$0xf] %v4718
      %4783 = vst [vmem:[%s262 + $0x4c] sm:$0xf] %v4719
      %4784 = vst [vmem:[%s262 + $0x50] sm:$0xf] %v4720
      %4785 = vst [vmem:[%s262 + $0x54] sm:$0xf] %v4721
      %4786 = vst [vmem:[%s262 + $0x58] sm:$0xf] %v4722
      %4787 = vst [vmem:[%s262 + $0x5c] sm:$0xf] %v4723
      %4788 = vst [vmem:[%s262 + $0x60] sm:$0xf] %v4724
      %4789 = vst [vmem:[%s262 + $0x64] sm:$0xf] %v4725
      %4790 = vst [vmem:[%s262 + $0x68] sm:$0xf] %v4726
      %4791 = vst [vmem:[%s262 + $0x6c] sm:$0xf] %v4727
      %4792 = vst [vmem:[%s262 + $0x70] sm:$0xf] %v4728
      %4793 = vst [vmem:[%s262 + $0x74] sm:$0xf] %v4729
      %4794 = vst [vmem:[%s262 + $0x78] sm:$0xf] %v4730
      %4795 = vst [vmem:[%s262 + $0x7c] sm:$0xf] %v4731
      %v4796 = vunpack.c.l.bf16 %v4636
      %v4797 = vunpack.c.h.bf16 %v4636
      %v4798 = vunpack.c.l.bf16 %v4637
      %v4799 = vunpack.c.h.bf16 %v4637
      %v4800 = vunpack.c.l.bf16 %v4638
      %v4801 = vunpack.c.h.bf16 %v4638
      %v4802 = vunpack.c.l.bf16 %v4639
      %v4803 = vunpack.c.h.bf16 %v4639
      %v4804 = vunpack.c.l.bf16 %v4640
      %v4805 = vunpack.c.h.bf16 %v4640
      %v4806 = vunpack.c.l.bf16 %v4641
      %v4807 = vunpack.c.h.bf16 %v4641
      %v4808 = vunpack.c.l.bf16 %v4642
      %v4809 = vunpack.c.h.bf16 %v4642
      %v4810 = vunpack.c.l.bf16 %v4643
      %v4811 = vunpack.c.h.bf16 %v4643
      %v4812 = vunpack.c.l.bf16 %v4644
      %v4813 = vunpack.c.h.bf16 %v4644
      %v4814 = vunpack.c.l.bf16 %v4645
      %v4815 = vunpack.c.h.bf16 %v4645
      %v4816 = vunpack.c.l.bf16 %v4646
      %v4817 = vunpack.c.h.bf16 %v4646
      %v4818 = vunpack.c.l.bf16 %v4647
      %v4819 = vunpack.c.h.bf16 %v4647
      %v4820 = vunpack.c.l.bf16 %v4648
      %v4821 = vunpack.c.h.bf16 %v4648
      %v4822 = vunpack.c.l.bf16 %v4649
      %v4823 = vunpack.c.h.bf16 %v4649
      %v4824 = vunpack.c.l.bf16 %v4650
      %v4825 = vunpack.c.h.bf16 %v4650
      %v4826 = vunpack.c.l.bf16 %v4651
      %v4827 = vunpack.c.h.bf16 %v4651
      %v4828 = vadd.f32 %v4796, %v4797
      %v4829 = vadd.f32 %v4828, %v4798
      %v4830 = vadd.f32 %v4829, %v4799
      %v4831 = vadd.f32 %v4830, %v4800
      %v4832 = vadd.f32 %v4831, %v4801
      %v4833 = vadd.f32 %v4832, %v4802
      %v4834 = vadd.f32 %v4833, %v4803
      %v4835 = vadd.f32 %v4834, %v4804
      %v4836 = vadd.f32 %v4835, %v4805
      %v4837 = vadd.f32 %v4836, %v4806
      %v4838 = vadd.f32 %v4837, %v4807
      %v4839 = vadd.f32 %v4838, %v4808
      %v4840 = vadd.f32 %v4839, %v4809
      %v4841 = vadd.f32 %v4840, %v4810
      %v4842 = vadd.f32 %v4841, %v4811
      %v4843 = vadd.f32 %v4842, %v4812
      %v4844 = vadd.f32 %v4843, %v4813
      %v4845 = vadd.f32 %v4844, %v4814
      %v4846 = vadd.f32 %v4845, %v4815
      %v4847 = vadd.f32 %v4846, %v4816
      %v4848 = vadd.f32 %v4847, %v4817
      %v4849 = vadd.f32 %v4848, %v4818
      %v4850 = vadd.f32 %v4849, %v4819
      %v4851 = vadd.f32 %v4850, %v4820
      %v4852 = vadd.f32 %v4851, %v4821
      %v4853 = vadd.f32 %v4852, %v4822
      %v4854 = vadd.f32 %v4853, %v4823
      %v4855 = vadd.f32 %v4854, %v4824
      %v4856 = vadd.f32 %v4855, %v4825
      %v4857 = vadd.f32 %v4856, %v4826
      %v4858 = vadd.f32 %v4857, %v4827
      %v4859 = vrot.slane %v4858, 4
      %v4860 = vadd.f32 %v4858, %v4859
      %v4861 = vrot.slane %v4860, 2
      %v4862 = vadd.f32 %v4860, %v4861
      %v4863 = vrot.slane %v4862, 1
      %v4864 = vadd.f32 %v4862, %v4863
      %4865 = vst [vmem:[%s265] sm:$0x1] %v4864
      %v4866 = vmul.f32 %v4796, %v4796
      %v4867 = vmul.f32 %v4797, %v4797
      %v4868 = vmul.f32 %v4798, %v4798
      %v4869 = vmul.f32 %v4799, %v4799
      %v4870 = vmul.f32 %v4800, %v4800
      %v4871 = vmul.f32 %v4801, %v4801
      %v4872 = vmul.f32 %v4802, %v4802
      %v4873 = vmul.f32 %v4803, %v4803
      %v4874 = vmul.f32 %v4804, %v4804
      %v4875 = vmul.f32 %v4805, %v4805
      %v4876 = vmul.f32 %v4806, %v4806
      %v4877 = vmul.f32 %v4807, %v4807
      %v4878 = vmul.f32 %v4808, %v4808
      %v4879 = vmul.f32 %v4809, %v4809
      %v4880 = vmul.f32 %v4810, %v4810
      %v4881 = vmul.f32 %v4811, %v4811
      %v4882 = vmul.f32 %v4812, %v4812
      %v4883 = vmul.f32 %v4813, %v4813
      %v4884 = vmul.f32 %v4814, %v4814
      %v4885 = vmul.f32 %v4815, %v4815
      %v4886 = vmul.f32 %v4816, %v4816
      %v4887 = vmul.f32 %v4817, %v4817
      %v4888 = vmul.f32 %v4818, %v4818
      %v4889 = vmul.f32 %v4819, %v4819
      %v4890 = vmul.f32 %v4820, %v4820
      %v4891 = vmul.f32 %v4821, %v4821
      %v4892 = vmul.f32 %v4822, %v4822
      %v4893 = vmul.f32 %v4823, %v4823
      %v4894 = vmul.f32 %v4824, %v4824
      %v4895 = vmul.f32 %v4825, %v4825
      %v4896 = vmul.f32 %v4826, %v4826
      %v4897 = vmul.f32 %v4827, %v4827
      %v4898 = vadd.f32 %v4866, %v4867
      %v4899 = vadd.f32 %v4898, %v4868
      %v4900 = vadd.f32 %v4899, %v4869
      %v4901 = vadd.f32 %v4900, %v4870
      %v4902 = vadd.f32 %v4901, %v4871
      %v4903 = vadd.f32 %v4902, %v4872
      %v4904 = vadd.f32 %v4903, %v4873
      %v4905 = vadd.f32 %v4904, %v4874
      %v4906 = vadd.f32 %v4905, %v4875
      %v4907 = vadd.f32 %v4906, %v4876
      %v4908 = vadd.f32 %v4907, %v4877
      %v4909 = vadd.f32 %v4908, %v4878
      %v4910 = vadd.f32 %v4909, %v4879
      %v4911 = vadd.f32 %v4910, %v4880
      %v4912 = vadd.f32 %v4911, %v4881
      %v4913 = vadd.f32 %v4912, %v4882
      %v4914 = vadd.f32 %v4913, %v4883
      %v4915 = vadd.f32 %v4914, %v4884
      %v4916 = vadd.f32 %v4915, %v4885
      %v4917 = vadd.f32 %v4916, %v4886
      %v4918 = vadd.f32 %v4917, %v4887
      %v4919 = vadd.f32 %v4918, %v4888
      %v4920 = vadd.f32 %v4919, %v4889
      %v4921 = vadd.f32 %v4920, %v4890
      %v4922 = vadd.f32 %v4921, %v4891
      %v4923 = vadd.f32 %v4922, %v4892
      %v4924 = vadd.f32 %v4923, %v4893
      %v4925 = vadd.f32 %v4924, %v4894
      %v4926 = vadd.f32 %v4925, %v4895
      %v4927 = vadd.f32 %v4926, %v4896
      %v4928 = vadd.f32 %v4927, %v4897
      %v4929 = vrot.slane %v4928, 4
      %v4930 = vadd.f32 %v4928, %v4929
      %v4931 = vrot.slane %v4930, 2
      %v4932 = vadd.f32 %v4930, %v4931
      %v4933 = vrot.slane %v4932, 1
      %v4934 = vadd.f32 %v4932, %v4933
      %4935 = vst [vmem:[%s268] sm:$0x1] %v4934
      %p4936 = scmp.lt.s32.totalorder %s18, 1
      %s4937 = scalar_select %p4936, %s18, 1
      %s4938 = smul.addr %s4937, 32
      %s4939 = smul.addr %s4938, 4
      %s4940 = scalar_lea.vmem %s4, %s4939
      %p4941 = scmp.lt.s32.totalorder %s18, 1
      %s4942 = scalar_select %p4941, %s18, 1
      %s4943 = scalar_lea.vmem %s5, %s4942
      %p4944 = scmp.lt.s32.totalorder %s18, 1
      %s4945 = scalar_select %p4944, %s18, 1
      %s4946 = scalar_lea.vmem %s6, %s4945
      // Predicated region
      $region37: #{preact_bottleneck_pallas.4} parent=35 // pred_check
        %p4947 = pneg %p125
      $region38: #{preact_bottleneck_pallas.4} parent=35 // pred_check_branch
        %4949 = sbr.rel (%p4947) target = $region40
      $region39: #{preact_bottleneck_pallas.4} parent=35 // pred_region
        _
      $region40: #{preact_bottleneck_pallas.4} parent=35 // pred_fallthru
        _
      // Predicated region
      $region41: #{preact_bottleneck_pallas.4} parent=35 // pred_check
        %p4950 = pneg %p151
      $region42: #{preact_bottleneck_pallas.4} parent=35 // pred_check_branch
        %4952 = sbr.rel (%p4950) target = $region44
      $region43: #{preact_bottleneck_pallas.4} parent=35 // pred_region
        _
      $region44: #{preact_bottleneck_pallas.4} parent=35 // pred_fallthru
        _
      // Predicated region
      $region45: #{preact_bottleneck_pallas.4} parent=35 // pred_check
        %p4953 = pneg %p177
      $region46: #{preact_bottleneck_pallas.4} parent=35 // pred_check_branch
        %4955 = sbr.rel (%p4953) target = $region48
      $region47: #{preact_bottleneck_pallas.4} parent=35 // pred_region
        _
      $region48: #{preact_bottleneck_pallas.4} parent=35 // pred_fallthru
        _
    $region36: #{preact_bottleneck_pallas.4} parent=5 // pred_fallthru
      _
    %p4956 = scmp.le.s32.totalorder 2, %s13
    // Predicated region
    $region49: #{preact_bottleneck_pallas.4} parent=5 // pred_check
      %p4957 = pneg %p4956
    $region50: #{preact_bottleneck_pallas.4} parent=5 // pred_check_branch
      %4959 = sbr.rel (%p4957) target = $region52
    $region51: #{preact_bottleneck_pallas.4} parent=5 // pred_region
      %s4960 = ssub.s32 %s13, 2
      // Predicated region
      $region53: #{preact_bottleneck_pallas.4} parent=51 // pred_check
        %p4961 = pneg %p131
      $region54: #{preact_bottleneck_pallas.4} parent=51 // pred_check_branch
        %4963 = sbr.rel (%p4961) target = $region56
      $region55: #{preact_bottleneck_pallas.4} parent=51 // pred_region
        %p4964 = scmp.lt.s32.totalorder %s19, 1
        %s4965 = scalar_select %p4964, %s19, 1
        %s4966 = smul.addr %s4965, 32
        %s4967 = smul.addr %s4966, 4
        %s4968 = scalar_lea.vmem %s4, %s4967
      $region56: #{preact_bottleneck_pallas.4} parent=51 // pred_fallthru
        _
      // Predicated region
      $region57: #{preact_bottleneck_pallas.4} parent=51 // pred_check
        %p4969 = pneg %p157
      $region58: #{preact_bottleneck_pallas.4} parent=51 // pred_check_branch
        %4971 = sbr.rel (%p4969) target = $region60
      $region59: #{preact_bottleneck_pallas.4} parent=51 // pred_region
        %p4972 = scmp.lt.s32.totalorder %s19, 1
        %s4973 = scalar_select %p4972, %s19, 1
        %s4974 = scalar_lea.vmem %s5, %s4973
      $region60: #{preact_bottleneck_pallas.4} parent=51 // pred_fallthru
        _
      // Predicated region
      $region61: #{preact_bottleneck_pallas.4} parent=51 // pred_check
        %p4975 = pneg %p183
      $region62: #{preact_bottleneck_pallas.4} parent=51 // pred_check_branch
        %4977 = sbr.rel (%p4975) target = $region64
      $region63: #{preact_bottleneck_pallas.4} parent=51 // pred_region
        %p4978 = scmp.lt.s32.totalorder %s19, 1
        %s4979 = scalar_select %p4978, %s19, 1
        %s4980 = scalar_lea.vmem %s6, %s4979
      $region64: #{preact_bottleneck_pallas.4} parent=51 // pred_fallthru
        _
    $region52: #{preact_bottleneck_pallas.4} parent=5 // pred_fallthru
      _
  $region6: #{preact_bottleneck_pallas.4} parent=0 // loop_footer
    %s17 = sadd.s32 1, %s13
  $region7: #{preact_bottleneck_pallas.4} parent=0 // loop_footer_branch
    %12 = sbr.rel target = $region3
  $region8: #{preact_bottleneck_pallas.4} parent=0 // loop_exit
    _

</llo_original>
